<compile_context>
chip_gen: v5e
topology: v5e:2x2
jax: 0.10.0
libtpu: 0.0.40
codegen_flags: <defaults>
</compile_context>

<pallas_src>
import jax
import jax.numpy as jnp
from jax.experimental import pallas as pl
from jax.experimental.pallas import tpu as pltpu

# Model constants (from the PyTorch module's __init__ / forward).
N = 2                      # batch
H = W = 32                 # spatial (forced by F.avg_pool2d(out, 32))
IN_CH = 3
PLANES = 2                 # self.in_planes = 2, BasicBlock expansion = 1
NUM_CLASSES = 10
NUM_BLOCKS = 2             # num_blocks = [2]
BN_EPS = 1e-5

CONV1_W_SIZE = PLANES * IN_CH * 9      # 54 weights for conv1
BLOCK_W_SIZE = PLANES * PLANES * 9     # 36 weights per block conv


# --------------------------------------------------------------------------- #
# In-kernel 3x3 conv (stride 1, pad 1) + folded BN affine + optional residual
# add + ReLU, reading a zero-padded (cin, H+2, W+2) VMEM buffer and returning
# cout (H, W) value slabs (no HBM traffic).
# --------------------------------------------------------------------------- #
def _conv3x3_bn(in_buf, cin, cout, w_ref, w_off, scale_ref, bias_ref, sb_off,
                relu, residual):
    accs = [jnp.zeros((H, W), jnp.float32) for _ in range(cout)]
    for ci in range(cin):
        slab = in_buf[ci]                                 # (H+2, W+2), loaded once
        for kh in range(3):
            for kw in range(3):
                win = slab[kh:kh + H, kw:kw + W]          # one shifted view, reused
                for co in range(cout):
                    # PyTorch (cout, cin, 3, 3) row-major flattening.
                    wt = w_ref[w_off + ((co * cin + ci) * 3 + kh) * 3 + kw]
                    accs[co] = accs[co] + wt * win
    outs = []
    for co in range(cout):
        a = accs[co] * scale_ref[sb_off + co] + bias_ref[sb_off + co]  # folded BN
        if residual is not None:
            a = a + residual[co]                          # identity shortcut
        if relu:
            a = jnp.maximum(a, 0.0)
        outs.append(a)
    return outs


# --------------------------------------------------------------------------- #
# Single fused kernel: one grid step == one image of the batch.
# --------------------------------------------------------------------------- #
def _resnet_kernel(x_ref, convw_ref, scale_ref, bias_ref, linw_ref, linb_ref,
                   out_ref, xbuf, abuf, bbuf):
    # Zero the padded scratch buffers -> pad=1 borders (in-kernel padding).
    xbuf[...] = jnp.zeros_like(xbuf)
    abuf[...] = jnp.zeros_like(abuf)
    bbuf[...] = jnp.zeros_like(bbuf)

    # Stage this image's interior into the padded input buffer.
    for ci in range(IN_CH):
        xbuf[ci, 1:H + 1, 1:W + 1] = x_ref[0, ci]

    # out = relu(bn1(conv1(x)))
    cur = _conv3x3_bn(xbuf, IN_CH, PLANES, convw_ref, 0,
                      scale_ref, bias_ref, 0, relu=True, residual=None)
    w_off, sb_off = CONV1_W_SIZE, PLANES

    # out = layer1(out): NUM_BLOCKS BasicBlocks, stride 1, identity shortcut.
    for _ in range(NUM_BLOCKS):
        for co in range(PLANES):                          # padded conv input
            abuf[co, 1:H + 1, 1:W + 1] = cur[co]
        mid = _conv3x3_bn(abuf, PLANES, PLANES, convw_ref, w_off,
                          scale_ref, bias_ref, sb_off, relu=True, residual=None)
        w_off += BLOCK_W_SIZE
        sb_off += PLANES
        for co in range(PLANES):
            bbuf[co, 1:H + 1, 1:W + 1] = mid[co]
        # bn2(conv2(mid)) + identity residual, then relu (PyTorch BasicBlock).
        cur = _conv3x3_bn(bbuf, PLANES, PLANES, convw_ref, w_off,
                          scale_ref, bias_ref, sb_off, relu=True, residual=cur)
        w_off += BLOCK_W_SIZE
        sb_off += PLANES

    # avg_pool2d(., 32) -> view(N, -1) -> linear.  The (1, NUM_CLASSES) row
    # below is the only HBM write of the whole forward pass.
    inv = 1.0 / float(H * W)
    res = linb_ref[...]                                    # (1, NUM_CLASSES)
    for c in range(PLANES):
        colsum = jnp.sum(cur[c], axis=0, keepdims=True)    # (1, W)  sublane reduce
        feat = jnp.sum(colsum, axis=1, keepdims=True) * inv  # (1, 1) lane reduce
        res = res + feat * linw_ref[c:c + 1, :]
    out_ref[0] = res


@jax.jit
def resnet_forward(x, params):
    out3 = pl.pallas_call(
        _resnet_kernel,
        out_shape=jax.ShapeDtypeStruct((N, 1, NUM_CLASSES), jnp.float32),
        grid_spec=pltpu.PrefetchScalarGridSpec(
            num_scalar_prefetch=0,
            grid=(N,),
            in_specs=[
                pl.BlockSpec((1, IN_CH, H, W), lambda n: (n, 0, 0, 0)),
                pl.BlockSpec(memory_space=pltpu.MemorySpace.SMEM),   # conv weights
                pl.BlockSpec(memory_space=pltpu.MemorySpace.SMEM),   # BN scales
                pl.BlockSpec(memory_space=pltpu.MemorySpace.SMEM),   # BN biases
                pl.BlockSpec(memory_space=pltpu.MemorySpace.VMEM),   # linear W^T
                pl.BlockSpec(memory_space=pltpu.MemorySpace.VMEM),   # linear bias
            ],
            out_specs=pl.BlockSpec((1, 1, NUM_CLASSES), lambda n: (n, 0, 0)),
            scratch_shapes=[
                pltpu.VMEM((IN_CH, H + 2, W + 2), jnp.float32),   # padded input
                pltpu.VMEM((PLANES, H + 2, W + 2), jnp.float32),  # padded act A
                pltpu.VMEM((PLANES, H + 2, W + 2), jnp.float32),  # padded act B
            ],
        ),
        compiler_params=pltpu.CompilerParams(
            dimension_semantics=("parallel",)),
    )(x, params["conv_w"], params["bn_scale"], params["bn_bias"],
      params["lin_w"], params["lin_b"])
    return out3.reshape(N, NUM_CLASSES)


# --------------------------------------------------------------------------- #
# Deterministic parameter construction (shapes from the module's __init__),
# packed into the flat layout the kernel indexes.
# --------------------------------------------------------------------------- #
def _fold_bn(gamma, beta, mean, var):
    scale = gamma / jnp.sqrt(var + BN_EPS)
    bias = beta - mean * scale
    return scale.astype(jnp.float32), bias.astype(jnp.float32)


def init_params(key):
    keys = iter(jax.random.split(key, 64))

    def conv_w(cout, cin):
        return 0.2 * jax.random.normal(next(keys), (cout, cin, 3, 3), jnp.float32)

    def bn(c):
        gamma = 1.0 + 0.1 * jax.random.normal(next(keys), (c,), jnp.float32)
        beta = 0.1 * jax.random.normal(next(keys), (c,), jnp.float32)
        mean = 0.1 * jax.random.normal(next(keys), (c,), jnp.float32)
        var = 1.0 + 0.1 * jax.random.uniform(next(keys), (c,), jnp.float32)
        return _fold_bn(gamma, beta, mean, var)

    conv_ws = [conv_w(PLANES, IN_CH)]                  # conv1: Conv2d(3, 2, 3, pad=1)
    s, b = bn(PLANES)                                  # bn1
    bn_s, bn_b = [s], [b]
    for _ in range(NUM_BLOCKS):                        # BasicBlock(2, 2, stride=1)
        w1 = conv_w(PLANES, PLANES)
        s1, b1 = bn(PLANES)
        w2 = conv_w(PLANES, PLANES)
        s2, b2 = bn(PLANES)
        conv_ws += [w1, w2]
        bn_s += [s1, s2]
        bn_b += [b1, b2]
    lin_w = 0.2 * jax.random.normal(next(keys), (NUM_CLASSES, PLANES), jnp.float32)
    lin_b = 0.1 * jax.random.normal(next(keys), (NUM_CLASSES,), jnp.float32)

    return {
        # Order: conv1, blk0.conv1, blk0.conv2, blk1.conv1, blk1.conv2.
        "conv_w": jnp.concatenate([w.reshape(-1) for w in conv_ws]),   # (198,)
        # Order: bn1, blk0.bn1, blk0.bn2, blk1.bn1, blk1.bn2.
        "bn_scale": jnp.concatenate(bn_s),                             # (10,)
        "bn_bias": jnp.concatenate(bn_b),                              # (10,)
        "lin_w": lin_w.T.astype(jnp.float32),                          # (2, 10)
        "lin_b": lin_b.reshape(1, NUM_CLASSES).astype(jnp.float32),    # (1, 10)
    }


if __name__ == "__main__":
    key = jax.random.PRNGKey(0)
    pkey, xkey = jax.random.split(key)
    params = init_params(pkey)
    x = jax.random.normal(xkey, (N, IN_CH, H, W), jnp.float32)
    out = resnet_forward(x, params)
    jax.block_until_ready(out)
    assert out.shape == (N, NUM_CLASSES) and out.dtype == jnp.float32
    print("KERNEL_OK")
</pallas_src>

<mosaic_0001>
module attributes {stable_mosaic.version = 11 : i64} {
  func.func @_resnet_kernel(%arg0: i32, %arg1: memref<1x3x32x32xf32, #tpu.memory_space<vmem>>, %arg2: memref<198xf32, #tpu.memory_space<smem>>, %arg3: memref<10xf32, #tpu.memory_space<smem>>, %arg4: memref<10xf32, #tpu.memory_space<smem>>, %arg5: memref<2x10xf32, #tpu.memory_space<vmem>>, %arg6: memref<1x10xf32, #tpu.memory_space<vmem>>, %arg7: memref<1x1x10xf32, #tpu.memory_space<vmem>>, %arg8: memref<3x34x34xf32, #tpu.memory_space<vmem>>, %arg9: memref<2x34x34xf32, #tpu.memory_space<vmem>>, %arg10: memref<2x34x34xf32, #tpu.memory_space<vmem>>) attributes {dimension_semantics = [#tpu.dimension_semantics<parallel>], iteration_bounds = array<i64: 2>, scalar_prefetch = 0 : i64, scratch_operands = 3 : i64, tpu.core_type = #tpu.core_type<tc>, window_params = [{transform_indices = @transform_0, window_bounds = array<i64: 1, 3, 32, 32>}, {transform_indices = @transform_1, window_bounds = array<i64: 198>}, {transform_indices = @transform_2, window_bounds = array<i64: 10>}, {transform_indices = @transform_3, window_bounds = array<i64: 10>}, {pipeline_mode = #tpu.pipeline_mode<synchronous>, transform_indices = @transform_4, window_bounds = array<i64: 2, 10>}, {pipeline_mode = #tpu.pipeline_mode<synchronous>, transform_indices = @transform_5, window_bounds = array<i64: 1, 10>}, {transform_indices = @transform_6, window_bounds = array<i64: 1, 1, 10>}]} {
    %cst = arith.constant 0.000000e+00 : f32
    %0 = vector.broadcast %cst : f32 to vector<3x34x34xf32>
    %c0 = arith.constant 0 : index
    %c0_0 = arith.constant 0 : index
    %c0_1 = arith.constant 0 : index
    %1 = vector.load %arg8[%c0, %c0_0, %c0_1] : memref<3x34x34xf32, #tpu.memory_space<vmem>>, vector<3x34x34xf32>
    tpu.vector_store %arg8[%c0, %c0_0, %c0_1], %0 {strides = array<i32>} : memref<3x34x34xf32, #tpu.memory_space<vmem>>, vector<3x34x34xf32>,
    %cst_2 = arith.constant 0.000000e+00 : f32
    %2 = vector.broadcast %cst_2 : f32 to vector<2x34x34xf32>
    %c0_3 = arith.constant 0 : index
    %c0_4 = arith.constant 0 : index
    %c0_5 = arith.constant 0 : index
    %3 = vector.load %arg9[%c0_3, %c0_4, %c0_5] : memref<2x34x34xf32, #tpu.memory_space<vmem>>, vector<2x34x34xf32>
    tpu.vector_store %arg9[%c0_3, %c0_4, %c0_5], %2 {strides = array<i32>} : memref<2x34x34xf32, #tpu.memory_space<vmem>>, vector<2x34x34xf32>,
    %cst_6 = arith.constant 0.000000e+00 : f32
    %4 = vector.broadcast %cst_6 : f32 to vector<2x34x34xf32>
    %c0_7 = arith.constant 0 : index
    %c0_8 = arith.constant 0 : index
    %c0_9 = arith.constant 0 : index
    %5 = vector.load %arg10[%c0_7, %c0_8, %c0_9] : memref<2x34x34xf32, #tpu.memory_space<vmem>>, vector<2x34x34xf32>
    tpu.vector_store %arg10[%c0_7, %c0_8, %c0_9], %4 {strides = array<i32>} : memref<2x34x34xf32, #tpu.memory_space<vmem>>, vector<2x34x34xf32>,
    %c0_10 = arith.constant 0 : index
    %c0_11 = arith.constant 0 : index
    %c0_12 = arith.constant 0 : index
    %c0_13 = arith.constant 0 : index
    %6 = vector.load %arg1[%c0_10, %c0_11, %c0_12, %c0_13] : memref<1x3x32x32xf32, #tpu.memory_space<vmem>>, vector<1x1x32x32xf32>
    %7 = vector.shape_cast %6 : vector<1x1x32x32xf32> to vector<32x32xf32>
    %c0_14 = arith.constant 0 : index
    %c1 = arith.constant 1 : index
    %c1_15 = arith.constant 1 : index
    %8 = vector.load %arg8[%c0_14, %c1, %c1_15] : memref<3x34x34xf32, #tpu.memory_space<vmem>>, vector<1x32x32xf32>
    %9 = vector.shape_cast %8 : vector<1x32x32xf32> to vector<32x32xf32>
    %10 = vector.shape_cast %7 : vector<32x32xf32> to vector<1x32x32xf32>
    tpu.vector_store %arg8[%c0_14, %c1, %c1_15], %10 {strides = array<i32>} : memref<3x34x34xf32, #tpu.memory_space<vmem>>, vector<1x32x32xf32>,
    %c0_16 = arith.constant 0 : index
    %c1_17 = arith.constant 1 : index
    %c0_18 = arith.constant 0 : index
    %c0_19 = arith.constant 0 : index
    %11 = vector.load %arg1[%c0_16, %c1_17, %c0_18, %c0_19] : memref<1x3x32x32xf32, #tpu.memory_space<vmem>>, vector<1x1x32x32xf32>
    %12 = vector.shape_cast %11 : vector<1x1x32x32xf32> to vector<32x32xf32>
    %c1_20 = arith.constant 1 : index
    %c1_21 = arith.constant 1 : index
    %c1_22 = arith.constant 1 : index
    %13 = vector.load %arg8[%c1_20, %c1_21, %c1_22] : memref<3x34x34xf32, #tpu.memory_space<vmem>>, vector<1x32x32xf32>
    %14 = vector.shape_cast %13 : vector<1x32x32xf32> to vector<32x32xf32>
    %15 = vector.shape_cast %12 : vector<32x32xf32> to vector<1x32x32xf32>
    tpu.vector_store %arg8[%c1_20, %c1_21, %c1_22], %15 {strides = array<i32>} : memref<3x34x34xf32, #tpu.memory_space<vmem>>, vector<1x32x32xf32>,
    %c0_23 = arith.constant 0 : index
    %c2 = arith.constant 2 : index
    %c0_24 = arith.constant 0 : index
    %c0_25 = arith.constant 0 : index
    %16 = vector.load %arg1[%c0_23, %c2, %c0_24, %c0_25] : memref<1x3x32x32xf32, #tpu.memory_space<vmem>>, vector<1x1x32x32xf32>
    %17 = vector.shape_cast %16 : vector<1x1x32x32xf32> to vector<32x32xf32>
    %c2_26 = arith.constant 2 : index
    %c1_27 = arith.constant 1 : index
    %c1_28 = arith.constant 1 : index
    %18 = vector.load %arg8[%c2_26, %c1_27, %c1_28] : memref<3x34x34xf32, #tpu.memory_space<vmem>>, vector<1x32x32xf32>
    %19 = vector.shape_cast %18 : vector<1x32x32xf32> to vector<32x32xf32>
    %20 = vector.shape_cast %17 : vector<32x32xf32> to vector<1x32x32xf32>
    tpu.vector_store %arg8[%c2_26, %c1_27, %c1_28], %20 {strides = array<i32>} : memref<3x34x34xf32, #tpu.memory_space<vmem>>, vector<1x32x32xf32>,
    %cst_29 = arith.constant 0.000000e+00 : f32
    %21 = vector.broadcast %cst_29 : f32 to vector<32x32xf32>
    %cst_30 = arith.constant 0.000000e+00 : f32
    %22 = vector.broadcast %cst_30 : f32 to vector<32x32xf32>
    %c0_31 = arith.constant 0 : index
    %c0_32 = arith.constant 0 : index
    %c0_33 = arith.constant 0 : index
    %23 = vector.load %arg8[%c0_31, %c0_32, %c0_33] : memref<3x34x34xf32, #tpu.memory_space<vmem>>, vector<1x34x34xf32>
    %24 = vector.shape_cast %23 : vector<1x34x34xf32> to vector<34x34xf32>
    %25 = vector.extract_strided_slice %24 {offsets = [0, 0], sizes = [32, 32], strides = [1, 1]} : vector<34x34xf32> to vector<32x32xf32>
    %c0_34 = arith.constant 0 : index
    %26 = memref.load %arg2[%c0_34] : memref<198xf32, #tpu.memory_space<smem>>
    %27 = vector.broadcast %26 : f32 to vector<32x32xf32>
    %28 = arith.mulf %27, %25 : vector<32x32xf32>
    %29 = arith.addf %21, %28 : vector<32x32xf32>
    %c27 = arith.constant 27 : index
    %30 = memref.load %arg2[%c27] : memref<198xf32, #tpu.memory_space<smem>>
    %31 = vector.broadcast %30 : f32 to vector<32x32xf32>
    %32 = arith.mulf %31, %25 : vector<32x32xf32>
    %33 = arith.addf %22, %32 : vector<32x32xf32>
    %34 = vector.extract_strided_slice %24 {offsets = [0, 1], sizes = [32, 32], strides = [1, 1]} : vector<34x34xf32> to vector<32x32xf32>
    %c1_35 = arith.constant 1 : index
    %35 = memref.load %arg2[%c1_35] : memref<198xf32, #tpu.memory_space<smem>>
    %36 = vector.broadcast %35 : f32 to vector<32x32xf32>
    %37 = arith.mulf %36, %34 : vector<32x32xf32>
    %38 = arith.addf %29, %37 : vector<32x32xf32>
    %c28 = arith.constant 28 : index
    %39 = memref.load %arg2[%c28] : memref<198xf32, #tpu.memory_space<smem>>
    %40 = vector.broadcast %39 : f32 to vector<32x32xf32>
    %41 = arith.mulf %40, %34 : vector<32x32xf32>
    %42 = arith.addf %33, %41 : vector<32x32xf32>
    %43 = vector.extract_strided_slice %24 {offsets = [0, 2], sizes = [32, 32], strides = [1, 1]} : vector<34x34xf32> to vector<32x32xf32>
    %c2_36 = arith.constant 2 : index
    %44 = memref.load %arg2[%c2_36] : memref<198xf32, #tpu.memory_space<smem>>
    %45 = vector.broadcast %44 : f32 to vector<32x32xf32>
    %46 = arith.mulf %45, %43 : vector<32x32xf32>
    %47 = arith.addf %38, %46 : vector<32x32xf32>
    %c29 = arith.constant 29 : index
    %48 = memref.load %arg2[%c29] : memref<198xf32, #tpu.memory_space<smem>>
    %49 = vector.broadcast %48 : f32 to vector<32x32xf32>
    %50 = arith.mulf %49, %43 : vector<32x32xf32>
    %51 = arith.addf %42, %50 : vector<32x32xf32>
    %52 = vector.extract_strided_slice %24 {offsets = [1, 0], sizes = [32, 32], strides = [1, 1]} : vector<34x34xf32> to vector<32x32xf32>
    %c3 = arith.constant 3 : index
    %53 = memref.load %arg2[%c3] : memref<198xf32, #tpu.memory_space<smem>>
    %54 = vector.broadcast %53 : f32 to vector<32x32xf32>
    %55 = arith.mulf %54, %52 : vector<32x32xf32>
    %56 = arith.addf %47, %55 : vector<32x32xf32>
    %c30 = arith.constant 30 : index
    %57 = memref.load %arg2[%c30] : memref<198xf32, #tpu.memory_space<smem>>
    %58 = vector.broadcast %57 : f32 to vector<32x32xf32>
    %59 = arith.mulf %58, %52 : vector<32x32xf32>
    %60 = arith.addf %51, %59 : vector<32x32xf32>
    %61 = vector.extract_strided_slice %24 {offsets = [1, 1], sizes = [32, 32], strides = [1, 1]} : vector<34x34xf32> to vector<32x32xf32>
    %c4 = arith.constant 4 : index
    %62 = memref.load %arg2[%c4] : memref<198xf32, #tpu.memory_space<smem>>
    %63 = vector.broadcast %62 : f32 to vector<32x32xf32>
    %64 = arith.mulf %63, %61 : vector<32x32xf32>
    %65 = arith.addf %56, %64 : vector<32x32xf32>
    %c31 = arith.constant 31 : index
    %66 = memref.load %arg2[%c31] : memref<198xf32, #tpu.memory_space<smem>>
    %67 = vector.broadcast %66 : f32 to vector<32x32xf32>
    %68 = arith.mulf %67, %61 : vector<32x32xf32>
    %69 = arith.addf %60, %68 : vector<32x32xf32>
    %70 = vector.extract_strided_slice %24 {offsets = [1, 2], sizes = [32, 32], strides = [1, 1]} : vector<34x34xf32> to vector<32x32xf32>
    %c5 = arith.constant 5 : index
    %71 = memref.load %arg2[%c5] : memref<198xf32, #tpu.memory_space<smem>>
    %72 = vector.broadcast %71 : f32 to vector<32x32xf32>
    %73 = arith.mulf %72, %70 : vector<32x32xf32>
    %74 = arith.addf %65, %73 : vector<32x32xf32>
    %c32 = arith.constant 32 : index
    %75 = memref.load %arg2[%c32] : memref<198xf32, #tpu.memory_space<smem>>
    %76 = vector.broadcast %75 : f32 to vector<32x32xf32>
    %77 = arith.mulf %76, %70 : vector<32x32xf32>
    %78 = arith.addf %69, %77 : vector<32x32xf32>
    %79 = vector.extract_strided_slice %24 {offsets = [2, 0], sizes = [32, 32], strides = [1, 1]} : vector<34x34xf32> to vector<32x32xf32>
    %c6 = arith.constant 6 : index
    %80 = memref.load %arg2[%c6] : memref<198xf32, #tpu.memory_space<smem>>
    %81 = vector.broadcast %80 : f32 to vector<32x32xf32>
    %82 = arith.mulf %81, %79 : vector<32x32xf32>
    %83 = arith.addf %74, %82 : vector<32x32xf32>
    %c33 = arith.constant 33 : index
    %84 = memref.load %arg2[%c33] : memref<198xf32, #tpu.memory_space<smem>>
    %85 = vector.broadcast %84 : f32 to vector<32x32xf32>
    %86 = arith.mulf %85, %79 : vector<32x32xf32>
    %87 = arith.addf %78, %86 : vector<32x32xf32>
    %88 = vector.extract_strided_slice %24 {offsets = [2, 1], sizes = [32, 32], strides = [1, 1]} : vector<34x34xf32> to vector<32x32xf32>
    %c7 = arith.constant 7 : index
    %89 = memref.load %arg2[%c7] : memref<198xf32, #tpu.memory_space<smem>>
    %90 = vector.broadcast %89 : f32 to vector<32x32xf32>
    %91 = arith.mulf %90, %88 : vector<32x32xf32>
    %92 = arith.addf %83, %91 : vector<32x32xf32>
    %c34 = arith.constant 34 : index
    %93 = memref.load %arg2[%c34] : memref<198xf32, #tpu.memory_space<smem>>
    %94 = vector.broadcast %93 : f32 to vector<32x32xf32>
    %95 = arith.mulf %94, %88 : vector<32x32xf32>
    %96 = arith.addf %87, %95 : vector<32x32xf32>
    %97 = vector.extract_strided_slice %24 {offsets = [2, 2], sizes = [32, 32], strides = [1, 1]} : vector<34x34xf32> to vector<32x32xf32>
    %c8 = arith.constant 8 : index
    %98 = memref.load %arg2[%c8] : memref<198xf32, #tpu.memory_space<smem>>
    %99 = vector.broadcast %98 : f32 to vector<32x32xf32>
    %100 = arith.mulf %99, %97 : vector<32x32xf32>
    %101 = arith.addf %92, %100 : vector<32x32xf32>
    %c35 = arith.constant 35 : index
    %102 = memref.load %arg2[%c35] : memref<198xf32, #tpu.memory_space<smem>>
    %103 = vector.broadcast %102 : f32 to vector<32x32xf32>
    %104 = arith.mulf %103, %97 : vector<32x32xf32>
    %105 = arith.addf %96, %104 : vector<32x32xf32>
    %c1_37 = arith.constant 1 : index
    %c0_38 = arith.constant 0 : index
    %c0_39 = arith.constant 0 : index
    %106 = vector.load %arg8[%c1_37, %c0_38, %c0_39] : memref<3x34x34xf32, #tpu.memory_space<vmem>>, vector<1x34x34xf32>
    %107 = vector.shape_cast %106 : vector<1x34x34xf32> to vector<34x34xf32>
    %108 = vector.extract_strided_slice %107 {offsets = [0, 0], sizes = [32, 32], strides = [1, 1]} : vector<34x34xf32> to vector<32x32xf32>
    %c9 = arith.constant 9 : index
    %109 = memref.load %arg2[%c9] : memref<198xf32, #tpu.memory_space<smem>>
    %110 = vector.broadcast %109 : f32 to vector<32x32xf32>
    %111 = arith.mulf %110, %108 : vector<32x32xf32>
    %112 = arith.addf %101, %111 : vector<32x32xf32>
    %c36 = arith.constant 36 : index
    %113 = memref.load %arg2[%c36] : memref<198xf32, #tpu.memory_space<smem>>
    %114 = vector.broadcast %113 : f32 to vector<32x32xf32>
    %115 = arith.mulf %114, %108 : vector<32x32xf32>
    %116 = arith.addf %105, %115 : vector<32x32xf32>
    %117 = vector.extract_strided_slice %107 {offsets = [0, 1], sizes = [32, 32], strides = [1, 1]} : vector<34x34xf32> to vector<32x32xf32>
    %c10 = arith.constant 10 : index
    %118 = memref.load %arg2[%c10] : memref<198xf32, #tpu.memory_space<smem>>
    %119 = vector.broadcast %118 : f32 to vector<32x32xf32>
    %120 = arith.mulf %119, %117 : vector<32x32xf32>
    %121 = arith.addf %112, %120 : vector<32x32xf32>
    %c37 = arith.constant 37 : index
    %122 = memref.load %arg2[%c37] : memref<198xf32, #tpu.memory_space<smem>>
    %123 = vector.broadcast %122 : f32 to vector<32x32xf32>
    %124 = arith.mulf %123, %117 : vector<32x32xf32>
    %125 = arith.addf %116, %124 : vector<32x32xf32>
    %126 = vector.extract_strided_slice %107 {offsets = [0, 2], sizes = [32, 32], strides = [1, 1]} : vector<34x34xf32> to vector<32x32xf32>
    %c11 = arith.constant 11 : index
    %127 = memref.load %arg2[%c11] : memref<198xf32, #tpu.memory_space<smem>>
    %128 = vector.broadcast %127 : f32 to vector<32x32xf32>
    %129 = arith.mulf %128, %126 : vector<32x32xf32>
    %130 = arith.addf %121, %129 : vector<32x32xf32>
    %c38 = arith.constant 38 : index
    %131 = memref.load %arg2[%c38] : memref<198xf32, #tpu.memory_space<smem>>
    %132 = vector.broadcast %131 : f32 to vector<32x32xf32>
    %133 = arith.mulf %132, %126 : vector<32x32xf32>
    %134 = arith.addf %125, %133 : vector<32x32xf32>
    %135 = vector.extract_strided_slice %107 {offsets = [1, 0], sizes = [32, 32], strides = [1, 1]} : vector<34x34xf32> to vector<32x32xf32>
    %c12 = arith.constant 12 : index
    %136 = memref.load %arg2[%c12] : memref<198xf32, #tpu.memory_space<smem>>
    %137 = vector.broadcast %136 : f32 to vector<32x32xf32>
    %138 = arith.mulf %137, %135 : vector<32x32xf32>
    %139 = arith.addf %130, %138 : vector<32x32xf32>
    %c39 = arith.constant 39 : index
    %140 = memref.load %arg2[%c39] : memref<198xf32, #tpu.memory_space<smem>>
    %141 = vector.broadcast %140 : f32 to vector<32x32xf32>
    %142 = arith.mulf %141, %135 : vector<32x32xf32>
    %143 = arith.addf %134, %142 : vector<32x32xf32>
    %144 = vector.extract_strided_slice %107 {offsets = [1, 1], sizes = [32, 32], strides = [1, 1]} : vector<34x34xf32> to vector<32x32xf32>
    %c13 = arith.constant 13 : index
    %145 = memref.load %arg2[%c13] : memref<198xf32, #tpu.memory_space<smem>>
    %146 = vector.broadcast %145 : f32 to vector<32x32xf32>
    %147 = arith.mulf %146, %144 : vector<32x32xf32>
    %148 = arith.addf %139, %147 : vector<32x32xf32>
    %c40 = arith.constant 40 : index
    %149 = memref.load %arg2[%c40] : memref<198xf32, #tpu.memory_space<smem>>
    %150 = vector.broadcast %149 : f32 to vector<32x32xf32>
    %151 = arith.mulf %150, %144 : vector<32x32xf32>
    %152 = arith.addf %143, %151 : vector<32x32xf32>
    %153 = vector.extract_strided_slice %107 {offsets = [1, 2], sizes = [32, 32], strides = [1, 1]} : vector<34x34xf32> to vector<32x32xf32>
    %c14 = arith.constant 14 : index
    %154 = memref.load %arg2[%c14] : memref<198xf32, #tpu.memory_space<smem>>
    %155 = vector.broadcast %154 : f32 to vector<32x32xf32>
    %156 = arith.mulf %155, %153 : vector<32x32xf32>
    %157 = arith.addf %148, %156 : vector<32x32xf32>
    %c41 = arith.constant 41 : index
    %158 = memref.load %arg2[%c41] : memref<198xf32, #tpu.memory_space<smem>>
    %159 = vector.broadcast %158 : f32 to vector<32x32xf32>
    %160 = arith.mulf %159, %153 : vector<32x32xf32>
    %161 = arith.addf %152, %160 : vector<32x32xf32>
    %162 = vector.extract_strided_slice %107 {offsets = [2, 0], sizes = [32, 32], strides = [1, 1]} : vector<34x34xf32> to vector<32x32xf32>
    %c15 = arith.constant 15 : index
    %163 = memref.load %arg2[%c15] : memref<198xf32, #tpu.memory_space<smem>>
    %164 = vector.broadcast %163 : f32 to vector<32x32xf32>
    %165 = arith.mulf %164, %162 : vector<32x32xf32>
    %166 = arith.addf %157, %165 : vector<32x32xf32>
    %c42 = arith.constant 42 : index
    %167 = memref.load %arg2[%c42] : memref<198xf32, #tpu.memory_space<smem>>
    %168 = vector.broadcast %167 : f32 to vector<32x32xf32>
    %169 = arith.mulf %168, %162 : vector<32x32xf32>
    %170 = arith.addf %161, %169 : vector<32x32xf32>
    %171 = vector.extract_strided_slice %107 {offsets = [2, 1], sizes = [32, 32], strides = [1, 1]} : vector<34x34xf32> to vector<32x32xf32>
    %c16 = arith.constant 16 : index
    %172 = memref.load %arg2[%c16] : memref<198xf32, #tpu.memory_space<smem>>
    %173 = vector.broadcast %172 : f32 to vector<32x32xf32>
    %174 = arith.mulf %173, %171 : vector<32x32xf32>
    %175 = arith.addf %166, %174 : vector<32x32xf32>
    %c43 = arith.constant 43 : index
    %176 = memref.load %arg2[%c43] : memref<198xf32, #tpu.memory_space<smem>>
    %177 = vector.broadcast %176 : f32 to vector<32x32xf32>
    %178 = arith.mulf %177, %171 : vector<32x32xf32>
    %179 = arith.addf %170, %178 : vector<32x32xf32>
    %180 = vector.extract_strided_slice %107 {offsets = [2, 2], sizes = [32, 32], strides = [1, 1]} : vector<34x34xf32> to vector<32x32xf32>
    %c17 = arith.constant 17 : index
    %181 = memref.load %arg2[%c17] : memref<198xf32, #tpu.memory_space<smem>>
    %182 = vector.broadcast %181 : f32 to vector<32x32xf32>
    %183 = arith.mulf %182, %180 : vector<32x32xf32>
    %184 = arith.addf %175, %183 : vector<32x32xf32>
    %c44 = arith.constant 44 : index
    %185 = memref.load %arg2[%c44] : memref<198xf32, #tpu.memory_space<smem>>
    %186 = vector.broadcast %185 : f32 to vector<32x32xf32>
    %187 = arith.mulf %186, %180 : vector<32x32xf32>
    %188 = arith.addf %179, %187 : vector<32x32xf32>
    %c2_40 = arith.constant 2 : index
    %c0_41 = arith.constant 0 : index
    %c0_42 = arith.constant 0 : index
    %189 = vector.load %arg8[%c2_40, %c0_41, %c0_42] : memref<3x34x34xf32, #tpu.memory_space<vmem>>, vector<1x34x34xf32>
    %190 = vector.shape_cast %189 : vector<1x34x34xf32> to vector<34x34xf32>
    %191 = vector.extract_strided_slice %190 {offsets = [0, 0], sizes = [32, 32], strides = [1, 1]} : vector<34x34xf32> to vector<32x32xf32>
    %c18 = arith.constant 18 : index
    %192 = memref.load %arg2[%c18] : memref<198xf32, #tpu.memory_space<smem>>
    %193 = vector.broadcast %192 : f32 to vector<32x32xf32>
    %194 = arith.mulf %193, %191 : vector<32x32xf32>
    %195 = arith.addf %184, %194 : vector<32x32xf32>
    %c45 = arith.constant 45 : index
    %196 = memref.load %arg2[%c45] : memref<198xf32, #tpu.memory_space<smem>>
    %197 = vector.broadcast %196 : f32 to vector<32x32xf32>
    %198 = arith.mulf %197, %191 : vector<32x32xf32>
    %199 = arith.addf %188, %198 : vector<32x32xf32>
    %200 = vector.extract_strided_slice %190 {offsets = [0, 1], sizes = [32, 32], strides = [1, 1]} : vector<34x34xf32> to vector<32x32xf32>
    %c19 = arith.constant 19 : index
    %201 = memref.load %arg2[%c19] : memref<198xf32, #tpu.memory_space<smem>>
    %202 = vector.broadcast %201 : f32 to vector<32x32xf32>
    %203 = arith.mulf %202, %200 : vector<32x32xf32>
    %204 = arith.addf %195, %203 : vector<32x32xf32>
    %c46 = arith.constant 46 : index
    %205 = memref.load %arg2[%c46] : memref<198xf32, #tpu.memory_space<smem>>
    %206 = vector.broadcast %205 : f32 to vector<32x32xf32>
    %207 = arith.mulf %206, %200 : vector<32x32xf32>
    %208 = arith.addf %199, %207 : vector<32x32xf32>
    %209 = vector.extract_strided_slice %190 {offsets = [0, 2], sizes = [32, 32], strides = [1, 1]} : vector<34x34xf32> to vector<32x32xf32>
    %c20 = arith.constant 20 : index
    %210 = memref.load %arg2[%c20] : memref<198xf32, #tpu.memory_space<smem>>
    %211 = vector.broadcast %210 : f32 to vector<32x32xf32>
    %212 = arith.mulf %211, %209 : vector<32x32xf32>
    %213 = arith.addf %204, %212 : vector<32x32xf32>
    %c47 = arith.constant 47 : index
    %214 = memref.load %arg2[%c47] : memref<198xf32, #tpu.memory_space<smem>>
    %215 = vector.broadcast %214 : f32 to vector<32x32xf32>
    %216 = arith.mulf %215, %209 : vector<32x32xf32>
    %217 = arith.addf %208, %216 : vector<32x32xf32>
    %218 = vector.extract_strided_slice %190 {offsets = [1, 0], sizes = [32, 32], strides = [1, 1]} : vector<34x34xf32> to vector<32x32xf32>
    %c21 = arith.constant 21 : index
    %219 = memref.load %arg2[%c21] : memref<198xf32, #tpu.memory_space<smem>>
    %220 = vector.broadcast %219 : f32 to vector<32x32xf32>
    %221 = arith.mulf %220, %218 : vector<32x32xf32>
    %222 = arith.addf %213, %221 : vector<32x32xf32>
    %c48 = arith.constant 48 : index
    %223 = memref.load %arg2[%c48] : memref<198xf32, #tpu.memory_space<smem>>
    %224 = vector.broadcast %223 : f32 to vector<32x32xf32>
    %225 = arith.mulf %224, %218 : vector<32x32xf32>
    %226 = arith.addf %217, %225 : vector<32x32xf32>
    %227 = vector.extract_strided_slice %190 {offsets = [1, 1], sizes = [32, 32], strides = [1, 1]} : vector<34x34xf32> to vector<32x32xf32>
    %c22 = arith.constant 22 : index
    %228 = memref.load %arg2[%c22] : memref<198xf32, #tpu.memory_space<smem>>
    %229 = vector.broadcast %228 : f32 to vector<32x32xf32>
    %230 = arith.mulf %229, %227 : vector<32x32xf32>
    %231 = arith.addf %222, %230 : vector<32x32xf32>
    %c49 = arith.constant 49 : index
    %232 = memref.load %arg2[%c49] : memref<198xf32, #tpu.memory_space<smem>>
    %233 = vector.broadcast %232 : f32 to vector<32x32xf32>
    %234 = arith.mulf %233, %227 : vector<32x32xf32>
    %235 = arith.addf %226, %234 : vector<32x32xf32>
    %236 = vector.extract_strided_slice %190 {offsets = [1, 2], sizes = [32, 32], strides = [1, 1]} : vector<34x34xf32> to vector<32x32xf32>
    %c23 = arith.constant 23 : index
    %237 = memref.load %arg2[%c23] : memref<198xf32, #tpu.memory_space<smem>>
    %238 = vector.broadcast %237 : f32 to vector<32x32xf32>
    %239 = arith.mulf %238, %236 : vector<32x32xf32>
    %240 = arith.addf %231, %239 : vector<32x32xf32>
    %c50 = arith.constant 50 : index
    %241 = memref.load %arg2[%c50] : memref<198xf32, #tpu.memory_space<smem>>
    %242 = vector.broadcast %241 : f32 to vector<32x32xf32>
    %243 = arith.mulf %242, %236 : vector<32x32xf32>
    %244 = arith.addf %235, %243 : vector<32x32xf32>
    %245 = vector.extract_strided_slice %190 {offsets = [2, 0], sizes = [32, 32], strides = [1, 1]} : vector<34x34xf32> to vector<32x32xf32>
    %c24 = arith.constant 24 : index
    %246 = memref.load %arg2[%c24] : memref<198xf32, #tpu.memory_space<smem>>
    %247 = vector.broadcast %246 : f32 to vector<32x32xf32>
    %248 = arith.mulf %247, %245 : vector<32x32xf32>
    %249 = arith.addf %240, %248 : vector<32x32xf32>
    %c51 = arith.constant 51 : index
    %250 = memref.load %arg2[%c51] : memref<198xf32, #tpu.memory_space<smem>>
    %251 = vector.broadcast %250 : f32 to vector<32x32xf32>
    %252 = arith.mulf %251, %245 : vector<32x32xf32>
    %253 = arith.addf %244, %252 : vector<32x32xf32>
    %254 = vector.extract_strided_slice %190 {offsets = [2, 1], sizes = [32, 32], strides = [1, 1]} : vector<34x34xf32> to vector<32x32xf32>
    %c25 = arith.constant 25 : index
    %255 = memref.load %arg2[%c25] : memref<198xf32, #tpu.memory_space<smem>>
    %256 = vector.broadcast %255 : f32 to vector<32x32xf32>
    %257 = arith.mulf %256, %254 : vector<32x32xf32>
    %258 = arith.addf %249, %257 : vector<32x32xf32>
    %c52 = arith.constant 52 : index
    %259 = memref.load %arg2[%c52] : memref<198xf32, #tpu.memory_space<smem>>
    %260 = vector.broadcast %259 : f32 to vector<32x32xf32>
    %261 = arith.mulf %260, %254 : vector<32x32xf32>
    %262 = arith.addf %253, %261 : vector<32x32xf32>
    %263 = vector.extract_strided_slice %190 {offsets = [2, 2], sizes = [32, 32], strides = [1, 1]} : vector<34x34xf32> to vector<32x32xf32>
    %c26 = arith.constant 26 : index
    %264 = memref.load %arg2[%c26] : memref<198xf32, #tpu.memory_space<smem>>
    %265 = vector.broadcast %264 : f32 to vector<32x32xf32>
    %266 = arith.mulf %265, %263 : vector<32x32xf32>
    %267 = arith.addf %258, %266 : vector<32x32xf32>
    %c53 = arith.constant 53 : index
    %268 = memref.load %arg2[%c53] : memref<198xf32, #tpu.memory_space<smem>>
    %269 = vector.broadcast %268 : f32 to vector<32x32xf32>
    %270 = arith.mulf %269, %263 : vector<32x32xf32>
    %271 = arith.addf %262, %270 : vector<32x32xf32>
    %c0_43 = arith.constant 0 : index
    %272 = memref.load %arg3[%c0_43] : memref<10xf32, #tpu.memory_space<smem>>
    %273 = vector.broadcast %272 : f32 to vector<32x32xf32>
    %274 = arith.mulf %267, %273 : vector<32x32xf32>
    %c0_44 = arith.constant 0 : index
    %275 = memref.load %arg4[%c0_44] : memref<10xf32, #tpu.memory_space<smem>>
    %276 = vector.broadcast %275 : f32 to vector<32x32xf32>
    %277 = arith.addf %274, %276 : vector<32x32xf32>
    %cst_45 = arith.constant 0.000000e+00 : f32
    %278 = vector.broadcast %cst_45 : f32 to vector<32x32xf32>
    %279 = arith.maximumf %277, %278 : vector<32x32xf32>
    %c1_46 = arith.constant 1 : index
    %280 = memref.load %arg3[%c1_46] : memref<10xf32, #tpu.memory_space<smem>>
    %281 = vector.broadcast %280 : f32 to vector<32x32xf32>
    %282 = arith.mulf %271, %281 : vector<32x32xf32>
    %c1_47 = arith.constant 1 : index
    %283 = memref.load %arg4[%c1_47] : memref<10xf32, #tpu.memory_space<smem>>
    %284 = vector.broadcast %283 : f32 to vector<32x32xf32>
    %285 = arith.addf %282, %284 : vector<32x32xf32>
    %cst_48 = arith.constant 0.000000e+00 : f32
    %286 = vector.broadcast %cst_48 : f32 to vector<32x32xf32>
    %287 = arith.maximumf %285, %286 : vector<32x32xf32>
    %c0_49 = arith.constant 0 : index
    %c1_50 = arith.constant 1 : index
    %c1_51 = arith.constant 1 : index
    %288 = vector.load %arg9[%c0_49, %c1_50, %c1_51] : memref<2x34x34xf32, #tpu.memory_space<vmem>>, vector<1x32x32xf32>
    %289 = vector.shape_cast %288 : vector<1x32x32xf32> to vector<32x32xf32>
    %290 = vector.shape_cast %279 : vector<32x32xf32> to vector<1x32x32xf32>
    tpu.vector_store %arg9[%c0_49, %c1_50, %c1_51], %290 {strides = array<i32>} : memref<2x34x34xf32, #tpu.memory_space<vmem>>, vector<1x32x32xf32>,
    %c1_52 = arith.constant 1 : index
    %c1_53 = arith.constant 1 : index
    %c1_54 = arith.constant 1 : index
    %291 = vector.load %arg9[%c1_52, %c1_53, %c1_54] : memref<2x34x34xf32, #tpu.memory_space<vmem>>, vector<1x32x32xf32>
    %292 = vector.shape_cast %291 : vector<1x32x32xf32> to vector<32x32xf32>
    %293 = vector.shape_cast %287 : vector<32x32xf32> to vector<1x32x32xf32>
    tpu.vector_store %arg9[%c1_52, %c1_53, %c1_54], %293 {strides = array<i32>} : memref<2x34x34xf32, #tpu.memory_space<vmem>>, vector<1x32x32xf32>,
    %cst_55 = arith.constant 0.000000e+00 : f32
    %294 = vector.broadcast %cst_55 : f32 to vector<32x32xf32>
    %cst_56 = arith.constant 0.000000e+00 : f32
    %295 = vector.broadcast %cst_56 : f32 to vector<32x32xf32>
    %c0_57 = arith.constant 0 : index
    %c0_58 = arith.constant 0 : index
    %c0_59 = arith.constant 0 : index
    %296 = vector.load %arg9[%c0_57, %c0_58, %c0_59] : memref<2x34x34xf32, #tpu.memory_space<vmem>>, vector<1x34x34xf32>
    %297 = vector.shape_cast %296 : vector<1x34x34xf32> to vector<34x34xf32>
    %298 = vector.extract_strided_slice %297 {offsets = [0, 0], sizes = [32, 32], strides = [1, 1]} : vector<34x34xf32> to vector<32x32xf32>
    %c54 = arith.constant 54 : index
    %299 = memref.load %arg2[%c54] : memref<198xf32, #tpu.memory_space<smem>>
    %300 = vector.broadcast %299 : f32 to vector<32x32xf32>
    %301 = arith.mulf %300, %298 : vector<32x32xf32>
    %302 = arith.addf %294, %301 : vector<32x32xf32>
    %c72 = arith.constant 72 : index
    %303 = memref.load %arg2[%c72] : memref<198xf32, #tpu.memory_space<smem>>
    %304 = vector.broadcast %303 : f32 to vector<32x32xf32>
    %305 = arith.mulf %304, %298 : vector<32x32xf32>
    %306 = arith.addf %295, %305 : vector<32x32xf32>
    %307 = vector.extract_strided_slice %297 {offsets = [0, 1], sizes = [32, 32], strides = [1, 1]} : vector<34x34xf32> to vector<32x32xf32>
    %c55 = arith.constant 55 : index
    %308 = memref.load %arg2[%c55] : memref<198xf32, #tpu.memory_space<smem>>
    %309 = vector.broadcast %308 : f32 to vector<32x32xf32>
    %310 = arith.mulf %309, %307 : vector<32x32xf32>
    %311 = arith.addf %302, %310 : vector<32x32xf32>
    %c73 = arith.constant 73 : index
    %312 = memref.load %arg2[%c73] : memref<198xf32, #tpu.memory_space<smem>>
    %313 = vector.broadcast %312 : f32 to vector<32x32xf32>
    %314 = arith.mulf %313, %307 : vector<32x32xf32>
    %315 = arith.addf %306, %314 : vector<32x32xf32>
    %316 = vector.extract_strided_slice %297 {offsets = [0, 2], sizes = [32, 32], strides = [1, 1]} : vector<34x34xf32> to vector<32x32xf32>
    %c56 = arith.constant 56 : index
    %317 = memref.load %arg2[%c56] : memref<198xf32, #tpu.memory_space<smem>>
    %318 = vector.broadcast %317 : f32 to vector<32x32xf32>
    %319 = arith.mulf %318, %316 : vector<32x32xf32>
    %320 = arith.addf %311, %319 : vector<32x32xf32>
    %c74 = arith.constant 74 : index
    %321 = memref.load %arg2[%c74] : memref<198xf32, #tpu.memory_space<smem>>
    %322 = vector.broadcast %321 : f32 to vector<32x32xf32>
    %323 = arith.mulf %322, %316 : vector<32x32xf32>
    %324 = arith.addf %315, %323 : vector<32x32xf32>
    %325 = vector.extract_strided_slice %297 {offsets = [1, 0], sizes = [32, 32], strides = [1, 1]} : vector<34x34xf32> to vector<32x32xf32>
    %c57 = arith.constant 57 : index
    %326 = memref.load %arg2[%c57] : memref<198xf32, #tpu.memory_space<smem>>
    %327 = vector.broadcast %326 : f32 to vector<32x32xf32>
    %328 = arith.mulf %327, %325 : vector<32x32xf32>
    %329 = arith.addf %320, %328 : vector<32x32xf32>
    %c75 = arith.constant 75 : index
    %330 = memref.load %arg2[%c75] : memref<198xf32, #tpu.memory_space<smem>>
    %331 = vector.broadcast %330 : f32 to vector<32x32xf32>
    %332 = arith.mulf %331, %325 : vector<32x32xf32>
    %333 = arith.addf %324, %332 : vector<32x32xf32>
    %334 = vector.extract_strided_slice %297 {offsets = [1, 1], sizes = [32, 32], strides = [1, 1]} : vector<34x34xf32> to vector<32x32xf32>
    %c58 = arith.constant 58 : index
    %335 = memref.load %arg2[%c58] : memref<198xf32, #tpu.memory_space<smem>>
    %336 = vector.broadcast %335 : f32 to vector<32x32xf32>
    %337 = arith.mulf %336, %334 : vector<32x32xf32>
    %338 = arith.addf %329, %337 : vector<32x32xf32>
    %c76 = arith.constant 76 : index
    %339 = memref.load %arg2[%c76] : memref<198xf32, #tpu.memory_space<smem>>
    %340 = vector.broadcast %339 : f32 to vector<32x32xf32>
    %341 = arith.mulf %340, %334 : vector<32x32xf32>
    %342 = arith.addf %333, %341 : vector<32x32xf32>
    %343 = vector.extract_strided_slice %297 {offsets = [1, 2], sizes = [32, 32], strides = [1, 1]} : vector<34x34xf32> to vector<32x32xf32>
    %c59 = arith.constant 59 : index
    %344 = memref.load %arg2[%c59] : memref<198xf32, #tpu.memory_space<smem>>
    %345 = vector.broadcast %344 : f32 to vector<32x32xf32>
    %346 = arith.mulf %345, %343 : vector<32x32xf32>
    %347 = arith.addf %338, %346 : vector<32x32xf32>
    %c77 = arith.constant 77 : index
    %348 = memref.load %arg2[%c77] : memref<198xf32, #tpu.memory_space<smem>>
    %349 = vector.broadcast %348 : f32 to vector<32x32xf32>
    %350 = arith.mulf %349, %343 : vector<32x32xf32>
    %351 = arith.addf %342, %350 : vector<32x32xf32>
    %352 = vector.extract_strided_slice %297 {offsets = [2, 0], sizes = [32, 32], strides = [1, 1]} : vector<34x34xf32> to vector<32x32xf32>
    %c60 = arith.constant 60 : index
    %353 = memref.load %arg2[%c60] : memref<198xf32, #tpu.memory_space<smem>>
    %354 = vector.broadcast %353 : f32 to vector<32x32xf32>
    %355 = arith.mulf %354, %352 : vector<32x32xf32>
    %356 = arith.addf %347, %355 : vector<32x32xf32>
    %c78 = arith.constant 78 : index
    %357 = memref.load %arg2[%c78] : memref<198xf32, #tpu.memory_space<smem>>
    %358 = vector.broadcast %357 : f32 to vector<32x32xf32>
    %359 = arith.mulf %358, %352 : vector<32x32xf32>
    %360 = arith.addf %351, %359 : vector<32x32xf32>
    %361 = vector.extract_strided_slice %297 {offsets = [2, 1], sizes = [32, 32], strides = [1, 1]} : vector<34x34xf32> to vector<32x32xf32>
    %c61 = arith.constant 61 : index
    %362 = memref.load %arg2[%c61] : memref<198xf32, #tpu.memory_space<smem>>
    %363 = vector.broadcast %362 : f32 to vector<32x32xf32>
    %364 = arith.mulf %363, %361 : vector<32x32xf32>
    %365 = arith.addf %356, %364 : vector<32x32xf32>
    %c79 = arith.constant 79 : index
    %366 = memref.load %arg2[%c79] : memref<198xf32, #tpu.memory_space<smem>>
    %367 = vector.broadcast %366 : f32 to vector<32x32xf32>
    %368 = arith.mulf %367, %361 : vector<32x32xf32>
    %369 = arith.addf %360, %368 : vector<32x32xf32>
    %370 = vector.extract_strided_slice %297 {offsets = [2, 2], sizes = [32, 32], strides = [1, 1]} : vector<34x34xf32> to vector<32x32xf32>
    %c62 = arith.constant 62 : index
    %371 = memref.load %arg2[%c62] : memref<198xf32, #tpu.memory_space<smem>>
    %372 = vector.broadcast %371 : f32 to vector<32x32xf32>
    %373 = arith.mulf %372, %370 : vector<32x32xf32>
    %374 = arith.addf %365, %373 : vector<32x32xf32>
    %c80 = arith.constant 80 : index
    %375 = memref.load %arg2[%c80] : memref<198xf32, #tpu.memory_space<smem>>
    %376 = vector.broadcast %375 : f32 to vector<32x32xf32>
    %377 = arith.mulf %376, %370 : vector<32x32xf32>
    %378 = arith.addf %369, %377 : vector<32x32xf32>
    %c1_60 = arith.constant 1 : index
    %c0_61 = arith.constant 0 : index
    %c0_62 = arith.constant 0 : index
    %379 = vector.load %arg9[%c1_60, %c0_61, %c0_62] : memref<2x34x34xf32, #tpu.memory_space<vmem>>, vector<1x34x34xf32>
    %380 = vector.shape_cast %379 : vector<1x34x34xf32> to vector<34x34xf32>
    %381 = vector.extract_strided_slice %380 {offsets = [0, 0], sizes = [32, 32], strides = [1, 1]} : vector<34x34xf32> to vector<32x32xf32>
    %c63 = arith.constant 63 : index
    %382 = memref.load %arg2[%c63] : memref<198xf32, #tpu.memory_space<smem>>
    %383 = vector.broadcast %382 : f32 to vector<32x32xf32>
    %384 = arith.mulf %383, %381 : vector<32x32xf32>
    %385 = arith.addf %374, %384 : vector<32x32xf32>
    %c81 = arith.constant 81 : index
    %386 = memref.load %arg2[%c81] : memref<198xf32, #tpu.memory_space<smem>>
    %387 = vector.broadcast %386 : f32 to vector<32x32xf32>
    %388 = arith.mulf %387, %381 : vector<32x32xf32>
    %389 = arith.addf %378, %388 : vector<32x32xf32>
    %390 = vector.extract_strided_slice %380 {offsets = [0, 1], sizes = [32, 32], strides = [1, 1]} : vector<34x34xf32> to vector<32x32xf32>
    %c64 = arith.constant 64 : index
    %391 = memref.load %arg2[%c64] : memref<198xf32, #tpu.memory_space<smem>>
    %392 = vector.broadcast %391 : f32 to vector<32x32xf32>
    %393 = arith.mulf %392, %390 : vector<32x32xf32>
    %394 = arith.addf %385, %393 : vector<32x32xf32>
    %c82 = arith.constant 82 : index
    %395 = memref.load %arg2[%c82] : memref<198xf32, #tpu.memory_space<smem>>
    %396 = vector.broadcast %395 : f32 to vector<32x32xf32>
    %397 = arith.mulf %396, %390 : vector<32x32xf32>
    %398 = arith.addf %389, %397 : vector<32x32xf32>
    %399 = vector.extract_strided_slice %380 {offsets = [0, 2], sizes = [32, 32], strides = [1, 1]} : vector<34x34xf32> to vector<32x32xf32>
    %c65 = arith.constant 65 : index
    %400 = memref.load %arg2[%c65] : memref<198xf32, #tpu.memory_space<smem>>
    %401 = vector.broadcast %400 : f32 to vector<32x32xf32>
    %402 = arith.mulf %401, %399 : vector<32x32xf32>
    %403 = arith.addf %394, %402 : vector<32x32xf32>
    %c83 = arith.constant 83 : index
    %404 = memref.load %arg2[%c83] : memref<198xf32, #tpu.memory_space<smem>>
    %405 = vector.broadcast %404 : f32 to vector<32x32xf32>
    %406 = arith.mulf %405, %399 : vector<32x32xf32>
    %407 = arith.addf %398, %406 : vector<32x32xf32>
    %408 = vector.extract_strided_slice %380 {offsets = [1, 0], sizes = [32, 32], strides = [1, 1]} : vector<34x34xf32> to vector<32x32xf32>
    %c66 = arith.constant 66 : index
    %409 = memref.load %arg2[%c66] : memref<198xf32, #tpu.memory_space<smem>>
    %410 = vector.broadcast %409 : f32 to vector<32x32xf32>
    %411 = arith.mulf %410, %408 : vector<32x32xf32>
    %412 = arith.addf %403, %411 : vector<32x32xf32>
    %c84 = arith.constant 84 : index
    %413 = memref.load %arg2[%c84] : memref<198xf32, #tpu.memory_space<smem>>
    %414 = vector.broadcast %413 : f32 to vector<32x32xf32>
    %415 = arith.mulf %414, %408 : vector<32x32xf32>
    %416 = arith.addf %407, %415 : vector<32x32xf32>
    %417 = vector.extract_strided_slice %380 {offsets = [1, 1], sizes = [32, 32], strides = [1, 1]} : vector<34x34xf32> to vector<32x32xf32>
    %c67 = arith.constant 67 : index
    %418 = memref.load %arg2[%c67] : memref<198xf32, #tpu.memory_space<smem>>
    %419 = vector.broadcast %418 : f32 to vector<32x32xf32>
    %420 = arith.mulf %419, %417 : vector<32x32xf32>
    %421 = arith.addf %412, %420 : vector<32x32xf32>
    %c85 = arith.constant 85 : index
    %422 = memref.load %arg2[%c85] : memref<198xf32, #tpu.memory_space<smem>>
    %423 = vector.broadcast %422 : f32 to vector<32x32xf32>
    %424 = arith.mulf %423, %417 : vector<32x32xf32>
    %425 = arith.addf %416, %424 : vector<32x32xf32>
    %426 = vector.extract_strided_slice %380 {offsets = [1, 2], sizes = [32, 32], strides = [1, 1]} : vector<34x34xf32> to vector<32x32xf32>
    %c68 = arith.constant 68 : index
    %427 = memref.load %arg2[%c68] : memref<198xf32, #tpu.memory_space<smem>>
    %428 = vector.broadcast %427 : f32 to vector<32x32xf32>
    %429 = arith.mulf %428, %426 : vector<32x32xf32>
    %430 = arith.addf %421, %429 : vector<32x32xf32>
    %c86 = arith.constant 86 : index
    %431 = memref.load %arg2[%c86] : memref<198xf32, #tpu.memory_space<smem>>
    %432 = vector.broadcast %431 : f32 to vector<32x32xf32>
    %433 = arith.mulf %432, %426 : vector<32x32xf32>
    %434 = arith.addf %425, %433 : vector<32x32xf32>
    %435 = vector.extract_strided_slice %380 {offsets = [2, 0], sizes = [32, 32], strides = [1, 1]} : vector<34x34xf32> to vector<32x32xf32>
    %c69 = arith.constant 69 : index
    %436 = memref.load %arg2[%c69] : memref<198xf32, #tpu.memory_space<smem>>
    %437 = vector.broadcast %436 : f32 to vector<32x32xf32>
    %438 = arith.mulf %437, %435 : vector<32x32xf32>
    %439 = arith.addf %430, %438 : vector<32x32xf32>
    %c87 = arith.constant 87 : index
    %440 = memref.load %arg2[%c87] : memref<198xf32, #tpu.memory_space<smem>>
    %441 = vector.broadcast %440 : f32 to vector<32x32xf32>
    %442 = arith.mulf %441, %435 : vector<32x32xf32>
    %443 = arith.addf %434, %442 : vector<32x32xf32>
    %444 = vector.extract_strided_slice %380 {offsets = [2, 1], sizes = [32, 32], strides = [1, 1]} : vector<34x34xf32> to vector<32x32xf32>
    %c70 = arith.constant 70 : index
    %445 = memref.load %arg2[%c70] : memref<198xf32, #tpu.memory_space<smem>>
    %446 = vector.broadcast %445 : f32 to vector<32x32xf32>
    %447 = arith.mulf %446, %444 : vector<32x32xf32>
    %448 = arith.addf %439, %447 : vector<32x32xf32>
    %c88 = arith.constant 88 : index
    %449 = memref.load %arg2[%c88] : memref<198xf32, #tpu.memory_space<smem>>
    %450 = vector.broadcast %449 : f32 to vector<32x32xf32>
    %451 = arith.mulf %450, %444 : vector<32x32xf32>
    %452 = arith.addf %443, %451 : vector<32x32xf32>
    %453 = vector.extract_strided_slice %380 {offsets = [2, 2], sizes = [32, 32], strides = [1, 1]} : vector<34x34xf32> to vector<32x32xf32>
    %c71 = arith.constant 71 : index
    %454 = memref.load %arg2[%c71] : memref<198xf32, #tpu.memory_space<smem>>
    %455 = vector.broadcast %454 : f32 to vector<32x32xf32>
    %456 = arith.mulf %455, %453 : vector<32x32xf32>
    %457 = arith.addf %448, %456 : vector<32x32xf32>
    %c89 = arith.constant 89 : index
    %458 = memref.load %arg2[%c89] : memref<198xf32, #tpu.memory_space<smem>>
    %459 = vector.broadcast %458 : f32 to vector<32x32xf32>
    %460 = arith.mulf %459, %453 : vector<32x32xf32>
    %461 = arith.addf %452, %460 : vector<32x32xf32>
    %c2_63 = arith.constant 2 : index
    %462 = memref.load %arg3[%c2_63] : memref<10xf32, #tpu.memory_space<smem>>
    %463 = vector.broadcast %462 : f32 to vector<32x32xf32>
    %464 = arith.mulf %457, %463 : vector<32x32xf32>
    %c2_64 = arith.constant 2 : index
    %465 = memref.load %arg4[%c2_64] : memref<10xf32, #tpu.memory_space<smem>>
    %466 = vector.broadcast %465 : f32 to vector<32x32xf32>
    %467 = arith.addf %464, %466 : vector<32x32xf32>
    %cst_65 = arith.constant 0.000000e+00 : f32
    %468 = vector.broadcast %cst_65 : f32 to vector<32x32xf32>
    %469 = arith.maximumf %467, %468 : vector<32x32xf32>
    %c3_66 = arith.constant 3 : index
    %470 = memref.load %arg3[%c3_66] : memref<10xf32, #tpu.memory_space<smem>>
    %471 = vector.broadcast %470 : f32 to vector<32x32xf32>
    %472 = arith.mulf %461, %471 : vector<32x32xf32>
    %c3_67 = arith.constant 3 : index
    %473 = memref.load %arg4[%c3_67] : memref<10xf32, #tpu.memory_space<smem>>
    %474 = vector.broadcast %473 : f32 to vector<32x32xf32>
    %475 = arith.addf %472, %474 : vector<32x32xf32>
    %cst_68 = arith.constant 0.000000e+00 : f32
    %476 = vector.broadcast %cst_68 : f32 to vector<32x32xf32>
    %477 = arith.maximumf %475, %476 : vector<32x32xf32>
    %c0_69 = arith.constant 0 : index
    %c1_70 = arith.constant 1 : index
    %c1_71 = arith.constant 1 : index
    %478 = vector.load %arg10[%c0_69, %c1_70, %c1_71] : memref<2x34x34xf32, #tpu.memory_space<vmem>>, vector<1x32x32xf32>
    %479 = vector.shape_cast %478 : vector<1x32x32xf32> to vector<32x32xf32>
    %480 = vector.shape_cast %469 : vector<32x32xf32> to vector<1x32x32xf32>
    tpu.vector_store %arg10[%c0_69, %c1_70, %c1_71], %480 {strides = array<i32>} : memref<2x34x34xf32, #tpu.memory_space<vmem>>, vector<1x32x32xf32>,
    %c1_72 = arith.constant 1 : index
    %c1_73 = arith.constant 1 : index
    %c1_74 = arith.constant 1 : index
    %481 = vector.load %arg10[%c1_72, %c1_73, %c1_74] : memref<2x34x34xf32, #tpu.memory_space<vmem>>, vector<1x32x32xf32>
    %482 = vector.shape_cast %481 : vector<1x32x32xf32> to vector<32x32xf32>
    %483 = vector.shape_cast %477 : vector<32x32xf32> to vector<1x32x32xf32>
    tpu.vector_store %arg10[%c1_72, %c1_73, %c1_74], %483 {strides = array<i32>} : memref<2x34x34xf32, #tpu.memory_space<vmem>>, vector<1x32x32xf32>,
    %cst_75 = arith.constant 0.000000e+00 : f32
    %484 = vector.broadcast %cst_75 : f32 to vector<32x32xf32>
    %cst_76 = arith.constant 0.000000e+00 : f32
    %485 = vector.broadcast %cst_76 : f32 to vector<32x32xf32>
    %c0_77 = arith.constant 0 : index
    %c0_78 = arith.constant 0 : index
    %c0_79 = arith.constant 0 : index
    %486 = vector.load %arg10[%c0_77, %c0_78, %c0_79] : memref<2x34x34xf32, #tpu.memory_space<vmem>>, vector<1x34x34xf32>
    %487 = vector.shape_cast %486 : vector<1x34x34xf32> to vector<34x34xf32>
    %488 = vector.extract_strided_slice %487 {offsets = [0, 0], sizes = [32, 32], strides = [1, 1]} : vector<34x34xf32> to vector<32x32xf32>
    %c90 = arith.constant 90 : index
    %489 = memref.load %arg2[%c90] : memref<198xf32, #tpu.memory_space<smem>>
    %490 = vector.broadcast %489 : f32 to vector<32x32xf32>
    %491 = arith.mulf %490, %488 : vector<32x32xf32>
    %492 = arith.addf %484, %491 : vector<32x32xf32>
    %c108 = arith.constant 108 : index
    %493 = memref.load %arg2[%c108] : memref<198xf32, #tpu.memory_space<smem>>
    %494 = vector.broadcast %493 : f32 to vector<32x32xf32>
    %495 = arith.mulf %494, %488 : vector<32x32xf32>
    %496 = arith.addf %485, %495 : vector<32x32xf32>
    %497 = vector.extract_strided_slice %487 {offsets = [0, 1], sizes = [32, 32], strides = [1, 1]} : vector<34x34xf32> to vector<32x32xf32>
    %c91 = arith.constant 91 : index
    %498 = memref.load %arg2[%c91] : memref<198xf32, #tpu.memory_space<smem>>
    %499 = vector.broadcast %498 : f32 to vector<32x32xf32>
    %500 = arith.mulf %499, %497 : vector<32x32xf32>
    %501 = arith.addf %492, %500 : vector<32x32xf32>
    %c109 = arith.constant 109 : index
    %502 = memref.load %arg2[%c109] : memref<198xf32, #tpu.memory_space<smem>>
    %503 = vector.broadcast %502 : f32 to vector<32x32xf32>
    %504 = arith.mulf %503, %497 : vector<32x32xf32>
    %505 = arith.addf %496, %504 : vector<32x32xf32>
    %506 = vector.extract_strided_slice %487 {offsets = [0, 2], sizes = [32, 32], strides = [1, 1]} : vector<34x34xf32> to vector<32x32xf32>
    %c92 = arith.constant 92 : index
    %507 = memref.load %arg2[%c92] : memref<198xf32, #tpu.memory_space<smem>>
    %508 = vector.broadcast %507 : f32 to vector<32x32xf32>
    %509 = arith.mulf %508, %506 : vector<32x32xf32>
    %510 = arith.addf %501, %509 : vector<32x32xf32>
    %c110 = arith.constant 110 : index
    %511 = memref.load %arg2[%c110] : memref<198xf32, #tpu.memory_space<smem>>
    %512 = vector.broadcast %511 : f32 to vector<32x32xf32>
    %513 = arith.mulf %512, %506 : vector<32x32xf32>
    %514 = arith.addf %505, %513 : vector<32x32xf32>
    %515 = vector.extract_strided_slice %487 {offsets = [1, 0], sizes = [32, 32], strides = [1, 1]} : vector<34x34xf32> to vector<32x32xf32>
    %c93 = arith.constant 93 : index
    %516 = memref.load %arg2[%c93] : memref<198xf32, #tpu.memory_space<smem>>
    %517 = vector.broadcast %516 : f32 to vector<32x32xf32>
    %518 = arith.mulf %517, %515 : vector<32x32xf32>
    %519 = arith.addf %510, %518 : vector<32x32xf32>
    %c111 = arith.constant 111 : index
    %520 = memref.load %arg2[%c111] : memref<198xf32, #tpu.memory_space<smem>>
    %521 = vector.broadcast %520 : f32 to vector<32x32xf32>
    %522 = arith.mulf %521, %515 : vector<32x32xf32>
    %523 = arith.addf %514, %522 : vector<32x32xf32>
    %524 = vector.extract_strided_slice %487 {offsets = [1, 1], sizes = [32, 32], strides = [1, 1]} : vector<34x34xf32> to vector<32x32xf32>
    %c94 = arith.constant 94 : index
    %525 = memref.load %arg2[%c94] : memref<198xf32, #tpu.memory_space<smem>>
    %526 = vector.broadcast %525 : f32 to vector<32x32xf32>
    %527 = arith.mulf %526, %524 : vector<32x32xf32>
    %528 = arith.addf %519, %527 : vector<32x32xf32>
    %c112 = arith.constant 112 : index
    %529 = memref.load %arg2[%c112] : memref<198xf32, #tpu.memory_space<smem>>
    %530 = vector.broadcast %529 : f32 to vector<32x32xf32>
    %531 = arith.mulf %530, %524 : vector<32x32xf32>
    %532 = arith.addf %523, %531 : vector<32x32xf32>
    %533 = vector.extract_strided_slice %487 {offsets = [1, 2], sizes = [32, 32], strides = [1, 1]} : vector<34x34xf32> to vector<32x32xf32>
    %c95 = arith.constant 95 : index
    %534 = memref.load %arg2[%c95] : memref<198xf32, #tpu.memory_space<smem>>
    %535 = vector.broadcast %534 : f32 to vector<32x32xf32>
    %536 = arith.mulf %535, %533 : vector<32x32xf32>
    %537 = arith.addf %528, %536 : vector<32x32xf32>
    %c113 = arith.constant 113 : index
    %538 = memref.load %arg2[%c113] : memref<198xf32, #tpu.memory_space<smem>>
    %539 = vector.broadcast %538 : f32 to vector<32x32xf32>
    %540 = arith.mulf %539, %533 : vector<32x32xf32>
    %541 = arith.addf %532, %540 : vector<32x32xf32>
    %542 = vector.extract_strided_slice %487 {offsets = [2, 0], sizes = [32, 32], strides = [1, 1]} : vector<34x34xf32> to vector<32x32xf32>
    %c96 = arith.constant 96 : index
    %543 = memref.load %arg2[%c96] : memref<198xf32, #tpu.memory_space<smem>>
    %544 = vector.broadcast %543 : f32 to vector<32x32xf32>
    %545 = arith.mulf %544, %542 : vector<32x32xf32>
    %546 = arith.addf %537, %545 : vector<32x32xf32>
    %c114 = arith.constant 114 : index
    %547 = memref.load %arg2[%c114] : memref<198xf32, #tpu.memory_space<smem>>
    %548 = vector.broadcast %547 : f32 to vector<32x32xf32>
    %549 = arith.mulf %548, %542 : vector<32x32xf32>
    %550 = arith.addf %541, %549 : vector<32x32xf32>
    %551 = vector.extract_strided_slice %487 {offsets = [2, 1], sizes = [32, 32], strides = [1, 1]} : vector<34x34xf32> to vector<32x32xf32>
    %c97 = arith.constant 97 : index
    %552 = memref.load %arg2[%c97] : memref<198xf32, #tpu.memory_space<smem>>
    %553 = vector.broadcast %552 : f32 to vector<32x32xf32>
    %554 = arith.mulf %553, %551 : vector<32x32xf32>
    %555 = arith.addf %546, %554 : vector<32x32xf32>
    %c115 = arith.constant 115 : index
    %556 = memref.load %arg2[%c115] : memref<198xf32, #tpu.memory_space<smem>>
    %557 = vector.broadcast %556 : f32 to vector<32x32xf32>
    %558 = arith.mulf %557, %551 : vector<32x32xf32>
    %559 = arith.addf %550, %558 : vector<32x32xf32>
    %560 = vector.extract_strided_slice %487 {offsets = [2, 2], sizes = [32, 32], strides = [1, 1]} : vector<34x34xf32> to vector<32x32xf32>
    %c98 = arith.constant 98 : index
    %561 = memref.load %arg2[%c98] : memref<198xf32, #tpu.memory_space<smem>>
    %562 = vector.broadcast %561 : f32 to vector<32x32xf32>
    %563 = arith.mulf %562, %560 : vector<32x32xf32>
    %564 = arith.addf %555, %563 : vector<32x32xf32>
    %c116 = arith.constant 116 : index
    %565 = memref.load %arg2[%c116] : memref<198xf32, #tpu.memory_space<smem>>
    %566 = vector.broadcast %565 : f32 to vector<32x32xf32>
    %567 = arith.mulf %566, %560 : vector<32x32xf32>
    %568 = arith.addf %559, %567 : vector<32x32xf32>
    %c1_80 = arith.constant 1 : index
    %c0_81 = arith.constant 0 : index
    %c0_82 = arith.constant 0 : index
    %569 = vector.load %arg10[%c1_80, %c0_81, %c0_82] : memref<2x34x34xf32, #tpu.memory_space<vmem>>, vector<1x34x34xf32>
    %570 = vector.shape_cast %569 : vector<1x34x34xf32> to vector<34x34xf32>
    %571 = vector.extract_strided_slice %570 {offsets = [0, 0], sizes = [32, 32], strides = [1, 1]} : vector<34x34xf32> to vector<32x32xf32>
    %c99 = arith.constant 99 : index
    %572 = memref.load %arg2[%c99] : memref<198xf32, #tpu.memory_space<smem>>
    %573 = vector.broadcast %572 : f32 to vector<32x32xf32>
    %574 = arith.mulf %573, %571 : vector<32x32xf32>
    %575 = arith.addf %564, %574 : vector<32x32xf32>
    %c117 = arith.constant 117 : index
    %576 = memref.load %arg2[%c117] : memref<198xf32, #tpu.memory_space<smem>>
    %577 = vector.broadcast %576 : f32 to vector<32x32xf32>
    %578 = arith.mulf %577, %571 : vector<32x32xf32>
    %579 = arith.addf %568, %578 : vector<32x32xf32>
    %580 = vector.extract_strided_slice %570 {offsets = [0, 1], sizes = [32, 32], strides = [1, 1]} : vector<34x34xf32> to vector<32x32xf32>
    %c100 = arith.constant 100 : index
    %581 = memref.load %arg2[%c100] : memref<198xf32, #tpu.memory_space<smem>>
    %582 = vector.broadcast %581 : f32 to vector<32x32xf32>
    %583 = arith.mulf %582, %580 : vector<32x32xf32>
    %584 = arith.addf %575, %583 : vector<32x32xf32>
    %c118 = arith.constant 118 : index
    %585 = memref.load %arg2[%c118] : memref<198xf32, #tpu.memory_space<smem>>
    %586 = vector.broadcast %585 : f32 to vector<32x32xf32>
    %587 = arith.mulf %586, %580 : vector<32x32xf32>
    %588 = arith.addf %579, %587 : vector<32x32xf32>
    %589 = vector.extract_strided_slice %570 {offsets = [0, 2], sizes = [32, 32], strides = [1, 1]} : vector<34x34xf32> to vector<32x32xf32>
    %c101 = arith.constant 101 : index
    %590 = memref.load %arg2[%c101] : memref<198xf32, #tpu.memory_space<smem>>
    %591 = vector.broadcast %590 : f32 to vector<32x32xf32>
    %592 = arith.mulf %591, %589 : vector<32x32xf32>
    %593 = arith.addf %584, %592 : vector<32x32xf32>
    %c119 = arith.constant 119 : index
    %594 = memref.load %arg2[%c119] : memref<198xf32, #tpu.memory_space<smem>>
    %595 = vector.broadcast %594 : f32 to vector<32x32xf32>
    %596 = arith.mulf %595, %589 : vector<32x32xf32>
    %597 = arith.addf %588, %596 : vector<32x32xf32>
    %598 = vector.extract_strided_slice %570 {offsets = [1, 0], sizes = [32, 32], strides = [1, 1]} : vector<34x34xf32> to vector<32x32xf32>
    %c102 = arith.constant 102 : index
    %599 = memref.load %arg2[%c102] : memref<198xf32, #tpu.memory_space<smem>>
    %600 = vector.broadcast %599 : f32 to vector<32x32xf32>
    %601 = arith.mulf %600, %598 : vector<32x32xf32>
    %602 = arith.addf %593, %601 : vector<32x32xf32>
    %c120 = arith.constant 120 : index
    %603 = memref.load %arg2[%c120] : memref<198xf32, #tpu.memory_space<smem>>
    %604 = vector.broadcast %603 : f32 to vector<32x32xf32>
    %605 = arith.mulf %604, %598 : vector<32x32xf32>
    %606 = arith.addf %597, %605 : vector<32x32xf32>
    %607 = vector.extract_strided_slice %570 {offsets = [1, 1], sizes = [32, 32], strides = [1, 1]} : vector<34x34xf32> to vector<32x32xf32>
    %c103 = arith.constant 103 : index
    %608 = memref.load %arg2[%c103] : memref<198xf32, #tpu.memory_space<smem>>
    %609 = vector.broadcast %608 : f32 to vector<32x32xf32>
    %610 = arith.mulf %609, %607 : vector<32x32xf32>
    %611 = arith.addf %602, %610 : vector<32x32xf32>
    %c121 = arith.constant 121 : index
    %612 = memref.load %arg2[%c121] : memref<198xf32, #tpu.memory_space<smem>>
    %613 = vector.broadcast %612 : f32 to vector<32x32xf32>
    %614 = arith.mulf %613, %607 : vector<32x32xf32>
    %615 = arith.addf %606, %614 : vector<32x32xf32>
    %616 = vector.extract_strided_slice %570 {offsets = [1, 2], sizes = [32, 32], strides = [1, 1]} : vector<34x34xf32> to vector<32x32xf32>
    %c104 = arith.constant 104 : index
    %617 = memref.load %arg2[%c104] : memref<198xf32, #tpu.memory_space<smem>>
    %618 = vector.broadcast %617 : f32 to vector<32x32xf32>
    %619 = arith.mulf %618, %616 : vector<32x32xf32>
    %620 = arith.addf %611, %619 : vector<32x32xf32>
    %c122 = arith.constant 122 : index
    %621 = memref.load %arg2[%c122] : memref<198xf32, #tpu.memory_space<smem>>
    %622 = vector.broadcast %621 : f32 to vector<32x32xf32>
    %623 = arith.mulf %622, %616 : vector<32x32xf32>
    %624 = arith.addf %615, %623 : vector<32x32xf32>
    %625 = vector.extract_strided_slice %570 {offsets = [2, 0], sizes = [32, 32], strides = [1, 1]} : vector<34x34xf32> to vector<32x32xf32>
    %c105 = arith.constant 105 : index
    %626 = memref.load %arg2[%c105] : memref<198xf32, #tpu.memory_space<smem>>
    %627 = vector.broadcast %626 : f32 to vector<32x32xf32>
    %628 = arith.mulf %627, %625 : vector<32x32xf32>
    %629 = arith.addf %620, %628 : vector<32x32xf32>
    %c123 = arith.constant 123 : index
    %630 = memref.load %arg2[%c123] : memref<198xf32, #tpu.memory_space<smem>>
    %631 = vector.broadcast %630 : f32 to vector<32x32xf32>
    %632 = arith.mulf %631, %625 : vector<32x32xf32>
    %633 = arith.addf %624, %632 : vector<32x32xf32>
    %634 = vector.extract_strided_slice %570 {offsets = [2, 1], sizes = [32, 32], strides = [1, 1]} : vector<34x34xf32> to vector<32x32xf32>
    %c106 = arith.constant 106 : index
    %635 = memref.load %arg2[%c106] : memref<198xf32, #tpu.memory_space<smem>>
    %636 = vector.broadcast %635 : f32 to vector<32x32xf32>
    %637 = arith.mulf %636, %634 : vector<32x32xf32>
    %638 = arith.addf %629, %637 : vector<32x32xf32>
    %c124 = arith.constant 124 : index
    %639 = memref.load %arg2[%c124] : memref<198xf32, #tpu.memory_space<smem>>
    %640 = vector.broadcast %639 : f32 to vector<32x32xf32>
    %641 = arith.mulf %640, %634 : vector<32x32xf32>
    %642 = arith.addf %633, %641 : vector<32x32xf32>
    %643 = vector.extract_strided_slice %570 {offsets = [2, 2], sizes = [32, 32], strides = [1, 1]} : vector<34x34xf32> to vector<32x32xf32>
    %c107 = arith.constant 107 : index
    %644 = memref.load %arg2[%c107] : memref<198xf32, #tpu.memory_space<smem>>
    %645 = vector.broadcast %644 : f32 to vector<32x32xf32>
    %646 = arith.mulf %645, %643 : vector<32x32xf32>
    %647 = arith.addf %638, %646 : vector<32x32xf32>
    %c125 = arith.constant 125 : index
    %648 = memref.load %arg2[%c125] : memref<198xf32, #tpu.memory_space<smem>>
    %649 = vector.broadcast %648 : f32 to vector<32x32xf32>
    %650 = arith.mulf %649, %643 : vector<32x32xf32>
    %651 = arith.addf %642, %650 : vector<32x32xf32>
    %c4_83 = arith.constant 4 : index
    %652 = memref.load %arg3[%c4_83] : memref<10xf32, #tpu.memory_space<smem>>
    %653 = vector.broadcast %652 : f32 to vector<32x32xf32>
    %654 = arith.mulf %647, %653 : vector<32x32xf32>
    %c4_84 = arith.constant 4 : index
    %655 = memref.load %arg4[%c4_84] : memref<10xf32, #tpu.memory_space<smem>>
    %656 = vector.broadcast %655 : f32 to vector<32x32xf32>
    %657 = arith.addf %654, %656 : vector<32x32xf32>
    %658 = arith.addf %657, %279 : vector<32x32xf32>
    %cst_85 = arith.constant 0.000000e+00 : f32
    %659 = vector.broadcast %cst_85 : f32 to vector<32x32xf32>
    %660 = arith.maximumf %658, %659 : vector<32x32xf32>
    %c5_86 = arith.constant 5 : index
    %661 = memref.load %arg3[%c5_86] : memref<10xf32, #tpu.memory_space<smem>>
    %662 = vector.broadcast %661 : f32 to vector<32x32xf32>
    %663 = arith.mulf %651, %662 : vector<32x32xf32>
    %c5_87 = arith.constant 5 : index
    %664 = memref.load %arg4[%c5_87] : memref<10xf32, #tpu.memory_space<smem>>
    %665 = vector.broadcast %664 : f32 to vector<32x32xf32>
    %666 = arith.addf %663, %665 : vector<32x32xf32>
    %667 = arith.addf %666, %287 : vector<32x32xf32>
    %cst_88 = arith.constant 0.000000e+00 : f32
    %668 = vector.broadcast %cst_88 : f32 to vector<32x32xf32>
    %669 = arith.maximumf %667, %668 : vector<32x32xf32>
    %c0_89 = arith.constant 0 : index
    %c1_90 = arith.constant 1 : index
    %c1_91 = arith.constant 1 : index
    %670 = vector.load %arg9[%c0_89, %c1_90, %c1_91] : memref<2x34x34xf32, #tpu.memory_space<vmem>>, vector<1x32x32xf32>
    %671 = vector.shape_cast %670 : vector<1x32x32xf32> to vector<32x32xf32>
    %672 = vector.shape_cast %660 : vector<32x32xf32> to vector<1x32x32xf32>
    tpu.vector_store %arg9[%c0_89, %c1_90, %c1_91], %672 {strides = array<i32>} : memref<2x34x34xf32, #tpu.memory_space<vmem>>, vector<1x32x32xf32>,
    %c1_92 = arith.constant 1 : index
    %c1_93 = arith.constant 1 : index
    %c1_94 = arith.constant 1 : index
    %673 = vector.load %arg9[%c1_92, %c1_93, %c1_94] : memref<2x34x34xf32, #tpu.memory_space<vmem>>, vector<1x32x32xf32>
    %674 = vector.shape_cast %673 : vector<1x32x32xf32> to vector<32x32xf32>
    %675 = vector.shape_cast %669 : vector<32x32xf32> to vector<1x32x32xf32>
    tpu.vector_store %arg9[%c1_92, %c1_93, %c1_94], %675 {strides = array<i32>} : memref<2x34x34xf32, #tpu.memory_space<vmem>>, vector<1x32x32xf32>,
    %cst_95 = arith.constant 0.000000e+00 : f32
    %676 = vector.broadcast %cst_95 : f32 to vector<32x32xf32>
    %cst_96 = arith.constant 0.000000e+00 : f32
    %677 = vector.broadcast %cst_96 : f32 to vector<32x32xf32>
    %c0_97 = arith.constant 0 : index
    %c0_98 = arith.constant 0 : index
    %c0_99 = arith.constant 0 : index
    %678 = vector.load %arg9[%c0_97, %c0_98, %c0_99] : memref<2x34x34xf32, #tpu.memory_space<vmem>>, vector<1x34x34xf32>
    %679 = vector.shape_cast %678 : vector<1x34x34xf32> to vector<34x34xf32>
    %680 = vector.extract_strided_slice %679 {offsets = [0, 0], sizes = [32, 32], strides = [1, 1]} : vector<34x34xf32> to vector<32x32xf32>
    %c126 = arith.constant 126 : index
    %681 = memref.load %arg2[%c126] : memref<198xf32, #tpu.memory_space<smem>>
    %682 = vector.broadcast %681 : f32 to vector<32x32xf32>
    %683 = arith.mulf %682, %680 : vector<32x32xf32>
    %684 = arith.addf %676, %683 : vector<32x32xf32>
    %c144 = arith.constant 144 : index
    %685 = memref.load %arg2[%c144] : memref<198xf32, #tpu.memory_space<smem>>
    %686 = vector.broadcast %685 : f32 to vector<32x32xf32>
    %687 = arith.mulf %686, %680 : vector<32x32xf32>
    %688 = arith.addf %677, %687 : vector<32x32xf32>
    %689 = vector.extract_strided_slice %679 {offsets = [0, 1], sizes = [32, 32], strides = [1, 1]} : vector<34x34xf32> to vector<32x32xf32>
    %c127 = arith.constant 127 : index
    %690 = memref.load %arg2[%c127] : memref<198xf32, #tpu.memory_space<smem>>
    %691 = vector.broadcast %690 : f32 to vector<32x32xf32>
    %692 = arith.mulf %691, %689 : vector<32x32xf32>
    %693 = arith.addf %684, %692 : vector<32x32xf32>
    %c145 = arith.constant 145 : index
    %694 = memref.load %arg2[%c145] : memref<198xf32, #tpu.memory_space<smem>>
    %695 = vector.broadcast %694 : f32 to vector<32x32xf32>
    %696 = arith.mulf %695, %689 : vector<32x32xf32>
    %697 = arith.addf %688, %696 : vector<32x32xf32>
    %698 = vector.extract_strided_slice %679 {offsets = [0, 2], sizes = [32, 32], strides = [1, 1]} : vector<34x34xf32> to vector<32x32xf32>
    %c128 = arith.constant 128 : index
    %699 = memref.load %arg2[%c128] : memref<198xf32, #tpu.memory_space<smem>>
    %700 = vector.broadcast %699 : f32 to vector<32x32xf32>
    %701 = arith.mulf %700, %698 : vector<32x32xf32>
    %702 = arith.addf %693, %701 : vector<32x32xf32>
    %c146 = arith.constant 146 : index
    %703 = memref.load %arg2[%c146] : memref<198xf32, #tpu.memory_space<smem>>
    %704 = vector.broadcast %703 : f32 to vector<32x32xf32>
    %705 = arith.mulf %704, %698 : vector<32x32xf32>
    %706 = arith.addf %697, %705 : vector<32x32xf32>
    %707 = vector.extract_strided_slice %679 {offsets = [1, 0], sizes = [32, 32], strides = [1, 1]} : vector<34x34xf32> to vector<32x32xf32>
    %c129 = arith.constant 129 : index
    %708 = memref.load %arg2[%c129] : memref<198xf32, #tpu.memory_space<smem>>
    %709 = vector.broadcast %708 : f32 to vector<32x32xf32>
    %710 = arith.mulf %709, %707 : vector<32x32xf32>
    %711 = arith.addf %702, %710 : vector<32x32xf32>
    %c147 = arith.constant 147 : index
    %712 = memref.load %arg2[%c147] : memref<198xf32, #tpu.memory_space<smem>>
    %713 = vector.broadcast %712 : f32 to vector<32x32xf32>
    %714 = arith.mulf %713, %707 : vector<32x32xf32>
    %715 = arith.addf %706, %714 : vector<32x32xf32>
    %716 = vector.extract_strided_slice %679 {offsets = [1, 1], sizes = [32, 32], strides = [1, 1]} : vector<34x34xf32> to vector<32x32xf32>
    %c130 = arith.constant 130 : index
    %717 = memref.load %arg2[%c130] : memref<198xf32, #tpu.memory_space<smem>>
    %718 = vector.broadcast %717 : f32 to vector<32x32xf32>
    %719 = arith.mulf %718, %716 : vector<32x32xf32>
    %720 = arith.addf %711, %719 : vector<32x32xf32>
    %c148 = arith.constant 148 : index
    %721 = memref.load %arg2[%c148] : memref<198xf32, #tpu.memory_space<smem>>
    %722 = vector.broadcast %721 : f32 to vector<32x32xf32>
    %723 = arith.mulf %722, %716 : vector<32x32xf32>
    %724 = arith.addf %715, %723 : vector<32x32xf32>
    %725 = vector.extract_strided_slice %679 {offsets = [1, 2], sizes = [32, 32], strides = [1, 1]} : vector<34x34xf32> to vector<32x32xf32>
    %c131 = arith.constant 131 : index
    %726 = memref.load %arg2[%c131] : memref<198xf32, #tpu.memory_space<smem>>
    %727 = vector.broadcast %726 : f32 to vector<32x32xf32>
    %728 = arith.mulf %727, %725 : vector<32x32xf32>
    %729 = arith.addf %720, %728 : vector<32x32xf32>
    %c149 = arith.constant 149 : index
    %730 = memref.load %arg2[%c149] : memref<198xf32, #tpu.memory_space<smem>>
    %731 = vector.broadcast %730 : f32 to vector<32x32xf32>
    %732 = arith.mulf %731, %725 : vector<32x32xf32>
    %733 = arith.addf %724, %732 : vector<32x32xf32>
    %734 = vector.extract_strided_slice %679 {offsets = [2, 0], sizes = [32, 32], strides = [1, 1]} : vector<34x34xf32> to vector<32x32xf32>
    %c132 = arith.constant 132 : index
    %735 = memref.load %arg2[%c132] : memref<198xf32, #tpu.memory_space<smem>>
    %736 = vector.broadcast %735 : f32 to vector<32x32xf32>
    %737 = arith.mulf %736, %734 : vector<32x32xf32>
    %738 = arith.addf %729, %737 : vector<32x32xf32>
    %c150 = arith.constant 150 : index
    %739 = memref.load %arg2[%c150] : memref<198xf32, #tpu.memory_space<smem>>
    %740 = vector.broadcast %739 : f32 to vector<32x32xf32>
    %741 = arith.mulf %740, %734 : vector<32x32xf32>
    %742 = arith.addf %733, %741 : vector<32x32xf32>
    %743 = vector.extract_strided_slice %679 {offsets = [2, 1], sizes = [32, 32], strides = [1, 1]} : vector<34x34xf32> to vector<32x32xf32>
    %c133 = arith.constant 133 : index
    %744 = memref.load %arg2[%c133] : memref<198xf32, #tpu.memory_space<smem>>
    %745 = vector.broadcast %744 : f32 to vector<32x32xf32>
    %746 = arith.mulf %745, %743 : vector<32x32xf32>
    %747 = arith.addf %738, %746 : vector<32x32xf32>
    %c151 = arith.constant 151 : index
    %748 = memref.load %arg2[%c151] : memref<198xf32, #tpu.memory_space<smem>>
    %749 = vector.broadcast %748 : f32 to vector<32x32xf32>
    %750 = arith.mulf %749, %743 : vector<32x32xf32>
    %751 = arith.addf %742, %750 : vector<32x32xf32>
    %752 = vector.extract_strided_slice %679 {offsets = [2, 2], sizes = [32, 32], strides = [1, 1]} : vector<34x34xf32> to vector<32x32xf32>
    %c134 = arith.constant 134 : index
    %753 = memref.load %arg2[%c134] : memref<198xf32, #tpu.memory_space<smem>>
    %754 = vector.broadcast %753 : f32 to vector<32x32xf32>
    %755 = arith.mulf %754, %752 : vector<32x32xf32>
    %756 = arith.addf %747, %755 : vector<32x32xf32>
    %c152 = arith.constant 152 : index
    %757 = memref.load %arg2[%c152] : memref<198xf32, #tpu.memory_space<smem>>
    %758 = vector.broadcast %757 : f32 to vector<32x32xf32>
    %759 = arith.mulf %758, %752 : vector<32x32xf32>
    %760 = arith.addf %751, %759 : vector<32x32xf32>
    %c1_100 = arith.constant 1 : index
    %c0_101 = arith.constant 0 : index
    %c0_102 = arith.constant 0 : index
    %761 = vector.load %arg9[%c1_100, %c0_101, %c0_102] : memref<2x34x34xf32, #tpu.memory_space<vmem>>, vector<1x34x34xf32>
    %762 = vector.shape_cast %761 : vector<1x34x34xf32> to vector<34x34xf32>
    %763 = vector.extract_strided_slice %762 {offsets = [0, 0], sizes = [32, 32], strides = [1, 1]} : vector<34x34xf32> to vector<32x32xf32>
    %c135 = arith.constant 135 : index
    %764 = memref.load %arg2[%c135] : memref<198xf32, #tpu.memory_space<smem>>
    %765 = vector.broadcast %764 : f32 to vector<32x32xf32>
    %766 = arith.mulf %765, %763 : vector<32x32xf32>
    %767 = arith.addf %756, %766 : vector<32x32xf32>
    %c153 = arith.constant 153 : index
    %768 = memref.load %arg2[%c153] : memref<198xf32, #tpu.memory_space<smem>>
    %769 = vector.broadcast %768 : f32 to vector<32x32xf32>
    %770 = arith.mulf %769, %763 : vector<32x32xf32>
    %771 = arith.addf %760, %770 : vector<32x32xf32>
    %772 = vector.extract_strided_slice %762 {offsets = [0, 1], sizes = [32, 32], strides = [1, 1]} : vector<34x34xf32> to vector<32x32xf32>
    %c136 = arith.constant 136 : index
    %773 = memref.load %arg2[%c136] : memref<198xf32, #tpu.memory_space<smem>>
    %774 = vector.broadcast %773 : f32 to vector<32x32xf32>
    %775 = arith.mulf %774, %772 : vector<32x32xf32>
    %776 = arith.addf %767, %775 : vector<32x32xf32>
    %c154 = arith.constant 154 : index
    %777 = memref.load %arg2[%c154] : memref<198xf32, #tpu.memory_space<smem>>
    %778 = vector.broadcast %777 : f32 to vector<32x32xf32>
    %779 = arith.mulf %778, %772 : vector<32x32xf32>
    %780 = arith.addf %771, %779 : vector<32x32xf32>
    %781 = vector.extract_strided_slice %762 {offsets = [0, 2], sizes = [32, 32], strides = [1, 1]} : vector<34x34xf32> to vector<32x32xf32>
    %c137 = arith.constant 137 : index
    %782 = memref.load %arg2[%c137] : memref<198xf32, #tpu.memory_space<smem>>
    %783 = vector.broadcast %782 : f32 to vector<32x32xf32>
    %784 = arith.mulf %783, %781 : vector<32x32xf32>
    %785 = arith.addf %776, %784 : vector<32x32xf32>
    %c155 = arith.constant 155 : index
    %786 = memref.load %arg2[%c155] : memref<198xf32, #tpu.memory_space<smem>>
    %787 = vector.broadcast %786 : f32 to vector<32x32xf32>
    %788 = arith.mulf %787, %781 : vector<32x32xf32>
    %789 = arith.addf %780, %788 : vector<32x32xf32>
    %790 = vector.extract_strided_slice %762 {offsets = [1, 0], sizes = [32, 32], strides = [1, 1]} : vector<34x34xf32> to vector<32x32xf32>
    %c138 = arith.constant 138 : index
    %791 = memref.load %arg2[%c138] : memref<198xf32, #tpu.memory_space<smem>>
    %792 = vector.broadcast %791 : f32 to vector<32x32xf32>
    %793 = arith.mulf %792, %790 : vector<32x32xf32>
    %794 = arith.addf %785, %793 : vector<32x32xf32>
    %c156 = arith.constant 156 : index
    %795 = memref.load %arg2[%c156] : memref<198xf32, #tpu.memory_space<smem>>
    %796 = vector.broadcast %795 : f32 to vector<32x32xf32>
    %797 = arith.mulf %796, %790 : vector<32x32xf32>
    %798 = arith.addf %789, %797 : vector<32x32xf32>
    %799 = vector.extract_strided_slice %762 {offsets = [1, 1], sizes = [32, 32], strides = [1, 1]} : vector<34x34xf32> to vector<32x32xf32>
    %c139 = arith.constant 139 : index
    %800 = memref.load %arg2[%c139] : memref<198xf32, #tpu.memory_space<smem>>
    %801 = vector.broadcast %800 : f32 to vector<32x32xf32>
    %802 = arith.mulf %801, %799 : vector<32x32xf32>
    %803 = arith.addf %794, %802 : vector<32x32xf32>
    %c157 = arith.constant 157 : index
    %804 = memref.load %arg2[%c157] : memref<198xf32, #tpu.memory_space<smem>>
    %805 = vector.broadcast %804 : f32 to vector<32x32xf32>
    %806 = arith.mulf %805, %799 : vector<32x32xf32>
    %807 = arith.addf %798, %806 : vector<32x32xf32>
    %808 = vector.extract_strided_slice %762 {offsets = [1, 2], sizes = [32, 32], strides = [1, 1]} : vector<34x34xf32> to vector<32x32xf32>
    %c140 = arith.constant 140 : index
    %809 = memref.load %arg2[%c140] : memref<198xf32, #tpu.memory_space<smem>>
    %810 = vector.broadcast %809 : f32 to vector<32x32xf32>
    %811 = arith.mulf %810, %808 : vector<32x32xf32>
    %812 = arith.addf %803, %811 : vector<32x32xf32>
    %c158 = arith.constant 158 : index
    %813 = memref.load %arg2[%c158] : memref<198xf32, #tpu.memory_space<smem>>
    %814 = vector.broadcast %813 : f32 to vector<32x32xf32>
    %815 = arith.mulf %814, %808 : vector<32x32xf32>
    %816 = arith.addf %807, %815 : vector<32x32xf32>
    %817 = vector.extract_strided_slice %762 {offsets = [2, 0], sizes = [32, 32], strides = [1, 1]} : vector<34x34xf32> to vector<32x32xf32>
    %c141 = arith.constant 141 : index
    %818 = memref.load %arg2[%c141] : memref<198xf32, #tpu.memory_space<smem>>
    %819 = vector.broadcast %818 : f32 to vector<32x32xf32>
    %820 = arith.mulf %819, %817 : vector<32x32xf32>
    %821 = arith.addf %812, %820 : vector<32x32xf32>
    %c159 = arith.constant 159 : index
    %822 = memref.load %arg2[%c159] : memref<198xf32, #tpu.memory_space<smem>>
    %823 = vector.broadcast %822 : f32 to vector<32x32xf32>
    %824 = arith.mulf %823, %817 : vector<32x32xf32>
    %825 = arith.addf %816, %824 : vector<32x32xf32>
    %826 = vector.extract_strided_slice %762 {offsets = [2, 1], sizes = [32, 32], strides = [1, 1]} : vector<34x34xf32> to vector<32x32xf32>
    %c142 = arith.constant 142 : index
    %827 = memref.load %arg2[%c142] : memref<198xf32, #tpu.memory_space<smem>>
    %828 = vector.broadcast %827 : f32 to vector<32x32xf32>
    %829 = arith.mulf %828, %826 : vector<32x32xf32>
    %830 = arith.addf %821, %829 : vector<32x32xf32>
    %c160 = arith.constant 160 : index
    %831 = memref.load %arg2[%c160] : memref<198xf32, #tpu.memory_space<smem>>
    %832 = vector.broadcast %831 : f32 to vector<32x32xf32>
    %833 = arith.mulf %832, %826 : vector<32x32xf32>
    %834 = arith.addf %825, %833 : vector<32x32xf32>
    %835 = vector.extract_strided_slice %762 {offsets = [2, 2], sizes = [32, 32], strides = [1, 1]} : vector<34x34xf32> to vector<32x32xf32>
    %c143 = arith.constant 143 : index
    %836 = memref.load %arg2[%c143] : memref<198xf32, #tpu.memory_space<smem>>
    %837 = vector.broadcast %836 : f32 to vector<32x32xf32>
    %838 = arith.mulf %837, %835 : vector<32x32xf32>
    %839 = arith.addf %830, %838 : vector<32x32xf32>
    %c161 = arith.constant 161 : index
    %840 = memref.load %arg2[%c161] : memref<198xf32, #tpu.memory_space<smem>>
    %841 = vector.broadcast %840 : f32 to vector<32x32xf32>
    %842 = arith.mulf %841, %835 : vector<32x32xf32>
    %843 = arith.addf %834, %842 : vector<32x32xf32>
    %c6_103 = arith.constant 6 : index
    %844 = memref.load %arg3[%c6_103] : memref<10xf32, #tpu.memory_space<smem>>
    %845 = vector.broadcast %844 : f32 to vector<32x32xf32>
    %846 = arith.mulf %839, %845 : vector<32x32xf32>
    %c6_104 = arith.constant 6 : index
    %847 = memref.load %arg4[%c6_104] : memref<10xf32, #tpu.memory_space<smem>>
    %848 = vector.broadcast %847 : f32 to vector<32x32xf32>
    %849 = arith.addf %846, %848 : vector<32x32xf32>
    %cst_105 = arith.constant 0.000000e+00 : f32
    %850 = vector.broadcast %cst_105 : f32 to vector<32x32xf32>
    %851 = arith.maximumf %849, %850 : vector<32x32xf32>
    %c7_106 = arith.constant 7 : index
    %852 = memref.load %arg3[%c7_106] : memref<10xf32, #tpu.memory_space<smem>>
    %853 = vector.broadcast %852 : f32 to vector<32x32xf32>
    %854 = arith.mulf %843, %853 : vector<32x32xf32>
    %c7_107 = arith.constant 7 : index
    %855 = memref.load %arg4[%c7_107] : memref<10xf32, #tpu.memory_space<smem>>
    %856 = vector.broadcast %855 : f32 to vector<32x32xf32>
    %857 = arith.addf %854, %856 : vector<32x32xf32>
    %cst_108 = arith.constant 0.000000e+00 : f32
    %858 = vector.broadcast %cst_108 : f32 to vector<32x32xf32>
    %859 = arith.maximumf %857, %858 : vector<32x32xf32>
    %c0_109 = arith.constant 0 : index
    %c1_110 = arith.constant 1 : index
    %c1_111 = arith.constant 1 : index
    %860 = vector.load %arg10[%c0_109, %c1_110, %c1_111] : memref<2x34x34xf32, #tpu.memory_space<vmem>>, vector<1x32x32xf32>
    %861 = vector.shape_cast %860 : vector<1x32x32xf32> to vector<32x32xf32>
    %862 = vector.shape_cast %851 : vector<32x32xf32> to vector<1x32x32xf32>
    tpu.vector_store %arg10[%c0_109, %c1_110, %c1_111], %862 {strides = array<i32>} : memref<2x34x34xf32, #tpu.memory_space<vmem>>, vector<1x32x32xf32>,
    %c1_112 = arith.constant 1 : index
    %c1_113 = arith.constant 1 : index
    %c1_114 = arith.constant 1 : index
    %863 = vector.load %arg10[%c1_112, %c1_113, %c1_114] : memref<2x34x34xf32, #tpu.memory_space<vmem>>, vector<1x32x32xf32>
    %864 = vector.shape_cast %863 : vector<1x32x32xf32> to vector<32x32xf32>
    %865 = vector.shape_cast %859 : vector<32x32xf32> to vector<1x32x32xf32>
    tpu.vector_store %arg10[%c1_112, %c1_113, %c1_114], %865 {strides = array<i32>} : memref<2x34x34xf32, #tpu.memory_space<vmem>>, vector<1x32x32xf32>,
    %cst_115 = arith.constant 0.000000e+00 : f32
    %866 = vector.broadcast %cst_115 : f32 to vector<32x32xf32>
    %cst_116 = arith.constant 0.000000e+00 : f32
    %867 = vector.broadcast %cst_116 : f32 to vector<32x32xf32>
    %c0_117 = arith.constant 0 : index
    %c0_118 = arith.constant 0 : index
    %c0_119 = arith.constant 0 : index
    %868 = vector.load %arg10[%c0_117, %c0_118, %c0_119] : memref<2x34x34xf32, #tpu.memory_space<vmem>>, vector<1x34x34xf32>
    %869 = vector.shape_cast %868 : vector<1x34x34xf32> to vector<34x34xf32>
    %870 = vector.extract_strided_slice %869 {offsets = [0, 0], sizes = [32, 32], strides = [1, 1]} : vector<34x34xf32> to vector<32x32xf32>
    %c162 = arith.constant 162 : index
    %871 = memref.load %arg2[%c162] : memref<198xf32, #tpu.memory_space<smem>>
    %872 = vector.broadcast %871 : f32 to vector<32x32xf32>
    %873 = arith.mulf %872, %870 : vector<32x32xf32>
    %874 = arith.addf %866, %873 : vector<32x32xf32>
    %c180 = arith.constant 180 : index
    %875 = memref.load %arg2[%c180] : memref<198xf32, #tpu.memory_space<smem>>
    %876 = vector.broadcast %875 : f32 to vector<32x32xf32>
    %877 = arith.mulf %876, %870 : vector<32x32xf32>
    %878 = arith.addf %867, %877 : vector<32x32xf32>
    %879 = vector.extract_strided_slice %869 {offsets = [0, 1], sizes = [32, 32], strides = [1, 1]} : vector<34x34xf32> to vector<32x32xf32>
    %c163 = arith.constant 163 : index
    %880 = memref.load %arg2[%c163] : memref<198xf32, #tpu.memory_space<smem>>
    %881 = vector.broadcast %880 : f32 to vector<32x32xf32>
    %882 = arith.mulf %881, %879 : vector<32x32xf32>
    %883 = arith.addf %874, %882 : vector<32x32xf32>
    %c181 = arith.constant 181 : index
    %884 = memref.load %arg2[%c181] : memref<198xf32, #tpu.memory_space<smem>>
    %885 = vector.broadcast %884 : f32 to vector<32x32xf32>
    %886 = arith.mulf %885, %879 : vector<32x32xf32>
    %887 = arith.addf %878, %886 : vector<32x32xf32>
    %888 = vector.extract_strided_slice %869 {offsets = [0, 2], sizes = [32, 32], strides = [1, 1]} : vector<34x34xf32> to vector<32x32xf32>
    %c164 = arith.constant 164 : index
    %889 = memref.load %arg2[%c164] : memref<198xf32, #tpu.memory_space<smem>>
    %890 = vector.broadcast %889 : f32 to vector<32x32xf32>
    %891 = arith.mulf %890, %888 : vector<32x32xf32>
    %892 = arith.addf %883, %891 : vector<32x32xf32>
    %c182 = arith.constant 182 : index
    %893 = memref.load %arg2[%c182] : memref<198xf32, #tpu.memory_space<smem>>
    %894 = vector.broadcast %893 : f32 to vector<32x32xf32>
    %895 = arith.mulf %894, %888 : vector<32x32xf32>
    %896 = arith.addf %887, %895 : vector<32x32xf32>
    %897 = vector.extract_strided_slice %869 {offsets = [1, 0], sizes = [32, 32], strides = [1, 1]} : vector<34x34xf32> to vector<32x32xf32>
    %c165 = arith.constant 165 : index
    %898 = memref.load %arg2[%c165] : memref<198xf32, #tpu.memory_space<smem>>
    %899 = vector.broadcast %898 : f32 to vector<32x32xf32>
    %900 = arith.mulf %899, %897 : vector<32x32xf32>
    %901 = arith.addf %892, %900 : vector<32x32xf32>
    %c183 = arith.constant 183 : index
    %902 = memref.load %arg2[%c183] : memref<198xf32, #tpu.memory_space<smem>>
    %903 = vector.broadcast %902 : f32 to vector<32x32xf32>
    %904 = arith.mulf %903, %897 : vector<32x32xf32>
    %905 = arith.addf %896, %904 : vector<32x32xf32>
    %906 = vector.extract_strided_slice %869 {offsets = [1, 1], sizes = [32, 32], strides = [1, 1]} : vector<34x34xf32> to vector<32x32xf32>
    %c166 = arith.constant 166 : index
    %907 = memref.load %arg2[%c166] : memref<198xf32, #tpu.memory_space<smem>>
    %908 = vector.broadcast %907 : f32 to vector<32x32xf32>
    %909 = arith.mulf %908, %906 : vector<32x32xf32>
    %910 = arith.addf %901, %909 : vector<32x32xf32>
    %c184 = arith.constant 184 : index
    %911 = memref.load %arg2[%c184] : memref<198xf32, #tpu.memory_space<smem>>
    %912 = vector.broadcast %911 : f32 to vector<32x32xf32>
    %913 = arith.mulf %912, %906 : vector<32x32xf32>
    %914 = arith.addf %905, %913 : vector<32x32xf32>
    %915 = vector.extract_strided_slice %869 {offsets = [1, 2], sizes = [32, 32], strides = [1, 1]} : vector<34x34xf32> to vector<32x32xf32>
    %c167 = arith.constant 167 : index
    %916 = memref.load %arg2[%c167] : memref<198xf32, #tpu.memory_space<smem>>
    %917 = vector.broadcast %916 : f32 to vector<32x32xf32>
    %918 = arith.mulf %917, %915 : vector<32x32xf32>
    %919 = arith.addf %910, %918 : vector<32x32xf32>
    %c185 = arith.constant 185 : index
    %920 = memref.load %arg2[%c185] : memref<198xf32, #tpu.memory_space<smem>>
    %921 = vector.broadcast %920 : f32 to vector<32x32xf32>
    %922 = arith.mulf %921, %915 : vector<32x32xf32>
    %923 = arith.addf %914, %922 : vector<32x32xf32>
    %924 = vector.extract_strided_slice %869 {offsets = [2, 0], sizes = [32, 32], strides = [1, 1]} : vector<34x34xf32> to vector<32x32xf32>
    %c168 = arith.constant 168 : index
    %925 = memref.load %arg2[%c168] : memref<198xf32, #tpu.memory_space<smem>>
    %926 = vector.broadcast %925 : f32 to vector<32x32xf32>
    %927 = arith.mulf %926, %924 : vector<32x32xf32>
    %928 = arith.addf %919, %927 : vector<32x32xf32>
    %c186 = arith.constant 186 : index
    %929 = memref.load %arg2[%c186] : memref<198xf32, #tpu.memory_space<smem>>
    %930 = vector.broadcast %929 : f32 to vector<32x32xf32>
    %931 = arith.mulf %930, %924 : vector<32x32xf32>
    %932 = arith.addf %923, %931 : vector<32x32xf32>
    %933 = vector.extract_strided_slice %869 {offsets = [2, 1], sizes = [32, 32], strides = [1, 1]} : vector<34x34xf32> to vector<32x32xf32>
    %c169 = arith.constant 169 : index
    %934 = memref.load %arg2[%c169] : memref<198xf32, #tpu.memory_space<smem>>
    %935 = vector.broadcast %934 : f32 to vector<32x32xf32>
    %936 = arith.mulf %935, %933 : vector<32x32xf32>
    %937 = arith.addf %928, %936 : vector<32x32xf32>
    %c187 = arith.constant 187 : index
    %938 = memref.load %arg2[%c187] : memref<198xf32, #tpu.memory_space<smem>>
    %939 = vector.broadcast %938 : f32 to vector<32x32xf32>
    %940 = arith.mulf %939, %933 : vector<32x32xf32>
    %941 = arith.addf %932, %940 : vector<32x32xf32>
    %942 = vector.extract_strided_slice %869 {offsets = [2, 2], sizes = [32, 32], strides = [1, 1]} : vector<34x34xf32> to vector<32x32xf32>
    %c170 = arith.constant 170 : index
    %943 = memref.load %arg2[%c170] : memref<198xf32, #tpu.memory_space<smem>>
    %944 = vector.broadcast %943 : f32 to vector<32x32xf32>
    %945 = arith.mulf %944, %942 : vector<32x32xf32>
    %946 = arith.addf %937, %945 : vector<32x32xf32>
    %c188 = arith.constant 188 : index
    %947 = memref.load %arg2[%c188] : memref<198xf32, #tpu.memory_space<smem>>
    %948 = vector.broadcast %947 : f32 to vector<32x32xf32>
    %949 = arith.mulf %948, %942 : vector<32x32xf32>
    %950 = arith.addf %941, %949 : vector<32x32xf32>
    %c1_120 = arith.constant 1 : index
    %c0_121 = arith.constant 0 : index
    %c0_122 = arith.constant 0 : index
    %951 = vector.load %arg10[%c1_120, %c0_121, %c0_122] : memref<2x34x34xf32, #tpu.memory_space<vmem>>, vector<1x34x34xf32>
    %952 = vector.shape_cast %951 : vector<1x34x34xf32> to vector<34x34xf32>
    %953 = vector.extract_strided_slice %952 {offsets = [0, 0], sizes = [32, 32], strides = [1, 1]} : vector<34x34xf32> to vector<32x32xf32>
    %c171 = arith.constant 171 : index
    %954 = memref.load %arg2[%c171] : memref<198xf32, #tpu.memory_space<smem>>
    %955 = vector.broadcast %954 : f32 to vector<32x32xf32>
    %956 = arith.mulf %955, %953 : vector<32x32xf32>
    %957 = arith.addf %946, %956 : vector<32x32xf32>
    %c189 = arith.constant 189 : index
    %958 = memref.load %arg2[%c189] : memref<198xf32, #tpu.memory_space<smem>>
    %959 = vector.broadcast %958 : f32 to vector<32x32xf32>
    %960 = arith.mulf %959, %953 : vector<32x32xf32>
    %961 = arith.addf %950, %960 : vector<32x32xf32>
    %962 = vector.extract_strided_slice %952 {offsets = [0, 1], sizes = [32, 32], strides = [1, 1]} : vector<34x34xf32> to vector<32x32xf32>
    %c172 = arith.constant 172 : index
    %963 = memref.load %arg2[%c172] : memref<198xf32, #tpu.memory_space<smem>>
    %964 = vector.broadcast %963 : f32 to vector<32x32xf32>
    %965 = arith.mulf %964, %962 : vector<32x32xf32>
    %966 = arith.addf %957, %965 : vector<32x32xf32>
    %c190 = arith.constant 190 : index
    %967 = memref.load %arg2[%c190] : memref<198xf32, #tpu.memory_space<smem>>
    %968 = vector.broadcast %967 : f32 to vector<32x32xf32>
    %969 = arith.mulf %968, %962 : vector<32x32xf32>
    %970 = arith.addf %961, %969 : vector<32x32xf32>
    %971 = vector.extract_strided_slice %952 {offsets = [0, 2], sizes = [32, 32], strides = [1, 1]} : vector<34x34xf32> to vector<32x32xf32>
    %c173 = arith.constant 173 : index
    %972 = memref.load %arg2[%c173] : memref<198xf32, #tpu.memory_space<smem>>
    %973 = vector.broadcast %972 : f32 to vector<32x32xf32>
    %974 = arith.mulf %973, %971 : vector<32x32xf32>
    %975 = arith.addf %966, %974 : vector<32x32xf32>
    %c191 = arith.constant 191 : index
    %976 = memref.load %arg2[%c191] : memref<198xf32, #tpu.memory_space<smem>>
    %977 = vector.broadcast %976 : f32 to vector<32x32xf32>
    %978 = arith.mulf %977, %971 : vector<32x32xf32>
    %979 = arith.addf %970, %978 : vector<32x32xf32>
    %980 = vector.extract_strided_slice %952 {offsets = [1, 0], sizes = [32, 32], strides = [1, 1]} : vector<34x34xf32> to vector<32x32xf32>
    %c174 = arith.constant 174 : index
    %981 = memref.load %arg2[%c174] : memref<198xf32, #tpu.memory_space<smem>>
    %982 = vector.broadcast %981 : f32 to vector<32x32xf32>
    %983 = arith.mulf %982, %980 : vector<32x32xf32>
    %984 = arith.addf %975, %983 : vector<32x32xf32>
    %c192 = arith.constant 192 : index
    %985 = memref.load %arg2[%c192] : memref<198xf32, #tpu.memory_space<smem>>
    %986 = vector.broadcast %985 : f32 to vector<32x32xf32>
    %987 = arith.mulf %986, %980 : vector<32x32xf32>
    %988 = arith.addf %979, %987 : vector<32x32xf32>
    %989 = vector.extract_strided_slice %952 {offsets = [1, 1], sizes = [32, 32], strides = [1, 1]} : vector<34x34xf32> to vector<32x32xf32>
    %c175 = arith.constant 175 : index
    %990 = memref.load %arg2[%c175] : memref<198xf32, #tpu.memory_space<smem>>
    %991 = vector.broadcast %990 : f32 to vector<32x32xf32>
    %992 = arith.mulf %991, %989 : vector<32x32xf32>
    %993 = arith.addf %984, %992 : vector<32x32xf32>
    %c193 = arith.constant 193 : index
    %994 = memref.load %arg2[%c193] : memref<198xf32, #tpu.memory_space<smem>>
    %995 = vector.broadcast %994 : f32 to vector<32x32xf32>
    %996 = arith.mulf %995, %989 : vector<32x32xf32>
    %997 = arith.addf %988, %996 : vector<32x32xf32>
    %998 = vector.extract_strided_slice %952 {offsets = [1, 2], sizes = [32, 32], strides = [1, 1]} : vector<34x34xf32> to vector<32x32xf32>
    %c176 = arith.constant 176 : index
    %999 = memref.load %arg2[%c176] : memref<198xf32, #tpu.memory_space<smem>>
    %1000 = vector.broadcast %999 : f32 to vector<32x32xf32>
    %1001 = arith.mulf %1000, %998 : vector<32x32xf32>
    %1002 = arith.addf %993, %1001 : vector<32x32xf32>
    %c194 = arith.constant 194 : index
    %1003 = memref.load %arg2[%c194] : memref<198xf32, #tpu.memory_space<smem>>
    %1004 = vector.broadcast %1003 : f32 to vector<32x32xf32>
    %1005 = arith.mulf %1004, %998 : vector<32x32xf32>
    %1006 = arith.addf %997, %1005 : vector<32x32xf32>
    %1007 = vector.extract_strided_slice %952 {offsets = [2, 0], sizes = [32, 32], strides = [1, 1]} : vector<34x34xf32> to vector<32x32xf32>
    %c177 = arith.constant 177 : index
    %1008 = memref.load %arg2[%c177] : memref<198xf32, #tpu.memory_space<smem>>
    %1009 = vector.broadcast %1008 : f32 to vector<32x32xf32>
    %1010 = arith.mulf %1009, %1007 : vector<32x32xf32>
    %1011 = arith.addf %1002, %1010 : vector<32x32xf32>
    %c195 = arith.constant 195 : index
    %1012 = memref.load %arg2[%c195] : memref<198xf32, #tpu.memory_space<smem>>
    %1013 = vector.broadcast %1012 : f32 to vector<32x32xf32>
    %1014 = arith.mulf %1013, %1007 : vector<32x32xf32>
    %1015 = arith.addf %1006, %1014 : vector<32x32xf32>
    %1016 = vector.extract_strided_slice %952 {offsets = [2, 1], sizes = [32, 32], strides = [1, 1]} : vector<34x34xf32> to vector<32x32xf32>
    %c178 = arith.constant 178 : index
    %1017 = memref.load %arg2[%c178] : memref<198xf32, #tpu.memory_space<smem>>
    %1018 = vector.broadcast %1017 : f32 to vector<32x32xf32>
    %1019 = arith.mulf %1018, %1016 : vector<32x32xf32>
    %1020 = arith.addf %1011, %1019 : vector<32x32xf32>
    %c196 = arith.constant 196 : index
    %1021 = memref.load %arg2[%c196] : memref<198xf32, #tpu.memory_space<smem>>
    %1022 = vector.broadcast %1021 : f32 to vector<32x32xf32>
    %1023 = arith.mulf %1022, %1016 : vector<32x32xf32>
    %1024 = arith.addf %1015, %1023 : vector<32x32xf32>
    %1025 = vector.extract_strided_slice %952 {offsets = [2, 2], sizes = [32, 32], strides = [1, 1]} : vector<34x34xf32> to vector<32x32xf32>
    %c179 = arith.constant 179 : index
    %1026 = memref.load %arg2[%c179] : memref<198xf32, #tpu.memory_space<smem>>
    %1027 = vector.broadcast %1026 : f32 to vector<32x32xf32>
    %1028 = arith.mulf %1027, %1025 : vector<32x32xf32>
    %1029 = arith.addf %1020, %1028 : vector<32x32xf32>
    %c197 = arith.constant 197 : index
    %1030 = memref.load %arg2[%c197] : memref<198xf32, #tpu.memory_space<smem>>
    %1031 = vector.broadcast %1030 : f32 to vector<32x32xf32>
    %1032 = arith.mulf %1031, %1025 : vector<32x32xf32>
    %1033 = arith.addf %1024, %1032 : vector<32x32xf32>
    %c8_123 = arith.constant 8 : index
    %1034 = memref.load %arg3[%c8_123] : memref<10xf32, #tpu.memory_space<smem>>
    %1035 = vector.broadcast %1034 : f32 to vector<32x32xf32>
    %1036 = arith.mulf %1029, %1035 : vector<32x32xf32>
    %c8_124 = arith.constant 8 : index
    %1037 = memref.load %arg4[%c8_124] : memref<10xf32, #tpu.memory_space<smem>>
    %1038 = vector.broadcast %1037 : f32 to vector<32x32xf32>
    %1039 = arith.addf %1036, %1038 : vector<32x32xf32>
    %1040 = arith.addf %1039, %660 : vector<32x32xf32>
    %cst_125 = arith.constant 0.000000e+00 : f32
    %1041 = vector.broadcast %cst_125 : f32 to vector<32x32xf32>
    %1042 = arith.maximumf %1040, %1041 : vector<32x32xf32>
    %c9_126 = arith.constant 9 : index
    %1043 = memref.load %arg3[%c9_126] : memref<10xf32, #tpu.memory_space<smem>>
    %1044 = vector.broadcast %1043 : f32 to vector<32x32xf32>
    %1045 = arith.mulf %1033, %1044 : vector<32x32xf32>
    %c9_127 = arith.constant 9 : index
    %1046 = memref.load %arg4[%c9_127] : memref<10xf32, #tpu.memory_space<smem>>
    %1047 = vector.broadcast %1046 : f32 to vector<32x32xf32>
    %1048 = arith.addf %1045, %1047 : vector<32x32xf32>
    %1049 = arith.addf %1048, %669 : vector<32x32xf32>
    %cst_128 = arith.constant 0.000000e+00 : f32
    %1050 = vector.broadcast %cst_128 : f32 to vector<32x32xf32>
    %1051 = arith.maximumf %1049, %1050 : vector<32x32xf32>
    %c0_129 = arith.constant 0 : index
    %c0_130 = arith.constant 0 : index
    %1052 = vector.load %arg6[%c0_129, %c0_130] : memref<1x10xf32, #tpu.memory_space<vmem>>, vector<1x10xf32>
    %cst_131 = arith.constant dense<0.000000e+00> : vector<32xf32>
    %1053 = vector.multi_reduction <add>, %1042, %cst_131 [0] : vector<32x32xf32> to vector<32xf32>
    %1054 = vector.shape_cast %1053 : vector<32xf32> to vector<1x32xf32>
    %cst_132 = arith.constant dense<0.000000e+00> : vector<1xf32>
    %1055 = vector.multi_reduction <add>, %1054, %cst_132 [1] : vector<1x32xf32> to vector<1xf32>
    %1056 = vector.shape_cast %1055 : vector<1xf32> to vector<1x1xf32>
    %cst_133 = arith.constant 9.765625E-4 : f32
    %1057 = vector.broadcast %cst_133 : f32 to vector<1x1xf32>
    %1058 = arith.mulf %1056, %1057 : vector<1x1xf32>
    %c0_134 = arith.constant 0 : index
    %c0_135 = arith.constant 0 : index
    %1059 = vector.load %arg5[%c0_134, %c0_135] : memref<2x10xf32, #tpu.memory_space<vmem>>, vector<1x10xf32>
    %1060 = vector.broadcast %1058 : vector<1x1xf32> to vector<1x10xf32>
    %1061 = arith.mulf %1060, %1059 : vector<1x10xf32>
    %1062 = arith.addf %1052, %1061 : vector<1x10xf32>
    %cst_136 = arith.constant dense<0.000000e+00> : vector<32xf32>
    %1063 = vector.multi_reduction <add>, %1051, %cst_136 [0] : vector<32x32xf32> to vector<32xf32>
    %1064 = vector.shape_cast %1063 : vector<32xf32> to vector<1x32xf32>
    %cst_137 = arith.constant dense<0.000000e+00> : vector<1xf32>
    %1065 = vector.multi_reduction <add>, %1064, %cst_137 [1] : vector<1x32xf32> to vector<1xf32>
    %1066 = vector.shape_cast %1065 : vector<1xf32> to vector<1x1xf32>
    %cst_138 = arith.constant 9.765625E-4 : f32
    %1067 = vector.broadcast %cst_138 : f32 to vector<1x1xf32>
    %1068 = arith.mulf %1066, %1067 : vector<1x1xf32>
    %c1_139 = arith.constant 1 : index
    %c0_140 = arith.constant 0 : index
    %1069 = vector.load %arg5[%c1_139, %c0_140] : memref<2x10xf32, #tpu.memory_space<vmem>>, vector<1x10xf32>
    %1070 = vector.broadcast %1068 : vector<1x1xf32> to vector<1x10xf32>
    %1071 = arith.mulf %1070, %1069 : vector<1x10xf32>
    %1072 = arith.addf %1062, %1071 : vector<1x10xf32>
    %c0_141 = arith.constant 0 : index
    %c0_142 = arith.constant 0 : index
    %c0_143 = arith.constant 0 : index
    %1073 = vector.load %arg7[%c0_141, %c0_142, %c0_143] : memref<1x1x10xf32, #tpu.memory_space<vmem>>, vector<1x1x10xf32>
    %1074 = vector.shape_cast %1073 : vector<1x1x10xf32> to vector<1x10xf32>
    %1075 = vector.shape_cast %1072 : vector<1x10xf32> to vector<1x1x10xf32>
    tpu.vector_store %arg7[%c0_141, %c0_142, %c0_143], %1075 {strides = array<i32>} : memref<1x1x10xf32, #tpu.memory_space<vmem>>, vector<1x1x10xf32>,
    return
  }
  func.func @transform_0(%arg0: i32) -> (i32, i32, i32, i32) {
    %c0_i32 = arith.constant 0 : i32
    %c0_i32_0 = arith.constant 0 : i32
    %c0_i32_1 = arith.constant 0 : i32
    %c0_i32_2 = arith.constant 0 : i32
    return %arg0, %c0_i32, %c0_i32_0, %c0_i32_1 : i32, i32, i32, i32
  }
  func.func @transform_1(%arg0: i32) -> i32 {
    %c0_i32 = arith.constant 0 : i32
    %c0_i32_0 = arith.constant 0 : i32
    return %c0_i32 : i32
  }
  func.func @transform_2(%arg0: i32) -> i32 {
    %c0_i32 = arith.constant 0 : i32
    %c0_i32_0 = arith.constant 0 : i32
    return %c0_i32 : i32
  }
  func.func @transform_3(%arg0: i32) -> i32 {
    %c0_i32 = arith.constant 0 : i32
    %c0_i32_0 = arith.constant 0 : i32
    return %c0_i32 : i32
  }
  func.func @transform_4(%arg0: i32) -> (i32, i32) {
    %c0_i32 = arith.constant 0 : i32
    %c0_i32_0 = arith.constant 0 : i32
    %c0_i32_1 = arith.constant 0 : i32
    return %c0_i32, %c0_i32_0 : i32, i32
  }
  func.func @transform_5(%arg0: i32) -> (i32, i32) {
    %c0_i32 = arith.constant 0 : i32
    %c0_i32_0 = arith.constant 0 : i32
    %c0_i32_1 = arith.constant 0 : i32
    return %c0_i32, %c0_i32_0 : i32, i32
  }
  func.func @transform_6(%arg0: i32) -> (i32, i32, i32) {
    %c0_i32 = arith.constant 0 : i32
    %c0_i32_0 = arith.constant 0 : i32
    %c0_i32_1 = arith.constant 0 : i32
    return %arg0, %c0_i32, %c0_i32_0 : i32, i32, i32
  }
}

</mosaic_0001>

<llo_original>
// kernel: resnet_forward.1
$region0: #{resnet_forward.1}
  #allocation0 [shape = 'u32[]', space=smem, size = 0x4, offset = 0x4, fixed_abs, tag = 'smem constant byte address 0x4 - core index']
  #allocation1 [shape = 'u32[72,128]{1,0:T(1,128)}', space=vmem, size = 0x9000, scoped, tag = 'internal scratch']
  #allocation2 [shape = 'f32[3,34,34]{2,1,0:T(8,128)}', space=vmem, size = 0xf000, scoped, tag = 'scratch operand']
  #allocation3 [shape = 'f32[2,34,34]{2,1,0:T(8,128)}', space=vmem, size = 0xa000, scoped, tag = 'scratch operand']
  #allocation4 [shape = 'f32[2,34,34]{2,1,0:T(8,128)}', space=vmem, size = 0xa000, scoped, tag = 'scratch operand']
  %s0 = inlined_call_operand.hbm [shape: f32[2,3,32,32], index: 0, kind: input, shape index: {}]
  %s1 = inlined_call_operand.vmem [shape: f32[198], index: 1, kind: input, shape index: {}]
  %s2 = inlined_call_operand.hbm [shape: f32[10], index: 2, kind: input, shape index: {}]
  %s3 = inlined_call_operand.hbm [shape: f32[10], index: 3, kind: input, shape index: {}]
  %s4 = inlined_call_operand.vmem [shape: f32[2,10], index: 4, kind: input, shape index: {}]
  %s5 = inlined_call_operand.hbm [shape: f32[1,10], index: 5, kind: input, shape index: {}]
  %s6 = inlined_call_operand.hbm [shape: f32[2,1,10], index: 6, kind: output, shape index: {}]
  %s7 = sld [smem:[#allocation0]]
  $region77: #{resnet_forward.1} parent=0
    _
  %s9 = ssub.s32 1, %s7
  %s10 = scalar_select 0, %s9, %s7
  $region1: #{resnet_forward.1} parent=0
    #allocation5 [shape = 'u8[98304]{0}', space=vmem, size = 0x18000, scoped, tag = 'input window, operand 0']
    #allocation6 [shape = 's32[2]{0}', space=sflag, size = 0x8, scoped, tag = 'scoped memory for resnet_forward.1']
    #allocation7 [shape = 's32[2]{0}', space=sflag, size = 0x8, scoped, tag = 'scoped memory for resnet_forward.1']
    #allocation8 [shape = 's32[2]{0}', space=sflag, size = 0x8, scoped, tag = 'scoped memory for resnet_forward.1']
    #allocation9 [shape = 's32[2]{0}', space=sflag, size = 0x8, scoped, tag = 'scoped memory for resnet_forward.1']
    #allocation10 [shape = 'u8[1024]{0}', space=smem, size = 0x400, scoped, tag = 'input window, operand 1, single buffered']
    #allocation11 [shape = 'u8[512]{0}', space=smem, size = 0x200, scoped, tag = 'input window, operand 2, single buffered']
    #allocation12 [shape = 'u8[512]{0}', space=smem, size = 0x200, scoped, tag = 'input window, operand 3, single buffered']
    #allocation13 [shape = 's32[1]{0}', space=sflag, size = 0x4, scoped, tag = 'scoped memory for resnet_forward.1']
    #allocation14 [shape = 'u8[512]{0}', space=vmem, size = 0x400, scoped, tag = 'input window, operand 5, single buffered']
    #allocation15 [shape = 's32[1]{0}', space=sflag, size = 0x4, scoped, tag = 'scoped memory for resnet_forward.1']
    #allocation16 [shape = 'u8[1024]{0}', space=vmem, size = 0x400, scoped, tag = 'output window, operand 0']
    %11 = vsyncpa [#allocation6], 0
    %s12 = scalar_lea.sflag [#allocation6], 1
    %13 = vsyncpa %s12, 0
    %14 = vsyncpa [#allocation9], 0
    %15 = vsyncpa [#allocation8], 0
    %16 = vsyncpa [#allocation13], 0
    %17 = vsyncpa [#allocation15], 0
    %18 = vsyncpa [#allocation7], 0
    %s19 = scalar_lea.sflag [#allocation7], 1
    %20 = vsyncpa %s19, 0
    loop: start=0, step=1, limit=4
    $region2: #{resnet_forward.1} parent=1 // loop_pre_header
      _
    $region3: #{resnet_forward.1} parent=1 // loop_header
      %s22 = sphi 0, %s26
      %p23 = scmp.ge.s32.totalorder %s22, 4
      %s32 = sphi 0, %s34
      %s35 = sphi 0, %s32
      %s36 = sphi 0, %s35
      %s52 = sphi 0, %s36
      %s56 = sphi 0, %s56
      %s58 = sphi 0, %s56
      %s59 = sphi 0, %s58
      %s73 = sphi 0, %s59
      %s77 = sphi 0, %s77
      %s79 = sphi 0, %s77
      %s80 = sphi 0, %s79
      %s94 = sphi 0, %s80
      %s98 = sphi 0, %s98
      %s100 = sphi 0, %s98
      %s101 = sphi 0, %s100
      %s115 = sphi 0, %s101
      %s119 = sphi 0, %s119
      %s121 = sphi 0, %s119
      %s122 = sphi 0, %s121
      %s136 = sphi 0, %s122
      %s140 = sphi 0, %s140
      %s142 = sphi 0, %s140
      %s143 = sphi 0, %s142
      %s157 = sphi 0, %s143
      %s163 = sphi 0, %s165
      %s166 = sphi 0, %s163
      %s167 = sphi 0, %s166
      %s183 = sphi 0, %s167
    $region4: #{resnet_forward.1} parent=1 // loop_header_branch
      %25 = sbr.rel (%p23) target = $region8
    $region5: #{resnet_forward.1} parent=1 // loop_body
      %s27 = ssub.s32 %s22, 1
      %s28 = ssub.s32 %s22, 2
      %s29 = sadd.s32 %s22, 1
      %s30 = ssub.s32 %s22, %s29
      %p31 = scmp.eq.s32.totalorder %s30, 0
      %s33 = sadd.s32 %s32, 1
      %s34 = scalar_select %p31, %s32, %s33
      %p37 = pneg %p31
      %p38 = scmp.eq.s32.totalorder %s22, 1
      %p39 = por %p37, %p38
      %p40 = scmp.ne.s32.totalorder %s32, %s35
      %p41 = scmp.eq.s32.totalorder %s22, 0
      %p42 = por %p40, %p41
      %p43 = scmp.ne.s32.totalorder %s32, %s35
      %p44 = scmp.eq.s32.totalorder %s27, 1
      %p45 = por %p43, %p44
      %p46 = scmp.ne.s32.totalorder %s35, %s36
      %p47 = scmp.eq.s32.totalorder %s27, 0
      %p48 = por %p46, %p47
      %p49 = scmp.ne.s32.totalorder %s35, %s36
      %p50 = scmp.eq.s32.totalorder %s28, 1
      %p51 = por %p49, %p50
      %p53 = scmp.ne.s32.totalorder %s36, %s52
      %p54 = scmp.eq.s32.totalorder %s28, 0
      %p55 = por %p53, %p54
      %s57 = sadd.s32 %s56, 1
      %p60 = scmp.eq.s32.totalorder %s22, 1
      %p61 = scmp.ne.s32.totalorder %s56, %s58
      %p62 = scmp.eq.s32.totalorder %s22, 0
      %p63 = por %p61, %p62
      %p64 = scmp.ne.s32.totalorder %s56, %s58
      %p65 = scmp.eq.s32.totalorder %s27, 1
      %p66 = por %p64, %p65
      %p67 = scmp.ne.s32.totalorder %s58, %s59
      %p68 = scmp.eq.s32.totalorder %s27, 0
      %p69 = por %p67, %p68
      %p70 = scmp.ne.s32.totalorder %s58, %s59
      %p71 = scmp.eq.s32.totalorder %s28, 1
      %p72 = por %p70, %p71
      %p74 = scmp.ne.s32.totalorder %s59, %s73
      %p75 = scmp.eq.s32.totalorder %s28, 0
      %p76 = por %p74, %p75
      %s78 = sadd.s32 %s77, 1
      %p81 = scmp.eq.s32.totalorder %s22, 1
      %p82 = scmp.ne.s32.totalorder %s77, %s79
      %p83 = scmp.eq.s32.totalorder %s22, 0
      %p84 = por %p82, %p83
      %p85 = scmp.ne.s32.totalorder %s77, %s79
      %p86 = scmp.eq.s32.totalorder %s27, 1
      %p87 = por %p85, %p86
      %p88 = scmp.ne.s32.totalorder %s79, %s80
      %p89 = scmp.eq.s32.totalorder %s27, 0
      %p90 = por %p88, %p89
      %p91 = scmp.ne.s32.totalorder %s79, %s80
      %p92 = scmp.eq.s32.totalorder %s28, 1
      %p93 = por %p91, %p92
      %p95 = scmp.ne.s32.totalorder %s80, %s94
      %p96 = scmp.eq.s32.totalorder %s28, 0
      %p97 = por %p95, %p96
      %s99 = sadd.s32 %s98, 1
      %p102 = scmp.eq.s32.totalorder %s22, 1
      %p103 = scmp.ne.s32.totalorder %s98, %s100
      %p104 = scmp.eq.s32.totalorder %s22, 0
      %p105 = por %p103, %p104
      %p106 = scmp.ne.s32.totalorder %s98, %s100
      %p107 = scmp.eq.s32.totalorder %s27, 1
      %p108 = por %p106, %p107
      %p109 = scmp.ne.s32.totalorder %s100, %s101
      %p110 = scmp.eq.s32.totalorder %s27, 0
      %p111 = por %p109, %p110
      %p112 = scmp.ne.s32.totalorder %s100, %s101
      %p113 = scmp.eq.s32.totalorder %s28, 1
      %p114 = por %p112, %p113
      %p116 = scmp.ne.s32.totalorder %s101, %s115
      %p117 = scmp.eq.s32.totalorder %s28, 0
      %p118 = por %p116, %p117
      %s120 = sadd.s32 %s119, 1
      %p123 = scmp.eq.s32.totalorder %s22, 1
      %p124 = scmp.ne.s32.totalorder %s119, %s121
      %p125 = scmp.eq.s32.totalorder %s22, 0
      %p126 = por %p124, %p125
      %p127 = scmp.ne.s32.totalorder %s119, %s121
      %p128 = scmp.eq.s32.totalorder %s27, 1
      %p129 = por %p127, %p128
      %p130 = scmp.ne.s32.totalorder %s121, %s122
      %p131 = scmp.eq.s32.totalorder %s27, 0
      %p132 = por %p130, %p131
      %p133 = scmp.ne.s32.totalorder %s121, %s122
      %p134 = scmp.eq.s32.totalorder %s28, 1
      %p135 = por %p133, %p134
      %p137 = scmp.ne.s32.totalorder %s122, %s136
      %p138 = scmp.eq.s32.totalorder %s28, 0
      %p139 = por %p137, %p138
      %s141 = sadd.s32 %s140, 1
      %p144 = scmp.eq.s32.totalorder %s22, 1
      %p145 = scmp.ne.s32.totalorder %s140, %s142
      %p146 = scmp.eq.s32.totalorder %s22, 0
      %p147 = por %p145, %p146
      %p148 = scmp.ne.s32.totalorder %s140, %s142
      %p149 = scmp.eq.s32.totalorder %s27, 1
      %p150 = por %p148, %p149
      %p151 = scmp.ne.s32.totalorder %s142, %s143
      %p152 = scmp.eq.s32.totalorder %s27, 0
      %p153 = por %p151, %p152
      %p154 = scmp.ne.s32.totalorder %s142, %s143
      %p155 = scmp.eq.s32.totalorder %s28, 1
      %p156 = por %p154, %p155
      %p158 = scmp.ne.s32.totalorder %s143, %s157
      %p159 = scmp.eq.s32.totalorder %s28, 0
      %p160 = por %p158, %p159
      %s161 = ssub.s32 %s22, %s29
      %p162 = scmp.eq.s32.totalorder %s161, 0
      %s164 = sadd.s32 %s163, 1
      %s165 = scalar_select %p162, %s163, %s164
      %p168 = pneg %p162
      %p169 = scmp.eq.s32.totalorder %s22, 1
      %p170 = por %p168, %p169
      %p171 = scmp.ne.s32.totalorder %s163, %s166
      %p172 = scmp.eq.s32.totalorder %s22, 0
      %p173 = por %p171, %p172
      %p174 = scmp.ne.s32.totalorder %s163, %s166
      %p175 = scmp.eq.s32.totalorder %s27, 1
      %p176 = por %p174, %p175
      %p177 = scmp.ne.s32.totalorder %s166, %s167
      %p178 = scmp.eq.s32.totalorder %s27, 0
      %p179 = por %p177, %p178
      %p180 = scmp.ne.s32.totalorder %s166, %s167
      %p181 = scmp.eq.s32.totalorder %s28, 1
      %p182 = por %p180, %p181
      %p184 = scmp.ne.s32.totalorder %s167, %s183
      %p185 = scmp.eq.s32.totalorder %s28, 0
      %p186 = por %p184, %p185
      %p187 = scmp.le.s32.totalorder 1, %s22
      %p188 = scmp.lt.s32.totalorder %s22, 3
      %p189 = pnand %p187, %p188
      %p190 = pneg %p189
      // Predicated region
      $region9: #{resnet_forward.1} parent=5 // pred_check
        _
      $region10: #{resnet_forward.1} parent=5 // pred_check_branch
        %192 = sbr.rel (%p189) target = $region12
      $region11: #{resnet_forward.1} parent=5 // pred_region
        %s193 = ssub.s32 %s22, 1
        // Predicated region
        $region13: #{resnet_forward.1} parent=11 // pred_check
          %p194 = pneg %p69
        $region14: #{resnet_forward.1} parent=11 // pred_check_branch
          %196 = sbr.rel (%p194) target = $region16
        $region15: #{resnet_forward.1} parent=11 // pred_region
          %198 = vsyncadd [#allocation9], 0
          %s200 = sshll.u32 %s1, 4
          %s201 = int_to_ptr.vmem [resolvable:$true] %s200
          %203 = dma.vmem_to_smem %s201, 32, [#allocation10], [#allocation9]
        $region16: #{resnet_forward.1} parent=11 // pred_fallthru
          _
        // Predicated region
        $region17: #{resnet_forward.1} parent=11 // pred_check
          %p204 = pneg %p90
        $region18: #{resnet_forward.1} parent=11 // pred_check_branch
          %206 = sbr.rel (%p204) target = $region20
        $region19: #{resnet_forward.1} parent=11 // pred_region
          %208 = vsyncadd [#allocation8], 0
          %s210 = sshll.u32 %s2, 4
          %s211 = int_to_ptr.hbm [resolvable:$true] %s210
          %213 = dma.hbm_to_smem %s211, 16, [#allocation11], [#allocation8]
        $region20: #{resnet_forward.1} parent=11 // pred_fallthru
          _
        // Predicated region
        $region21: #{resnet_forward.1} parent=11 // pred_check
          %p214 = pneg %p111
        $region22: #{resnet_forward.1} parent=11 // pred_check_branch
          %216 = sbr.rel (%p214) target = $region24
        $region23: #{resnet_forward.1} parent=11 // pred_region
          %218 = vsyncadd [#allocation13], 0
          %s220 = sshll.u32 %s3, 4
          %s221 = int_to_ptr.hbm [resolvable:$true] %s220
          %223 = dma.hbm_to_smem %s221, 16, [#allocation12], [#allocation13]
        $region24: #{resnet_forward.1} parent=11 // pred_fallthru
          _
        // Predicated region
        $region25: #{resnet_forward.1} parent=11 // pred_check
          %p224 = pneg %p132
        $region26: #{resnet_forward.1} parent=11 // pred_check_branch
          %226 = sbr.rel (%p224) target = $region28
        $region27: #{resnet_forward.1} parent=11 // pred_region
          _
        $region28: #{resnet_forward.1} parent=11 // pred_fallthru
          _
        // Predicated region
        $region29: #{resnet_forward.1} parent=11 // pred_check
          %p227 = pneg %p153
        $region30: #{resnet_forward.1} parent=11 // pred_check_branch
          %229 = sbr.rel (%p227) target = $region32
        $region31: #{resnet_forward.1} parent=11 // pred_region
          %231 = vsyncadd [#allocation15], 0
          %s233 = sshll.u32 %s5, 4
          %s234 = int_to_ptr.hbm [resolvable:$true] %s233
          %s235 = sshll.u32 [#allocation14], 4
          %s236 = int_to_ptr.vmem [resolvable:$true] %s235
          %238 = dma.hbm_to_vmem [thread:$0]  %s234, 16, %s236, [#allocation15]
        $region32: #{resnet_forward.1} parent=11 // pred_fallthru
          _
      $region12: #{resnet_forward.1} parent=5 // pred_fallthru
        _
      %p239 = scmp.lt.s32.totalorder %s22, 2
      // Predicated region
      $region33: #{resnet_forward.1} parent=5 // pred_check
        %p240 = pneg %p239
      $region34: #{resnet_forward.1} parent=5 // pred_check_branch
        %242 = sbr.rel (%p240) target = $region36
      $region35: #{resnet_forward.1} parent=5 // pred_region
        // Predicated region
        $region37: #{resnet_forward.1} parent=35 // pred_check
          %p243 = pneg %p42
        $region38: #{resnet_forward.1} parent=35 // pred_check_branch
          %245 = sbr.rel (%p243) target = $region40
        $region39: #{resnet_forward.1} parent=35 // pred_region
          %s246 = sand.u32 %s32, 1
          %s247 = scalar_lea.sflag [#allocation6], %s246
          %s248 = sand.u32 %s32, 1
          %s249 = smul.addr %s248, 96
          %s250 = scalar_lea.vmem [#allocation5], %s249
          %252 = vsyncadd %s247, 0
          %s253 = smul.addr %s22, 12
          %s254 = smul.addr %s253, 8
          %s255 = scalar_lea.hbm %s0, %s254
          %s256 = sshll.u32 %s255, 4
          %s257 = int_to_ptr.hbm [resolvable:$true] %s256
          %s258 = sshll.u32 %s250, 4
          %s259 = int_to_ptr.vmem [resolvable:$true] %s258
          %264 = dma.hbm_to_vmem [thread:$0]  %s257, 1536, %s259, %s247, 128, 128, 8
        $region40: #{resnet_forward.1} parent=35 // pred_fallthru
          _
      $region36: #{resnet_forward.1} parent=5 // pred_fallthru
        _
      %p265 = scmp.le.s32.totalorder 1, %s22
      %p266 = scmp.lt.s32.totalorder %s22, 3
      %p267 = pnand %p265, %p266
      %p268 = pneg %p267
      // Predicated region
      $region41: #{resnet_forward.1} parent=5 // pred_check
        _
      $region42: #{resnet_forward.1} parent=5 // pred_check_branch
        %270 = sbr.rel (%p267) target = $region44
      $region43: #{resnet_forward.1} parent=5 // pred_region
        %s271 = ssub.s32 %s22, 1
        %s272 = sand.u32 %s35, 1
        %s273 = scalar_lea.sflag [#allocation6], %s272
        %s274 = sand.u32 %s35, 1
        %s275 = smul.addr %s274, 96
        %s276 = scalar_lea.vmem [#allocation5], %s275
        // Predicated region
        $region45: #{resnet_forward.1} parent=43 // pred_check
          %p277 = pneg %p48
        $region46: #{resnet_forward.1} parent=43 // pred_check_branch
          %279 = sbr.rel (%p277) target = $region48
        $region47: #{resnet_forward.1} parent=43 // pred_region
          %281 = dma.done %s273, 1536
        $region48: #{resnet_forward.1} parent=43 // pred_fallthru
          _
        // Predicated region
        $region49: #{resnet_forward.1} parent=43 // pred_check
          %p282 = pneg %p69
        $region50: #{resnet_forward.1} parent=43 // pred_check_branch
          %284 = sbr.rel (%p282) target = $region52
        $region51: #{resnet_forward.1} parent=43 // pred_region
          %286 = dma.done [#allocation9], 32
        $region52: #{resnet_forward.1} parent=43 // pred_fallthru
          _
        // Predicated region
        $region53: #{resnet_forward.1} parent=43 // pred_check
          %p287 = pneg %p90
        $region54: #{resnet_forward.1} parent=43 // pred_check_branch
          %289 = sbr.rel (%p287) target = $region56
        $region55: #{resnet_forward.1} parent=43 // pred_region
          %291 = dma.done [#allocation8], 16
        $region56: #{resnet_forward.1} parent=43 // pred_fallthru
          _
        // Predicated region
        $region57: #{resnet_forward.1} parent=43 // pred_check
          %p292 = pneg %p111
        $region58: #{resnet_forward.1} parent=43 // pred_check_branch
          %294 = sbr.rel (%p292) target = $region60
        $region59: #{resnet_forward.1} parent=43 // pred_region
          %296 = dma.done [#allocation13], 16
        $region60: #{resnet_forward.1} parent=43 // pred_fallthru
          _
        // Predicated region
        $region61: #{resnet_forward.1} parent=43 // pred_check
          %p297 = pneg %p153
        $region62: #{resnet_forward.1} parent=43 // pred_check_branch
          %299 = sbr.rel (%p297) target = $region64
        $region63: #{resnet_forward.1} parent=43 // pred_region
          %301 = dma.done [#allocation15], 16
        $region64: #{resnet_forward.1} parent=43 // pred_fallthru
          _
        %302 = sfence
        %s303 = sand.u32 %s35, 1
        %s304 = scalar_lea.sflag [#allocation6], %s303
        %s305 = sand.u32 %s35, 1
        %s306 = smul.addr %s305, 96
        %s307 = scalar_lea.vmem [#allocation5], %s306
        %p308 = pneg %p48
        %p309 = pneg %p45
        %p310 = pneg %p69
        %p311 = pneg %p66
        %p312 = pneg %p90
        %p313 = pneg %p87
        %p314 = pneg %p111
        %p315 = pneg %p108
        %p316 = pneg %p132
        %p317 = pneg %p129
        %p318 = pneg %p153
        %p319 = pneg %p150
        %p320 = pneg %p179
        %p321 = pneg %p176
        %s322 = sand.u32 %s166, 1
        %s323 = scalar_lea.sflag [#allocation7], %s322
        %s324 = sand.u32 %s166, 1
        %s325 = scalar_lea.vmem [#allocation16], %s324
        %vm326 = vcmask 277504
        %327 = vst.msk [vmem:[#allocation2] sm:$0xff] %vm326, 0.0
        %328 = vst.msk [vmem:[#allocation2 + $0x8] sm:$0xff] %vm326, 0.0
        %329 = vst.msk [vmem:[#allocation2 + $0x10] sm:$0xff] %vm326, 0.0
        %330 = vst.msk [vmem:[#allocation2 + $0x18] sm:$0xff] %vm326, 0.0
        %vm331 = vcmask 271360
        %332 = vst.msk [vmem:[#allocation2 + $0x20] sm:$0x3] %vm331, 0.0
        %333 = vst.msk [vmem:[#allocation2 + $0x28] sm:$0xff] %vm326, 0.0
        %334 = vst.msk [vmem:[#allocation2 + $0x30] sm:$0xff] %vm326, 0.0
        %335 = vst.msk [vmem:[#allocation2 + $0x38] sm:$0xff] %vm326, 0.0
        %336 = vst.msk [vmem:[#allocation2 + $0x40] sm:$0xff] %vm326, 0.0
        %337 = vst.msk [vmem:[#allocation2 + $0x48] sm:$0x3] %vm331, 0.0
        %338 = vst.msk [vmem:[#allocation2 + $0x50] sm:$0xff] %vm326, 0.0
        %339 = vst.msk [vmem:[#allocation2 + $0x58] sm:$0xff] %vm326, 0.0
        %340 = vst.msk [vmem:[#allocation2 + $0x60] sm:$0xff] %vm326, 0.0
        %341 = vst.msk [vmem:[#allocation2 + $0x68] sm:$0xff] %vm326, 0.0
        %342 = vst.msk [vmem:[#allocation2 + $0x70] sm:$0x3] %vm331, 0.0
        %343 = vst.msk [vmem:[#allocation3] sm:$0xff] %vm326, 0.0
        %344 = vst.msk [vmem:[#allocation3 + $0x8] sm:$0xff] %vm326, 0.0
        %345 = vst.msk [vmem:[#allocation3 + $0x10] sm:$0xff] %vm326, 0.0
        %346 = vst.msk [vmem:[#allocation3 + $0x18] sm:$0xff] %vm326, 0.0
        %347 = vst.msk [vmem:[#allocation3 + $0x20] sm:$0x3] %vm331, 0.0
        %348 = vst.msk [vmem:[#allocation3 + $0x28] sm:$0xff] %vm326, 0.0
        %349 = vst.msk [vmem:[#allocation3 + $0x30] sm:$0xff] %vm326, 0.0
        %350 = vst.msk [vmem:[#allocation3 + $0x38] sm:$0xff] %vm326, 0.0
        %351 = vst.msk [vmem:[#allocation3 + $0x40] sm:$0xff] %vm326, 0.0
        %352 = vst.msk [vmem:[#allocation3 + $0x48] sm:$0x3] %vm331, 0.0
        %353 = vst.msk [vmem:[#allocation4] sm:$0xff] %vm326, 0.0
        %354 = vst.msk [vmem:[#allocation4 + $0x8] sm:$0xff] %vm326, 0.0
        %355 = vst.msk [vmem:[#allocation4 + $0x10] sm:$0xff] %vm326, 0.0
        %356 = vst.msk [vmem:[#allocation4 + $0x18] sm:$0xff] %vm326, 0.0
        %357 = vst.msk [vmem:[#allocation4 + $0x20] sm:$0x3] %vm331, 0.0
        %358 = vst.msk [vmem:[#allocation4 + $0x28] sm:$0xff] %vm326, 0.0
        %359 = vst.msk [vmem:[#allocation4 + $0x30] sm:$0xff] %vm326, 0.0
        %360 = vst.msk [vmem:[#allocation4 + $0x38] sm:$0xff] %vm326, 0.0
        %361 = vst.msk [vmem:[#allocation4 + $0x40] sm:$0xff] %vm326, 0.0
        %362 = vst.msk [vmem:[#allocation4 + $0x48] sm:$0x3] %vm331, 0.0
        %v363 = vld [vmem:[%s276] sm:$0xff]
        %v364 = vld [vmem:[%s276 + $0x8] sm:$0xff]
        %v365 = vld [vmem:[%s276 + $0x10] sm:$0xff]
        %v366 = vld [vmem:[%s276 + $0x18] sm:$0xff]
        %371 = vrot.lane.b32.xlu0 %v363, 1
        %v372 = vpop.permute.xlu0 %371
        %373 = vrot.lane.b32.xlu0 %v364, 1
        %v374 = vpop.permute.xlu0 %373
        %375 = vrot.lane.b32.xlu0 %v365, 1
        %v376 = vpop.permute.xlu0 %375
        %377 = vrot.lane.b32.xlu0 %v366, 1
        %v378 = vpop.permute.xlu0 %377
        %vm383 = vcmask 269320
        %384 = vst.msk [vmem:[#allocation2 + $0x1] sm:$0xff] %vm383, %v372
        %385 = vst.msk [vmem:[#allocation2 + $0x9] sm:$0xff] %vm383, %v374
        %386 = vst.msk [vmem:[#allocation2 + $0x11] sm:$0xff] %vm383, %v376
        %387 = vst.msk [vmem:[#allocation2 + $0x19] sm:$0xff] %vm383, %v378
        %s388 = scalar_lea.vmem %s276, 32 [#allocation5]
        %v389 = vld [vmem:[%s388] sm:$0xff]
        %v390 = vld [vmem:[%s388 + $0x8] sm:$0xff]
        %v391 = vld [vmem:[%s388 + $0x10] sm:$0xff]
        %v392 = vld [vmem:[%s388 + $0x18] sm:$0xff]
        %397 = vrot.lane.b32.xlu0 %v389, 1
        %v398 = vpop.permute.xlu0 %397
        %399 = vrot.lane.b32.xlu0 %v390, 1
        %v400 = vpop.permute.xlu0 %399
        %401 = vrot.lane.b32.xlu0 %v391, 1
        %v402 = vpop.permute.xlu0 %401
        %403 = vrot.lane.b32.xlu0 %v392, 1
        %v404 = vpop.permute.xlu0 %403
        %s409 = scalar_lea.vmem [#allocation2], 40
        %410 = vst.msk [vmem:[%s409 + $0x1] sm:$0xff] %vm383, %v398
        %411 = vst.msk [vmem:[%s409 + $0x9] sm:$0xff] %vm383, %v400
        %412 = vst.msk [vmem:[%s409 + $0x11] sm:$0xff] %vm383, %v402
        %413 = vst.msk [vmem:[%s409 + $0x19] sm:$0xff] %vm383, %v404
        %s414 = scalar_lea.vmem %s276, 64 [#allocation5]
        %v415 = vld [vmem:[%s414] sm:$0xff]
        %v416 = vld [vmem:[%s414 + $0x8] sm:$0xff]
        %v417 = vld [vmem:[%s414 + $0x10] sm:$0xff]
        %v418 = vld [vmem:[%s414 + $0x18] sm:$0xff]
        %423 = vrot.lane.b32.xlu0 %v415, 1
        %v424 = vpop.permute.xlu0 %423
        %425 = vrot.lane.b32.xlu0 %v416, 1
        %v426 = vpop.permute.xlu0 %425
        %427 = vrot.lane.b32.xlu0 %v417, 1
        %v428 = vpop.permute.xlu0 %427
        %429 = vrot.lane.b32.xlu0 %v418, 1
        %v430 = vpop.permute.xlu0 %429
        %s435 = scalar_lea.vmem [#allocation2], 80
        %436 = vst.msk [vmem:[%s435 + $0x1] sm:$0xff] %vm383, %v424
        %437 = vst.msk [vmem:[%s435 + $0x9] sm:$0xff] %vm383, %v426
        %438 = vst.msk [vmem:[%s435 + $0x11] sm:$0xff] %vm383, %v428
        %439 = vst.msk [vmem:[%s435 + $0x19] sm:$0xff] %vm383, %v430
        %v440 = vld [vmem:[#allocation2] sm:$0xff]
        %v441 = vld [vmem:[#allocation2 + $0x8] sm:$0xff]
        %v442 = vld [vmem:[#allocation2 + $0x10] sm:$0xff]
        %v443 = vld [vmem:[#allocation2 + $0x18] sm:$0xff]
        %v444 = vld [vmem:[#allocation2 + $0x20] sm:$0x3]
        %s445 = sld [smem:[#allocation10]]
        %v446 = vstv %s445
        %v447 = vmul.f32 %v446, %v440
        %v448 = vmul.f32 %v446, %v441
        %v449 = vmul.f32 %v446, %v442
        %v450 = vmul.f32 %v446, %v443
        %v451 = vadd.f32 %v447, 0.0
        %v452 = vadd.f32 %v448, 0.0
        %v453 = vadd.f32 %v449, 0.0
        %v454 = vadd.f32 %v450, 0.0
        %s455 = sld [smem:[#allocation10 + $0x1b]]
        %v456 = vstv %s455
        %v457 = vmul.f32 %v456, %v440
        %v458 = vmul.f32 %v456, %v441
        %v459 = vmul.f32 %v456, %v442
        %v460 = vmul.f32 %v456, %v443
        %v461 = vadd.f32 %v457, 0.0
        %v462 = vadd.f32 %v458, 0.0
        %v463 = vadd.f32 %v459, 0.0
        %v464 = vadd.f32 %v460, 0.0
        %s465 = sld [smem:[#allocation10 + $0x1]]
        %v466 = vstv %s465
        %v467 = vmul.f32 %v466, %v440
        %v468 = vmul.f32 %v466, %v441
        %v469 = vmul.f32 %v466, %v442
        %v470 = vmul.f32 %v466, %v443
        %475 = vrot.lane.b32.xlu0 %v467, 127
        %v476 = vpop.permute.xlu0 %475
        %477 = vrot.lane.b32.xlu0 %v468, 127
        %v478 = vpop.permute.xlu0 %477
        %479 = vrot.lane.b32.xlu0 %v469, 127
        %v480 = vpop.permute.xlu0 %479
        %481 = vrot.lane.b32.xlu0 %v470, 127
        %v482 = vpop.permute.xlu0 %481
        %v487 = vadd.f32 %v451, %v476
        %v488 = vadd.f32 %v452, %v478
        %v489 = vadd.f32 %v453, %v480
        %v490 = vadd.f32 %v454, %v482
        %s491 = sld [smem:[#allocation10 + $0x1c]]
        %v492 = vstv %s491
        %v493 = vmul.f32 %v492, %v440
        %v494 = vmul.f32 %v492, %v441
        %v495 = vmul.f32 %v492, %v442
        %v496 = vmul.f32 %v492, %v443
        %501 = vrot.lane.b32.xlu0 %v493, 127
        %v502 = vpop.permute.xlu0 %501
        %503 = vrot.lane.b32.xlu0 %v494, 127
        %v504 = vpop.permute.xlu0 %503
        %505 = vrot.lane.b32.xlu0 %v495, 127
        %v506 = vpop.permute.xlu0 %505
        %507 = vrot.lane.b32.xlu0 %v496, 127
        %v508 = vpop.permute.xlu0 %507
        %v513 = vadd.f32 %v461, %v502
        %v514 = vadd.f32 %v462, %v504
        %v515 = vadd.f32 %v463, %v506
        %v516 = vadd.f32 %v464, %v508
        %s517 = sld [smem:[#allocation10 + $0x2]]
        %v518 = vstv %s517
        %v519 = vmul.f32 %v518, %v440
        %v520 = vmul.f32 %v518, %v441
        %v521 = vmul.f32 %v518, %v442
        %v522 = vmul.f32 %v518, %v443
        %527 = vrot.lane.b32.xlu0 %v519, 126
        %v528 = vpop.permute.xlu0 %527
        %529 = vrot.lane.b32.xlu0 %v520, 126
        %v530 = vpop.permute.xlu0 %529
        %531 = vrot.lane.b32.xlu0 %v521, 126
        %v532 = vpop.permute.xlu0 %531
        %533 = vrot.lane.b32.xlu0 %v522, 126
        %v534 = vpop.permute.xlu0 %533
        %v539 = vadd.f32 %v487, %v528
        %v540 = vadd.f32 %v488, %v530
        %v541 = vadd.f32 %v489, %v532
        %v542 = vadd.f32 %v490, %v534
        %s543 = sld [smem:[#allocation10 + $0x1d]]
        %v544 = vstv %s543
        %v545 = vmul.f32 %v544, %v440
        %v546 = vmul.f32 %v544, %v441
        %v547 = vmul.f32 %v544, %v442
        %v548 = vmul.f32 %v544, %v443
        %553 = vrot.lane.b32.xlu0 %v545, 126
        %v554 = vpop.permute.xlu0 %553
        %555 = vrot.lane.b32.xlu0 %v546, 126
        %v556 = vpop.permute.xlu0 %555
        %557 = vrot.lane.b32.xlu0 %v547, 126
        %v558 = vpop.permute.xlu0 %557
        %559 = vrot.lane.b32.xlu0 %v548, 126
        %v560 = vpop.permute.xlu0 %559
        %v565 = vadd.f32 %v513, %v554
        %v566 = vadd.f32 %v514, %v556
        %v567 = vadd.f32 %v515, %v558
        %v568 = vadd.f32 %v516, %v560
        %s569 = sld [smem:[#allocation10 + $0x3]]
        %v570 = vstv %s569
        %v571 = vmul.f32 %v570, %v440
        %v572 = vmul.f32 %v570, %v441
        %v573 = vmul.f32 %v570, %v442
        %v574 = vmul.f32 %v570, %v443
        %v575 = vmul.f32 %v570, %v444
        %vm581 = vcmask 1046528
        %v582 = vrot.slane %v571, 1
        %v583 = vrot.slane %v572, 1
        %v584 = vsel %vm581, %v582, %v583
        %v585 = vrot.slane %v573, 1
        %v586 = vsel %vm581, %v583, %v585
        %v587 = vrot.slane %v574, 1
        %v588 = vsel %vm581, %v585, %v587
        %v589 = vrot.slane %v575, 1
        %v590 = vsel %vm581, %v587, %v589
        %v595 = vadd.f32 %v539, %v584
        %v596 = vadd.f32 %v540, %v586
        %v597 = vadd.f32 %v541, %v588
        %v598 = vadd.f32 %v542, %v590
        %s599 = sld [smem:[#allocation10 + $0x1e]]
        %v600 = vstv %s599
        %v601 = vmul.f32 %v600, %v440
        %v602 = vmul.f32 %v600, %v441
        %v603 = vmul.f32 %v600, %v442
        %v604 = vmul.f32 %v600, %v443
        %v605 = vmul.f32 %v600, %v444
        %v611 = vrot.slane %v601, 1
        %v612 = vrot.slane %v602, 1
        %v613 = vsel %vm581, %v611, %v612
        %v614 = vrot.slane %v603, 1
        %v615 = vsel %vm581, %v612, %v614
        %v616 = vrot.slane %v604, 1
        %v617 = vsel %vm581, %v614, %v616
        %v618 = vrot.slane %v605, 1
        %v619 = vsel %vm581, %v616, %v618
        %v624 = vadd.f32 %v565, %v613
        %v625 = vadd.f32 %v566, %v615
        %v626 = vadd.f32 %v567, %v617
        %v627 = vadd.f32 %v568, %v619
        %s628 = sld [smem:[#allocation10 + $0x4]]
        %v629 = vstv %s628
        %v630 = vmul.f32 %v629, %v440
        %v631 = vmul.f32 %v629, %v441
        %v632 = vmul.f32 %v629, %v442
        %v633 = vmul.f32 %v629, %v443
        %v634 = vmul.f32 %v629, %v444
        %v640 = vrot.slane %v630, 1
        %v641 = vrot.slane %v631, 1
        %v642 = vsel %vm581, %v640, %v641
        %v643 = vrot.slane %v632, 1
        %v644 = vsel %vm581, %v641, %v643
        %v645 = vrot.slane %v633, 1
        %v646 = vsel %vm581, %v643, %v645
        %v647 = vrot.slane %v634, 1
        %v648 = vsel %vm581, %v645, %v647
        %649 = vrot.lane.b32.xlu0 %v642, 127
        %v650 = vpop.permute.xlu0 %649
        %651 = vrot.lane.b32.xlu0 %v644, 127
        %v652 = vpop.permute.xlu0 %651
        %653 = vrot.lane.b32.xlu0 %v646, 127
        %v654 = vpop.permute.xlu0 %653
        %655 = vrot.lane.b32.xlu0 %v648, 127
        %v656 = vpop.permute.xlu0 %655
        %v661 = vadd.f32 %v595, %v650
        %v662 = vadd.f32 %v596, %v652
        %v663 = vadd.f32 %v597, %v654
        %v664 = vadd.f32 %v598, %v656
        %s665 = sld [smem:[#allocation10 + $0x1f]]
        %v666 = vstv %s665
        %v667 = vmul.f32 %v666, %v440
        %v668 = vmul.f32 %v666, %v441
        %v669 = vmul.f32 %v666, %v442
        %v670 = vmul.f32 %v666, %v443
        %v671 = vmul.f32 %v666, %v444
        %v677 = vrot.slane %v667, 1
        %v678 = vrot.slane %v668, 1
        %v679 = vsel %vm581, %v677, %v678
        %v680 = vrot.slane %v669, 1
        %v681 = vsel %vm581, %v678, %v680
        %v682 = vrot.slane %v670, 1
        %v683 = vsel %vm581, %v680, %v682
        %v684 = vrot.slane %v671, 1
        %v685 = vsel %vm581, %v682, %v684
        %686 = vrot.lane.b32.xlu0 %v679, 127
        %v687 = vpop.permute.xlu0 %686
        %688 = vrot.lane.b32.xlu0 %v681, 127
        %v689 = vpop.permute.xlu0 %688
        %690 = vrot.lane.b32.xlu0 %v683, 127
        %v691 = vpop.permute.xlu0 %690
        %692 = vrot.lane.b32.xlu0 %v685, 127
        %v693 = vpop.permute.xlu0 %692
        %v698 = vadd.f32 %v624, %v687
        %v699 = vadd.f32 %v625, %v689
        %v700 = vadd.f32 %v626, %v691
        %v701 = vadd.f32 %v627, %v693
        %s702 = sld [smem:[#allocation10 + $0x5]]
        %v703 = vstv %s702
        %v704 = vmul.f32 %v703, %v440
        %v705 = vmul.f32 %v703, %v441
        %v706 = vmul.f32 %v703, %v442
        %v707 = vmul.f32 %v703, %v443
        %v708 = vmul.f32 %v703, %v444
        %v714 = vrot.slane %v704, 1
        %v715 = vrot.slane %v705, 1
        %v716 = vsel %vm581, %v714, %v715
        %v717 = vrot.slane %v706, 1
        %v718 = vsel %vm581, %v715, %v717
        %v719 = vrot.slane %v707, 1
        %v720 = vsel %vm581, %v717, %v719
        %v721 = vrot.slane %v708, 1
        %v722 = vsel %vm581, %v719, %v721
        %723 = vrot.lane.b32.xlu0 %v716, 126
        %v724 = vpop.permute.xlu0 %723
        %725 = vrot.lane.b32.xlu0 %v718, 126
        %v726 = vpop.permute.xlu0 %725
        %727 = vrot.lane.b32.xlu0 %v720, 126
        %v728 = vpop.permute.xlu0 %727
        %729 = vrot.lane.b32.xlu0 %v722, 126
        %v730 = vpop.permute.xlu0 %729
        %v735 = vadd.f32 %v661, %v724
        %v736 = vadd.f32 %v662, %v726
        %v737 = vadd.f32 %v663, %v728
        %v738 = vadd.f32 %v664, %v730
        %s739 = sld [smem:[#allocation10 + $0x20]]
        %v740 = vstv %s739
        %v741 = vmul.f32 %v740, %v440
        %v742 = vmul.f32 %v740, %v441
        %v743 = vmul.f32 %v740, %v442
        %v744 = vmul.f32 %v740, %v443
        %v745 = vmul.f32 %v740, %v444
        %v751 = vrot.slane %v741, 1
        %v752 = vrot.slane %v742, 1
        %v753 = vsel %vm581, %v751, %v752
        %v754 = vrot.slane %v743, 1
        %v755 = vsel %vm581, %v752, %v754
        %v756 = vrot.slane %v744, 1
        %v757 = vsel %vm581, %v754, %v756
        %v758 = vrot.slane %v745, 1
        %v759 = vsel %vm581, %v756, %v758
        %760 = vrot.lane.b32.xlu0 %v753, 126
        %v761 = vpop.permute.xlu0 %760
        %762 = vrot.lane.b32.xlu0 %v755, 126
        %v763 = vpop.permute.xlu0 %762
        %764 = vrot.lane.b32.xlu0 %v757, 126
        %v765 = vpop.permute.xlu0 %764
        %766 = vrot.lane.b32.xlu0 %v759, 126
        %v767 = vpop.permute.xlu0 %766
        %v772 = vadd.f32 %v698, %v761
        %v773 = vadd.f32 %v699, %v763
        %v774 = vadd.f32 %v700, %v765
        %v775 = vadd.f32 %v701, %v767
        %s776 = sld [smem:[#allocation10 + $0x6]]
        %v777 = vstv %s776
        %v778 = vmul.f32 %v777, %v440
        %v779 = vmul.f32 %v777, %v441
        %v780 = vmul.f32 %v777, %v442
        %v781 = vmul.f32 %v777, %v443
        %v782 = vmul.f32 %v777, %v444
        %vm788 = vcmask 1045504
        %v789 = vrot.slane %v778, 2
        %v790 = vrot.slane %v779, 2
        %v791 = vsel %vm788, %v789, %v790
        %v792 = vrot.slane %v780, 2
        %v793 = vsel %vm788, %v790, %v792
        %v794 = vrot.slane %v781, 2
        %v795 = vsel %vm788, %v792, %v794
        %v796 = vrot.slane %v782, 2
        %v797 = vsel %vm788, %v794, %v796
        %v802 = vadd.f32 %v735, %v791
        %v803 = vadd.f32 %v736, %v793
        %v804 = vadd.f32 %v737, %v795
        %v805 = vadd.f32 %v738, %v797
        %s806 = sld [smem:[#allocation10 + $0x21]]
        %v807 = vstv %s806
        %v808 = vmul.f32 %v807, %v440
        %v809 = vmul.f32 %v807, %v441
        %v810 = vmul.f32 %v807, %v442
        %v811 = vmul.f32 %v807, %v443
        %v812 = vmul.f32 %v807, %v444
        %v818 = vrot.slane %v808, 2
        %v819 = vrot.slane %v809, 2
        %v820 = vsel %vm788, %v818, %v819
        %v821 = vrot.slane %v810, 2
        %v822 = vsel %vm788, %v819, %v821
        %v823 = vrot.slane %v811, 2
        %v824 = vsel %vm788, %v821, %v823
        %v825 = vrot.slane %v812, 2
        %v826 = vsel %vm788, %v823, %v825
        %v831 = vadd.f32 %v772, %v820
        %v832 = vadd.f32 %v773, %v822
        %v833 = vadd.f32 %v774, %v824
        %v834 = vadd.f32 %v775, %v826
        %s835 = sld [smem:[#allocation10 + $0x7]]
        %v836 = vstv %s835
        %v837 = vmul.f32 %v836, %v440
        %v838 = vmul.f32 %v836, %v441
        %v839 = vmul.f32 %v836, %v442
        %v840 = vmul.f32 %v836, %v443
        %v841 = vmul.f32 %v836, %v444
        %v847 = vrot.slane %v837, 2
        %v848 = vrot.slane %v838, 2
        %v849 = vsel %vm788, %v847, %v848
        %v850 = vrot.slane %v839, 2
        %v851 = vsel %vm788, %v848, %v850
        %v852 = vrot.slane %v840, 2
        %v853 = vsel %vm788, %v850, %v852
        %v854 = vrot.slane %v841, 2
        %v855 = vsel %vm788, %v852, %v854
        %856 = vrot.lane.b32.xlu0 %v849, 127
        %v857 = vpop.permute.xlu0 %856
        %858 = vrot.lane.b32.xlu0 %v851, 127
        %v859 = vpop.permute.xlu0 %858
        %860 = vrot.lane.b32.xlu0 %v853, 127
        %v861 = vpop.permute.xlu0 %860
        %862 = vrot.lane.b32.xlu0 %v855, 127
        %v863 = vpop.permute.xlu0 %862
        %v868 = vadd.f32 %v802, %v857
        %v869 = vadd.f32 %v803, %v859
        %v870 = vadd.f32 %v804, %v861
        %v871 = vadd.f32 %v805, %v863
        %s872 = sld [smem:[#allocation10 + $0x22]]
        %v873 = vstv %s872
        %v874 = vmul.f32 %v873, %v440
        %v875 = vmul.f32 %v873, %v441
        %v876 = vmul.f32 %v873, %v442
        %v877 = vmul.f32 %v873, %v443
        %v878 = vmul.f32 %v873, %v444
        %v884 = vrot.slane %v874, 2
        %v885 = vrot.slane %v875, 2
        %v886 = vsel %vm788, %v884, %v885
        %v887 = vrot.slane %v876, 2
        %v888 = vsel %vm788, %v885, %v887
        %v889 = vrot.slane %v877, 2
        %v890 = vsel %vm788, %v887, %v889
        %v891 = vrot.slane %v878, 2
        %v892 = vsel %vm788, %v889, %v891
        %893 = vrot.lane.b32.xlu0 %v886, 127
        %v894 = vpop.permute.xlu0 %893
        %895 = vrot.lane.b32.xlu0 %v888, 127
        %v896 = vpop.permute.xlu0 %895
        %897 = vrot.lane.b32.xlu0 %v890, 127
        %v898 = vpop.permute.xlu0 %897
        %899 = vrot.lane.b32.xlu0 %v892, 127
        %v900 = vpop.permute.xlu0 %899
        %v905 = vadd.f32 %v831, %v894
        %v906 = vadd.f32 %v832, %v896
        %v907 = vadd.f32 %v833, %v898
        %v908 = vadd.f32 %v834, %v900
        %s909 = sld [smem:[#allocation10 + $0x8]]
        %v910 = vstv %s909
        %v911 = vmul.f32 %v910, %v440
        %v912 = vmul.f32 %v910, %v441
        %v913 = vmul.f32 %v910, %v442
        %v914 = vmul.f32 %v910, %v443
        %v915 = vmul.f32 %v910, %v444
        %v921 = vrot.slane %v911, 2
        %v922 = vrot.slane %v912, 2
        %v923 = vsel %vm788, %v921, %v922
        %v924 = vrot.slane %v913, 2
        %v925 = vsel %vm788, %v922, %v924
        %v926 = vrot.slane %v914, 2
        %v927 = vsel %vm788, %v924, %v926
        %v928 = vrot.slane %v915, 2
        %v929 = vsel %vm788, %v926, %v928
        %930 = vrot.lane.b32.xlu0 %v923, 126
        %v931 = vpop.permute.xlu0 %930
        %932 = vrot.lane.b32.xlu0 %v925, 126
        %v933 = vpop.permute.xlu0 %932
        %934 = vrot.lane.b32.xlu0 %v927, 126
        %v935 = vpop.permute.xlu0 %934
        %936 = vrot.lane.b32.xlu0 %v929, 126
        %v937 = vpop.permute.xlu0 %936
        %v942 = vadd.f32 %v868, %v931
        %v943 = vadd.f32 %v869, %v933
        %v944 = vadd.f32 %v870, %v935
        %v945 = vadd.f32 %v871, %v937
        %s946 = sld [smem:[#allocation10 + $0x23]]
        %v947 = vstv %s946
        %v948 = vmul.f32 %v947, %v440
        %v949 = vmul.f32 %v947, %v441
        %v950 = vmul.f32 %v947, %v442
        %v951 = vmul.f32 %v947, %v443
        %v952 = vmul.f32 %v947, %v444
        %v958 = vrot.slane %v948, 2
        %v959 = vrot.slane %v949, 2
        %v960 = vsel %vm788, %v958, %v959
        %v961 = vrot.slane %v950, 2
        %v962 = vsel %vm788, %v959, %v961
        %v963 = vrot.slane %v951, 2
        %v964 = vsel %vm788, %v961, %v963
        %v965 = vrot.slane %v952, 2
        %v966 = vsel %vm788, %v963, %v965
        %967 = vrot.lane.b32.xlu0 %v960, 126
        %v968 = vpop.permute.xlu0 %967
        %969 = vrot.lane.b32.xlu0 %v962, 126
        %v970 = vpop.permute.xlu0 %969
        %971 = vrot.lane.b32.xlu0 %v964, 126
        %v972 = vpop.permute.xlu0 %971
        %973 = vrot.lane.b32.xlu0 %v966, 126
        %v974 = vpop.permute.xlu0 %973
        %v979 = vadd.f32 %v905, %v968
        %v980 = vadd.f32 %v906, %v970
        %v981 = vadd.f32 %v907, %v972
        %v982 = vadd.f32 %v908, %v974
        %v983 = vld [vmem:[%s409] sm:$0xff]
        %v984 = vld [vmem:[%s409 + $0x8] sm:$0xff]
        %v985 = vld [vmem:[%s409 + $0x10] sm:$0xff]
        %v986 = vld [vmem:[%s409 + $0x18] sm:$0xff]
        %v987 = vld [vmem:[%s409 + $0x20] sm:$0x3]
        %s988 = sld [smem:[#allocation10 + $0x9]]
        %v989 = vstv %s988
        %v990 = vmul.f32 %v989, %v983
        %v991 = vmul.f32 %v989, %v984
        %v992 = vmul.f32 %v989, %v985
        %v993 = vmul.f32 %v989, %v986
        %v994 = vadd.f32 %v942, %v990
        %v995 = vadd.f32 %v943, %v991
        %v996 = vadd.f32 %v944, %v992
        %v997 = vadd.f32 %v945, %v993
        %s998 = sld [smem:[#allocation10 + $0x24]]
        %v999 = vstv %s998
        %v1000 = vmul.f32 %v999, %v983
        %v1001 = vmul.f32 %v999, %v984
        %v1002 = vmul.f32 %v999, %v985
        %v1003 = vmul.f32 %v999, %v986
        %v1004 = vadd.f32 %v979, %v1000
        %v1005 = vadd.f32 %v980, %v1001
        %v1006 = vadd.f32 %v981, %v1002
        %v1007 = vadd.f32 %v982, %v1003
        %s1008 = sld [smem:[#allocation10 + $0xa]]
        %v1009 = vstv %s1008
        %v1010 = vmul.f32 %v1009, %v983
        %v1011 = vmul.f32 %v1009, %v984
        %v1012 = vmul.f32 %v1009, %v985
        %v1013 = vmul.f32 %v1009, %v986
        %1018 = vrot.lane.b32.xlu0 %v1010, 127
        %v1019 = vpop.permute.xlu0 %1018
        %1020 = vrot.lane.b32.xlu0 %v1011, 127
        %v1021 = vpop.permute.xlu0 %1020
        %1022 = vrot.lane.b32.xlu0 %v1012, 127
        %v1023 = vpop.permute.xlu0 %1022
        %1024 = vrot.lane.b32.xlu0 %v1013, 127
        %v1025 = vpop.permute.xlu0 %1024
        %v1030 = vadd.f32 %v994, %v1019
        %v1031 = vadd.f32 %v995, %v1021
        %v1032 = vadd.f32 %v996, %v1023
        %v1033 = vadd.f32 %v997, %v1025
        %s1034 = sld [smem:[#allocation10 + $0x25]]
        %v1035 = vstv %s1034
        %v1036 = vmul.f32 %v1035, %v983
        %v1037 = vmul.f32 %v1035, %v984
        %v1038 = vmul.f32 %v1035, %v985
        %v1039 = vmul.f32 %v1035, %v986
        %1044 = vrot.lane.b32.xlu0 %v1036, 127
        %v1045 = vpop.permute.xlu0 %1044
        %1046 = vrot.lane.b32.xlu0 %v1037, 127
        %v1047 = vpop.permute.xlu0 %1046
        %1048 = vrot.lane.b32.xlu0 %v1038, 127
        %v1049 = vpop.permute.xlu0 %1048
        %1050 = vrot.lane.b32.xlu0 %v1039, 127
        %v1051 = vpop.permute.xlu0 %1050
        %v1056 = vadd.f32 %v1004, %v1045
        %v1057 = vadd.f32 %v1005, %v1047
        %v1058 = vadd.f32 %v1006, %v1049
        %v1059 = vadd.f32 %v1007, %v1051
        %s1060 = sld [smem:[#allocation10 + $0xb]]
        %v1061 = vstv %s1060
        %v1062 = vmul.f32 %v1061, %v983
        %v1063 = vmul.f32 %v1061, %v984
        %v1064 = vmul.f32 %v1061, %v985
        %v1065 = vmul.f32 %v1061, %v986
        %1070 = vrot.lane.b32.xlu0 %v1062, 126
        %v1071 = vpop.permute.xlu0 %1070
        %1072 = vrot.lane.b32.xlu0 %v1063, 126
        %v1073 = vpop.permute.xlu0 %1072
        %1074 = vrot.lane.b32.xlu0 %v1064, 126
        %v1075 = vpop.permute.xlu0 %1074
        %1076 = vrot.lane.b32.xlu0 %v1065, 126
        %v1077 = vpop.permute.xlu0 %1076
        %v1082 = vadd.f32 %v1030, %v1071
        %v1083 = vadd.f32 %v1031, %v1073
        %v1084 = vadd.f32 %v1032, %v1075
        %v1085 = vadd.f32 %v1033, %v1077
        %s1086 = sld [smem:[#allocation10 + $0x26]]
        %v1087 = vstv %s1086
        %v1088 = vmul.f32 %v1087, %v983
        %v1089 = vmul.f32 %v1087, %v984
        %v1090 = vmul.f32 %v1087, %v985
        %v1091 = vmul.f32 %v1087, %v986
        %1096 = vrot.lane.b32.xlu0 %v1088, 126
        %v1097 = vpop.permute.xlu0 %1096
        %1098 = vrot.lane.b32.xlu0 %v1089, 126
        %v1099 = vpop.permute.xlu0 %1098
        %1100 = vrot.lane.b32.xlu0 %v1090, 126
        %v1101 = vpop.permute.xlu0 %1100
        %1102 = vrot.lane.b32.xlu0 %v1091, 126
        %v1103 = vpop.permute.xlu0 %1102
        %v1108 = vadd.f32 %v1056, %v1097
        %v1109 = vadd.f32 %v1057, %v1099
        %v1110 = vadd.f32 %v1058, %v1101
        %v1111 = vadd.f32 %v1059, %v1103
        %s1112 = sld [smem:[#allocation10 + $0xc]]
        %v1113 = vstv %s1112
        %v1114 = vmul.f32 %v1113, %v983
        %v1115 = vmul.f32 %v1113, %v984
        %v1116 = vmul.f32 %v1113, %v985
        %v1117 = vmul.f32 %v1113, %v986
        %v1118 = vmul.f32 %v1113, %v987
        %v1124 = vrot.slane %v1114, 1
        %v1125 = vrot.slane %v1115, 1
        %v1126 = vsel %vm581, %v1124, %v1125
        %v1127 = vrot.slane %v1116, 1
        %v1128 = vsel %vm581, %v1125, %v1127
        %v1129 = vrot.slane %v1117, 1
        %v1130 = vsel %vm581, %v1127, %v1129
        %v1131 = vrot.slane %v1118, 1
        %v1132 = vsel %vm581, %v1129, %v1131
        %v1137 = vadd.f32 %v1082, %v1126
        %v1138 = vadd.f32 %v1083, %v1128
        %v1139 = vadd.f32 %v1084, %v1130
        %v1140 = vadd.f32 %v1085, %v1132
        %s1141 = sld [smem:[#allocation10 + $0x27]]
        %v1142 = vstv %s1141
        %v1143 = vmul.f32 %v1142, %v983
        %v1144 = vmul.f32 %v1142, %v984
        %v1145 = vmul.f32 %v1142, %v985
        %v1146 = vmul.f32 %v1142, %v986
        %v1147 = vmul.f32 %v1142, %v987
        %v1153 = vrot.slane %v1143, 1
        %v1154 = vrot.slane %v1144, 1
        %v1155 = vsel %vm581, %v1153, %v1154
        %v1156 = vrot.slane %v1145, 1
        %v1157 = vsel %vm581, %v1154, %v1156
        %v1158 = vrot.slane %v1146, 1
        %v1159 = vsel %vm581, %v1156, %v1158
        %v1160 = vrot.slane %v1147, 1
        %v1161 = vsel %vm581, %v1158, %v1160
        %v1166 = vadd.f32 %v1108, %v1155
        %v1167 = vadd.f32 %v1109, %v1157
        %v1168 = vadd.f32 %v1110, %v1159
        %v1169 = vadd.f32 %v1111, %v1161
        %s1170 = sld [smem:[#allocation10 + $0xd]]
        %v1171 = vstv %s1170
        %v1172 = vmul.f32 %v1171, %v983
        %v1173 = vmul.f32 %v1171, %v984
        %v1174 = vmul.f32 %v1171, %v985
        %v1175 = vmul.f32 %v1171, %v986
        %v1176 = vmul.f32 %v1171, %v987
        %v1182 = vrot.slane %v1172, 1
        %v1183 = vrot.slane %v1173, 1
        %v1184 = vsel %vm581, %v1182, %v1183
        %v1185 = vrot.slane %v1174, 1
        %v1186 = vsel %vm581, %v1183, %v1185
        %v1187 = vrot.slane %v1175, 1
        %v1188 = vsel %vm581, %v1185, %v1187
        %v1189 = vrot.slane %v1176, 1
        %v1190 = vsel %vm581, %v1187, %v1189
        %1191 = vrot.lane.b32.xlu0 %v1184, 127
        %v1192 = vpop.permute.xlu0 %1191
        %1193 = vrot.lane.b32.xlu0 %v1186, 127
        %v1194 = vpop.permute.xlu0 %1193
        %1195 = vrot.lane.b32.xlu0 %v1188, 127
        %v1196 = vpop.permute.xlu0 %1195
        %1197 = vrot.lane.b32.xlu0 %v1190, 127
        %v1198 = vpop.permute.xlu0 %1197
        %v1203 = vadd.f32 %v1137, %v1192
        %v1204 = vadd.f32 %v1138, %v1194
        %v1205 = vadd.f32 %v1139, %v1196
        %v1206 = vadd.f32 %v1140, %v1198
        %s1207 = sld [smem:[#allocation10 + $0x28]]
        %v1208 = vstv %s1207
        %v1209 = vmul.f32 %v1208, %v983
        %v1210 = vmul.f32 %v1208, %v984
        %v1211 = vmul.f32 %v1208, %v985
        %v1212 = vmul.f32 %v1208, %v986
        %v1213 = vmul.f32 %v1208, %v987
        %v1219 = vrot.slane %v1209, 1
        %v1220 = vrot.slane %v1210, 1
        %v1221 = vsel %vm581, %v1219, %v1220
        %v1222 = vrot.slane %v1211, 1
        %v1223 = vsel %vm581, %v1220, %v1222
        %v1224 = vrot.slane %v1212, 1
        %v1225 = vsel %vm581, %v1222, %v1224
        %v1226 = vrot.slane %v1213, 1
        %v1227 = vsel %vm581, %v1224, %v1226
        %1228 = vrot.lane.b32.xlu0 %v1221, 127
        %v1229 = vpop.permute.xlu0 %1228
        %1230 = vrot.lane.b32.xlu0 %v1223, 127
        %v1231 = vpop.permute.xlu0 %1230
        %1232 = vrot.lane.b32.xlu0 %v1225, 127
        %v1233 = vpop.permute.xlu0 %1232
        %1234 = vrot.lane.b32.xlu0 %v1227, 127
        %v1235 = vpop.permute.xlu0 %1234
        %v1240 = vadd.f32 %v1166, %v1229
        %v1241 = vadd.f32 %v1167, %v1231
        %v1242 = vadd.f32 %v1168, %v1233
        %v1243 = vadd.f32 %v1169, %v1235
        %s1244 = sld [smem:[#allocation10 + $0xe]]
        %v1245 = vstv %s1244
        %v1246 = vmul.f32 %v1245, %v983
        %v1247 = vmul.f32 %v1245, %v984
        %v1248 = vmul.f32 %v1245, %v985
        %v1249 = vmul.f32 %v1245, %v986
        %v1250 = vmul.f32 %v1245, %v987
        %v1256 = vrot.slane %v1246, 1
        %v1257 = vrot.slane %v1247, 1
        %v1258 = vsel %vm581, %v1256, %v1257
        %v1259 = vrot.slane %v1248, 1
        %v1260 = vsel %vm581, %v1257, %v1259
        %v1261 = vrot.slane %v1249, 1
        %v1262 = vsel %vm581, %v1259, %v1261
        %v1263 = vrot.slane %v1250, 1
        %v1264 = vsel %vm581, %v1261, %v1263
        %1265 = vrot.lane.b32.xlu0 %v1258, 126
        %v1266 = vpop.permute.xlu0 %1265
        %1267 = vrot.lane.b32.xlu0 %v1260, 126
        %v1268 = vpop.permute.xlu0 %1267
        %1269 = vrot.lane.b32.xlu0 %v1262, 126
        %v1270 = vpop.permute.xlu0 %1269
        %1271 = vrot.lane.b32.xlu0 %v1264, 126
        %v1272 = vpop.permute.xlu0 %1271
        %v1277 = vadd.f32 %v1203, %v1266
        %v1278 = vadd.f32 %v1204, %v1268
        %v1279 = vadd.f32 %v1205, %v1270
        %v1280 = vadd.f32 %v1206, %v1272
        %s1281 = sld [smem:[#allocation10 + $0x29]]
        %v1282 = vstv %s1281
        %v1283 = vmul.f32 %v1282, %v983
        %v1284 = vmul.f32 %v1282, %v984
        %v1285 = vmul.f32 %v1282, %v985
        %v1286 = vmul.f32 %v1282, %v986
        %v1287 = vmul.f32 %v1282, %v987
        %v1293 = vrot.slane %v1283, 1
        %v1294 = vrot.slane %v1284, 1
        %v1295 = vsel %vm581, %v1293, %v1294
        %v1296 = vrot.slane %v1285, 1
        %v1297 = vsel %vm581, %v1294, %v1296
        %v1298 = vrot.slane %v1286, 1
        %v1299 = vsel %vm581, %v1296, %v1298
        %v1300 = vrot.slane %v1287, 1
        %v1301 = vsel %vm581, %v1298, %v1300
        %1302 = vrot.lane.b32.xlu0 %v1295, 126
        %v1303 = vpop.permute.xlu0 %1302
        %1304 = vrot.lane.b32.xlu0 %v1297, 126
        %v1305 = vpop.permute.xlu0 %1304
        %1306 = vrot.lane.b32.xlu0 %v1299, 126
        %v1307 = vpop.permute.xlu0 %1306
        %1308 = vrot.lane.b32.xlu0 %v1301, 126
        %v1309 = vpop.permute.xlu0 %1308
        %v1314 = vadd.f32 %v1240, %v1303
        %v1315 = vadd.f32 %v1241, %v1305
        %v1316 = vadd.f32 %v1242, %v1307
        %v1317 = vadd.f32 %v1243, %v1309
        %s1318 = sld [smem:[#allocation10 + $0xf]]
        %v1319 = vstv %s1318
        %v1320 = vmul.f32 %v1319, %v983
        %v1321 = vmul.f32 %v1319, %v984
        %v1322 = vmul.f32 %v1319, %v985
        %v1323 = vmul.f32 %v1319, %v986
        %v1324 = vmul.f32 %v1319, %v987
        %v1330 = vrot.slane %v1320, 2
        %v1331 = vrot.slane %v1321, 2
        %v1332 = vsel %vm788, %v1330, %v1331
        %v1333 = vrot.slane %v1322, 2
        %v1334 = vsel %vm788, %v1331, %v1333
        %v1335 = vrot.slane %v1323, 2
        %v1336 = vsel %vm788, %v1333, %v1335
        %v1337 = vrot.slane %v1324, 2
        %v1338 = vsel %vm788, %v1335, %v1337
        %v1343 = vadd.f32 %v1277, %v1332
        %v1344 = vadd.f32 %v1278, %v1334
        %v1345 = vadd.f32 %v1279, %v1336
        %v1346 = vadd.f32 %v1280, %v1338
        %s1347 = sld [smem:[#allocation10 + $0x2a]]
        %v1348 = vstv %s1347
        %v1349 = vmul.f32 %v1348, %v983
        %v1350 = vmul.f32 %v1348, %v984
        %v1351 = vmul.f32 %v1348, %v985
        %v1352 = vmul.f32 %v1348, %v986
        %v1353 = vmul.f32 %v1348, %v987
        %v1359 = vrot.slane %v1349, 2
        %v1360 = vrot.slane %v1350, 2
        %v1361 = vsel %vm788, %v1359, %v1360
        %v1362 = vrot.slane %v1351, 2
        %v1363 = vsel %vm788, %v1360, %v1362
        %v1364 = vrot.slane %v1352, 2
        %v1365 = vsel %vm788, %v1362, %v1364
        %v1366 = vrot.slane %v1353, 2
        %v1367 = vsel %vm788, %v1364, %v1366
        %v1372 = vadd.f32 %v1314, %v1361
        %v1373 = vadd.f32 %v1315, %v1363
        %v1374 = vadd.f32 %v1316, %v1365
        %v1375 = vadd.f32 %v1317, %v1367
        %s1376 = sld [smem:[#allocation10 + $0x10]]
        %v1377 = vstv %s1376
        %v1378 = vmul.f32 %v1377, %v983
        %v1379 = vmul.f32 %v1377, %v984
        %v1380 = vmul.f32 %v1377, %v985
        %v1381 = vmul.f32 %v1377, %v986
        %v1382 = vmul.f32 %v1377, %v987
        %v1388 = vrot.slane %v1378, 2
        %v1389 = vrot.slane %v1379, 2
        %v1390 = vsel %vm788, %v1388, %v1389
        %v1391 = vrot.slane %v1380, 2
        %v1392 = vsel %vm788, %v1389, %v1391
        %v1393 = vrot.slane %v1381, 2
        %v1394 = vsel %vm788, %v1391, %v1393
        %v1395 = vrot.slane %v1382, 2
        %v1396 = vsel %vm788, %v1393, %v1395
        %1397 = vrot.lane.b32.xlu0 %v1390, 127
        %v1398 = vpop.permute.xlu0 %1397
        %1399 = vrot.lane.b32.xlu0 %v1392, 127
        %v1400 = vpop.permute.xlu0 %1399
        %1401 = vrot.lane.b32.xlu0 %v1394, 127
        %v1402 = vpop.permute.xlu0 %1401
        %1403 = vrot.lane.b32.xlu0 %v1396, 127
        %v1404 = vpop.permute.xlu0 %1403
        %v1409 = vadd.f32 %v1343, %v1398
        %v1410 = vadd.f32 %v1344, %v1400
        %v1411 = vadd.f32 %v1345, %v1402
        %v1412 = vadd.f32 %v1346, %v1404
        %s1413 = sld [smem:[#allocation10 + $0x2b]]
        %v1414 = vstv %s1413
        %v1415 = vmul.f32 %v1414, %v983
        %v1416 = vmul.f32 %v1414, %v984
        %v1417 = vmul.f32 %v1414, %v985
        %v1418 = vmul.f32 %v1414, %v986
        %v1419 = vmul.f32 %v1414, %v987
        %v1425 = vrot.slane %v1415, 2
        %v1426 = vrot.slane %v1416, 2
        %v1427 = vsel %vm788, %v1425, %v1426
        %v1428 = vrot.slane %v1417, 2
        %v1429 = vsel %vm788, %v1426, %v1428
        %v1430 = vrot.slane %v1418, 2
        %v1431 = vsel %vm788, %v1428, %v1430
        %v1432 = vrot.slane %v1419, 2
        %v1433 = vsel %vm788, %v1430, %v1432
        %1434 = vrot.lane.b32.xlu0 %v1427, 127
        %v1435 = vpop.permute.xlu0 %1434
        %1436 = vrot.lane.b32.xlu0 %v1429, 127
        %v1437 = vpop.permute.xlu0 %1436
        %1438 = vrot.lane.b32.xlu0 %v1431, 127
        %v1439 = vpop.permute.xlu0 %1438
        %1440 = vrot.lane.b32.xlu0 %v1433, 127
        %v1441 = vpop.permute.xlu0 %1440
        %v1446 = vadd.f32 %v1372, %v1435
        %v1447 = vadd.f32 %v1373, %v1437
        %v1448 = vadd.f32 %v1374, %v1439
        %v1449 = vadd.f32 %v1375, %v1441
        %s1450 = sld [smem:[#allocation10 + $0x11]]
        %v1451 = vstv %s1450
        %v1452 = vmul.f32 %v1451, %v983
        %v1453 = vmul.f32 %v1451, %v984
        %v1454 = vmul.f32 %v1451, %v985
        %v1455 = vmul.f32 %v1451, %v986
        %v1456 = vmul.f32 %v1451, %v987
        %v1462 = vrot.slane %v1452, 2
        %v1463 = vrot.slane %v1453, 2
        %v1464 = vsel %vm788, %v1462, %v1463
        %v1465 = vrot.slane %v1454, 2
        %v1466 = vsel %vm788, %v1463, %v1465
        %v1467 = vrot.slane %v1455, 2
        %v1468 = vsel %vm788, %v1465, %v1467
        %v1469 = vrot.slane %v1456, 2
        %v1470 = vsel %vm788, %v1467, %v1469
        %1471 = vrot.lane.b32.xlu0 %v1464, 126
        %v1472 = vpop.permute.xlu0 %1471
        %1473 = vrot.lane.b32.xlu0 %v1466, 126
        %v1474 = vpop.permute.xlu0 %1473
        %1475 = vrot.lane.b32.xlu0 %v1468, 126
        %v1476 = vpop.permute.xlu0 %1475
        %1477 = vrot.lane.b32.xlu0 %v1470, 126
        %v1478 = vpop.permute.xlu0 %1477
        %v1483 = vadd.f32 %v1409, %v1472
        %v1484 = vadd.f32 %v1410, %v1474
        %v1485 = vadd.f32 %v1411, %v1476
        %v1486 = vadd.f32 %v1412, %v1478
        %s1487 = sld [smem:[#allocation10 + $0x2c]]
        %v1488 = vstv %s1487
        %v1489 = vmul.f32 %v1488, %v983
        %v1490 = vmul.f32 %v1488, %v984
        %v1491 = vmul.f32 %v1488, %v985
        %v1492 = vmul.f32 %v1488, %v986
        %v1493 = vmul.f32 %v1488, %v987
        %v1499 = vrot.slane %v1489, 2
        %v1500 = vrot.slane %v1490, 2
        %v1501 = vsel %vm788, %v1499, %v1500
        %v1502 = vrot.slane %v1491, 2
        %v1503 = vsel %vm788, %v1500, %v1502
        %v1504 = vrot.slane %v1492, 2
        %v1505 = vsel %vm788, %v1502, %v1504
        %v1506 = vrot.slane %v1493, 2
        %v1507 = vsel %vm788, %v1504, %v1506
        %1508 = vrot.lane.b32.xlu0 %v1501, 126
        %v1509 = vpop.permute.xlu0 %1508
        %1510 = vrot.lane.b32.xlu0 %v1503, 126
        %v1511 = vpop.permute.xlu0 %1510
        %1512 = vrot.lane.b32.xlu0 %v1505, 126
        %v1513 = vpop.permute.xlu0 %1512
        %1514 = vrot.lane.b32.xlu0 %v1507, 126
        %v1515 = vpop.permute.xlu0 %1514
        %v1520 = vadd.f32 %v1446, %v1509
        %v1521 = vadd.f32 %v1447, %v1511
        %v1522 = vadd.f32 %v1448, %v1513
        %v1523 = vadd.f32 %v1449, %v1515
        %v1524 = vld [vmem:[%s435] sm:$0xff]
        %v1525 = vld [vmem:[%s435 + $0x8] sm:$0xff]
        %v1526 = vld [vmem:[%s435 + $0x10] sm:$0xff]
        %v1527 = vld [vmem:[%s435 + $0x18] sm:$0xff]
        %v1528 = vld [vmem:[%s435 + $0x20] sm:$0x3]
        %s1529 = sld [smem:[#allocation10 + $0x12]]
        %v1530 = vstv %s1529
        %v1531 = vmul.f32 %v1530, %v1524
        %v1532 = vmul.f32 %v1530, %v1525
        %v1533 = vmul.f32 %v1530, %v1526
        %v1534 = vmul.f32 %v1530, %v1527
        %v1535 = vadd.f32 %v1483, %v1531
        %v1536 = vadd.f32 %v1484, %v1532
        %v1537 = vadd.f32 %v1485, %v1533
        %v1538 = vadd.f32 %v1486, %v1534
        %s1539 = sld [smem:[#allocation10 + $0x2d]]
        %v1540 = vstv %s1539
        %v1541 = vmul.f32 %v1540, %v1524
        %v1542 = vmul.f32 %v1540, %v1525
        %v1543 = vmul.f32 %v1540, %v1526
        %v1544 = vmul.f32 %v1540, %v1527
        %v1545 = vadd.f32 %v1520, %v1541
        %v1546 = vadd.f32 %v1521, %v1542
        %v1547 = vadd.f32 %v1522, %v1543
        %v1548 = vadd.f32 %v1523, %v1544
        %s1549 = sld [smem:[#allocation10 + $0x13]]
        %v1550 = vstv %s1549
        %v1551 = vmul.f32 %v1550, %v1524
        %v1552 = vmul.f32 %v1550, %v1525
        %v1553 = vmul.f32 %v1550, %v1526
        %v1554 = vmul.f32 %v1550, %v1527
        %1559 = vrot.lane.b32.xlu0 %v1551, 127
        %v1560 = vpop.permute.xlu0 %1559
        %1561 = vrot.lane.b32.xlu0 %v1552, 127
        %v1562 = vpop.permute.xlu0 %1561
        %1563 = vrot.lane.b32.xlu0 %v1553, 127
        %v1564 = vpop.permute.xlu0 %1563
        %1565 = vrot.lane.b32.xlu0 %v1554, 127
        %v1566 = vpop.permute.xlu0 %1565
        %v1571 = vadd.f32 %v1535, %v1560
        %v1572 = vadd.f32 %v1536, %v1562
        %v1573 = vadd.f32 %v1537, %v1564
        %v1574 = vadd.f32 %v1538, %v1566
        %s1575 = sld [smem:[#allocation10 + $0x2e]]
        %v1576 = vstv %s1575
        %v1577 = vmul.f32 %v1576, %v1524
        %v1578 = vmul.f32 %v1576, %v1525
        %v1579 = vmul.f32 %v1576, %v1526
        %v1580 = vmul.f32 %v1576, %v1527
        %1585 = vrot.lane.b32.xlu0 %v1577, 127
        %v1586 = vpop.permute.xlu0 %1585
        %1587 = vrot.lane.b32.xlu0 %v1578, 127
        %v1588 = vpop.permute.xlu0 %1587
        %1589 = vrot.lane.b32.xlu0 %v1579, 127
        %v1590 = vpop.permute.xlu0 %1589
        %1591 = vrot.lane.b32.xlu0 %v1580, 127
        %v1592 = vpop.permute.xlu0 %1591
        %v1597 = vadd.f32 %v1545, %v1586
        %v1598 = vadd.f32 %v1546, %v1588
        %v1599 = vadd.f32 %v1547, %v1590
        %v1600 = vadd.f32 %v1548, %v1592
        %s1601 = sld [smem:[#allocation10 + $0x14]]
        %v1602 = vstv %s1601
        %v1603 = vmul.f32 %v1602, %v1524
        %v1604 = vmul.f32 %v1602, %v1525
        %v1605 = vmul.f32 %v1602, %v1526
        %v1606 = vmul.f32 %v1602, %v1527
        %1611 = vrot.lane.b32.xlu0 %v1603, 126
        %v1612 = vpop.permute.xlu0 %1611
        %1613 = vrot.lane.b32.xlu0 %v1604, 126
        %v1614 = vpop.permute.xlu0 %1613
        %1615 = vrot.lane.b32.xlu0 %v1605, 126
        %v1616 = vpop.permute.xlu0 %1615
        %1617 = vrot.lane.b32.xlu0 %v1606, 126
        %v1618 = vpop.permute.xlu0 %1617
        %v1623 = vadd.f32 %v1571, %v1612
        %v1624 = vadd.f32 %v1572, %v1614
        %v1625 = vadd.f32 %v1573, %v1616
        %v1626 = vadd.f32 %v1574, %v1618
        %s1627 = sld [smem:[#allocation10 + $0x2f]]
        %v1628 = vstv %s1627
        %v1629 = vmul.f32 %v1628, %v1524
        %v1630 = vmul.f32 %v1628, %v1525
        %v1631 = vmul.f32 %v1628, %v1526
        %v1632 = vmul.f32 %v1628, %v1527
        %1637 = vrot.lane.b32.xlu0 %v1629, 126
        %v1638 = vpop.permute.xlu0 %1637
        %1639 = vrot.lane.b32.xlu0 %v1630, 126
        %v1640 = vpop.permute.xlu0 %1639
        %1641 = vrot.lane.b32.xlu0 %v1631, 126
        %v1642 = vpop.permute.xlu0 %1641
        %1643 = vrot.lane.b32.xlu0 %v1632, 126
        %v1644 = vpop.permute.xlu0 %1643
        %v1649 = vadd.f32 %v1597, %v1638
        %v1650 = vadd.f32 %v1598, %v1640
        %v1651 = vadd.f32 %v1599, %v1642
        %v1652 = vadd.f32 %v1600, %v1644
        %s1653 = sld [smem:[#allocation10 + $0x15]]
        %v1654 = vstv %s1653
        %v1655 = vmul.f32 %v1654, %v1524
        %v1656 = vmul.f32 %v1654, %v1525
        %v1657 = vmul.f32 %v1654, %v1526
        %v1658 = vmul.f32 %v1654, %v1527
        %v1659 = vmul.f32 %v1654, %v1528
        %v1665 = vrot.slane %v1655, 1
        %v1666 = vrot.slane %v1656, 1
        %v1667 = vsel %vm581, %v1665, %v1666
        %v1668 = vrot.slane %v1657, 1
        %v1669 = vsel %vm581, %v1666, %v1668
        %v1670 = vrot.slane %v1658, 1
        %v1671 = vsel %vm581, %v1668, %v1670
        %v1672 = vrot.slane %v1659, 1
        %v1673 = vsel %vm581, %v1670, %v1672
        %v1678 = vadd.f32 %v1623, %v1667
        %v1679 = vadd.f32 %v1624, %v1669
        %v1680 = vadd.f32 %v1625, %v1671
        %v1681 = vadd.f32 %v1626, %v1673
        %s1682 = sld [smem:[#allocation10 + $0x30]]
        %v1683 = vstv %s1682
        %v1684 = vmul.f32 %v1683, %v1524
        %v1685 = vmul.f32 %v1683, %v1525
        %v1686 = vmul.f32 %v1683, %v1526
        %v1687 = vmul.f32 %v1683, %v1527
        %v1688 = vmul.f32 %v1683, %v1528
        %v1694 = vrot.slane %v1684, 1
        %v1695 = vrot.slane %v1685, 1
        %v1696 = vsel %vm581, %v1694, %v1695
        %v1697 = vrot.slane %v1686, 1
        %v1698 = vsel %vm581, %v1695, %v1697
        %v1699 = vrot.slane %v1687, 1
        %v1700 = vsel %vm581, %v1697, %v1699
        %v1701 = vrot.slane %v1688, 1
        %v1702 = vsel %vm581, %v1699, %v1701
        %v1707 = vadd.f32 %v1649, %v1696
        %v1708 = vadd.f32 %v1650, %v1698
        %v1709 = vadd.f32 %v1651, %v1700
        %v1710 = vadd.f32 %v1652, %v1702
        %s1711 = sld [smem:[#allocation10 + $0x16]]
        %v1712 = vstv %s1711
        %v1713 = vmul.f32 %v1712, %v1524
        %v1714 = vmul.f32 %v1712, %v1525
        %v1715 = vmul.f32 %v1712, %v1526
        %v1716 = vmul.f32 %v1712, %v1527
        %v1717 = vmul.f32 %v1712, %v1528
        %v1723 = vrot.slane %v1713, 1
        %v1724 = vrot.slane %v1714, 1
        %v1725 = vsel %vm581, %v1723, %v1724
        %v1726 = vrot.slane %v1715, 1
        %v1727 = vsel %vm581, %v1724, %v1726
        %v1728 = vrot.slane %v1716, 1
        %v1729 = vsel %vm581, %v1726, %v1728
        %v1730 = vrot.slane %v1717, 1
        %v1731 = vsel %vm581, %v1728, %v1730
        %1732 = vrot.lane.b32.xlu0 %v1725, 127
        %v1733 = vpop.permute.xlu0 %1732
        %1734 = vrot.lane.b32.xlu0 %v1727, 127
        %v1735 = vpop.permute.xlu0 %1734
        %1736 = vrot.lane.b32.xlu0 %v1729, 127
        %v1737 = vpop.permute.xlu0 %1736
        %1738 = vrot.lane.b32.xlu0 %v1731, 127
        %v1739 = vpop.permute.xlu0 %1738
        %v1744 = vadd.f32 %v1678, %v1733
        %v1745 = vadd.f32 %v1679, %v1735
        %v1746 = vadd.f32 %v1680, %v1737
        %v1747 = vadd.f32 %v1681, %v1739
        %s1748 = sld [smem:[#allocation10 + $0x31]]
        %v1749 = vstv %s1748
        %v1750 = vmul.f32 %v1749, %v1524
        %v1751 = vmul.f32 %v1749, %v1525
        %v1752 = vmul.f32 %v1749, %v1526
        %v1753 = vmul.f32 %v1749, %v1527
        %v1754 = vmul.f32 %v1749, %v1528
        %v1760 = vrot.slane %v1750, 1
        %v1761 = vrot.slane %v1751, 1
        %v1762 = vsel %vm581, %v1760, %v1761
        %v1763 = vrot.slane %v1752, 1
        %v1764 = vsel %vm581, %v1761, %v1763
        %v1765 = vrot.slane %v1753, 1
        %v1766 = vsel %vm581, %v1763, %v1765
        %v1767 = vrot.slane %v1754, 1
        %v1768 = vsel %vm581, %v1765, %v1767
        %1769 = vrot.lane.b32.xlu0 %v1762, 127
        %v1770 = vpop.permute.xlu0 %1769
        %1771 = vrot.lane.b32.xlu0 %v1764, 127
        %v1772 = vpop.permute.xlu0 %1771
        %1773 = vrot.lane.b32.xlu0 %v1766, 127
        %v1774 = vpop.permute.xlu0 %1773
        %1775 = vrot.lane.b32.xlu0 %v1768, 127
        %v1776 = vpop.permute.xlu0 %1775
        %v1781 = vadd.f32 %v1707, %v1770
        %v1782 = vadd.f32 %v1708, %v1772
        %v1783 = vadd.f32 %v1709, %v1774
        %v1784 = vadd.f32 %v1710, %v1776
        %s1785 = sld [smem:[#allocation10 + $0x17]]
        %v1786 = vstv %s1785
        %v1787 = vmul.f32 %v1786, %v1524
        %v1788 = vmul.f32 %v1786, %v1525
        %v1789 = vmul.f32 %v1786, %v1526
        %v1790 = vmul.f32 %v1786, %v1527
        %v1791 = vmul.f32 %v1786, %v1528
        %v1797 = vrot.slane %v1787, 1
        %v1798 = vrot.slane %v1788, 1
        %v1799 = vsel %vm581, %v1797, %v1798
        %v1800 = vrot.slane %v1789, 1
        %v1801 = vsel %vm581, %v1798, %v1800
        %v1802 = vrot.slane %v1790, 1
        %v1803 = vsel %vm581, %v1800, %v1802
        %v1804 = vrot.slane %v1791, 1
        %v1805 = vsel %vm581, %v1802, %v1804
        %1806 = vrot.lane.b32.xlu0 %v1799, 126
        %v1807 = vpop.permute.xlu0 %1806
        %1808 = vrot.lane.b32.xlu0 %v1801, 126
        %v1809 = vpop.permute.xlu0 %1808
        %1810 = vrot.lane.b32.xlu0 %v1803, 126
        %v1811 = vpop.permute.xlu0 %1810
        %1812 = vrot.lane.b32.xlu0 %v1805, 126
        %v1813 = vpop.permute.xlu0 %1812
        %v1818 = vadd.f32 %v1744, %v1807
        %v1819 = vadd.f32 %v1745, %v1809
        %v1820 = vadd.f32 %v1746, %v1811
        %v1821 = vadd.f32 %v1747, %v1813
        %s1822 = sld [smem:[#allocation10 + $0x32]]
        %v1823 = vstv %s1822
        %v1824 = vmul.f32 %v1823, %v1524
        %v1825 = vmul.f32 %v1823, %v1525
        %v1826 = vmul.f32 %v1823, %v1526
        %v1827 = vmul.f32 %v1823, %v1527
        %v1828 = vmul.f32 %v1823, %v1528
        %v1834 = vrot.slane %v1824, 1
        %v1835 = vrot.slane %v1825, 1
        %v1836 = vsel %vm581, %v1834, %v1835
        %v1837 = vrot.slane %v1826, 1
        %v1838 = vsel %vm581, %v1835, %v1837
        %v1839 = vrot.slane %v1827, 1
        %v1840 = vsel %vm581, %v1837, %v1839
        %v1841 = vrot.slane %v1828, 1
        %v1842 = vsel %vm581, %v1839, %v1841
        %1843 = vrot.lane.b32.xlu0 %v1836, 126
        %v1844 = vpop.permute.xlu0 %1843
        %1845 = vrot.lane.b32.xlu0 %v1838, 126
        %v1846 = vpop.permute.xlu0 %1845
        %1847 = vrot.lane.b32.xlu0 %v1840, 126
        %v1848 = vpop.permute.xlu0 %1847
        %1849 = vrot.lane.b32.xlu0 %v1842, 126
        %v1850 = vpop.permute.xlu0 %1849
        %v1855 = vadd.f32 %v1781, %v1844
        %v1856 = vadd.f32 %v1782, %v1846
        %v1857 = vadd.f32 %v1783, %v1848
        %v1858 = vadd.f32 %v1784, %v1850
        %s1859 = sld [smem:[#allocation10 + $0x18]]
        %v1860 = vstv %s1859
        %v1861 = vmul.f32 %v1860, %v1524
        %v1862 = vmul.f32 %v1860, %v1525
        %v1863 = vmul.f32 %v1860, %v1526
        %v1864 = vmul.f32 %v1860, %v1527
        %v1865 = vmul.f32 %v1860, %v1528
        %v1871 = vrot.slane %v1861, 2
        %v1872 = vrot.slane %v1862, 2
        %v1873 = vsel %vm788, %v1871, %v1872
        %v1874 = vrot.slane %v1863, 2
        %v1875 = vsel %vm788, %v1872, %v1874
        %v1876 = vrot.slane %v1864, 2
        %v1877 = vsel %vm788, %v1874, %v1876
        %v1878 = vrot.slane %v1865, 2
        %v1879 = vsel %vm788, %v1876, %v1878
        %v1884 = vadd.f32 %v1818, %v1873
        %v1885 = vadd.f32 %v1819, %v1875
        %v1886 = vadd.f32 %v1820, %v1877
        %v1887 = vadd.f32 %v1821, %v1879
        %s1888 = sld [smem:[#allocation10 + $0x33]]
        %v1889 = vstv %s1888
        %v1890 = vmul.f32 %v1889, %v1524
        %v1891 = vmul.f32 %v1889, %v1525
        %v1892 = vmul.f32 %v1889, %v1526
        %v1893 = vmul.f32 %v1889, %v1527
        %v1894 = vmul.f32 %v1889, %v1528
        %v1900 = vrot.slane %v1890, 2
        %v1901 = vrot.slane %v1891, 2
        %v1902 = vsel %vm788, %v1900, %v1901
        %v1903 = vrot.slane %v1892, 2
        %v1904 = vsel %vm788, %v1901, %v1903
        %v1905 = vrot.slane %v1893, 2
        %v1906 = vsel %vm788, %v1903, %v1905
        %v1907 = vrot.slane %v1894, 2
        %v1908 = vsel %vm788, %v1905, %v1907
        %v1913 = vadd.f32 %v1855, %v1902
        %v1914 = vadd.f32 %v1856, %v1904
        %v1915 = vadd.f32 %v1857, %v1906
        %v1916 = vadd.f32 %v1858, %v1908
        %s1917 = sld [smem:[#allocation10 + $0x19]]
        %v1918 = vstv %s1917
        %v1919 = vmul.f32 %v1918, %v1524
        %v1920 = vmul.f32 %v1918, %v1525
        %v1921 = vmul.f32 %v1918, %v1526
        %v1922 = vmul.f32 %v1918, %v1527
        %v1923 = vmul.f32 %v1918, %v1528
        %v1929 = vrot.slane %v1919, 2
        %v1930 = vrot.slane %v1920, 2
        %v1931 = vsel %vm788, %v1929, %v1930
        %v1932 = vrot.slane %v1921, 2
        %v1933 = vsel %vm788, %v1930, %v1932
        %v1934 = vrot.slane %v1922, 2
        %v1935 = vsel %vm788, %v1932, %v1934
        %v1936 = vrot.slane %v1923, 2
        %v1937 = vsel %vm788, %v1934, %v1936
        %1938 = vrot.lane.b32.xlu0 %v1931, 127
        %v1939 = vpop.permute.xlu0 %1938
        %1940 = vrot.lane.b32.xlu0 %v1933, 127
        %v1941 = vpop.permute.xlu0 %1940
        %1942 = vrot.lane.b32.xlu0 %v1935, 127
        %v1943 = vpop.permute.xlu0 %1942
        %1944 = vrot.lane.b32.xlu0 %v1937, 127
        %v1945 = vpop.permute.xlu0 %1944
        %v1950 = vadd.f32 %v1884, %v1939
        %v1951 = vadd.f32 %v1885, %v1941
        %v1952 = vadd.f32 %v1886, %v1943
        %v1953 = vadd.f32 %v1887, %v1945
        %s1954 = sld [smem:[#allocation10 + $0x34]]
        %v1955 = vstv %s1954
        %v1956 = vmul.f32 %v1955, %v1524
        %v1957 = vmul.f32 %v1955, %v1525
        %v1958 = vmul.f32 %v1955, %v1526
        %v1959 = vmul.f32 %v1955, %v1527
        %v1960 = vmul.f32 %v1955, %v1528
        %v1966 = vrot.slane %v1956, 2
        %v1967 = vrot.slane %v1957, 2
        %v1968 = vsel %vm788, %v1966, %v1967
        %v1969 = vrot.slane %v1958, 2
        %v1970 = vsel %vm788, %v1967, %v1969
        %v1971 = vrot.slane %v1959, 2
        %v1972 = vsel %vm788, %v1969, %v1971
        %v1973 = vrot.slane %v1960, 2
        %v1974 = vsel %vm788, %v1971, %v1973
        %1975 = vrot.lane.b32.xlu0 %v1968, 127
        %v1976 = vpop.permute.xlu0 %1975
        %1977 = vrot.lane.b32.xlu0 %v1970, 127
        %v1978 = vpop.permute.xlu0 %1977
        %1979 = vrot.lane.b32.xlu0 %v1972, 127
        %v1980 = vpop.permute.xlu0 %1979
        %1981 = vrot.lane.b32.xlu0 %v1974, 127
        %v1982 = vpop.permute.xlu0 %1981
        %v1987 = vadd.f32 %v1913, %v1976
        %v1988 = vadd.f32 %v1914, %v1978
        %v1989 = vadd.f32 %v1915, %v1980
        %v1990 = vadd.f32 %v1916, %v1982
        %s1991 = sld [smem:[#allocation10 + $0x1a]]
        %v1992 = vstv %s1991
        %v1993 = vmul.f32 %v1992, %v1524
        %v1994 = vmul.f32 %v1992, %v1525
        %v1995 = vmul.f32 %v1992, %v1526
        %v1996 = vmul.f32 %v1992, %v1527
        %v1997 = vmul.f32 %v1992, %v1528
        %v2003 = vrot.slane %v1993, 2
        %v2004 = vrot.slane %v1994, 2
        %v2005 = vsel %vm788, %v2003, %v2004
        %v2006 = vrot.slane %v1995, 2
        %v2007 = vsel %vm788, %v2004, %v2006
        %v2008 = vrot.slane %v1996, 2
        %v2009 = vsel %vm788, %v2006, %v2008
        %v2010 = vrot.slane %v1997, 2
        %v2011 = vsel %vm788, %v2008, %v2010
        %2012 = vrot.lane.b32.xlu0 %v2005, 126
        %v2013 = vpop.permute.xlu0 %2012
        %2014 = vrot.lane.b32.xlu0 %v2007, 126
        %v2015 = vpop.permute.xlu0 %2014
        %2016 = vrot.lane.b32.xlu0 %v2009, 126
        %v2017 = vpop.permute.xlu0 %2016
        %2018 = vrot.lane.b32.xlu0 %v2011, 126
        %v2019 = vpop.permute.xlu0 %2018
        %v2024 = vadd.f32 %v1950, %v2013
        %v2025 = vadd.f32 %v1951, %v2015
        %v2026 = vadd.f32 %v1952, %v2017
        %v2027 = vadd.f32 %v1953, %v2019
        %s2028 = sld [smem:[#allocation10 + $0x35]]
        %v2029 = vstv %s2028
        %v2030 = vmul.f32 %v2029, %v1524
        %v2031 = vmul.f32 %v2029, %v1525
        %v2032 = vmul.f32 %v2029, %v1526
        %v2033 = vmul.f32 %v2029, %v1527
        %v2034 = vmul.f32 %v2029, %v1528
        %v2040 = vrot.slane %v2030, 2
        %v2041 = vrot.slane %v2031, 2
        %v2042 = vsel %vm788, %v2040, %v2041
        %v2043 = vrot.slane %v2032, 2
        %v2044 = vsel %vm788, %v2041, %v2043
        %v2045 = vrot.slane %v2033, 2
        %v2046 = vsel %vm788, %v2043, %v2045
        %v2047 = vrot.slane %v2034, 2
        %v2048 = vsel %vm788, %v2045, %v2047
        %2049 = vrot.lane.b32.xlu0 %v2042, 126
        %v2050 = vpop.permute.xlu0 %2049
        %2051 = vrot.lane.b32.xlu0 %v2044, 126
        %v2052 = vpop.permute.xlu0 %2051
        %2053 = vrot.lane.b32.xlu0 %v2046, 126
        %v2054 = vpop.permute.xlu0 %2053
        %2055 = vrot.lane.b32.xlu0 %v2048, 126
        %v2056 = vpop.permute.xlu0 %2055
        %v2061 = vadd.f32 %v1987, %v2050
        %v2062 = vadd.f32 %v1988, %v2052
        %v2063 = vadd.f32 %v1989, %v2054
        %v2064 = vadd.f32 %v1990, %v2056
        %s2065 = sld [smem:[#allocation11]]
        %v2066 = vstv %s2065
        %v2067 = vmul.f32 %v2024, %v2066
        %v2068 = vmul.f32 %v2025, %v2066
        %v2069 = vmul.f32 %v2026, %v2066
        %v2070 = vmul.f32 %v2027, %v2066
        %s2071 = sld [smem:[#allocation12]]
        %v2072 = vstv %s2071
        %v2073 = vadd.f32 %v2067, %v2072
        %v2074 = vadd.f32 %v2068, %v2072
        %v2075 = vadd.f32 %v2069, %v2072
        %v2076 = vadd.f32 %v2070, %v2072
        %v2077 = vmax.f32 %v2073, 0.0
        %v2078 = vmax.f32 %v2074, 0.0
        %v2079 = vmax.f32 %v2075, 0.0
        %v2080 = vmax.f32 %v2076, 0.0
        %s2081 = sld [smem:[#allocation11 + $0x1]]
        %v2082 = vstv %s2081
        %v2083 = vmul.f32 %v2061, %v2082
        %v2084 = vmul.f32 %v2062, %v2082
        %v2085 = vmul.f32 %v2063, %v2082
        %v2086 = vmul.f32 %v2064, %v2082
        %s2087 = sld [smem:[#allocation12 + $0x1]]
        %v2088 = vstv %s2087
        %v2089 = vadd.f32 %v2083, %v2088
        %v2090 = vadd.f32 %v2084, %v2088
        %v2091 = vadd.f32 %v2085, %v2088
        %v2092 = vadd.f32 %v2086, %v2088
        %v2093 = vmax.f32 %v2089, 0.0
        %v2094 = vmax.f32 %v2090, 0.0
        %v2095 = vmax.f32 %v2091, 0.0
        %v2096 = vmax.f32 %v2092, 0.0
        %2101 = vrot.lane.b32.xlu0 %v2077, 1
        %v2102 = vpop.permute.xlu0 %2101
        %2103 = vrot.lane.b32.xlu0 %v2078, 1
        %v2104 = vpop.permute.xlu0 %2103
        %2105 = vrot.lane.b32.xlu0 %v2079, 1
        %v2106 = vpop.permute.xlu0 %2105
        %2107 = vrot.lane.b32.xlu0 %v2080, 1
        %v2108 = vpop.permute.xlu0 %2107
        %2113 = vst.msk [vmem:[#allocation3 + $0x1] sm:$0xff] %vm383, %v2102
        %2114 = vst.msk [vmem:[#allocation3 + $0x9] sm:$0xff] %vm383, %v2104
        %2115 = vst.msk [vmem:[#allocation3 + $0x11] sm:$0xff] %vm383, %v2106
        %2116 = vst.msk [vmem:[#allocation3 + $0x19] sm:$0xff] %vm383, %v2108
        %2121 = vrot.lane.b32.xlu0 %v2093, 1
        %v2122 = vpop.permute.xlu0 %2121
        %2123 = vrot.lane.b32.xlu0 %v2094, 1
        %v2124 = vpop.permute.xlu0 %2123
        %2125 = vrot.lane.b32.xlu0 %v2095, 1
        %v2126 = vpop.permute.xlu0 %2125
        %2127 = vrot.lane.b32.xlu0 %v2096, 1
        %v2128 = vpop.permute.xlu0 %2127
        %s2133 = scalar_lea.vmem [#allocation3], 40
        %2134 = vst.msk [vmem:[%s2133 + $0x1] sm:$0xff] %vm383, %v2122
        %2135 = vst.msk [vmem:[%s2133 + $0x9] sm:$0xff] %vm383, %v2124
        %2136 = vst.msk [vmem:[%s2133 + $0x11] sm:$0xff] %vm383, %v2126
        %2137 = vst.msk [vmem:[%s2133 + $0x19] sm:$0xff] %vm383, %v2128
        %v2138 = vld [vmem:[#allocation3] sm:$0xff]
        %v2139 = vld [vmem:[#allocation3 + $0x8] sm:$0xff]
        %v2140 = vld [vmem:[#allocation3 + $0x10] sm:$0xff]
        %v2141 = vld [vmem:[#allocation3 + $0x18] sm:$0xff]
        %v2142 = vld [vmem:[#allocation3 + $0x20] sm:$0x3]
        %s2143 = sld [smem:[#allocation10 + $0x36]]
        %v2144 = vstv %s2143
        %v2145 = vmul.f32 %v2144, %v2138
        %v2146 = vmul.f32 %v2144, %v2139
        %v2147 = vmul.f32 %v2144, %v2140
        %v2148 = vmul.f32 %v2144, %v2141
        %v2149 = vadd.f32 %v2145, 0.0
        %v2150 = vadd.f32 %v2146, 0.0
        %v2151 = vadd.f32 %v2147, 0.0
        %v2152 = vadd.f32 %v2148, 0.0
        %s2153 = sld [smem:[#allocation10 + $0x48]]
        %v2154 = vstv %s2153
        %v2155 = vmul.f32 %v2154, %v2138
        %v2156 = vmul.f32 %v2154, %v2139
        %v2157 = vmul.f32 %v2154, %v2140
        %v2158 = vmul.f32 %v2154, %v2141
        %v2159 = vadd.f32 %v2155, 0.0
        %v2160 = vadd.f32 %v2156, 0.0
        %v2161 = vadd.f32 %v2157, 0.0
        %v2162 = vadd.f32 %v2158, 0.0
        %s2163 = sld [smem:[#allocation10 + $0x37]]
        %v2164 = vstv %s2163
        %v2165 = vmul.f32 %v2164, %v2138
        %v2166 = vmul.f32 %v2164, %v2139
        %v2167 = vmul.f32 %v2164, %v2140
        %v2168 = vmul.f32 %v2164, %v2141
        %2173 = vrot.lane.b32.xlu0 %v2165, 127
        %v2174 = vpop.permute.xlu0 %2173
        %2175 = vrot.lane.b32.xlu0 %v2166, 127
        %v2176 = vpop.permute.xlu0 %2175
        %2177 = vrot.lane.b32.xlu0 %v2167, 127
        %v2178 = vpop.permute.xlu0 %2177
        %2179 = vrot.lane.b32.xlu0 %v2168, 127
        %v2180 = vpop.permute.xlu0 %2179
        %v2185 = vadd.f32 %v2149, %v2174
        %v2186 = vadd.f32 %v2150, %v2176
        %v2187 = vadd.f32 %v2151, %v2178
        %v2188 = vadd.f32 %v2152, %v2180
        %s2189 = sld [smem:[#allocation10 + $0x49]]
        %v2190 = vstv %s2189
        %v2191 = vmul.f32 %v2190, %v2138
        %v2192 = vmul.f32 %v2190, %v2139
        %v2193 = vmul.f32 %v2190, %v2140
        %v2194 = vmul.f32 %v2190, %v2141
        %2199 = vrot.lane.b32.xlu0 %v2191, 127
        %v2200 = vpop.permute.xlu0 %2199
        %2201 = vrot.lane.b32.xlu0 %v2192, 127
        %v2202 = vpop.permute.xlu0 %2201
        %2203 = vrot.lane.b32.xlu0 %v2193, 127
        %v2204 = vpop.permute.xlu0 %2203
        %2205 = vrot.lane.b32.xlu0 %v2194, 127
        %v2206 = vpop.permute.xlu0 %2205
        %v2211 = vadd.f32 %v2159, %v2200
        %v2212 = vadd.f32 %v2160, %v2202
        %v2213 = vadd.f32 %v2161, %v2204
        %v2214 = vadd.f32 %v2162, %v2206
        %s2215 = sld [smem:[#allocation10 + $0x38]]
        %v2216 = vstv %s2215
        %v2217 = vmul.f32 %v2216, %v2138
        %v2218 = vmul.f32 %v2216, %v2139
        %v2219 = vmul.f32 %v2216, %v2140
        %v2220 = vmul.f32 %v2216, %v2141
        %2225 = vrot.lane.b32.xlu0 %v2217, 126
        %v2226 = vpop.permute.xlu0 %2225
        %2227 = vrot.lane.b32.xlu0 %v2218, 126
        %v2228 = vpop.permute.xlu0 %2227
        %2229 = vrot.lane.b32.xlu0 %v2219, 126
        %v2230 = vpop.permute.xlu0 %2229
        %2231 = vrot.lane.b32.xlu0 %v2220, 126
        %v2232 = vpop.permute.xlu0 %2231
        %v2237 = vadd.f32 %v2185, %v2226
        %v2238 = vadd.f32 %v2186, %v2228
        %v2239 = vadd.f32 %v2187, %v2230
        %v2240 = vadd.f32 %v2188, %v2232
        %s2241 = sld [smem:[#allocation10 + $0x4a]]
        %v2242 = vstv %s2241
        %v2243 = vmul.f32 %v2242, %v2138
        %v2244 = vmul.f32 %v2242, %v2139
        %v2245 = vmul.f32 %v2242, %v2140
        %v2246 = vmul.f32 %v2242, %v2141
        %2251 = vrot.lane.b32.xlu0 %v2243, 126
        %v2252 = vpop.permute.xlu0 %2251
        %2253 = vrot.lane.b32.xlu0 %v2244, 126
        %v2254 = vpop.permute.xlu0 %2253
        %2255 = vrot.lane.b32.xlu0 %v2245, 126
        %v2256 = vpop.permute.xlu0 %2255
        %2257 = vrot.lane.b32.xlu0 %v2246, 126
        %v2258 = vpop.permute.xlu0 %2257
        %v2263 = vadd.f32 %v2211, %v2252
        %v2264 = vadd.f32 %v2212, %v2254
        %v2265 = vadd.f32 %v2213, %v2256
        %v2266 = vadd.f32 %v2214, %v2258
        %s2267 = sld [smem:[#allocation10 + $0x39]]
        %v2268 = vstv %s2267
        %v2269 = vmul.f32 %v2268, %v2138
        %v2270 = vmul.f32 %v2268, %v2139
        %v2271 = vmul.f32 %v2268, %v2140
        %v2272 = vmul.f32 %v2268, %v2141
        %v2273 = vmul.f32 %v2268, %v2142
        %v2279 = vrot.slane %v2269, 1
        %v2280 = vrot.slane %v2270, 1
        %v2281 = vsel %vm581, %v2279, %v2280
        %v2282 = vrot.slane %v2271, 1
        %v2283 = vsel %vm581, %v2280, %v2282
        %v2284 = vrot.slane %v2272, 1
        %v2285 = vsel %vm581, %v2282, %v2284
        %v2286 = vrot.slane %v2273, 1
        %v2287 = vsel %vm581, %v2284, %v2286
        %v2292 = vadd.f32 %v2237, %v2281
        %v2293 = vadd.f32 %v2238, %v2283
        %v2294 = vadd.f32 %v2239, %v2285
        %v2295 = vadd.f32 %v2240, %v2287
        %s2296 = sld [smem:[#allocation10 + $0x4b]]
        %v2297 = vstv %s2296
        %v2298 = vmul.f32 %v2297, %v2138
        %v2299 = vmul.f32 %v2297, %v2139
        %v2300 = vmul.f32 %v2297, %v2140
        %v2301 = vmul.f32 %v2297, %v2141
        %v2302 = vmul.f32 %v2297, %v2142
        %v2308 = vrot.slane %v2298, 1
        %v2309 = vrot.slane %v2299, 1
        %v2310 = vsel %vm581, %v2308, %v2309
        %v2311 = vrot.slane %v2300, 1
        %v2312 = vsel %vm581, %v2309, %v2311
        %v2313 = vrot.slane %v2301, 1
        %v2314 = vsel %vm581, %v2311, %v2313
        %v2315 = vrot.slane %v2302, 1
        %v2316 = vsel %vm581, %v2313, %v2315
        %v2321 = vadd.f32 %v2263, %v2310
        %v2322 = vadd.f32 %v2264, %v2312
        %v2323 = vadd.f32 %v2265, %v2314
        %v2324 = vadd.f32 %v2266, %v2316
        %s2325 = sld [smem:[#allocation10 + $0x3a]]
        %v2326 = vstv %s2325
        %v2327 = vmul.f32 %v2326, %v2138
        %v2328 = vmul.f32 %v2326, %v2139
        %v2329 = vmul.f32 %v2326, %v2140
        %v2330 = vmul.f32 %v2326, %v2141
        %v2331 = vmul.f32 %v2326, %v2142
        %v2337 = vrot.slane %v2327, 1
        %v2338 = vrot.slane %v2328, 1
        %v2339 = vsel %vm581, %v2337, %v2338
        %v2340 = vrot.slane %v2329, 1
        %v2341 = vsel %vm581, %v2338, %v2340
        %v2342 = vrot.slane %v2330, 1
        %v2343 = vsel %vm581, %v2340, %v2342
        %v2344 = vrot.slane %v2331, 1
        %v2345 = vsel %vm581, %v2342, %v2344
        %2346 = vrot.lane.b32.xlu0 %v2339, 127
        %v2347 = vpop.permute.xlu0 %2346
        %2348 = vrot.lane.b32.xlu0 %v2341, 127
        %v2349 = vpop.permute.xlu0 %2348
        %2350 = vrot.lane.b32.xlu0 %v2343, 127
        %v2351 = vpop.permute.xlu0 %2350
        %2352 = vrot.lane.b32.xlu0 %v2345, 127
        %v2353 = vpop.permute.xlu0 %2352
        %v2358 = vadd.f32 %v2292, %v2347
        %v2359 = vadd.f32 %v2293, %v2349
        %v2360 = vadd.f32 %v2294, %v2351
        %v2361 = vadd.f32 %v2295, %v2353
        %s2362 = sld [smem:[#allocation10 + $0x4c]]
        %v2363 = vstv %s2362
        %v2364 = vmul.f32 %v2363, %v2138
        %v2365 = vmul.f32 %v2363, %v2139
        %v2366 = vmul.f32 %v2363, %v2140
        %v2367 = vmul.f32 %v2363, %v2141
        %v2368 = vmul.f32 %v2363, %v2142
        %v2374 = vrot.slane %v2364, 1
        %v2375 = vrot.slane %v2365, 1
        %v2376 = vsel %vm581, %v2374, %v2375
        %v2377 = vrot.slane %v2366, 1
        %v2378 = vsel %vm581, %v2375, %v2377
        %v2379 = vrot.slane %v2367, 1
        %v2380 = vsel %vm581, %v2377, %v2379
        %v2381 = vrot.slane %v2368, 1
        %v2382 = vsel %vm581, %v2379, %v2381
        %2383 = vrot.lane.b32.xlu0 %v2376, 127
        %v2384 = vpop.permute.xlu0 %2383
        %2385 = vrot.lane.b32.xlu0 %v2378, 127
        %v2386 = vpop.permute.xlu0 %2385
        %2387 = vrot.lane.b32.xlu0 %v2380, 127
        %v2388 = vpop.permute.xlu0 %2387
        %2389 = vrot.lane.b32.xlu0 %v2382, 127
        %v2390 = vpop.permute.xlu0 %2389
        %v2395 = vadd.f32 %v2321, %v2384
        %v2396 = vadd.f32 %v2322, %v2386
        %v2397 = vadd.f32 %v2323, %v2388
        %v2398 = vadd.f32 %v2324, %v2390
        %s2399 = sld [smem:[#allocation10 + $0x3b]]
        %v2400 = vstv %s2399
        %v2401 = vmul.f32 %v2400, %v2138
        %v2402 = vmul.f32 %v2400, %v2139
        %v2403 = vmul.f32 %v2400, %v2140
        %v2404 = vmul.f32 %v2400, %v2141
        %v2405 = vmul.f32 %v2400, %v2142
        %v2411 = vrot.slane %v2401, 1
        %v2412 = vrot.slane %v2402, 1
        %v2413 = vsel %vm581, %v2411, %v2412
        %v2414 = vrot.slane %v2403, 1
        %v2415 = vsel %vm581, %v2412, %v2414
        %v2416 = vrot.slane %v2404, 1
        %v2417 = vsel %vm581, %v2414, %v2416
        %v2418 = vrot.slane %v2405, 1
        %v2419 = vsel %vm581, %v2416, %v2418
        %2420 = vrot.lane.b32.xlu0 %v2413, 126
        %v2421 = vpop.permute.xlu0 %2420
        %2422 = vrot.lane.b32.xlu0 %v2415, 126
        %v2423 = vpop.permute.xlu0 %2422
        %2424 = vrot.lane.b32.xlu0 %v2417, 126
        %v2425 = vpop.permute.xlu0 %2424
        %2426 = vrot.lane.b32.xlu0 %v2419, 126
        %v2427 = vpop.permute.xlu0 %2426
        %v2432 = vadd.f32 %v2358, %v2421
        %v2433 = vadd.f32 %v2359, %v2423
        %v2434 = vadd.f32 %v2360, %v2425
        %v2435 = vadd.f32 %v2361, %v2427
        %s2436 = sld [smem:[#allocation10 + $0x4d]]
        %v2437 = vstv %s2436
        %v2438 = vmul.f32 %v2437, %v2138
        %v2439 = vmul.f32 %v2437, %v2139
        %v2440 = vmul.f32 %v2437, %v2140
        %v2441 = vmul.f32 %v2437, %v2141
        %v2442 = vmul.f32 %v2437, %v2142
        %v2448 = vrot.slane %v2438, 1
        %v2449 = vrot.slane %v2439, 1
        %v2450 = vsel %vm581, %v2448, %v2449
        %v2451 = vrot.slane %v2440, 1
        %v2452 = vsel %vm581, %v2449, %v2451
        %v2453 = vrot.slane %v2441, 1
        %v2454 = vsel %vm581, %v2451, %v2453
        %v2455 = vrot.slane %v2442, 1
        %v2456 = vsel %vm581, %v2453, %v2455
        %2457 = vrot.lane.b32.xlu0 %v2450, 126
        %v2458 = vpop.permute.xlu0 %2457
        %2459 = vrot.lane.b32.xlu0 %v2452, 126
        %v2460 = vpop.permute.xlu0 %2459
        %2461 = vrot.lane.b32.xlu0 %v2454, 126
        %v2462 = vpop.permute.xlu0 %2461
        %2463 = vrot.lane.b32.xlu0 %v2456, 126
        %v2464 = vpop.permute.xlu0 %2463
        %v2469 = vadd.f32 %v2395, %v2458
        %v2470 = vadd.f32 %v2396, %v2460
        %v2471 = vadd.f32 %v2397, %v2462
        %v2472 = vadd.f32 %v2398, %v2464
        %s2473 = sld [smem:[#allocation10 + $0x3c]]
        %v2474 = vstv %s2473
        %v2475 = vmul.f32 %v2474, %v2138
        %v2476 = vmul.f32 %v2474, %v2139
        %v2477 = vmul.f32 %v2474, %v2140
        %v2478 = vmul.f32 %v2474, %v2141
        %v2479 = vmul.f32 %v2474, %v2142
        %v2485 = vrot.slane %v2475, 2
        %v2486 = vrot.slane %v2476, 2
        %v2487 = vsel %vm788, %v2485, %v2486
        %v2488 = vrot.slane %v2477, 2
        %v2489 = vsel %vm788, %v2486, %v2488
        %v2490 = vrot.slane %v2478, 2
        %v2491 = vsel %vm788, %v2488, %v2490
        %v2492 = vrot.slane %v2479, 2
        %v2493 = vsel %vm788, %v2490, %v2492
        %v2498 = vadd.f32 %v2432, %v2487
        %v2499 = vadd.f32 %v2433, %v2489
        %v2500 = vadd.f32 %v2434, %v2491
        %v2501 = vadd.f32 %v2435, %v2493
        %s2502 = sld [smem:[#allocation10 + $0x4e]]
        %v2503 = vstv %s2502
        %v2504 = vmul.f32 %v2503, %v2138
        %v2505 = vmul.f32 %v2503, %v2139
        %v2506 = vmul.f32 %v2503, %v2140
        %v2507 = vmul.f32 %v2503, %v2141
        %v2508 = vmul.f32 %v2503, %v2142
        %v2514 = vrot.slane %v2504, 2
        %v2515 = vrot.slane %v2505, 2
        %v2516 = vsel %vm788, %v2514, %v2515
        %v2517 = vrot.slane %v2506, 2
        %v2518 = vsel %vm788, %v2515, %v2517
        %v2519 = vrot.slane %v2507, 2
        %v2520 = vsel %vm788, %v2517, %v2519
        %v2521 = vrot.slane %v2508, 2
        %v2522 = vsel %vm788, %v2519, %v2521
        %v2527 = vadd.f32 %v2469, %v2516
        %v2528 = vadd.f32 %v2470, %v2518
        %v2529 = vadd.f32 %v2471, %v2520
        %v2530 = vadd.f32 %v2472, %v2522
        %s2531 = sld [smem:[#allocation10 + $0x3d]]
        %v2532 = vstv %s2531
        %v2533 = vmul.f32 %v2532, %v2138
        %v2534 = vmul.f32 %v2532, %v2139
        %v2535 = vmul.f32 %v2532, %v2140
        %v2536 = vmul.f32 %v2532, %v2141
        %v2537 = vmul.f32 %v2532, %v2142
        %v2543 = vrot.slane %v2533, 2
        %v2544 = vrot.slane %v2534, 2
        %v2545 = vsel %vm788, %v2543, %v2544
        %v2546 = vrot.slane %v2535, 2
        %v2547 = vsel %vm788, %v2544, %v2546
        %v2548 = vrot.slane %v2536, 2
        %v2549 = vsel %vm788, %v2546, %v2548
        %v2550 = vrot.slane %v2537, 2
        %v2551 = vsel %vm788, %v2548, %v2550
        %2552 = vrot.lane.b32.xlu0 %v2545, 127
        %v2553 = vpop.permute.xlu0 %2552
        %2554 = vrot.lane.b32.xlu0 %v2547, 127
        %v2555 = vpop.permute.xlu0 %2554
        %2556 = vrot.lane.b32.xlu0 %v2549, 127
        %v2557 = vpop.permute.xlu0 %2556
        %2558 = vrot.lane.b32.xlu0 %v2551, 127
        %v2559 = vpop.permute.xlu0 %2558
        %v2564 = vadd.f32 %v2498, %v2553
        %v2565 = vadd.f32 %v2499, %v2555
        %v2566 = vadd.f32 %v2500, %v2557
        %v2567 = vadd.f32 %v2501, %v2559
        %s2568 = sld [smem:[#allocation10 + $0x4f]]
        %v2569 = vstv %s2568
        %v2570 = vmul.f32 %v2569, %v2138
        %v2571 = vmul.f32 %v2569, %v2139
        %v2572 = vmul.f32 %v2569, %v2140
        %v2573 = vmul.f32 %v2569, %v2141
        %v2574 = vmul.f32 %v2569, %v2142
        %v2580 = vrot.slane %v2570, 2
        %v2581 = vrot.slane %v2571, 2
        %v2582 = vsel %vm788, %v2580, %v2581
        %v2583 = vrot.slane %v2572, 2
        %v2584 = vsel %vm788, %v2581, %v2583
        %v2585 = vrot.slane %v2573, 2
        %v2586 = vsel %vm788, %v2583, %v2585
        %v2587 = vrot.slane %v2574, 2
        %v2588 = vsel %vm788, %v2585, %v2587
        %2589 = vrot.lane.b32.xlu0 %v2582, 127
        %v2590 = vpop.permute.xlu0 %2589
        %2591 = vrot.lane.b32.xlu0 %v2584, 127
        %v2592 = vpop.permute.xlu0 %2591
        %2593 = vrot.lane.b32.xlu0 %v2586, 127
        %v2594 = vpop.permute.xlu0 %2593
        %2595 = vrot.lane.b32.xlu0 %v2588, 127
        %v2596 = vpop.permute.xlu0 %2595
        %v2601 = vadd.f32 %v2527, %v2590
        %v2602 = vadd.f32 %v2528, %v2592
        %v2603 = vadd.f32 %v2529, %v2594
        %v2604 = vadd.f32 %v2530, %v2596
        %s2605 = sld [smem:[#allocation10 + $0x3e]]
        %v2606 = vstv %s2605
        %v2607 = vmul.f32 %v2606, %v2138
        %v2608 = vmul.f32 %v2606, %v2139
        %v2609 = vmul.f32 %v2606, %v2140
        %v2610 = vmul.f32 %v2606, %v2141
        %v2611 = vmul.f32 %v2606, %v2142
        %v2617 = vrot.slane %v2607, 2
        %v2618 = vrot.slane %v2608, 2
        %v2619 = vsel %vm788, %v2617, %v2618
        %v2620 = vrot.slane %v2609, 2
        %v2621 = vsel %vm788, %v2618, %v2620
        %v2622 = vrot.slane %v2610, 2
        %v2623 = vsel %vm788, %v2620, %v2622
        %v2624 = vrot.slane %v2611, 2
        %v2625 = vsel %vm788, %v2622, %v2624
        %2626 = vrot.lane.b32.xlu0 %v2619, 126
        %v2627 = vpop.permute.xlu0 %2626
        %2628 = vrot.lane.b32.xlu0 %v2621, 126
        %v2629 = vpop.permute.xlu0 %2628
        %2630 = vrot.lane.b32.xlu0 %v2623, 126
        %v2631 = vpop.permute.xlu0 %2630
        %2632 = vrot.lane.b32.xlu0 %v2625, 126
        %v2633 = vpop.permute.xlu0 %2632
        %v2638 = vadd.f32 %v2564, %v2627
        %v2639 = vadd.f32 %v2565, %v2629
        %v2640 = vadd.f32 %v2566, %v2631
        %v2641 = vadd.f32 %v2567, %v2633
        %s2642 = sld [smem:[#allocation10 + $0x50]]
        %v2643 = vstv %s2642
        %v2644 = vmul.f32 %v2643, %v2138
        %v2645 = vmul.f32 %v2643, %v2139
        %v2646 = vmul.f32 %v2643, %v2140
        %v2647 = vmul.f32 %v2643, %v2141
        %v2648 = vmul.f32 %v2643, %v2142
        %v2654 = vrot.slane %v2644, 2
        %v2655 = vrot.slane %v2645, 2
        %v2656 = vsel %vm788, %v2654, %v2655
        %v2657 = vrot.slane %v2646, 2
        %v2658 = vsel %vm788, %v2655, %v2657
        %v2659 = vrot.slane %v2647, 2
        %v2660 = vsel %vm788, %v2657, %v2659
        %v2661 = vrot.slane %v2648, 2
        %v2662 = vsel %vm788, %v2659, %v2661
        %2663 = vrot.lane.b32.xlu0 %v2656, 126
        %v2664 = vpop.permute.xlu0 %2663
        %2665 = vrot.lane.b32.xlu0 %v2658, 126
        %v2666 = vpop.permute.xlu0 %2665
        %2667 = vrot.lane.b32.xlu0 %v2660, 126
        %v2668 = vpop.permute.xlu0 %2667
        %2669 = vrot.lane.b32.xlu0 %v2662, 126
        %v2670 = vpop.permute.xlu0 %2669
        %v2675 = vadd.f32 %v2601, %v2664
        %v2676 = vadd.f32 %v2602, %v2666
        %v2677 = vadd.f32 %v2603, %v2668
        %v2678 = vadd.f32 %v2604, %v2670
        %v2679 = vld [vmem:[%s2133] sm:$0xff]
        %v2680 = vld [vmem:[%s2133 + $0x8] sm:$0xff]
        %v2681 = vld [vmem:[%s2133 + $0x10] sm:$0xff]
        %v2682 = vld [vmem:[%s2133 + $0x18] sm:$0xff]
        %v2683 = vld [vmem:[%s2133 + $0x20] sm:$0x3]
        %s2684 = sld [smem:[#allocation10 + $0x3f]]
        %v2685 = vstv %s2684
        %v2686 = vmul.f32 %v2685, %v2679
        %v2687 = vmul.f32 %v2685, %v2680
        %v2688 = vmul.f32 %v2685, %v2681
        %v2689 = vmul.f32 %v2685, %v2682
        %v2690 = vadd.f32 %v2638, %v2686
        %v2691 = vadd.f32 %v2639, %v2687
        %v2692 = vadd.f32 %v2640, %v2688
        %v2693 = vadd.f32 %v2641, %v2689
        %s2694 = sld [smem:[#allocation10 + $0x51]]
        %v2695 = vstv %s2694
        %v2696 = vmul.f32 %v2695, %v2679
        %v2697 = vmul.f32 %v2695, %v2680
        %v2698 = vmul.f32 %v2695, %v2681
        %v2699 = vmul.f32 %v2695, %v2682
        %v2700 = vadd.f32 %v2675, %v2696
        %v2701 = vadd.f32 %v2676, %v2697
        %v2702 = vadd.f32 %v2677, %v2698
        %v2703 = vadd.f32 %v2678, %v2699
        %s2704 = sld [smem:[#allocation10 + $0x40]]
        %v2705 = vstv %s2704
        %v2706 = vmul.f32 %v2705, %v2679
        %v2707 = vmul.f32 %v2705, %v2680
        %v2708 = vmul.f32 %v2705, %v2681
        %v2709 = vmul.f32 %v2705, %v2682
        %2714 = vrot.lane.b32.xlu0 %v2706, 127
        %v2715 = vpop.permute.xlu0 %2714
        %2716 = vrot.lane.b32.xlu0 %v2707, 127
        %v2717 = vpop.permute.xlu0 %2716
        %2718 = vrot.lane.b32.xlu0 %v2708, 127
        %v2719 = vpop.permute.xlu0 %2718
        %2720 = vrot.lane.b32.xlu0 %v2709, 127
        %v2721 = vpop.permute.xlu0 %2720
        %v2726 = vadd.f32 %v2690, %v2715
        %v2727 = vadd.f32 %v2691, %v2717
        %v2728 = vadd.f32 %v2692, %v2719
        %v2729 = vadd.f32 %v2693, %v2721
        %s2730 = sld [smem:[#allocation10 + $0x52]]
        %v2731 = vstv %s2730
        %v2732 = vmul.f32 %v2731, %v2679
        %v2733 = vmul.f32 %v2731, %v2680
        %v2734 = vmul.f32 %v2731, %v2681
        %v2735 = vmul.f32 %v2731, %v2682
        %2740 = vrot.lane.b32.xlu0 %v2732, 127
        %v2741 = vpop.permute.xlu0 %2740
        %2742 = vrot.lane.b32.xlu0 %v2733, 127
        %v2743 = vpop.permute.xlu0 %2742
        %2744 = vrot.lane.b32.xlu0 %v2734, 127
        %v2745 = vpop.permute.xlu0 %2744
        %2746 = vrot.lane.b32.xlu0 %v2735, 127
        %v2747 = vpop.permute.xlu0 %2746
        %v2752 = vadd.f32 %v2700, %v2741
        %v2753 = vadd.f32 %v2701, %v2743
        %v2754 = vadd.f32 %v2702, %v2745
        %v2755 = vadd.f32 %v2703, %v2747
        %s2756 = sld [smem:[#allocation10 + $0x41]]
        %v2757 = vstv %s2756
        %v2758 = vmul.f32 %v2757, %v2679
        %v2759 = vmul.f32 %v2757, %v2680
        %v2760 = vmul.f32 %v2757, %v2681
        %v2761 = vmul.f32 %v2757, %v2682
        %2766 = vrot.lane.b32.xlu0 %v2758, 126
        %v2767 = vpop.permute.xlu0 %2766
        %2768 = vrot.lane.b32.xlu0 %v2759, 126
        %v2769 = vpop.permute.xlu0 %2768
        %2770 = vrot.lane.b32.xlu0 %v2760, 126
        %v2771 = vpop.permute.xlu0 %2770
        %2772 = vrot.lane.b32.xlu0 %v2761, 126
        %v2773 = vpop.permute.xlu0 %2772
        %v2778 = vadd.f32 %v2726, %v2767
        %v2779 = vadd.f32 %v2727, %v2769
        %v2780 = vadd.f32 %v2728, %v2771
        %v2781 = vadd.f32 %v2729, %v2773
        %s2782 = sld [smem:[#allocation10 + $0x53]]
        %v2783 = vstv %s2782
        %v2784 = vmul.f32 %v2783, %v2679
        %v2785 = vmul.f32 %v2783, %v2680
        %v2786 = vmul.f32 %v2783, %v2681
        %v2787 = vmul.f32 %v2783, %v2682
        %2792 = vrot.lane.b32.xlu0 %v2784, 126
        %v2793 = vpop.permute.xlu0 %2792
        %2794 = vrot.lane.b32.xlu0 %v2785, 126
        %v2795 = vpop.permute.xlu0 %2794
        %2796 = vrot.lane.b32.xlu0 %v2786, 126
        %v2797 = vpop.permute.xlu0 %2796
        %2798 = vrot.lane.b32.xlu0 %v2787, 126
        %v2799 = vpop.permute.xlu0 %2798
        %v2804 = vadd.f32 %v2752, %v2793
        %v2805 = vadd.f32 %v2753, %v2795
        %v2806 = vadd.f32 %v2754, %v2797
        %v2807 = vadd.f32 %v2755, %v2799
        %s2808 = sld [smem:[#allocation10 + $0x42]]
        %v2809 = vstv %s2808
        %v2810 = vmul.f32 %v2809, %v2679
        %v2811 = vmul.f32 %v2809, %v2680
        %v2812 = vmul.f32 %v2809, %v2681
        %v2813 = vmul.f32 %v2809, %v2682
        %v2814 = vmul.f32 %v2809, %v2683
        %v2820 = vrot.slane %v2810, 1
        %v2821 = vrot.slane %v2811, 1
        %v2822 = vsel %vm581, %v2820, %v2821
        %v2823 = vrot.slane %v2812, 1
        %v2824 = vsel %vm581, %v2821, %v2823
        %v2825 = vrot.slane %v2813, 1
        %v2826 = vsel %vm581, %v2823, %v2825
        %v2827 = vrot.slane %v2814, 1
        %v2828 = vsel %vm581, %v2825, %v2827
        %v2833 = vadd.f32 %v2778, %v2822
        %v2834 = vadd.f32 %v2779, %v2824
        %v2835 = vadd.f32 %v2780, %v2826
        %v2836 = vadd.f32 %v2781, %v2828
        %s2837 = sld [smem:[#allocation10 + $0x54]]
        %v2838 = vstv %s2837
        %v2839 = vmul.f32 %v2838, %v2679
        %v2840 = vmul.f32 %v2838, %v2680
        %v2841 = vmul.f32 %v2838, %v2681
        %v2842 = vmul.f32 %v2838, %v2682
        %v2843 = vmul.f32 %v2838, %v2683
        %v2849 = vrot.slane %v2839, 1
        %v2850 = vrot.slane %v2840, 1
        %v2851 = vsel %vm581, %v2849, %v2850
        %v2852 = vrot.slane %v2841, 1
        %v2853 = vsel %vm581, %v2850, %v2852
        %v2854 = vrot.slane %v2842, 1
        %v2855 = vsel %vm581, %v2852, %v2854
        %v2856 = vrot.slane %v2843, 1
        %v2857 = vsel %vm581, %v2854, %v2856
        %v2862 = vadd.f32 %v2804, %v2851
        %v2863 = vadd.f32 %v2805, %v2853
        %v2864 = vadd.f32 %v2806, %v2855
        %v2865 = vadd.f32 %v2807, %v2857
        %s2866 = sld [smem:[#allocation10 + $0x43]]
        %v2867 = vstv %s2866
        %v2868 = vmul.f32 %v2867, %v2679
        %v2869 = vmul.f32 %v2867, %v2680
        %v2870 = vmul.f32 %v2867, %v2681
        %v2871 = vmul.f32 %v2867, %v2682
        %v2872 = vmul.f32 %v2867, %v2683
        %v2878 = vrot.slane %v2868, 1
        %v2879 = vrot.slane %v2869, 1
        %v2880 = vsel %vm581, %v2878, %v2879
        %v2881 = vrot.slane %v2870, 1
        %v2882 = vsel %vm581, %v2879, %v2881
        %v2883 = vrot.slane %v2871, 1
        %v2884 = vsel %vm581, %v2881, %v2883
        %v2885 = vrot.slane %v2872, 1
        %v2886 = vsel %vm581, %v2883, %v2885
        %2887 = vrot.lane.b32.xlu0 %v2880, 127
        %v2888 = vpop.permute.xlu0 %2887
        %2889 = vrot.lane.b32.xlu0 %v2882, 127
        %v2890 = vpop.permute.xlu0 %2889
        %2891 = vrot.lane.b32.xlu0 %v2884, 127
        %v2892 = vpop.permute.xlu0 %2891
        %2893 = vrot.lane.b32.xlu0 %v2886, 127
        %v2894 = vpop.permute.xlu0 %2893
        %v2899 = vadd.f32 %v2833, %v2888
        %v2900 = vadd.f32 %v2834, %v2890
        %v2901 = vadd.f32 %v2835, %v2892
        %v2902 = vadd.f32 %v2836, %v2894
        %s2903 = sld [smem:[#allocation10 + $0x55]]
        %v2904 = vstv %s2903
        %v2905 = vmul.f32 %v2904, %v2679
        %v2906 = vmul.f32 %v2904, %v2680
        %v2907 = vmul.f32 %v2904, %v2681
        %v2908 = vmul.f32 %v2904, %v2682
        %v2909 = vmul.f32 %v2904, %v2683
        %v2915 = vrot.slane %v2905, 1
        %v2916 = vrot.slane %v2906, 1
        %v2917 = vsel %vm581, %v2915, %v2916
        %v2918 = vrot.slane %v2907, 1
        %v2919 = vsel %vm581, %v2916, %v2918
        %v2920 = vrot.slane %v2908, 1
        %v2921 = vsel %vm581, %v2918, %v2920
        %v2922 = vrot.slane %v2909, 1
        %v2923 = vsel %vm581, %v2920, %v2922
        %2924 = vrot.lane.b32.xlu0 %v2917, 127
        %v2925 = vpop.permute.xlu0 %2924
        %2926 = vrot.lane.b32.xlu0 %v2919, 127
        %v2927 = vpop.permute.xlu0 %2926
        %2928 = vrot.lane.b32.xlu0 %v2921, 127
        %v2929 = vpop.permute.xlu0 %2928
        %2930 = vrot.lane.b32.xlu0 %v2923, 127
        %v2931 = vpop.permute.xlu0 %2930
        %v2936 = vadd.f32 %v2862, %v2925
        %v2937 = vadd.f32 %v2863, %v2927
        %v2938 = vadd.f32 %v2864, %v2929
        %v2939 = vadd.f32 %v2865, %v2931
        %s2940 = sld [smem:[#allocation10 + $0x44]]
        %v2941 = vstv %s2940
        %v2942 = vmul.f32 %v2941, %v2679
        %v2943 = vmul.f32 %v2941, %v2680
        %v2944 = vmul.f32 %v2941, %v2681
        %v2945 = vmul.f32 %v2941, %v2682
        %v2946 = vmul.f32 %v2941, %v2683
        %v2952 = vrot.slane %v2942, 1
        %v2953 = vrot.slane %v2943, 1
        %v2954 = vsel %vm581, %v2952, %v2953
        %v2955 = vrot.slane %v2944, 1
        %v2956 = vsel %vm581, %v2953, %v2955
        %v2957 = vrot.slane %v2945, 1
        %v2958 = vsel %vm581, %v2955, %v2957
        %v2959 = vrot.slane %v2946, 1
        %v2960 = vsel %vm581, %v2957, %v2959
        %2961 = vrot.lane.b32.xlu0 %v2954, 126
        %v2962 = vpop.permute.xlu0 %2961
        %2963 = vrot.lane.b32.xlu0 %v2956, 126
        %v2964 = vpop.permute.xlu0 %2963
        %2965 = vrot.lane.b32.xlu0 %v2958, 126
        %v2966 = vpop.permute.xlu0 %2965
        %2967 = vrot.lane.b32.xlu0 %v2960, 126
        %v2968 = vpop.permute.xlu0 %2967
        %v2973 = vadd.f32 %v2899, %v2962
        %v2974 = vadd.f32 %v2900, %v2964
        %v2975 = vadd.f32 %v2901, %v2966
        %v2976 = vadd.f32 %v2902, %v2968
        %s2977 = sld [smem:[#allocation10 + $0x56]]
        %v2978 = vstv %s2977
        %v2979 = vmul.f32 %v2978, %v2679
        %v2980 = vmul.f32 %v2978, %v2680
        %v2981 = vmul.f32 %v2978, %v2681
        %v2982 = vmul.f32 %v2978, %v2682
        %v2983 = vmul.f32 %v2978, %v2683
        %v2989 = vrot.slane %v2979, 1
        %v2990 = vrot.slane %v2980, 1
        %v2991 = vsel %vm581, %v2989, %v2990
        %v2992 = vrot.slane %v2981, 1
        %v2993 = vsel %vm581, %v2990, %v2992
        %v2994 = vrot.slane %v2982, 1
        %v2995 = vsel %vm581, %v2992, %v2994
        %v2996 = vrot.slane %v2983, 1
        %v2997 = vsel %vm581, %v2994, %v2996
        %2998 = vrot.lane.b32.xlu0 %v2991, 126
        %v2999 = vpop.permute.xlu0 %2998
        %3000 = vrot.lane.b32.xlu0 %v2993, 126
        %v3001 = vpop.permute.xlu0 %3000
        %3002 = vrot.lane.b32.xlu0 %v2995, 126
        %v3003 = vpop.permute.xlu0 %3002
        %3004 = vrot.lane.b32.xlu0 %v2997, 126
        %v3005 = vpop.permute.xlu0 %3004
        %v3010 = vadd.f32 %v2936, %v2999
        %v3011 = vadd.f32 %v2937, %v3001
        %v3012 = vadd.f32 %v2938, %v3003
        %v3013 = vadd.f32 %v2939, %v3005
        %s3014 = sld [smem:[#allocation10 + $0x45]]
        %v3015 = vstv %s3014
        %v3016 = vmul.f32 %v3015, %v2679
        %v3017 = vmul.f32 %v3015, %v2680
        %v3018 = vmul.f32 %v3015, %v2681
        %v3019 = vmul.f32 %v3015, %v2682
        %v3020 = vmul.f32 %v3015, %v2683
        %v3026 = vrot.slane %v3016, 2
        %v3027 = vrot.slane %v3017, 2
        %v3028 = vsel %vm788, %v3026, %v3027
        %v3029 = vrot.slane %v3018, 2
        %v3030 = vsel %vm788, %v3027, %v3029
        %v3031 = vrot.slane %v3019, 2
        %v3032 = vsel %vm788, %v3029, %v3031
        %v3033 = vrot.slane %v3020, 2
        %v3034 = vsel %vm788, %v3031, %v3033
        %v3039 = vadd.f32 %v2973, %v3028
        %v3040 = vadd.f32 %v2974, %v3030
        %v3041 = vadd.f32 %v2975, %v3032
        %v3042 = vadd.f32 %v2976, %v3034
        %s3043 = sld [smem:[#allocation10 + $0x57]]
        %v3044 = vstv %s3043
        %v3045 = vmul.f32 %v3044, %v2679
        %v3046 = vmul.f32 %v3044, %v2680
        %v3047 = vmul.f32 %v3044, %v2681
        %v3048 = vmul.f32 %v3044, %v2682
        %v3049 = vmul.f32 %v3044, %v2683
        %v3055 = vrot.slane %v3045, 2
        %v3056 = vrot.slane %v3046, 2
        %v3057 = vsel %vm788, %v3055, %v3056
        %v3058 = vrot.slane %v3047, 2
        %v3059 = vsel %vm788, %v3056, %v3058
        %v3060 = vrot.slane %v3048, 2
        %v3061 = vsel %vm788, %v3058, %v3060
        %v3062 = vrot.slane %v3049, 2
        %v3063 = vsel %vm788, %v3060, %v3062
        %v3068 = vadd.f32 %v3010, %v3057
        %v3069 = vadd.f32 %v3011, %v3059
        %v3070 = vadd.f32 %v3012, %v3061
        %v3071 = vadd.f32 %v3013, %v3063
        %s3072 = sld [smem:[#allocation10 + $0x46]]
        %v3073 = vstv %s3072
        %v3074 = vmul.f32 %v3073, %v2679
        %v3075 = vmul.f32 %v3073, %v2680
        %v3076 = vmul.f32 %v3073, %v2681
        %v3077 = vmul.f32 %v3073, %v2682
        %v3078 = vmul.f32 %v3073, %v2683
        %v3084 = vrot.slane %v3074, 2
        %v3085 = vrot.slane %v3075, 2
        %v3086 = vsel %vm788, %v3084, %v3085
        %v3087 = vrot.slane %v3076, 2
        %v3088 = vsel %vm788, %v3085, %v3087
        %v3089 = vrot.slane %v3077, 2
        %v3090 = vsel %vm788, %v3087, %v3089
        %v3091 = vrot.slane %v3078, 2
        %v3092 = vsel %vm788, %v3089, %v3091
        %3093 = vrot.lane.b32.xlu0 %v3086, 127
        %v3094 = vpop.permute.xlu0 %3093
        %3095 = vrot.lane.b32.xlu0 %v3088, 127
        %v3096 = vpop.permute.xlu0 %3095
        %3097 = vrot.lane.b32.xlu0 %v3090, 127
        %v3098 = vpop.permute.xlu0 %3097
        %3099 = vrot.lane.b32.xlu0 %v3092, 127
        %v3100 = vpop.permute.xlu0 %3099
        %v3105 = vadd.f32 %v3039, %v3094
        %v3106 = vadd.f32 %v3040, %v3096
        %v3107 = vadd.f32 %v3041, %v3098
        %v3108 = vadd.f32 %v3042, %v3100
        %s3109 = sld [smem:[#allocation10 + $0x58]]
        %v3110 = vstv %s3109
        %v3111 = vmul.f32 %v3110, %v2679
        %v3112 = vmul.f32 %v3110, %v2680
        %v3113 = vmul.f32 %v3110, %v2681
        %v3114 = vmul.f32 %v3110, %v2682
        %v3115 = vmul.f32 %v3110, %v2683
        %v3121 = vrot.slane %v3111, 2
        %v3122 = vrot.slane %v3112, 2
        %v3123 = vsel %vm788, %v3121, %v3122
        %v3124 = vrot.slane %v3113, 2
        %v3125 = vsel %vm788, %v3122, %v3124
        %v3126 = vrot.slane %v3114, 2
        %v3127 = vsel %vm788, %v3124, %v3126
        %v3128 = vrot.slane %v3115, 2
        %v3129 = vsel %vm788, %v3126, %v3128
        %3130 = vrot.lane.b32.xlu0 %v3123, 127
        %v3131 = vpop.permute.xlu0 %3130
        %3132 = vrot.lane.b32.xlu0 %v3125, 127
        %v3133 = vpop.permute.xlu0 %3132
        %3134 = vrot.lane.b32.xlu0 %v3127, 127
        %v3135 = vpop.permute.xlu0 %3134
        %3136 = vrot.lane.b32.xlu0 %v3129, 127
        %v3137 = vpop.permute.xlu0 %3136
        %v3142 = vadd.f32 %v3068, %v3131
        %v3143 = vadd.f32 %v3069, %v3133
        %v3144 = vadd.f32 %v3070, %v3135
        %v3145 = vadd.f32 %v3071, %v3137
        %s3146 = sld [smem:[#allocation10 + $0x47]]
        %v3147 = vstv %s3146
        %v3148 = vmul.f32 %v3147, %v2679
        %v3149 = vmul.f32 %v3147, %v2680
        %v3150 = vmul.f32 %v3147, %v2681
        %v3151 = vmul.f32 %v3147, %v2682
        %v3152 = vmul.f32 %v3147, %v2683
        %v3158 = vrot.slane %v3148, 2
        %v3159 = vrot.slane %v3149, 2
        %v3160 = vsel %vm788, %v3158, %v3159
        %v3161 = vrot.slane %v3150, 2
        %v3162 = vsel %vm788, %v3159, %v3161
        %v3163 = vrot.slane %v3151, 2
        %v3164 = vsel %vm788, %v3161, %v3163
        %v3165 = vrot.slane %v3152, 2
        %v3166 = vsel %vm788, %v3163, %v3165
        %3167 = vrot.lane.b32.xlu0 %v3160, 126
        %v3168 = vpop.permute.xlu0 %3167
        %3169 = vrot.lane.b32.xlu0 %v3162, 126
        %v3170 = vpop.permute.xlu0 %3169
        %3171 = vrot.lane.b32.xlu0 %v3164, 126
        %v3172 = vpop.permute.xlu0 %3171
        %3173 = vrot.lane.b32.xlu0 %v3166, 126
        %v3174 = vpop.permute.xlu0 %3173
        %v3179 = vadd.f32 %v3105, %v3168
        %v3180 = vadd.f32 %v3106, %v3170
        %v3181 = vadd.f32 %v3107, %v3172
        %v3182 = vadd.f32 %v3108, %v3174
        %s3183 = sld [smem:[#allocation10 + $0x59]]
        %v3184 = vstv %s3183
        %v3185 = vmul.f32 %v3184, %v2679
        %v3186 = vmul.f32 %v3184, %v2680
        %v3187 = vmul.f32 %v3184, %v2681
        %v3188 = vmul.f32 %v3184, %v2682
        %v3189 = vmul.f32 %v3184, %v2683
        %v3195 = vrot.slane %v3185, 2
        %v3196 = vrot.slane %v3186, 2
        %v3197 = vsel %vm788, %v3195, %v3196
        %v3198 = vrot.slane %v3187, 2
        %v3199 = vsel %vm788, %v3196, %v3198
        %v3200 = vrot.slane %v3188, 2
        %v3201 = vsel %vm788, %v3198, %v3200
        %v3202 = vrot.slane %v3189, 2
        %v3203 = vsel %vm788, %v3200, %v3202
        %3204 = vrot.lane.b32.xlu0 %v3197, 126
        %v3205 = vpop.permute.xlu0 %3204
        %3206 = vrot.lane.b32.xlu0 %v3199, 126
        %v3207 = vpop.permute.xlu0 %3206
        %3208 = vrot.lane.b32.xlu0 %v3201, 126
        %v3209 = vpop.permute.xlu0 %3208
        %3210 = vrot.lane.b32.xlu0 %v3203, 126
        %v3211 = vpop.permute.xlu0 %3210
        %v3216 = vadd.f32 %v3142, %v3205
        %v3217 = vadd.f32 %v3143, %v3207
        %v3218 = vadd.f32 %v3144, %v3209
        %v3219 = vadd.f32 %v3145, %v3211
        %s3220 = sld [smem:[#allocation11 + $0x2]]
        %v3221 = vstv %s3220
        %v3222 = vmul.f32 %v3179, %v3221
        %v3223 = vmul.f32 %v3180, %v3221
        %v3224 = vmul.f32 %v3181, %v3221
        %v3225 = vmul.f32 %v3182, %v3221
        %s3226 = sld [smem:[#allocation12 + $0x2]]
        %v3227 = vstv %s3226
        %v3228 = vadd.f32 %v3222, %v3227
        %v3229 = vadd.f32 %v3223, %v3227
        %v3230 = vadd.f32 %v3224, %v3227
        %v3231 = vadd.f32 %v3225, %v3227
        %v3232 = vmax.f32 %v3228, 0.0
        %v3233 = vmax.f32 %v3229, 0.0
        %v3234 = vmax.f32 %v3230, 0.0
        %v3235 = vmax.f32 %v3231, 0.0
        %s3236 = sld [smem:[#allocation11 + $0x3]]
        %v3237 = vstv %s3236
        %v3238 = vmul.f32 %v3216, %v3237
        %v3239 = vmul.f32 %v3217, %v3237
        %v3240 = vmul.f32 %v3218, %v3237
        %v3241 = vmul.f32 %v3219, %v3237
        %s3242 = sld [smem:[#allocation12 + $0x3]]
        %v3243 = vstv %s3242
        %v3244 = vadd.f32 %v3238, %v3243
        %v3245 = vadd.f32 %v3239, %v3243
        %v3246 = vadd.f32 %v3240, %v3243
        %v3247 = vadd.f32 %v3241, %v3243
        %v3248 = vmax.f32 %v3244, 0.0
        %v3249 = vmax.f32 %v3245, 0.0
        %v3250 = vmax.f32 %v3246, 0.0
        %v3251 = vmax.f32 %v3247, 0.0
        %3256 = vrot.lane.b32.xlu0 %v3232, 1
        %v3257 = vpop.permute.xlu0 %3256
        %3258 = vrot.lane.b32.xlu0 %v3233, 1
        %v3259 = vpop.permute.xlu0 %3258
        %3260 = vrot.lane.b32.xlu0 %v3234, 1
        %v3261 = vpop.permute.xlu0 %3260
        %3262 = vrot.lane.b32.xlu0 %v3235, 1
        %v3263 = vpop.permute.xlu0 %3262
        %3268 = vst.msk [vmem:[#allocation4 + $0x1] sm:$0xff] %vm383, %v3257
        %3269 = vst.msk [vmem:[#allocation4 + $0x9] sm:$0xff] %vm383, %v3259
        %3270 = vst.msk [vmem:[#allocation4 + $0x11] sm:$0xff] %vm383, %v3261
        %3271 = vst.msk [vmem:[#allocation4 + $0x19] sm:$0xff] %vm383, %v3263
        %3276 = vrot.lane.b32.xlu0 %v3248, 1
        %v3277 = vpop.permute.xlu0 %3276
        %3278 = vrot.lane.b32.xlu0 %v3249, 1
        %v3279 = vpop.permute.xlu0 %3278
        %3280 = vrot.lane.b32.xlu0 %v3250, 1
        %v3281 = vpop.permute.xlu0 %3280
        %3282 = vrot.lane.b32.xlu0 %v3251, 1
        %v3283 = vpop.permute.xlu0 %3282
        %s3288 = scalar_lea.vmem [#allocation4], 40
        %3289 = vst.msk [vmem:[%s3288 + $0x1] sm:$0xff] %vm383, %v3277
        %3290 = vst.msk [vmem:[%s3288 + $0x9] sm:$0xff] %vm383, %v3279
        %3291 = vst.msk [vmem:[%s3288 + $0x11] sm:$0xff] %vm383, %v3281
        %3292 = vst.msk [vmem:[%s3288 + $0x19] sm:$0xff] %vm383, %v3283
        %v3293 = vld [vmem:[#allocation4] sm:$0xff]
        %v3294 = vld [vmem:[#allocation4 + $0x8] sm:$0xff]
        %v3295 = vld [vmem:[#allocation4 + $0x10] sm:$0xff]
        %v3296 = vld [vmem:[#allocation4 + $0x18] sm:$0xff]
        %v3297 = vld [vmem:[#allocation4 + $0x20] sm:$0x3]
        %s3298 = sld [smem:[#allocation10 + $0x5a]]
        %v3299 = vstv %s3298
        %v3300 = vmul.f32 %v3299, %v3293
        %v3301 = vmul.f32 %v3299, %v3294
        %v3302 = vmul.f32 %v3299, %v3295
        %v3303 = vmul.f32 %v3299, %v3296
        %v3304 = vadd.f32 %v3300, 0.0
        %v3305 = vadd.f32 %v3301, 0.0
        %v3306 = vadd.f32 %v3302, 0.0
        %v3307 = vadd.f32 %v3303, 0.0
        %s3308 = sld [smem:[#allocation10 + $0x6c]]
        %v3309 = vstv %s3308
        %v3310 = vmul.f32 %v3309, %v3293
        %v3311 = vmul.f32 %v3309, %v3294
        %v3312 = vmul.f32 %v3309, %v3295
        %v3313 = vmul.f32 %v3309, %v3296
        %v3314 = vadd.f32 %v3310, 0.0
        %v3315 = vadd.f32 %v3311, 0.0
        %v3316 = vadd.f32 %v3312, 0.0
        %v3317 = vadd.f32 %v3313, 0.0
        %s3318 = sld [smem:[#allocation10 + $0x5b]]
        %v3319 = vstv %s3318
        %v3320 = vmul.f32 %v3319, %v3293
        %v3321 = vmul.f32 %v3319, %v3294
        %v3322 = vmul.f32 %v3319, %v3295
        %v3323 = vmul.f32 %v3319, %v3296
        %3328 = vrot.lane.b32.xlu0 %v3320, 127
        %v3329 = vpop.permute.xlu0 %3328
        %3330 = vrot.lane.b32.xlu0 %v3321, 127
        %v3331 = vpop.permute.xlu0 %3330
        %3332 = vrot.lane.b32.xlu0 %v3322, 127
        %v3333 = vpop.permute.xlu0 %3332
        %3334 = vrot.lane.b32.xlu0 %v3323, 127
        %v3335 = vpop.permute.xlu0 %3334
        %v3340 = vadd.f32 %v3304, %v3329
        %v3341 = vadd.f32 %v3305, %v3331
        %v3342 = vadd.f32 %v3306, %v3333
        %v3343 = vadd.f32 %v3307, %v3335
        %s3344 = sld [smem:[#allocation10 + $0x6d]]
        %v3345 = vstv %s3344
        %v3346 = vmul.f32 %v3345, %v3293
        %v3347 = vmul.f32 %v3345, %v3294
        %v3348 = vmul.f32 %v3345, %v3295
        %v3349 = vmul.f32 %v3345, %v3296
        %3354 = vrot.lane.b32.xlu0 %v3346, 127
        %v3355 = vpop.permute.xlu0 %3354
        %3356 = vrot.lane.b32.xlu0 %v3347, 127
        %v3357 = vpop.permute.xlu0 %3356
        %3358 = vrot.lane.b32.xlu0 %v3348, 127
        %v3359 = vpop.permute.xlu0 %3358
        %3360 = vrot.lane.b32.xlu0 %v3349, 127
        %v3361 = vpop.permute.xlu0 %3360
        %v3366 = vadd.f32 %v3314, %v3355
        %v3367 = vadd.f32 %v3315, %v3357
        %v3368 = vadd.f32 %v3316, %v3359
        %v3369 = vadd.f32 %v3317, %v3361
        %s3370 = sld [smem:[#allocation10 + $0x5c]]
        %v3371 = vstv %s3370
        %v3372 = vmul.f32 %v3371, %v3293
        %v3373 = vmul.f32 %v3371, %v3294
        %v3374 = vmul.f32 %v3371, %v3295
        %v3375 = vmul.f32 %v3371, %v3296
        %3380 = vrot.lane.b32.xlu0 %v3372, 126
        %v3381 = vpop.permute.xlu0 %3380
        %3382 = vrot.lane.b32.xlu0 %v3373, 126
        %v3383 = vpop.permute.xlu0 %3382
        %3384 = vrot.lane.b32.xlu0 %v3374, 126
        %v3385 = vpop.permute.xlu0 %3384
        %3386 = vrot.lane.b32.xlu0 %v3375, 126
        %v3387 = vpop.permute.xlu0 %3386
        %v3392 = vadd.f32 %v3340, %v3381
        %v3393 = vadd.f32 %v3341, %v3383
        %v3394 = vadd.f32 %v3342, %v3385
        %v3395 = vadd.f32 %v3343, %v3387
        %s3396 = sld [smem:[#allocation10 + $0x6e]]
        %v3397 = vstv %s3396
        %v3398 = vmul.f32 %v3397, %v3293
        %v3399 = vmul.f32 %v3397, %v3294
        %v3400 = vmul.f32 %v3397, %v3295
        %v3401 = vmul.f32 %v3397, %v3296
        %3406 = vrot.lane.b32.xlu0 %v3398, 126
        %v3407 = vpop.permute.xlu0 %3406
        %3408 = vrot.lane.b32.xlu0 %v3399, 126
        %v3409 = vpop.permute.xlu0 %3408
        %3410 = vrot.lane.b32.xlu0 %v3400, 126
        %v3411 = vpop.permute.xlu0 %3410
        %3412 = vrot.lane.b32.xlu0 %v3401, 126
        %v3413 = vpop.permute.xlu0 %3412
        %v3418 = vadd.f32 %v3366, %v3407
        %v3419 = vadd.f32 %v3367, %v3409
        %v3420 = vadd.f32 %v3368, %v3411
        %v3421 = vadd.f32 %v3369, %v3413
        %s3422 = sld [smem:[#allocation10 + $0x5d]]
        %v3423 = vstv %s3422
        %v3424 = vmul.f32 %v3423, %v3293
        %v3425 = vmul.f32 %v3423, %v3294
        %v3426 = vmul.f32 %v3423, %v3295
        %v3427 = vmul.f32 %v3423, %v3296
        %v3428 = vmul.f32 %v3423, %v3297
        %v3434 = vrot.slane %v3424, 1
        %v3435 = vrot.slane %v3425, 1
        %v3436 = vsel %vm581, %v3434, %v3435
        %v3437 = vrot.slane %v3426, 1
        %v3438 = vsel %vm581, %v3435, %v3437
        %v3439 = vrot.slane %v3427, 1
        %v3440 = vsel %vm581, %v3437, %v3439
        %v3441 = vrot.slane %v3428, 1
        %v3442 = vsel %vm581, %v3439, %v3441
        %v3447 = vadd.f32 %v3392, %v3436
        %v3448 = vadd.f32 %v3393, %v3438
        %v3449 = vadd.f32 %v3394, %v3440
        %v3450 = vadd.f32 %v3395, %v3442
        %s3451 = sld [smem:[#allocation10 + $0x6f]]
        %v3452 = vstv %s3451
        %v3453 = vmul.f32 %v3452, %v3293
        %v3454 = vmul.f32 %v3452, %v3294
        %v3455 = vmul.f32 %v3452, %v3295
        %v3456 = vmul.f32 %v3452, %v3296
        %v3457 = vmul.f32 %v3452, %v3297
        %v3463 = vrot.slane %v3453, 1
        %v3464 = vrot.slane %v3454, 1
        %v3465 = vsel %vm581, %v3463, %v3464
        %v3466 = vrot.slane %v3455, 1
        %v3467 = vsel %vm581, %v3464, %v3466
        %v3468 = vrot.slane %v3456, 1
        %v3469 = vsel %vm581, %v3466, %v3468
        %v3470 = vrot.slane %v3457, 1
        %v3471 = vsel %vm581, %v3468, %v3470
        %v3476 = vadd.f32 %v3418, %v3465
        %v3477 = vadd.f32 %v3419, %v3467
        %v3478 = vadd.f32 %v3420, %v3469
        %v3479 = vadd.f32 %v3421, %v3471
        %s3480 = sld [smem:[#allocation10 + $0x5e]]
        %v3481 = vstv %s3480
        %v3482 = vmul.f32 %v3481, %v3293
        %v3483 = vmul.f32 %v3481, %v3294
        %v3484 = vmul.f32 %v3481, %v3295
        %v3485 = vmul.f32 %v3481, %v3296
        %v3486 = vmul.f32 %v3481, %v3297
        %v3492 = vrot.slane %v3482, 1
        %v3493 = vrot.slane %v3483, 1
        %v3494 = vsel %vm581, %v3492, %v3493
        %v3495 = vrot.slane %v3484, 1
        %v3496 = vsel %vm581, %v3493, %v3495
        %v3497 = vrot.slane %v3485, 1
        %v3498 = vsel %vm581, %v3495, %v3497
        %v3499 = vrot.slane %v3486, 1
        %v3500 = vsel %vm581, %v3497, %v3499
        %3501 = vrot.lane.b32.xlu0 %v3494, 127
        %v3502 = vpop.permute.xlu0 %3501
        %3503 = vrot.lane.b32.xlu0 %v3496, 127
        %v3504 = vpop.permute.xlu0 %3503
        %3505 = vrot.lane.b32.xlu0 %v3498, 127
        %v3506 = vpop.permute.xlu0 %3505
        %3507 = vrot.lane.b32.xlu0 %v3500, 127
        %v3508 = vpop.permute.xlu0 %3507
        %v3513 = vadd.f32 %v3447, %v3502
        %v3514 = vadd.f32 %v3448, %v3504
        %v3515 = vadd.f32 %v3449, %v3506
        %v3516 = vadd.f32 %v3450, %v3508
        %s3517 = sld [smem:[#allocation10 + $0x70]]
        %v3518 = vstv %s3517
        %v3519 = vmul.f32 %v3518, %v3293
        %v3520 = vmul.f32 %v3518, %v3294
        %v3521 = vmul.f32 %v3518, %v3295
        %v3522 = vmul.f32 %v3518, %v3296
        %v3523 = vmul.f32 %v3518, %v3297
        %v3529 = vrot.slane %v3519, 1
        %v3530 = vrot.slane %v3520, 1
        %v3531 = vsel %vm581, %v3529, %v3530
        %v3532 = vrot.slane %v3521, 1
        %v3533 = vsel %vm581, %v3530, %v3532
        %v3534 = vrot.slane %v3522, 1
        %v3535 = vsel %vm581, %v3532, %v3534
        %v3536 = vrot.slane %v3523, 1
        %v3537 = vsel %vm581, %v3534, %v3536
        %3538 = vrot.lane.b32.xlu0 %v3531, 127
        %v3539 = vpop.permute.xlu0 %3538
        %3540 = vrot.lane.b32.xlu0 %v3533, 127
        %v3541 = vpop.permute.xlu0 %3540
        %3542 = vrot.lane.b32.xlu0 %v3535, 127
        %v3543 = vpop.permute.xlu0 %3542
        %3544 = vrot.lane.b32.xlu0 %v3537, 127
        %v3545 = vpop.permute.xlu0 %3544
        %v3550 = vadd.f32 %v3476, %v3539
        %v3551 = vadd.f32 %v3477, %v3541
        %v3552 = vadd.f32 %v3478, %v3543
        %v3553 = vadd.f32 %v3479, %v3545
        %s3554 = sld [smem:[#allocation10 + $0x5f]]
        %v3555 = vstv %s3554
        %v3556 = vmul.f32 %v3555, %v3293
        %v3557 = vmul.f32 %v3555, %v3294
        %v3558 = vmul.f32 %v3555, %v3295
        %v3559 = vmul.f32 %v3555, %v3296
        %v3560 = vmul.f32 %v3555, %v3297
        %v3566 = vrot.slane %v3556, 1
        %v3567 = vrot.slane %v3557, 1
        %v3568 = vsel %vm581, %v3566, %v3567
        %v3569 = vrot.slane %v3558, 1
        %v3570 = vsel %vm581, %v3567, %v3569
        %v3571 = vrot.slane %v3559, 1
        %v3572 = vsel %vm581, %v3569, %v3571
        %v3573 = vrot.slane %v3560, 1
        %v3574 = vsel %vm581, %v3571, %v3573
        %3575 = vrot.lane.b32.xlu0 %v3568, 126
        %v3576 = vpop.permute.xlu0 %3575
        %3577 = vrot.lane.b32.xlu0 %v3570, 126
        %v3578 = vpop.permute.xlu0 %3577
        %3579 = vrot.lane.b32.xlu0 %v3572, 126
        %v3580 = vpop.permute.xlu0 %3579
        %3581 = vrot.lane.b32.xlu0 %v3574, 126
        %v3582 = vpop.permute.xlu0 %3581
        %v3587 = vadd.f32 %v3513, %v3576
        %v3588 = vadd.f32 %v3514, %v3578
        %v3589 = vadd.f32 %v3515, %v3580
        %v3590 = vadd.f32 %v3516, %v3582
        %s3591 = sld [smem:[#allocation10 + $0x71]]
        %v3592 = vstv %s3591
        %v3593 = vmul.f32 %v3592, %v3293
        %v3594 = vmul.f32 %v3592, %v3294
        %v3595 = vmul.f32 %v3592, %v3295
        %v3596 = vmul.f32 %v3592, %v3296
        %v3597 = vmul.f32 %v3592, %v3297
        %v3603 = vrot.slane %v3593, 1
        %v3604 = vrot.slane %v3594, 1
        %v3605 = vsel %vm581, %v3603, %v3604
        %v3606 = vrot.slane %v3595, 1
        %v3607 = vsel %vm581, %v3604, %v3606
        %v3608 = vrot.slane %v3596, 1
        %v3609 = vsel %vm581, %v3606, %v3608
        %v3610 = vrot.slane %v3597, 1
        %v3611 = vsel %vm581, %v3608, %v3610
        %3612 = vrot.lane.b32.xlu0 %v3605, 126
        %v3613 = vpop.permute.xlu0 %3612
        %3614 = vrot.lane.b32.xlu0 %v3607, 126
        %v3615 = vpop.permute.xlu0 %3614
        %3616 = vrot.lane.b32.xlu0 %v3609, 126
        %v3617 = vpop.permute.xlu0 %3616
        %3618 = vrot.lane.b32.xlu0 %v3611, 126
        %v3619 = vpop.permute.xlu0 %3618
        %v3624 = vadd.f32 %v3550, %v3613
        %v3625 = vadd.f32 %v3551, %v3615
        %v3626 = vadd.f32 %v3552, %v3617
        %v3627 = vadd.f32 %v3553, %v3619
        %s3628 = sld [smem:[#allocation10 + $0x60]]
        %v3629 = vstv %s3628
        %v3630 = vmul.f32 %v3629, %v3293
        %v3631 = vmul.f32 %v3629, %v3294
        %v3632 = vmul.f32 %v3629, %v3295
        %v3633 = vmul.f32 %v3629, %v3296
        %v3634 = vmul.f32 %v3629, %v3297
        %v3640 = vrot.slane %v3630, 2
        %v3641 = vrot.slane %v3631, 2
        %v3642 = vsel %vm788, %v3640, %v3641
        %v3643 = vrot.slane %v3632, 2
        %v3644 = vsel %vm788, %v3641, %v3643
        %v3645 = vrot.slane %v3633, 2
        %v3646 = vsel %vm788, %v3643, %v3645
        %v3647 = vrot.slane %v3634, 2
        %v3648 = vsel %vm788, %v3645, %v3647
        %v3653 = vadd.f32 %v3587, %v3642
        %v3654 = vadd.f32 %v3588, %v3644
        %v3655 = vadd.f32 %v3589, %v3646
        %v3656 = vadd.f32 %v3590, %v3648
        %s3657 = sld [smem:[#allocation10 + $0x72]]
        %v3658 = vstv %s3657
        %v3659 = vmul.f32 %v3658, %v3293
        %v3660 = vmul.f32 %v3658, %v3294
        %v3661 = vmul.f32 %v3658, %v3295
        %v3662 = vmul.f32 %v3658, %v3296
        %v3663 = vmul.f32 %v3658, %v3297
        %v3669 = vrot.slane %v3659, 2
        %v3670 = vrot.slane %v3660, 2
        %v3671 = vsel %vm788, %v3669, %v3670
        %v3672 = vrot.slane %v3661, 2
        %v3673 = vsel %vm788, %v3670, %v3672
        %v3674 = vrot.slane %v3662, 2
        %v3675 = vsel %vm788, %v3672, %v3674
        %v3676 = vrot.slane %v3663, 2
        %v3677 = vsel %vm788, %v3674, %v3676
        %v3682 = vadd.f32 %v3624, %v3671
        %v3683 = vadd.f32 %v3625, %v3673
        %v3684 = vadd.f32 %v3626, %v3675
        %v3685 = vadd.f32 %v3627, %v3677
        %s3686 = sld [smem:[#allocation10 + $0x61]]
        %v3687 = vstv %s3686
        %v3688 = vmul.f32 %v3687, %v3293
        %v3689 = vmul.f32 %v3687, %v3294
        %v3690 = vmul.f32 %v3687, %v3295
        %v3691 = vmul.f32 %v3687, %v3296
        %v3692 = vmul.f32 %v3687, %v3297
        %v3698 = vrot.slane %v3688, 2
        %v3699 = vrot.slane %v3689, 2
        %v3700 = vsel %vm788, %v3698, %v3699
        %v3701 = vrot.slane %v3690, 2
        %v3702 = vsel %vm788, %v3699, %v3701
        %v3703 = vrot.slane %v3691, 2
        %v3704 = vsel %vm788, %v3701, %v3703
        %v3705 = vrot.slane %v3692, 2
        %v3706 = vsel %vm788, %v3703, %v3705
        %3707 = vrot.lane.b32.xlu0 %v3700, 127
        %v3708 = vpop.permute.xlu0 %3707
        %3709 = vrot.lane.b32.xlu0 %v3702, 127
        %v3710 = vpop.permute.xlu0 %3709
        %3711 = vrot.lane.b32.xlu0 %v3704, 127
        %v3712 = vpop.permute.xlu0 %3711
        %3713 = vrot.lane.b32.xlu0 %v3706, 127
        %v3714 = vpop.permute.xlu0 %3713
        %v3719 = vadd.f32 %v3653, %v3708
        %v3720 = vadd.f32 %v3654, %v3710
        %v3721 = vadd.f32 %v3655, %v3712
        %v3722 = vadd.f32 %v3656, %v3714
        %s3723 = sld [smem:[#allocation10 + $0x73]]
        %v3724 = vstv %s3723
        %v3725 = vmul.f32 %v3724, %v3293
        %v3726 = vmul.f32 %v3724, %v3294
        %v3727 = vmul.f32 %v3724, %v3295
        %v3728 = vmul.f32 %v3724, %v3296
        %v3729 = vmul.f32 %v3724, %v3297
        %v3735 = vrot.slane %v3725, 2
        %v3736 = vrot.slane %v3726, 2
        %v3737 = vsel %vm788, %v3735, %v3736
        %v3738 = vrot.slane %v3727, 2
        %v3739 = vsel %vm788, %v3736, %v3738
        %v3740 = vrot.slane %v3728, 2
        %v3741 = vsel %vm788, %v3738, %v3740
        %v3742 = vrot.slane %v3729, 2
        %v3743 = vsel %vm788, %v3740, %v3742
        %3744 = vrot.lane.b32.xlu0 %v3737, 127
        %v3745 = vpop.permute.xlu0 %3744
        %3746 = vrot.lane.b32.xlu0 %v3739, 127
        %v3747 = vpop.permute.xlu0 %3746
        %3748 = vrot.lane.b32.xlu0 %v3741, 127
        %v3749 = vpop.permute.xlu0 %3748
        %3750 = vrot.lane.b32.xlu0 %v3743, 127
        %v3751 = vpop.permute.xlu0 %3750
        %v3756 = vadd.f32 %v3682, %v3745
        %v3757 = vadd.f32 %v3683, %v3747
        %v3758 = vadd.f32 %v3684, %v3749
        %v3759 = vadd.f32 %v3685, %v3751
        %s3760 = sld [smem:[#allocation10 + $0x62]]
        %v3761 = vstv %s3760
        %v3762 = vmul.f32 %v3761, %v3293
        %v3763 = vmul.f32 %v3761, %v3294
        %v3764 = vmul.f32 %v3761, %v3295
        %v3765 = vmul.f32 %v3761, %v3296
        %v3766 = vmul.f32 %v3761, %v3297
        %v3772 = vrot.slane %v3762, 2
        %v3773 = vrot.slane %v3763, 2
        %v3774 = vsel %vm788, %v3772, %v3773
        %v3775 = vrot.slane %v3764, 2
        %v3776 = vsel %vm788, %v3773, %v3775
        %v3777 = vrot.slane %v3765, 2
        %v3778 = vsel %vm788, %v3775, %v3777
        %v3779 = vrot.slane %v3766, 2
        %v3780 = vsel %vm788, %v3777, %v3779
        %3781 = vrot.lane.b32.xlu0 %v3774, 126
        %v3782 = vpop.permute.xlu0 %3781
        %3783 = vrot.lane.b32.xlu0 %v3776, 126
        %v3784 = vpop.permute.xlu0 %3783
        %3785 = vrot.lane.b32.xlu0 %v3778, 126
        %v3786 = vpop.permute.xlu0 %3785
        %3787 = vrot.lane.b32.xlu0 %v3780, 126
        %v3788 = vpop.permute.xlu0 %3787
        %v3793 = vadd.f32 %v3719, %v3782
        %v3794 = vadd.f32 %v3720, %v3784
        %v3795 = vadd.f32 %v3721, %v3786
        %v3796 = vadd.f32 %v3722, %v3788
        %s3797 = sld [smem:[#allocation10 + $0x74]]
        %v3798 = vstv %s3797
        %v3799 = vmul.f32 %v3798, %v3293
        %v3800 = vmul.f32 %v3798, %v3294
        %v3801 = vmul.f32 %v3798, %v3295
        %v3802 = vmul.f32 %v3798, %v3296
        %v3803 = vmul.f32 %v3798, %v3297
        %v3809 = vrot.slane %v3799, 2
        %v3810 = vrot.slane %v3800, 2
        %v3811 = vsel %vm788, %v3809, %v3810
        %v3812 = vrot.slane %v3801, 2
        %v3813 = vsel %vm788, %v3810, %v3812
        %v3814 = vrot.slane %v3802, 2
        %v3815 = vsel %vm788, %v3812, %v3814
        %v3816 = vrot.slane %v3803, 2
        %v3817 = vsel %vm788, %v3814, %v3816
        %3818 = vrot.lane.b32.xlu0 %v3811, 126
        %v3819 = vpop.permute.xlu0 %3818
        %3820 = vrot.lane.b32.xlu0 %v3813, 126
        %v3821 = vpop.permute.xlu0 %3820
        %3822 = vrot.lane.b32.xlu0 %v3815, 126
        %v3823 = vpop.permute.xlu0 %3822
        %3824 = vrot.lane.b32.xlu0 %v3817, 126
        %v3825 = vpop.permute.xlu0 %3824
        %v3830 = vadd.f32 %v3756, %v3819
        %v3831 = vadd.f32 %v3757, %v3821
        %v3832 = vadd.f32 %v3758, %v3823
        %v3833 = vadd.f32 %v3759, %v3825
        %v3834 = vld [vmem:[%s3288] sm:$0xff]
        %v3835 = vld [vmem:[%s3288 + $0x8] sm:$0xff]
        %v3836 = vld [vmem:[%s3288 + $0x10] sm:$0xff]
        %v3837 = vld [vmem:[%s3288 + $0x18] sm:$0xff]
        %v3838 = vld [vmem:[%s3288 + $0x20] sm:$0x3]
        %s3839 = sld [smem:[#allocation10 + $0x63]]
        %v3840 = vstv %s3839
        %v3841 = vmul.f32 %v3840, %v3834
        %v3842 = vmul.f32 %v3840, %v3835
        %v3843 = vmul.f32 %v3840, %v3836
        %v3844 = vmul.f32 %v3840, %v3837
        %v3845 = vadd.f32 %v3793, %v3841
        %v3846 = vadd.f32 %v3794, %v3842
        %v3847 = vadd.f32 %v3795, %v3843
        %v3848 = vadd.f32 %v3796, %v3844
        %s3849 = sld [smem:[#allocation10 + $0x75]]
        %v3850 = vstv %s3849
        %v3851 = vmul.f32 %v3850, %v3834
        %v3852 = vmul.f32 %v3850, %v3835
        %v3853 = vmul.f32 %v3850, %v3836
        %v3854 = vmul.f32 %v3850, %v3837
        %v3855 = vadd.f32 %v3830, %v3851
        %v3856 = vadd.f32 %v3831, %v3852
        %v3857 = vadd.f32 %v3832, %v3853
        %v3858 = vadd.f32 %v3833, %v3854
        %s3859 = sld [smem:[#allocation10 + $0x64]]
        %v3860 = vstv %s3859
        %v3861 = vmul.f32 %v3860, %v3834
        %v3862 = vmul.f32 %v3860, %v3835
        %v3863 = vmul.f32 %v3860, %v3836
        %v3864 = vmul.f32 %v3860, %v3837
        %3869 = vrot.lane.b32.xlu0 %v3861, 127
        %v3870 = vpop.permute.xlu0 %3869
        %3871 = vrot.lane.b32.xlu0 %v3862, 127
        %v3872 = vpop.permute.xlu0 %3871
        %3873 = vrot.lane.b32.xlu0 %v3863, 127
        %v3874 = vpop.permute.xlu0 %3873
        %3875 = vrot.lane.b32.xlu0 %v3864, 127
        %v3876 = vpop.permute.xlu0 %3875
        %v3881 = vadd.f32 %v3845, %v3870
        %v3882 = vadd.f32 %v3846, %v3872
        %v3883 = vadd.f32 %v3847, %v3874
        %v3884 = vadd.f32 %v3848, %v3876
        %s3885 = sld [smem:[#allocation10 + $0x76]]
        %v3886 = vstv %s3885
        %v3887 = vmul.f32 %v3886, %v3834
        %v3888 = vmul.f32 %v3886, %v3835
        %v3889 = vmul.f32 %v3886, %v3836
        %v3890 = vmul.f32 %v3886, %v3837
        %3895 = vrot.lane.b32.xlu0 %v3887, 127
        %v3896 = vpop.permute.xlu0 %3895
        %3897 = vrot.lane.b32.xlu0 %v3888, 127
        %v3898 = vpop.permute.xlu0 %3897
        %3899 = vrot.lane.b32.xlu0 %v3889, 127
        %v3900 = vpop.permute.xlu0 %3899
        %3901 = vrot.lane.b32.xlu0 %v3890, 127
        %v3902 = vpop.permute.xlu0 %3901
        %v3907 = vadd.f32 %v3855, %v3896
        %v3908 = vadd.f32 %v3856, %v3898
        %v3909 = vadd.f32 %v3857, %v3900
        %v3910 = vadd.f32 %v3858, %v3902
        %s3911 = sld [smem:[#allocation10 + $0x65]]
        %v3912 = vstv %s3911
        %v3913 = vmul.f32 %v3912, %v3834
        %v3914 = vmul.f32 %v3912, %v3835
        %v3915 = vmul.f32 %v3912, %v3836
        %v3916 = vmul.f32 %v3912, %v3837
        %3921 = vrot.lane.b32.xlu0 %v3913, 126
        %v3922 = vpop.permute.xlu0 %3921
        %3923 = vrot.lane.b32.xlu0 %v3914, 126
        %v3924 = vpop.permute.xlu0 %3923
        %3925 = vrot.lane.b32.xlu0 %v3915, 126
        %v3926 = vpop.permute.xlu0 %3925
        %3927 = vrot.lane.b32.xlu0 %v3916, 126
        %v3928 = vpop.permute.xlu0 %3927
        %v3933 = vadd.f32 %v3881, %v3922
        %v3934 = vadd.f32 %v3882, %v3924
        %v3935 = vadd.f32 %v3883, %v3926
        %v3936 = vadd.f32 %v3884, %v3928
        %s3937 = sld [smem:[#allocation10 + $0x77]]
        %v3938 = vstv %s3937
        %v3939 = vmul.f32 %v3938, %v3834
        %v3940 = vmul.f32 %v3938, %v3835
        %v3941 = vmul.f32 %v3938, %v3836
        %v3942 = vmul.f32 %v3938, %v3837
        %3947 = vrot.lane.b32.xlu0 %v3939, 126
        %v3948 = vpop.permute.xlu0 %3947
        %3949 = vrot.lane.b32.xlu0 %v3940, 126
        %v3950 = vpop.permute.xlu0 %3949
        %3951 = vrot.lane.b32.xlu0 %v3941, 126
        %v3952 = vpop.permute.xlu0 %3951
        %3953 = vrot.lane.b32.xlu0 %v3942, 126
        %v3954 = vpop.permute.xlu0 %3953
        %v3959 = vadd.f32 %v3907, %v3948
        %v3960 = vadd.f32 %v3908, %v3950
        %v3961 = vadd.f32 %v3909, %v3952
        %v3962 = vadd.f32 %v3910, %v3954
        %s3963 = sld [smem:[#allocation10 + $0x66]]
        %v3964 = vstv %s3963
        %v3965 = vmul.f32 %v3964, %v3834
        %v3966 = vmul.f32 %v3964, %v3835
        %v3967 = vmul.f32 %v3964, %v3836
        %v3968 = vmul.f32 %v3964, %v3837
        %v3969 = vmul.f32 %v3964, %v3838
        %v3975 = vrot.slane %v3965, 1
        %v3976 = vrot.slane %v3966, 1
        %v3977 = vsel %vm581, %v3975, %v3976
        %v3978 = vrot.slane %v3967, 1
        %v3979 = vsel %vm581, %v3976, %v3978
        %v3980 = vrot.slane %v3968, 1
        %v3981 = vsel %vm581, %v3978, %v3980
        %v3982 = vrot.slane %v3969, 1
        %v3983 = vsel %vm581, %v3980, %v3982
        %v3988 = vadd.f32 %v3933, %v3977
        %v3989 = vadd.f32 %v3934, %v3979
        %v3990 = vadd.f32 %v3935, %v3981
        %v3991 = vadd.f32 %v3936, %v3983
        %s3992 = sld [smem:[#allocation10 + $0x78]]
        %v3993 = vstv %s3992
        %v3994 = vmul.f32 %v3993, %v3834
        %v3995 = vmul.f32 %v3993, %v3835
        %v3996 = vmul.f32 %v3993, %v3836
        %v3997 = vmul.f32 %v3993, %v3837
        %v3998 = vmul.f32 %v3993, %v3838
        %v4004 = vrot.slane %v3994, 1
        %v4005 = vrot.slane %v3995, 1
        %v4006 = vsel %vm581, %v4004, %v4005
        %v4007 = vrot.slane %v3996, 1
        %v4008 = vsel %vm581, %v4005, %v4007
        %v4009 = vrot.slane %v3997, 1
        %v4010 = vsel %vm581, %v4007, %v4009
        %v4011 = vrot.slane %v3998, 1
        %v4012 = vsel %vm581, %v4009, %v4011
        %v4017 = vadd.f32 %v3959, %v4006
        %v4018 = vadd.f32 %v3960, %v4008
        %v4019 = vadd.f32 %v3961, %v4010
        %v4020 = vadd.f32 %v3962, %v4012
        %s4021 = sld [smem:[#allocation10 + $0x67]]
        %v4022 = vstv %s4021
        %v4023 = vmul.f32 %v4022, %v3834
        %v4024 = vmul.f32 %v4022, %v3835
        %v4025 = vmul.f32 %v4022, %v3836
        %v4026 = vmul.f32 %v4022, %v3837
        %v4027 = vmul.f32 %v4022, %v3838
        %v4033 = vrot.slane %v4023, 1
        %v4034 = vrot.slane %v4024, 1
        %v4035 = vsel %vm581, %v4033, %v4034
        %v4036 = vrot.slane %v4025, 1
        %v4037 = vsel %vm581, %v4034, %v4036
        %v4038 = vrot.slane %v4026, 1
        %v4039 = vsel %vm581, %v4036, %v4038
        %v4040 = vrot.slane %v4027, 1
        %v4041 = vsel %vm581, %v4038, %v4040
        %4042 = vrot.lane.b32.xlu0 %v4035, 127
        %v4043 = vpop.permute.xlu0 %4042
        %4044 = vrot.lane.b32.xlu0 %v4037, 127
        %v4045 = vpop.permute.xlu0 %4044
        %4046 = vrot.lane.b32.xlu0 %v4039, 127
        %v4047 = vpop.permute.xlu0 %4046
        %4048 = vrot.lane.b32.xlu0 %v4041, 127
        %v4049 = vpop.permute.xlu0 %4048
        %v4054 = vadd.f32 %v3988, %v4043
        %v4055 = vadd.f32 %v3989, %v4045
        %v4056 = vadd.f32 %v3990, %v4047
        %v4057 = vadd.f32 %v3991, %v4049
        %s4058 = sld [smem:[#allocation10 + $0x79]]
        %v4059 = vstv %s4058
        %v4060 = vmul.f32 %v4059, %v3834
        %v4061 = vmul.f32 %v4059, %v3835
        %v4062 = vmul.f32 %v4059, %v3836
        %v4063 = vmul.f32 %v4059, %v3837
        %v4064 = vmul.f32 %v4059, %v3838
        %v4070 = vrot.slane %v4060, 1
        %v4071 = vrot.slane %v4061, 1
        %v4072 = vsel %vm581, %v4070, %v4071
        %v4073 = vrot.slane %v4062, 1
        %v4074 = vsel %vm581, %v4071, %v4073
        %v4075 = vrot.slane %v4063, 1
        %v4076 = vsel %vm581, %v4073, %v4075
        %v4077 = vrot.slane %v4064, 1
        %v4078 = vsel %vm581, %v4075, %v4077
        %4079 = vrot.lane.b32.xlu0 %v4072, 127
        %v4080 = vpop.permute.xlu0 %4079
        %4081 = vrot.lane.b32.xlu0 %v4074, 127
        %v4082 = vpop.permute.xlu0 %4081
        %4083 = vrot.lane.b32.xlu0 %v4076, 127
        %v4084 = vpop.permute.xlu0 %4083
        %4085 = vrot.lane.b32.xlu0 %v4078, 127
        %v4086 = vpop.permute.xlu0 %4085
        %v4091 = vadd.f32 %v4017, %v4080
        %v4092 = vadd.f32 %v4018, %v4082
        %v4093 = vadd.f32 %v4019, %v4084
        %v4094 = vadd.f32 %v4020, %v4086
        %s4095 = sld [smem:[#allocation10 + $0x68]]
        %v4096 = vstv %s4095
        %v4097 = vmul.f32 %v4096, %v3834
        %v4098 = vmul.f32 %v4096, %v3835
        %v4099 = vmul.f32 %v4096, %v3836
        %v4100 = vmul.f32 %v4096, %v3837
        %v4101 = vmul.f32 %v4096, %v3838
        %v4107 = vrot.slane %v4097, 1
        %v4108 = vrot.slane %v4098, 1
        %v4109 = vsel %vm581, %v4107, %v4108
        %v4110 = vrot.slane %v4099, 1
        %v4111 = vsel %vm581, %v4108, %v4110
        %v4112 = vrot.slane %v4100, 1
        %v4113 = vsel %vm581, %v4110, %v4112
        %v4114 = vrot.slane %v4101, 1
        %v4115 = vsel %vm581, %v4112, %v4114
        %4116 = vrot.lane.b32.xlu0 %v4109, 126
        %v4117 = vpop.permute.xlu0 %4116
        %4118 = vrot.lane.b32.xlu0 %v4111, 126
        %v4119 = vpop.permute.xlu0 %4118
        %4120 = vrot.lane.b32.xlu0 %v4113, 126
        %v4121 = vpop.permute.xlu0 %4120
        %4122 = vrot.lane.b32.xlu0 %v4115, 126
        %v4123 = vpop.permute.xlu0 %4122
        %v4128 = vadd.f32 %v4054, %v4117
        %v4129 = vadd.f32 %v4055, %v4119
        %v4130 = vadd.f32 %v4056, %v4121
        %v4131 = vadd.f32 %v4057, %v4123
        %s4132 = sld [smem:[#allocation10 + $0x7a]]
        %v4133 = vstv %s4132
        %v4134 = vmul.f32 %v4133, %v3834
        %v4135 = vmul.f32 %v4133, %v3835
        %v4136 = vmul.f32 %v4133, %v3836
        %v4137 = vmul.f32 %v4133, %v3837
        %v4138 = vmul.f32 %v4133, %v3838
        %v4144 = vrot.slane %v4134, 1
        %v4145 = vrot.slane %v4135, 1
        %v4146 = vsel %vm581, %v4144, %v4145
        %v4147 = vrot.slane %v4136, 1
        %v4148 = vsel %vm581, %v4145, %v4147
        %v4149 = vrot.slane %v4137, 1
        %v4150 = vsel %vm581, %v4147, %v4149
        %v4151 = vrot.slane %v4138, 1
        %v4152 = vsel %vm581, %v4149, %v4151
        %4153 = vrot.lane.b32.xlu0 %v4146, 126
        %v4154 = vpop.permute.xlu0 %4153
        %4155 = vrot.lane.b32.xlu0 %v4148, 126
        %v4156 = vpop.permute.xlu0 %4155
        %4157 = vrot.lane.b32.xlu0 %v4150, 126
        %v4158 = vpop.permute.xlu0 %4157
        %4159 = vrot.lane.b32.xlu0 %v4152, 126
        %v4160 = vpop.permute.xlu0 %4159
        %v4165 = vadd.f32 %v4091, %v4154
        %v4166 = vadd.f32 %v4092, %v4156
        %v4167 = vadd.f32 %v4093, %v4158
        %v4168 = vadd.f32 %v4094, %v4160
        %s4169 = sld [smem:[#allocation10 + $0x69]]
        %v4170 = vstv %s4169
        %v4171 = vmul.f32 %v4170, %v3834
        %v4172 = vmul.f32 %v4170, %v3835
        %v4173 = vmul.f32 %v4170, %v3836
        %v4174 = vmul.f32 %v4170, %v3837
        %v4175 = vmul.f32 %v4170, %v3838
        %v4181 = vrot.slane %v4171, 2
        %v4182 = vrot.slane %v4172, 2
        %v4183 = vsel %vm788, %v4181, %v4182
        %v4184 = vrot.slane %v4173, 2
        %v4185 = vsel %vm788, %v4182, %v4184
        %v4186 = vrot.slane %v4174, 2
        %v4187 = vsel %vm788, %v4184, %v4186
        %v4188 = vrot.slane %v4175, 2
        %v4189 = vsel %vm788, %v4186, %v4188
        %v4194 = vadd.f32 %v4128, %v4183
        %v4195 = vadd.f32 %v4129, %v4185
        %v4196 = vadd.f32 %v4130, %v4187
        %v4197 = vadd.f32 %v4131, %v4189
        %s4198 = sld [smem:[#allocation10 + $0x7b]]
        %v4199 = vstv %s4198
        %v4200 = vmul.f32 %v4199, %v3834
        %v4201 = vmul.f32 %v4199, %v3835
        %v4202 = vmul.f32 %v4199, %v3836
        %v4203 = vmul.f32 %v4199, %v3837
        %v4204 = vmul.f32 %v4199, %v3838
        %v4210 = vrot.slane %v4200, 2
        %v4211 = vrot.slane %v4201, 2
        %v4212 = vsel %vm788, %v4210, %v4211
        %v4213 = vrot.slane %v4202, 2
        %v4214 = vsel %vm788, %v4211, %v4213
        %v4215 = vrot.slane %v4203, 2
        %v4216 = vsel %vm788, %v4213, %v4215
        %v4217 = vrot.slane %v4204, 2
        %v4218 = vsel %vm788, %v4215, %v4217
        %v4223 = vadd.f32 %v4165, %v4212
        %v4224 = vadd.f32 %v4166, %v4214
        %v4225 = vadd.f32 %v4167, %v4216
        %v4226 = vadd.f32 %v4168, %v4218
        %s4227 = sld [smem:[#allocation10 + $0x6a]]
        %v4228 = vstv %s4227
        %v4229 = vmul.f32 %v4228, %v3834
        %v4230 = vmul.f32 %v4228, %v3835
        %v4231 = vmul.f32 %v4228, %v3836
        %v4232 = vmul.f32 %v4228, %v3837
        %v4233 = vmul.f32 %v4228, %v3838
        %v4239 = vrot.slane %v4229, 2
        %v4240 = vrot.slane %v4230, 2
        %v4241 = vsel %vm788, %v4239, %v4240
        %v4242 = vrot.slane %v4231, 2
        %v4243 = vsel %vm788, %v4240, %v4242
        %v4244 = vrot.slane %v4232, 2
        %v4245 = vsel %vm788, %v4242, %v4244
        %v4246 = vrot.slane %v4233, 2
        %v4247 = vsel %vm788, %v4244, %v4246
        %4248 = vrot.lane.b32.xlu0 %v4241, 127
        %v4249 = vpop.permute.xlu0 %4248
        %4250 = vrot.lane.b32.xlu0 %v4243, 127
        %v4251 = vpop.permute.xlu0 %4250
        %4252 = vrot.lane.b32.xlu0 %v4245, 127
        %v4253 = vpop.permute.xlu0 %4252
        %4254 = vrot.lane.b32.xlu0 %v4247, 127
        %v4255 = vpop.permute.xlu0 %4254
        %v4260 = vadd.f32 %v4194, %v4249
        %v4261 = vadd.f32 %v4195, %v4251
        %v4262 = vadd.f32 %v4196, %v4253
        %v4263 = vadd.f32 %v4197, %v4255
        %s4264 = sld [smem:[#allocation10 + $0x7c]]
        %v4265 = vstv %s4264
        %v4266 = vmul.f32 %v4265, %v3834
        %v4267 = vmul.f32 %v4265, %v3835
        %v4268 = vmul.f32 %v4265, %v3836
        %v4269 = vmul.f32 %v4265, %v3837
        %v4270 = vmul.f32 %v4265, %v3838
        %v4276 = vrot.slane %v4266, 2
        %v4277 = vrot.slane %v4267, 2
        %v4278 = vsel %vm788, %v4276, %v4277
        %v4279 = vrot.slane %v4268, 2
        %v4280 = vsel %vm788, %v4277, %v4279
        %v4281 = vrot.slane %v4269, 2
        %v4282 = vsel %vm788, %v4279, %v4281
        %v4283 = vrot.slane %v4270, 2
        %v4284 = vsel %vm788, %v4281, %v4283
        %4285 = vrot.lane.b32.xlu0 %v4278, 127
        %v4286 = vpop.permute.xlu0 %4285
        %4287 = vrot.lane.b32.xlu0 %v4280, 127
        %v4288 = vpop.permute.xlu0 %4287
        %4289 = vrot.lane.b32.xlu0 %v4282, 127
        %v4290 = vpop.permute.xlu0 %4289
        %4291 = vrot.lane.b32.xlu0 %v4284, 127
        %v4292 = vpop.permute.xlu0 %4291
        %v4297 = vadd.f32 %v4223, %v4286
        %v4298 = vadd.f32 %v4224, %v4288
        %v4299 = vadd.f32 %v4225, %v4290
        %v4300 = vadd.f32 %v4226, %v4292
        %s4301 = sld [smem:[#allocation10 + $0x6b]]
        %v4302 = vstv %s4301
        %v4303 = vmul.f32 %v4302, %v3834
        %v4304 = vmul.f32 %v4302, %v3835
        %v4305 = vmul.f32 %v4302, %v3836
        %v4306 = vmul.f32 %v4302, %v3837
        %v4307 = vmul.f32 %v4302, %v3838
        %v4313 = vrot.slane %v4303, 2
        %v4314 = vrot.slane %v4304, 2
        %v4315 = vsel %vm788, %v4313, %v4314
        %v4316 = vrot.slane %v4305, 2
        %v4317 = vsel %vm788, %v4314, %v4316
        %v4318 = vrot.slane %v4306, 2
        %v4319 = vsel %vm788, %v4316, %v4318
        %v4320 = vrot.slane %v4307, 2
        %v4321 = vsel %vm788, %v4318, %v4320
        %4322 = vrot.lane.b32.xlu0 %v4315, 126
        %v4323 = vpop.permute.xlu0 %4322
        %4324 = vrot.lane.b32.xlu0 %v4317, 126
        %v4325 = vpop.permute.xlu0 %4324
        %4326 = vrot.lane.b32.xlu0 %v4319, 126
        %v4327 = vpop.permute.xlu0 %4326
        %4328 = vrot.lane.b32.xlu0 %v4321, 126
        %v4329 = vpop.permute.xlu0 %4328
        %v4334 = vadd.f32 %v4260, %v4323
        %v4335 = vadd.f32 %v4261, %v4325
        %v4336 = vadd.f32 %v4262, %v4327
        %v4337 = vadd.f32 %v4263, %v4329
        %s4338 = sld [smem:[#allocation10 + $0x7d]]
        %v4339 = vstv %s4338
        %v4340 = vmul.f32 %v4339, %v3834
        %v4341 = vmul.f32 %v4339, %v3835
        %v4342 = vmul.f32 %v4339, %v3836
        %v4343 = vmul.f32 %v4339, %v3837
        %v4344 = vmul.f32 %v4339, %v3838
        %v4350 = vrot.slane %v4340, 2
        %v4351 = vrot.slane %v4341, 2
        %v4352 = vsel %vm788, %v4350, %v4351
        %v4353 = vrot.slane %v4342, 2
        %v4354 = vsel %vm788, %v4351, %v4353
        %v4355 = vrot.slane %v4343, 2
        %v4356 = vsel %vm788, %v4353, %v4355
        %v4357 = vrot.slane %v4344, 2
        %v4358 = vsel %vm788, %v4355, %v4357
        %4359 = vrot.lane.b32.xlu0 %v4352, 126
        %v4360 = vpop.permute.xlu0 %4359
        %4361 = vrot.lane.b32.xlu0 %v4354, 126
        %v4362 = vpop.permute.xlu0 %4361
        %4363 = vrot.lane.b32.xlu0 %v4356, 126
        %v4364 = vpop.permute.xlu0 %4363
        %4365 = vrot.lane.b32.xlu0 %v4358, 126
        %v4366 = vpop.permute.xlu0 %4365
        %v4371 = vadd.f32 %v4297, %v4360
        %v4372 = vadd.f32 %v4298, %v4362
        %v4373 = vadd.f32 %v4299, %v4364
        %v4374 = vadd.f32 %v4300, %v4366
        %s4375 = sld [smem:[#allocation11 + $0x4]]
        %v4376 = vstv %s4375
        %v4377 = vmul.f32 %v4334, %v4376
        %v4378 = vmul.f32 %v4335, %v4376
        %v4379 = vmul.f32 %v4336, %v4376
        %v4380 = vmul.f32 %v4337, %v4376
        %s4381 = sld [smem:[#allocation12 + $0x4]]
        %v4382 = vstv %s4381
        %v4383 = vadd.f32 %v4377, %v4382
        %v4384 = vadd.f32 %v4378, %v4382
        %v4385 = vadd.f32 %v4379, %v4382
        %v4386 = vadd.f32 %v4380, %v4382
        %v4387 = vadd.f32 %v4383, %v2077
        %v4388 = vadd.f32 %v4384, %v2078
        %v4389 = vadd.f32 %v4385, %v2079
        %v4390 = vadd.f32 %v4386, %v2080
        %v4391 = vmax.f32 %v4387, 0.0
        %v4392 = vmax.f32 %v4388, 0.0
        %v4393 = vmax.f32 %v4389, 0.0
        %v4394 = vmax.f32 %v4390, 0.0
        %s4395 = sld [smem:[#allocation11 + $0x5]]
        %v4396 = vstv %s4395
        %v4397 = vmul.f32 %v4371, %v4396
        %v4398 = vmul.f32 %v4372, %v4396
        %v4399 = vmul.f32 %v4373, %v4396
        %v4400 = vmul.f32 %v4374, %v4396
        %s4401 = sld [smem:[#allocation12 + $0x5]]
        %v4402 = vstv %s4401
        %v4403 = vadd.f32 %v4397, %v4402
        %v4404 = vadd.f32 %v4398, %v4402
        %v4405 = vadd.f32 %v4399, %v4402
        %v4406 = vadd.f32 %v4400, %v4402
        %v4407 = vadd.f32 %v4403, %v2093
        %v4408 = vadd.f32 %v4404, %v2094
        %v4409 = vadd.f32 %v4405, %v2095
        %v4410 = vadd.f32 %v4406, %v2096
        %v4411 = vmax.f32 %v4407, 0.0
        %v4412 = vmax.f32 %v4408, 0.0
        %v4413 = vmax.f32 %v4409, 0.0
        %v4414 = vmax.f32 %v4410, 0.0
        %4419 = vrot.lane.b32.xlu0 %v4391, 1
        %v4420 = vpop.permute.xlu0 %4419
        %4421 = vrot.lane.b32.xlu0 %v4392, 1
        %v4422 = vpop.permute.xlu0 %4421
        %4423 = vrot.lane.b32.xlu0 %v4393, 1
        %v4424 = vpop.permute.xlu0 %4423
        %4425 = vrot.lane.b32.xlu0 %v4394, 1
        %v4426 = vpop.permute.xlu0 %4425
        %4431 = vst.msk [vmem:[#allocation3 + $0x1] sm:$0xff] %vm383, %v4420
        %4432 = vst.msk [vmem:[#allocation3 + $0x9] sm:$0xff] %vm383, %v4422
        %4433 = vst.msk [vmem:[#allocation3 + $0x11] sm:$0xff] %vm383, %v4424
        %4434 = vst.msk [vmem:[#allocation3 + $0x19] sm:$0xff] %vm383, %v4426
        %4439 = vrot.lane.b32.xlu0 %v4411, 1
        %v4440 = vpop.permute.xlu0 %4439
        %4441 = vrot.lane.b32.xlu0 %v4412, 1
        %v4442 = vpop.permute.xlu0 %4441
        %4443 = vrot.lane.b32.xlu0 %v4413, 1
        %v4444 = vpop.permute.xlu0 %4443
        %4445 = vrot.lane.b32.xlu0 %v4414, 1
        %v4446 = vpop.permute.xlu0 %4445
        %4451 = vst.msk [vmem:[%s2133 + $0x1] sm:$0xff] %vm383, %v4440
        %4452 = vst.msk [vmem:[%s2133 + $0x9] sm:$0xff] %vm383, %v4442
        %4453 = vst.msk [vmem:[%s2133 + $0x11] sm:$0xff] %vm383, %v4444
        %4454 = vst.msk [vmem:[%s2133 + $0x19] sm:$0xff] %vm383, %v4446
        %v4455 = vld [vmem:[#allocation3] sm:$0xff]
        %v4456 = vld [vmem:[#allocation3 + $0x8] sm:$0xff]
        %v4457 = vld [vmem:[#allocation3 + $0x10] sm:$0xff]
        %v4458 = vld [vmem:[#allocation3 + $0x18] sm:$0xff]
        %v4459 = vld [vmem:[#allocation3 + $0x20] sm:$0x3]
        %s4460 = sld [smem:[#allocation10 + $0x7e]]
        %v4461 = vstv %s4460
        %v4462 = vmul.f32 %v4461, %v4455
        %v4463 = vmul.f32 %v4461, %v4456
        %v4464 = vmul.f32 %v4461, %v4457
        %v4465 = vmul.f32 %v4461, %v4458
        %v4466 = vadd.f32 %v4462, 0.0
        %v4467 = vadd.f32 %v4463, 0.0
        %v4468 = vadd.f32 %v4464, 0.0
        %v4469 = vadd.f32 %v4465, 0.0
        %s4470 = sld [smem:[#allocation10 + $0x90]]
        %v4471 = vstv %s4470
        %v4472 = vmul.f32 %v4471, %v4455
        %v4473 = vmul.f32 %v4471, %v4456
        %v4474 = vmul.f32 %v4471, %v4457
        %v4475 = vmul.f32 %v4471, %v4458
        %v4476 = vadd.f32 %v4472, 0.0
        %v4477 = vadd.f32 %v4473, 0.0
        %v4478 = vadd.f32 %v4474, 0.0
        %v4479 = vadd.f32 %v4475, 0.0
        %s4480 = sld [smem:[#allocation10 + $0x7f]]
        %v4481 = vstv %s4480
        %v4482 = vmul.f32 %v4481, %v4455
        %v4483 = vmul.f32 %v4481, %v4456
        %v4484 = vmul.f32 %v4481, %v4457
        %v4485 = vmul.f32 %v4481, %v4458
        %4490 = vrot.lane.b32.xlu0 %v4482, 127
        %v4491 = vpop.permute.xlu0 %4490
        %4492 = vrot.lane.b32.xlu0 %v4483, 127
        %v4493 = vpop.permute.xlu0 %4492
        %4494 = vrot.lane.b32.xlu0 %v4484, 127
        %v4495 = vpop.permute.xlu0 %4494
        %4496 = vrot.lane.b32.xlu0 %v4485, 127
        %v4497 = vpop.permute.xlu0 %4496
        %v4502 = vadd.f32 %v4466, %v4491
        %v4503 = vadd.f32 %v4467, %v4493
        %v4504 = vadd.f32 %v4468, %v4495
        %v4505 = vadd.f32 %v4469, %v4497
        %s4506 = sld [smem:[#allocation10 + $0x91]]
        %v4507 = vstv %s4506
        %v4508 = vmul.f32 %v4507, %v4455
        %v4509 = vmul.f32 %v4507, %v4456
        %v4510 = vmul.f32 %v4507, %v4457
        %v4511 = vmul.f32 %v4507, %v4458
        %4516 = vrot.lane.b32.xlu0 %v4508, 127
        %v4517 = vpop.permute.xlu0 %4516
        %4518 = vrot.lane.b32.xlu0 %v4509, 127
        %v4519 = vpop.permute.xlu0 %4518
        %4520 = vrot.lane.b32.xlu0 %v4510, 127
        %v4521 = vpop.permute.xlu0 %4520
        %4522 = vrot.lane.b32.xlu0 %v4511, 127
        %v4523 = vpop.permute.xlu0 %4522
        %v4528 = vadd.f32 %v4476, %v4517
        %v4529 = vadd.f32 %v4477, %v4519
        %v4530 = vadd.f32 %v4478, %v4521
        %v4531 = vadd.f32 %v4479, %v4523
        %s4532 = sld [smem:[#allocation10 + $0x80]]
        %v4533 = vstv %s4532
        %v4534 = vmul.f32 %v4533, %v4455
        %v4535 = vmul.f32 %v4533, %v4456
        %v4536 = vmul.f32 %v4533, %v4457
        %v4537 = vmul.f32 %v4533, %v4458
        %4542 = vrot.lane.b32.xlu0 %v4534, 126
        %v4543 = vpop.permute.xlu0 %4542
        %4544 = vrot.lane.b32.xlu0 %v4535, 126
        %v4545 = vpop.permute.xlu0 %4544
        %4546 = vrot.lane.b32.xlu0 %v4536, 126
        %v4547 = vpop.permute.xlu0 %4546
        %4548 = vrot.lane.b32.xlu0 %v4537, 126
        %v4549 = vpop.permute.xlu0 %4548
        %v4554 = vadd.f32 %v4502, %v4543
        %v4555 = vadd.f32 %v4503, %v4545
        %v4556 = vadd.f32 %v4504, %v4547
        %v4557 = vadd.f32 %v4505, %v4549
        %s4558 = sld [smem:[#allocation10 + $0x92]]
        %v4559 = vstv %s4558
        %v4560 = vmul.f32 %v4559, %v4455
        %v4561 = vmul.f32 %v4559, %v4456
        %v4562 = vmul.f32 %v4559, %v4457
        %v4563 = vmul.f32 %v4559, %v4458
        %4568 = vrot.lane.b32.xlu0 %v4560, 126
        %v4569 = vpop.permute.xlu0 %4568
        %4570 = vrot.lane.b32.xlu0 %v4561, 126
        %v4571 = vpop.permute.xlu0 %4570
        %4572 = vrot.lane.b32.xlu0 %v4562, 126
        %v4573 = vpop.permute.xlu0 %4572
        %4574 = vrot.lane.b32.xlu0 %v4563, 126
        %v4575 = vpop.permute.xlu0 %4574
        %v4580 = vadd.f32 %v4528, %v4569
        %v4581 = vadd.f32 %v4529, %v4571
        %v4582 = vadd.f32 %v4530, %v4573
        %v4583 = vadd.f32 %v4531, %v4575
        %s4584 = sld [smem:[#allocation10 + $0x81]]
        %v4585 = vstv %s4584
        %v4586 = vmul.f32 %v4585, %v4455
        %v4587 = vmul.f32 %v4585, %v4456
        %v4588 = vmul.f32 %v4585, %v4457
        %v4589 = vmul.f32 %v4585, %v4458
        %v4590 = vmul.f32 %v4585, %v4459
        %v4596 = vrot.slane %v4586, 1
        %v4597 = vrot.slane %v4587, 1
        %v4598 = vsel %vm581, %v4596, %v4597
        %v4599 = vrot.slane %v4588, 1
        %v4600 = vsel %vm581, %v4597, %v4599
        %v4601 = vrot.slane %v4589, 1
        %v4602 = vsel %vm581, %v4599, %v4601
        %v4603 = vrot.slane %v4590, 1
        %v4604 = vsel %vm581, %v4601, %v4603
        %v4609 = vadd.f32 %v4554, %v4598
        %v4610 = vadd.f32 %v4555, %v4600
        %v4611 = vadd.f32 %v4556, %v4602
        %v4612 = vadd.f32 %v4557, %v4604
        %s4613 = sld [smem:[#allocation10 + $0x93]]
        %v4614 = vstv %s4613
        %v4615 = vmul.f32 %v4614, %v4455
        %v4616 = vmul.f32 %v4614, %v4456
        %v4617 = vmul.f32 %v4614, %v4457
        %v4618 = vmul.f32 %v4614, %v4458
        %v4619 = vmul.f32 %v4614, %v4459
        %v4625 = vrot.slane %v4615, 1
        %v4626 = vrot.slane %v4616, 1
        %v4627 = vsel %vm581, %v4625, %v4626
        %v4628 = vrot.slane %v4617, 1
        %v4629 = vsel %vm581, %v4626, %v4628
        %v4630 = vrot.slane %v4618, 1
        %v4631 = vsel %vm581, %v4628, %v4630
        %v4632 = vrot.slane %v4619, 1
        %v4633 = vsel %vm581, %v4630, %v4632
        %v4638 = vadd.f32 %v4580, %v4627
        %v4639 = vadd.f32 %v4581, %v4629
        %v4640 = vadd.f32 %v4582, %v4631
        %v4641 = vadd.f32 %v4583, %v4633
        %s4642 = sld [smem:[#allocation10 + $0x82]]
        %v4643 = vstv %s4642
        %v4644 = vmul.f32 %v4643, %v4455
        %v4645 = vmul.f32 %v4643, %v4456
        %v4646 = vmul.f32 %v4643, %v4457
        %v4647 = vmul.f32 %v4643, %v4458
        %v4648 = vmul.f32 %v4643, %v4459
        %v4654 = vrot.slane %v4644, 1
        %v4655 = vrot.slane %v4645, 1
        %v4656 = vsel %vm581, %v4654, %v4655
        %v4657 = vrot.slane %v4646, 1
        %v4658 = vsel %vm581, %v4655, %v4657
        %v4659 = vrot.slane %v4647, 1
        %v4660 = vsel %vm581, %v4657, %v4659
        %v4661 = vrot.slane %v4648, 1
        %v4662 = vsel %vm581, %v4659, %v4661
        %4663 = vrot.lane.b32.xlu0 %v4656, 127
        %v4664 = vpop.permute.xlu0 %4663
        %4665 = vrot.lane.b32.xlu0 %v4658, 127
        %v4666 = vpop.permute.xlu0 %4665
        %4667 = vrot.lane.b32.xlu0 %v4660, 127
        %v4668 = vpop.permute.xlu0 %4667
        %4669 = vrot.lane.b32.xlu0 %v4662, 127
        %v4670 = vpop.permute.xlu0 %4669
        %v4675 = vadd.f32 %v4609, %v4664
        %v4676 = vadd.f32 %v4610, %v4666
        %v4677 = vadd.f32 %v4611, %v4668
        %v4678 = vadd.f32 %v4612, %v4670
        %s4679 = sld [smem:[#allocation10 + $0x94]]
        %v4680 = vstv %s4679
        %v4681 = vmul.f32 %v4680, %v4455
        %v4682 = vmul.f32 %v4680, %v4456
        %v4683 = vmul.f32 %v4680, %v4457
        %v4684 = vmul.f32 %v4680, %v4458
        %v4685 = vmul.f32 %v4680, %v4459
        %v4691 = vrot.slane %v4681, 1
        %v4692 = vrot.slane %v4682, 1
        %v4693 = vsel %vm581, %v4691, %v4692
        %v4694 = vrot.slane %v4683, 1
        %v4695 = vsel %vm581, %v4692, %v4694
        %v4696 = vrot.slane %v4684, 1
        %v4697 = vsel %vm581, %v4694, %v4696
        %v4698 = vrot.slane %v4685, 1
        %v4699 = vsel %vm581, %v4696, %v4698
        %4700 = vrot.lane.b32.xlu0 %v4693, 127
        %v4701 = vpop.permute.xlu0 %4700
        %4702 = vrot.lane.b32.xlu0 %v4695, 127
        %v4703 = vpop.permute.xlu0 %4702
        %4704 = vrot.lane.b32.xlu0 %v4697, 127
        %v4705 = vpop.permute.xlu0 %4704
        %4706 = vrot.lane.b32.xlu0 %v4699, 127
        %v4707 = vpop.permute.xlu0 %4706
        %v4712 = vadd.f32 %v4638, %v4701
        %v4713 = vadd.f32 %v4639, %v4703
        %v4714 = vadd.f32 %v4640, %v4705
        %v4715 = vadd.f32 %v4641, %v4707
        %s4716 = sld [smem:[#allocation10 + $0x83]]
        %v4717 = vstv %s4716
        %v4718 = vmul.f32 %v4717, %v4455
        %v4719 = vmul.f32 %v4717, %v4456
        %v4720 = vmul.f32 %v4717, %v4457
        %v4721 = vmul.f32 %v4717, %v4458
        %v4722 = vmul.f32 %v4717, %v4459
        %v4728 = vrot.slane %v4718, 1
        %v4729 = vrot.slane %v4719, 1
        %v4730 = vsel %vm581, %v4728, %v4729
        %v4731 = vrot.slane %v4720, 1
        %v4732 = vsel %vm581, %v4729, %v4731
        %v4733 = vrot.slane %v4721, 1
        %v4734 = vsel %vm581, %v4731, %v4733
        %v4735 = vrot.slane %v4722, 1
        %v4736 = vsel %vm581, %v4733, %v4735
        %4737 = vrot.lane.b32.xlu0 %v4730, 126
        %v4738 = vpop.permute.xlu0 %4737
        %4739 = vrot.lane.b32.xlu0 %v4732, 126
        %v4740 = vpop.permute.xlu0 %4739
        %4741 = vrot.lane.b32.xlu0 %v4734, 126
        %v4742 = vpop.permute.xlu0 %4741
        %4743 = vrot.lane.b32.xlu0 %v4736, 126
        %v4744 = vpop.permute.xlu0 %4743
        %v4749 = vadd.f32 %v4675, %v4738
        %v4750 = vadd.f32 %v4676, %v4740
        %v4751 = vadd.f32 %v4677, %v4742
        %v4752 = vadd.f32 %v4678, %v4744
        %s4753 = sld [smem:[#allocation10 + $0x95]]
        %v4754 = vstv %s4753
        %v4755 = vmul.f32 %v4754, %v4455
        %v4756 = vmul.f32 %v4754, %v4456
        %v4757 = vmul.f32 %v4754, %v4457
        %v4758 = vmul.f32 %v4754, %v4458
        %v4759 = vmul.f32 %v4754, %v4459
        %v4765 = vrot.slane %v4755, 1
        %v4766 = vrot.slane %v4756, 1
        %v4767 = vsel %vm581, %v4765, %v4766
        %v4768 = vrot.slane %v4757, 1
        %v4769 = vsel %vm581, %v4766, %v4768
        %v4770 = vrot.slane %v4758, 1
        %v4771 = vsel %vm581, %v4768, %v4770
        %v4772 = vrot.slane %v4759, 1
        %v4773 = vsel %vm581, %v4770, %v4772
        %4774 = vrot.lane.b32.xlu0 %v4767, 126
        %v4775 = vpop.permute.xlu0 %4774
        %4776 = vrot.lane.b32.xlu0 %v4769, 126
        %v4777 = vpop.permute.xlu0 %4776
        %4778 = vrot.lane.b32.xlu0 %v4771, 126
        %v4779 = vpop.permute.xlu0 %4778
        %4780 = vrot.lane.b32.xlu0 %v4773, 126
        %v4781 = vpop.permute.xlu0 %4780
        %v4786 = vadd.f32 %v4712, %v4775
        %v4787 = vadd.f32 %v4713, %v4777
        %v4788 = vadd.f32 %v4714, %v4779
        %v4789 = vadd.f32 %v4715, %v4781
        %s4790 = sld [smem:[#allocation10 + $0x84]]
        %v4791 = vstv %s4790
        %v4792 = vmul.f32 %v4791, %v4455
        %v4793 = vmul.f32 %v4791, %v4456
        %v4794 = vmul.f32 %v4791, %v4457
        %v4795 = vmul.f32 %v4791, %v4458
        %v4796 = vmul.f32 %v4791, %v4459
        %v4802 = vrot.slane %v4792, 2
        %v4803 = vrot.slane %v4793, 2
        %v4804 = vsel %vm788, %v4802, %v4803
        %v4805 = vrot.slane %v4794, 2
        %v4806 = vsel %vm788, %v4803, %v4805
        %v4807 = vrot.slane %v4795, 2
        %v4808 = vsel %vm788, %v4805, %v4807
        %v4809 = vrot.slane %v4796, 2
        %v4810 = vsel %vm788, %v4807, %v4809
        %v4815 = vadd.f32 %v4749, %v4804
        %v4816 = vadd.f32 %v4750, %v4806
        %v4817 = vadd.f32 %v4751, %v4808
        %v4818 = vadd.f32 %v4752, %v4810
        %s4819 = sld [smem:[#allocation10 + $0x96]]
        %v4820 = vstv %s4819
        %v4821 = vmul.f32 %v4820, %v4455
        %v4822 = vmul.f32 %v4820, %v4456
        %v4823 = vmul.f32 %v4820, %v4457
        %v4824 = vmul.f32 %v4820, %v4458
        %v4825 = vmul.f32 %v4820, %v4459
        %v4831 = vrot.slane %v4821, 2
        %v4832 = vrot.slane %v4822, 2
        %v4833 = vsel %vm788, %v4831, %v4832
        %v4834 = vrot.slane %v4823, 2
        %v4835 = vsel %vm788, %v4832, %v4834
        %v4836 = vrot.slane %v4824, 2
        %v4837 = vsel %vm788, %v4834, %v4836
        %v4838 = vrot.slane %v4825, 2
        %v4839 = vsel %vm788, %v4836, %v4838
        %v4844 = vadd.f32 %v4786, %v4833
        %v4845 = vadd.f32 %v4787, %v4835
        %v4846 = vadd.f32 %v4788, %v4837
        %v4847 = vadd.f32 %v4789, %v4839
        %s4848 = sld [smem:[#allocation10 + $0x85]]
        %v4849 = vstv %s4848
        %v4850 = vmul.f32 %v4849, %v4455
        %v4851 = vmul.f32 %v4849, %v4456
        %v4852 = vmul.f32 %v4849, %v4457
        %v4853 = vmul.f32 %v4849, %v4458
        %v4854 = vmul.f32 %v4849, %v4459
        %v4860 = vrot.slane %v4850, 2
        %v4861 = vrot.slane %v4851, 2
        %v4862 = vsel %vm788, %v4860, %v4861
        %v4863 = vrot.slane %v4852, 2
        %v4864 = vsel %vm788, %v4861, %v4863
        %v4865 = vrot.slane %v4853, 2
        %v4866 = vsel %vm788, %v4863, %v4865
        %v4867 = vrot.slane %v4854, 2
        %v4868 = vsel %vm788, %v4865, %v4867
        %4869 = vrot.lane.b32.xlu0 %v4862, 127
        %v4870 = vpop.permute.xlu0 %4869
        %4871 = vrot.lane.b32.xlu0 %v4864, 127
        %v4872 = vpop.permute.xlu0 %4871
        %4873 = vrot.lane.b32.xlu0 %v4866, 127
        %v4874 = vpop.permute.xlu0 %4873
        %4875 = vrot.lane.b32.xlu0 %v4868, 127
        %v4876 = vpop.permute.xlu0 %4875
        %v4881 = vadd.f32 %v4815, %v4870
        %v4882 = vadd.f32 %v4816, %v4872
        %v4883 = vadd.f32 %v4817, %v4874
        %v4884 = vadd.f32 %v4818, %v4876
        %s4885 = sld [smem:[#allocation10 + $0x97]]
        %v4886 = vstv %s4885
        %v4887 = vmul.f32 %v4886, %v4455
        %v4888 = vmul.f32 %v4886, %v4456
        %v4889 = vmul.f32 %v4886, %v4457
        %v4890 = vmul.f32 %v4886, %v4458
        %v4891 = vmul.f32 %v4886, %v4459
        %v4897 = vrot.slane %v4887, 2
        %v4898 = vrot.slane %v4888, 2
        %v4899 = vsel %vm788, %v4897, %v4898
        %v4900 = vrot.slane %v4889, 2
        %v4901 = vsel %vm788, %v4898, %v4900
        %v4902 = vrot.slane %v4890, 2
        %v4903 = vsel %vm788, %v4900, %v4902
        %v4904 = vrot.slane %v4891, 2
        %v4905 = vsel %vm788, %v4902, %v4904
        %4906 = vrot.lane.b32.xlu0 %v4899, 127
        %v4907 = vpop.permute.xlu0 %4906
        %4908 = vrot.lane.b32.xlu0 %v4901, 127
        %v4909 = vpop.permute.xlu0 %4908
        %4910 = vrot.lane.b32.xlu0 %v4903, 127
        %v4911 = vpop.permute.xlu0 %4910
        %4912 = vrot.lane.b32.xlu0 %v4905, 127
        %v4913 = vpop.permute.xlu0 %4912
        %v4918 = vadd.f32 %v4844, %v4907
        %v4919 = vadd.f32 %v4845, %v4909
        %v4920 = vadd.f32 %v4846, %v4911
        %v4921 = vadd.f32 %v4847, %v4913
        %s4922 = sld [smem:[#allocation10 + $0x86]]
        %v4923 = vstv %s4922
        %v4924 = vmul.f32 %v4923, %v4455
        %v4925 = vmul.f32 %v4923, %v4456
        %v4926 = vmul.f32 %v4923, %v4457
        %v4927 = vmul.f32 %v4923, %v4458
        %v4928 = vmul.f32 %v4923, %v4459
        %v4934 = vrot.slane %v4924, 2
        %v4935 = vrot.slane %v4925, 2
        %v4936 = vsel %vm788, %v4934, %v4935
        %v4937 = vrot.slane %v4926, 2
        %v4938 = vsel %vm788, %v4935, %v4937
        %v4939 = vrot.slane %v4927, 2
        %v4940 = vsel %vm788, %v4937, %v4939
        %v4941 = vrot.slane %v4928, 2
        %v4942 = vsel %vm788, %v4939, %v4941
        %4943 = vrot.lane.b32.xlu0 %v4936, 126
        %v4944 = vpop.permute.xlu0 %4943
        %4945 = vrot.lane.b32.xlu0 %v4938, 126
        %v4946 = vpop.permute.xlu0 %4945
        %4947 = vrot.lane.b32.xlu0 %v4940, 126
        %v4948 = vpop.permute.xlu0 %4947
        %4949 = vrot.lane.b32.xlu0 %v4942, 126
        %v4950 = vpop.permute.xlu0 %4949
        %v4955 = vadd.f32 %v4881, %v4944
        %v4956 = vadd.f32 %v4882, %v4946
        %v4957 = vadd.f32 %v4883, %v4948
        %v4958 = vadd.f32 %v4884, %v4950
        %s4959 = sld [smem:[#allocation10 + $0x98]]
        %v4960 = vstv %s4959
        %v4961 = vmul.f32 %v4960, %v4455
        %v4962 = vmul.f32 %v4960, %v4456
        %v4963 = vmul.f32 %v4960, %v4457
        %v4964 = vmul.f32 %v4960, %v4458
        %v4965 = vmul.f32 %v4960, %v4459
        %v4971 = vrot.slane %v4961, 2
        %v4972 = vrot.slane %v4962, 2
        %v4973 = vsel %vm788, %v4971, %v4972
        %v4974 = vrot.slane %v4963, 2
        %v4975 = vsel %vm788, %v4972, %v4974
        %v4976 = vrot.slane %v4964, 2
        %v4977 = vsel %vm788, %v4974, %v4976
        %v4978 = vrot.slane %v4965, 2
        %v4979 = vsel %vm788, %v4976, %v4978
        %4980 = vrot.lane.b32.xlu0 %v4973, 126
        %v4981 = vpop.permute.xlu0 %4980
        %4982 = vrot.lane.b32.xlu0 %v4975, 126
        %v4983 = vpop.permute.xlu0 %4982
        %4984 = vrot.lane.b32.xlu0 %v4977, 126
        %v4985 = vpop.permute.xlu0 %4984
        %4986 = vrot.lane.b32.xlu0 %v4979, 126
        %v4987 = vpop.permute.xlu0 %4986
        %v4992 = vadd.f32 %v4918, %v4981
        %v4993 = vadd.f32 %v4919, %v4983
        %v4994 = vadd.f32 %v4920, %v4985
        %v4995 = vadd.f32 %v4921, %v4987
        %v4996 = vld [vmem:[%s2133] sm:$0xff]
        %v4997 = vld [vmem:[%s2133 + $0x8] sm:$0xff]
        %v4998 = vld [vmem:[%s2133 + $0x10] sm:$0xff]
        %v4999 = vld [vmem:[%s2133 + $0x18] sm:$0xff]
        %v5000 = vld [vmem:[%s2133 + $0x20] sm:$0x3]
        %s5001 = sld [smem:[#allocation10 + $0x87]]
        %v5002 = vstv %s5001
        %v5003 = vmul.f32 %v5002, %v4996
        %v5004 = vmul.f32 %v5002, %v4997
        %v5005 = vmul.f32 %v5002, %v4998
        %v5006 = vmul.f32 %v5002, %v4999
        %v5007 = vadd.f32 %v4955, %v5003
        %v5008 = vadd.f32 %v4956, %v5004
        %v5009 = vadd.f32 %v4957, %v5005
        %v5010 = vadd.f32 %v4958, %v5006
        %s5011 = sld [smem:[#allocation10 + $0x99]]
        %v5012 = vstv %s5011
        %v5013 = vmul.f32 %v5012, %v4996
        %v5014 = vmul.f32 %v5012, %v4997
        %v5015 = vmul.f32 %v5012, %v4998
        %v5016 = vmul.f32 %v5012, %v4999
        %v5017 = vadd.f32 %v4992, %v5013
        %v5018 = vadd.f32 %v4993, %v5014
        %v5019 = vadd.f32 %v4994, %v5015
        %v5020 = vadd.f32 %v4995, %v5016
        %s5021 = sld [smem:[#allocation10 + $0x88]]
        %v5022 = vstv %s5021
        %v5023 = vmul.f32 %v5022, %v4996
        %v5024 = vmul.f32 %v5022, %v4997
        %v5025 = vmul.f32 %v5022, %v4998
        %v5026 = vmul.f32 %v5022, %v4999
        %5031 = vrot.lane.b32.xlu0 %v5023, 127
        %v5032 = vpop.permute.xlu0 %5031
        %5033 = vrot.lane.b32.xlu0 %v5024, 127
        %v5034 = vpop.permute.xlu0 %5033
        %5035 = vrot.lane.b32.xlu0 %v5025, 127
        %v5036 = vpop.permute.xlu0 %5035
        %5037 = vrot.lane.b32.xlu0 %v5026, 127
        %v5038 = vpop.permute.xlu0 %5037
        %v5043 = vadd.f32 %v5007, %v5032
        %v5044 = vadd.f32 %v5008, %v5034
        %v5045 = vadd.f32 %v5009, %v5036
        %v5046 = vadd.f32 %v5010, %v5038
        %s5047 = sld [smem:[#allocation10 + $0x9a]]
        %v5048 = vstv %s5047
        %v5049 = vmul.f32 %v5048, %v4996
        %v5050 = vmul.f32 %v5048, %v4997
        %v5051 = vmul.f32 %v5048, %v4998
        %v5052 = vmul.f32 %v5048, %v4999
        %5057 = vrot.lane.b32.xlu0 %v5049, 127
        %v5058 = vpop.permute.xlu0 %5057
        %5059 = vrot.lane.b32.xlu0 %v5050, 127
        %v5060 = vpop.permute.xlu0 %5059
        %5061 = vrot.lane.b32.xlu0 %v5051, 127
        %v5062 = vpop.permute.xlu0 %5061
        %5063 = vrot.lane.b32.xlu0 %v5052, 127
        %v5064 = vpop.permute.xlu0 %5063
        %v5069 = vadd.f32 %v5017, %v5058
        %v5070 = vadd.f32 %v5018, %v5060
        %v5071 = vadd.f32 %v5019, %v5062
        %v5072 = vadd.f32 %v5020, %v5064
        %s5073 = sld [smem:[#allocation10 + $0x89]]
        %v5074 = vstv %s5073
        %v5075 = vmul.f32 %v5074, %v4996
        %v5076 = vmul.f32 %v5074, %v4997
        %v5077 = vmul.f32 %v5074, %v4998
        %v5078 = vmul.f32 %v5074, %v4999
        %5083 = vrot.lane.b32.xlu0 %v5075, 126
        %v5084 = vpop.permute.xlu0 %5083
        %5085 = vrot.lane.b32.xlu0 %v5076, 126
        %v5086 = vpop.permute.xlu0 %5085
        %5087 = vrot.lane.b32.xlu0 %v5077, 126
        %v5088 = vpop.permute.xlu0 %5087
        %5089 = vrot.lane.b32.xlu0 %v5078, 126
        %v5090 = vpop.permute.xlu0 %5089
        %v5095 = vadd.f32 %v5043, %v5084
        %v5096 = vadd.f32 %v5044, %v5086
        %v5097 = vadd.f32 %v5045, %v5088
        %v5098 = vadd.f32 %v5046, %v5090
        %s5099 = sld [smem:[#allocation10 + $0x9b]]
        %v5100 = vstv %s5099
        %v5101 = vmul.f32 %v5100, %v4996
        %v5102 = vmul.f32 %v5100, %v4997
        %v5103 = vmul.f32 %v5100, %v4998
        %v5104 = vmul.f32 %v5100, %v4999
        %5109 = vrot.lane.b32.xlu0 %v5101, 126
        %v5110 = vpop.permute.xlu0 %5109
        %5111 = vrot.lane.b32.xlu0 %v5102, 126
        %v5112 = vpop.permute.xlu0 %5111
        %5113 = vrot.lane.b32.xlu0 %v5103, 126
        %v5114 = vpop.permute.xlu0 %5113
        %5115 = vrot.lane.b32.xlu0 %v5104, 126
        %v5116 = vpop.permute.xlu0 %5115
        %v5121 = vadd.f32 %v5069, %v5110
        %v5122 = vadd.f32 %v5070, %v5112
        %v5123 = vadd.f32 %v5071, %v5114
        %v5124 = vadd.f32 %v5072, %v5116
        %s5125 = sld [smem:[#allocation10 + $0x8a]]
        %v5126 = vstv %s5125
        %v5127 = vmul.f32 %v5126, %v4996
        %v5128 = vmul.f32 %v5126, %v4997
        %v5129 = vmul.f32 %v5126, %v4998
        %v5130 = vmul.f32 %v5126, %v4999
        %v5131 = vmul.f32 %v5126, %v5000
        %v5137 = vrot.slane %v5127, 1
        %v5138 = vrot.slane %v5128, 1
        %v5139 = vsel %vm581, %v5137, %v5138
        %v5140 = vrot.slane %v5129, 1
        %v5141 = vsel %vm581, %v5138, %v5140
        %v5142 = vrot.slane %v5130, 1
        %v5143 = vsel %vm581, %v5140, %v5142
        %v5144 = vrot.slane %v5131, 1
        %v5145 = vsel %vm581, %v5142, %v5144
        %v5150 = vadd.f32 %v5095, %v5139
        %v5151 = vadd.f32 %v5096, %v5141
        %v5152 = vadd.f32 %v5097, %v5143
        %v5153 = vadd.f32 %v5098, %v5145
        %s5154 = sld [smem:[#allocation10 + $0x9c]]
        %v5155 = vstv %s5154
        %v5156 = vmul.f32 %v5155, %v4996
        %v5157 = vmul.f32 %v5155, %v4997
        %v5158 = vmul.f32 %v5155, %v4998
        %v5159 = vmul.f32 %v5155, %v4999
        %v5160 = vmul.f32 %v5155, %v5000
        %v5166 = vrot.slane %v5156, 1
        %v5167 = vrot.slane %v5157, 1
        %v5168 = vsel %vm581, %v5166, %v5167
        %v5169 = vrot.slane %v5158, 1
        %v5170 = vsel %vm581, %v5167, %v5169
        %v5171 = vrot.slane %v5159, 1
        %v5172 = vsel %vm581, %v5169, %v5171
        %v5173 = vrot.slane %v5160, 1
        %v5174 = vsel %vm581, %v5171, %v5173
        %v5179 = vadd.f32 %v5121, %v5168
        %v5180 = vadd.f32 %v5122, %v5170
        %v5181 = vadd.f32 %v5123, %v5172
        %v5182 = vadd.f32 %v5124, %v5174
        %s5183 = sld [smem:[#allocation10 + $0x8b]]
        %v5184 = vstv %s5183
        %v5185 = vmul.f32 %v5184, %v4996
        %v5186 = vmul.f32 %v5184, %v4997
        %v5187 = vmul.f32 %v5184, %v4998
        %v5188 = vmul.f32 %v5184, %v4999
        %v5189 = vmul.f32 %v5184, %v5000
        %v5195 = vrot.slane %v5185, 1
        %v5196 = vrot.slane %v5186, 1
        %v5197 = vsel %vm581, %v5195, %v5196
        %v5198 = vrot.slane %v5187, 1
        %v5199 = vsel %vm581, %v5196, %v5198
        %v5200 = vrot.slane %v5188, 1
        %v5201 = vsel %vm581, %v5198, %v5200
        %v5202 = vrot.slane %v5189, 1
        %v5203 = vsel %vm581, %v5200, %v5202
        %5204 = vrot.lane.b32.xlu0 %v5197, 127
        %v5205 = vpop.permute.xlu0 %5204
        %5206 = vrot.lane.b32.xlu0 %v5199, 127
        %v5207 = vpop.permute.xlu0 %5206
        %5208 = vrot.lane.b32.xlu0 %v5201, 127
        %v5209 = vpop.permute.xlu0 %5208
        %5210 = vrot.lane.b32.xlu0 %v5203, 127
        %v5211 = vpop.permute.xlu0 %5210
        %v5216 = vadd.f32 %v5150, %v5205
        %v5217 = vadd.f32 %v5151, %v5207
        %v5218 = vadd.f32 %v5152, %v5209
        %v5219 = vadd.f32 %v5153, %v5211
        %s5220 = sld [smem:[#allocation10 + $0x9d]]
        %v5221 = vstv %s5220
        %v5222 = vmul.f32 %v5221, %v4996
        %v5223 = vmul.f32 %v5221, %v4997
        %v5224 = vmul.f32 %v5221, %v4998
        %v5225 = vmul.f32 %v5221, %v4999
        %v5226 = vmul.f32 %v5221, %v5000
        %v5232 = vrot.slane %v5222, 1
        %v5233 = vrot.slane %v5223, 1
        %v5234 = vsel %vm581, %v5232, %v5233
        %v5235 = vrot.slane %v5224, 1
        %v5236 = vsel %vm581, %v5233, %v5235
        %v5237 = vrot.slane %v5225, 1
        %v5238 = vsel %vm581, %v5235, %v5237
        %v5239 = vrot.slane %v5226, 1
        %v5240 = vsel %vm581, %v5237, %v5239
        %5241 = vrot.lane.b32.xlu0 %v5234, 127
        %v5242 = vpop.permute.xlu0 %5241
        %5243 = vrot.lane.b32.xlu0 %v5236, 127
        %v5244 = vpop.permute.xlu0 %5243
        %5245 = vrot.lane.b32.xlu0 %v5238, 127
        %v5246 = vpop.permute.xlu0 %5245
        %5247 = vrot.lane.b32.xlu0 %v5240, 127
        %v5248 = vpop.permute.xlu0 %5247
        %v5253 = vadd.f32 %v5179, %v5242
        %v5254 = vadd.f32 %v5180, %v5244
        %v5255 = vadd.f32 %v5181, %v5246
        %v5256 = vadd.f32 %v5182, %v5248
        %s5257 = sld [smem:[#allocation10 + $0x8c]]
        %v5258 = vstv %s5257
        %v5259 = vmul.f32 %v5258, %v4996
        %v5260 = vmul.f32 %v5258, %v4997
        %v5261 = vmul.f32 %v5258, %v4998
        %v5262 = vmul.f32 %v5258, %v4999
        %v5263 = vmul.f32 %v5258, %v5000
        %v5269 = vrot.slane %v5259, 1
        %v5270 = vrot.slane %v5260, 1
        %v5271 = vsel %vm581, %v5269, %v5270
        %v5272 = vrot.slane %v5261, 1
        %v5273 = vsel %vm581, %v5270, %v5272
        %v5274 = vrot.slane %v5262, 1
        %v5275 = vsel %vm581, %v5272, %v5274
        %v5276 = vrot.slane %v5263, 1
        %v5277 = vsel %vm581, %v5274, %v5276
        %5278 = vrot.lane.b32.xlu0 %v5271, 126
        %v5279 = vpop.permute.xlu0 %5278
        %5280 = vrot.lane.b32.xlu0 %v5273, 126
        %v5281 = vpop.permute.xlu0 %5280
        %5282 = vrot.lane.b32.xlu0 %v5275, 126
        %v5283 = vpop.permute.xlu0 %5282
        %5284 = vrot.lane.b32.xlu0 %v5277, 126
        %v5285 = vpop.permute.xlu0 %5284
        %v5290 = vadd.f32 %v5216, %v5279
        %v5291 = vadd.f32 %v5217, %v5281
        %v5292 = vadd.f32 %v5218, %v5283
        %v5293 = vadd.f32 %v5219, %v5285
        %s5294 = sld [smem:[#allocation10 + $0x9e]]
        %v5295 = vstv %s5294
        %v5296 = vmul.f32 %v5295, %v4996
        %v5297 = vmul.f32 %v5295, %v4997
        %v5298 = vmul.f32 %v5295, %v4998
        %v5299 = vmul.f32 %v5295, %v4999
        %v5300 = vmul.f32 %v5295, %v5000
        %v5306 = vrot.slane %v5296, 1
        %v5307 = vrot.slane %v5297, 1
        %v5308 = vsel %vm581, %v5306, %v5307
        %v5309 = vrot.slane %v5298, 1
        %v5310 = vsel %vm581, %v5307, %v5309
        %v5311 = vrot.slane %v5299, 1
        %v5312 = vsel %vm581, %v5309, %v5311
        %v5313 = vrot.slane %v5300, 1
        %v5314 = vsel %vm581, %v5311, %v5313
        %5315 = vrot.lane.b32.xlu0 %v5308, 126
        %v5316 = vpop.permute.xlu0 %5315
        %5317 = vrot.lane.b32.xlu0 %v5310, 126
        %v5318 = vpop.permute.xlu0 %5317
        %5319 = vrot.lane.b32.xlu0 %v5312, 126
        %v5320 = vpop.permute.xlu0 %5319
        %5321 = vrot.lane.b32.xlu0 %v5314, 126
        %v5322 = vpop.permute.xlu0 %5321
        %v5327 = vadd.f32 %v5253, %v5316
        %v5328 = vadd.f32 %v5254, %v5318
        %v5329 = vadd.f32 %v5255, %v5320
        %v5330 = vadd.f32 %v5256, %v5322
        %s5331 = sld [smem:[#allocation10 + $0x8d]]
        %v5332 = vstv %s5331
        %v5333 = vmul.f32 %v5332, %v4996
        %v5334 = vmul.f32 %v5332, %v4997
        %v5335 = vmul.f32 %v5332, %v4998
        %v5336 = vmul.f32 %v5332, %v4999
        %v5337 = vmul.f32 %v5332, %v5000
        %v5343 = vrot.slane %v5333, 2
        %v5344 = vrot.slane %v5334, 2
        %v5345 = vsel %vm788, %v5343, %v5344
        %v5346 = vrot.slane %v5335, 2
        %v5347 = vsel %vm788, %v5344, %v5346
        %v5348 = vrot.slane %v5336, 2
        %v5349 = vsel %vm788, %v5346, %v5348
        %v5350 = vrot.slane %v5337, 2
        %v5351 = vsel %vm788, %v5348, %v5350
        %v5356 = vadd.f32 %v5290, %v5345
        %v5357 = vadd.f32 %v5291, %v5347
        %v5358 = vadd.f32 %v5292, %v5349
        %v5359 = vadd.f32 %v5293, %v5351
        %s5360 = sld [smem:[#allocation10 + $0x9f]]
        %v5361 = vstv %s5360
        %v5362 = vmul.f32 %v5361, %v4996
        %v5363 = vmul.f32 %v5361, %v4997
        %v5364 = vmul.f32 %v5361, %v4998
        %v5365 = vmul.f32 %v5361, %v4999
        %v5366 = vmul.f32 %v5361, %v5000
        %v5372 = vrot.slane %v5362, 2
        %v5373 = vrot.slane %v5363, 2
        %v5374 = vsel %vm788, %v5372, %v5373
        %v5375 = vrot.slane %v5364, 2
        %v5376 = vsel %vm788, %v5373, %v5375
        %v5377 = vrot.slane %v5365, 2
        %v5378 = vsel %vm788, %v5375, %v5377
        %v5379 = vrot.slane %v5366, 2
        %v5380 = vsel %vm788, %v5377, %v5379
        %v5385 = vadd.f32 %v5327, %v5374
        %v5386 = vadd.f32 %v5328, %v5376
        %v5387 = vadd.f32 %v5329, %v5378
        %v5388 = vadd.f32 %v5330, %v5380
        %s5389 = sld [smem:[#allocation10 + $0x8e]]
        %v5390 = vstv %s5389
        %v5391 = vmul.f32 %v5390, %v4996
        %v5392 = vmul.f32 %v5390, %v4997
        %v5393 = vmul.f32 %v5390, %v4998
        %v5394 = vmul.f32 %v5390, %v4999
        %v5395 = vmul.f32 %v5390, %v5000
        %v5401 = vrot.slane %v5391, 2
        %v5402 = vrot.slane %v5392, 2
        %v5403 = vsel %vm788, %v5401, %v5402
        %v5404 = vrot.slane %v5393, 2
        %v5405 = vsel %vm788, %v5402, %v5404
        %v5406 = vrot.slane %v5394, 2
        %v5407 = vsel %vm788, %v5404, %v5406
        %v5408 = vrot.slane %v5395, 2
        %v5409 = vsel %vm788, %v5406, %v5408
        %5410 = vrot.lane.b32.xlu0 %v5403, 127
        %v5411 = vpop.permute.xlu0 %5410
        %5412 = vrot.lane.b32.xlu0 %v5405, 127
        %v5413 = vpop.permute.xlu0 %5412
        %5414 = vrot.lane.b32.xlu0 %v5407, 127
        %v5415 = vpop.permute.xlu0 %5414
        %5416 = vrot.lane.b32.xlu0 %v5409, 127
        %v5417 = vpop.permute.xlu0 %5416
        %v5422 = vadd.f32 %v5356, %v5411
        %v5423 = vadd.f32 %v5357, %v5413
        %v5424 = vadd.f32 %v5358, %v5415
        %v5425 = vadd.f32 %v5359, %v5417
        %s5426 = sld [smem:[#allocation10 + $0xa0]]
        %v5427 = vstv %s5426
        %v5428 = vmul.f32 %v5427, %v4996
        %v5429 = vmul.f32 %v5427, %v4997
        %v5430 = vmul.f32 %v5427, %v4998
        %v5431 = vmul.f32 %v5427, %v4999
        %v5432 = vmul.f32 %v5427, %v5000
        %v5438 = vrot.slane %v5428, 2
        %v5439 = vrot.slane %v5429, 2
        %v5440 = vsel %vm788, %v5438, %v5439
        %v5441 = vrot.slane %v5430, 2
        %v5442 = vsel %vm788, %v5439, %v5441
        %v5443 = vrot.slane %v5431, 2
        %v5444 = vsel %vm788, %v5441, %v5443
        %v5445 = vrot.slane %v5432, 2
        %v5446 = vsel %vm788, %v5443, %v5445
        %5447 = vrot.lane.b32.xlu0 %v5440, 127
        %v5448 = vpop.permute.xlu0 %5447
        %5449 = vrot.lane.b32.xlu0 %v5442, 127
        %v5450 = vpop.permute.xlu0 %5449
        %5451 = vrot.lane.b32.xlu0 %v5444, 127
        %v5452 = vpop.permute.xlu0 %5451
        %5453 = vrot.lane.b32.xlu0 %v5446, 127
        %v5454 = vpop.permute.xlu0 %5453
        %v5459 = vadd.f32 %v5385, %v5448
        %v5460 = vadd.f32 %v5386, %v5450
        %v5461 = vadd.f32 %v5387, %v5452
        %v5462 = vadd.f32 %v5388, %v5454
        %s5463 = sld [smem:[#allocation10 + $0x8f]]
        %v5464 = vstv %s5463
        %v5465 = vmul.f32 %v5464, %v4996
        %v5466 = vmul.f32 %v5464, %v4997
        %v5467 = vmul.f32 %v5464, %v4998
        %v5468 = vmul.f32 %v5464, %v4999
        %v5469 = vmul.f32 %v5464, %v5000
        %v5475 = vrot.slane %v5465, 2
        %v5476 = vrot.slane %v5466, 2
        %v5477 = vsel %vm788, %v5475, %v5476
        %v5478 = vrot.slane %v5467, 2
        %v5479 = vsel %vm788, %v5476, %v5478
        %v5480 = vrot.slane %v5468, 2
        %v5481 = vsel %vm788, %v5478, %v5480
        %v5482 = vrot.slane %v5469, 2
        %v5483 = vsel %vm788, %v5480, %v5482
        %5484 = vrot.lane.b32.xlu0 %v5477, 126
        %v5485 = vpop.permute.xlu0 %5484
        %5486 = vrot.lane.b32.xlu0 %v5479, 126
        %v5487 = vpop.permute.xlu0 %5486
        %5488 = vrot.lane.b32.xlu0 %v5481, 126
        %v5489 = vpop.permute.xlu0 %5488
        %5490 = vrot.lane.b32.xlu0 %v5483, 126
        %v5491 = vpop.permute.xlu0 %5490
        %v5496 = vadd.f32 %v5422, %v5485
        %v5497 = vadd.f32 %v5423, %v5487
        %v5498 = vadd.f32 %v5424, %v5489
        %v5499 = vadd.f32 %v5425, %v5491
        %s5500 = sld [smem:[#allocation10 + $0xa1]]
        %v5501 = vstv %s5500
        %v5502 = vmul.f32 %v5501, %v4996
        %v5503 = vmul.f32 %v5501, %v4997
        %v5504 = vmul.f32 %v5501, %v4998
        %v5505 = vmul.f32 %v5501, %v4999
        %v5506 = vmul.f32 %v5501, %v5000
        %v5512 = vrot.slane %v5502, 2
        %v5513 = vrot.slane %v5503, 2
        %v5514 = vsel %vm788, %v5512, %v5513
        %v5515 = vrot.slane %v5504, 2
        %v5516 = vsel %vm788, %v5513, %v5515
        %v5517 = vrot.slane %v5505, 2
        %v5518 = vsel %vm788, %v5515, %v5517
        %v5519 = vrot.slane %v5506, 2
        %v5520 = vsel %vm788, %v5517, %v5519
        %5521 = vrot.lane.b32.xlu0 %v5514, 126
        %v5522 = vpop.permute.xlu0 %5521
        %5523 = vrot.lane.b32.xlu0 %v5516, 126
        %v5524 = vpop.permute.xlu0 %5523
        %5525 = vrot.lane.b32.xlu0 %v5518, 126
        %v5526 = vpop.permute.xlu0 %5525
        %5527 = vrot.lane.b32.xlu0 %v5520, 126
        %v5528 = vpop.permute.xlu0 %5527
        %v5533 = vadd.f32 %v5459, %v5522
        %v5534 = vadd.f32 %v5460, %v5524
        %v5535 = vadd.f32 %v5461, %v5526
        %v5536 = vadd.f32 %v5462, %v5528
        %s5537 = sld [smem:[#allocation11 + $0x6]]
        %v5538 = vstv %s5537
        %v5539 = vmul.f32 %v5496, %v5538
        %v5540 = vmul.f32 %v5497, %v5538
        %v5541 = vmul.f32 %v5498, %v5538
        %v5542 = vmul.f32 %v5499, %v5538
        %s5543 = sld [smem:[#allocation12 + $0x6]]
        %v5544 = vstv %s5543
        %v5545 = vadd.f32 %v5539, %v5544
        %v5546 = vadd.f32 %v5540, %v5544
        %v5547 = vadd.f32 %v5541, %v5544
        %v5548 = vadd.f32 %v5542, %v5544
        %v5549 = vmax.f32 %v5545, 0.0
        %v5550 = vmax.f32 %v5546, 0.0
        %v5551 = vmax.f32 %v5547, 0.0
        %v5552 = vmax.f32 %v5548, 0.0
        %s5553 = sld [smem:[#allocation11 + $0x7]]
        %v5554 = vstv %s5553
        %v5555 = vmul.f32 %v5533, %v5554
        %v5556 = vmul.f32 %v5534, %v5554
        %v5557 = vmul.f32 %v5535, %v5554
        %v5558 = vmul.f32 %v5536, %v5554
        %s5559 = sld [smem:[#allocation12 + $0x7]]
        %v5560 = vstv %s5559
        %v5561 = vadd.f32 %v5555, %v5560
        %v5562 = vadd.f32 %v5556, %v5560
        %v5563 = vadd.f32 %v5557, %v5560
        %v5564 = vadd.f32 %v5558, %v5560
        %v5565 = vmax.f32 %v5561, 0.0
        %v5566 = vmax.f32 %v5562, 0.0
        %v5567 = vmax.f32 %v5563, 0.0
        %v5568 = vmax.f32 %v5564, 0.0
        %5573 = vrot.lane.b32.xlu0 %v5549, 1
        %v5574 = vpop.permute.xlu0 %5573
        %5575 = vrot.lane.b32.xlu0 %v5550, 1
        %v5576 = vpop.permute.xlu0 %5575
        %5577 = vrot.lane.b32.xlu0 %v5551, 1
        %v5578 = vpop.permute.xlu0 %5577
        %5579 = vrot.lane.b32.xlu0 %v5552, 1
        %v5580 = vpop.permute.xlu0 %5579
        %5585 = vst.msk [vmem:[#allocation4 + $0x1] sm:$0xff] %vm383, %v5574
        %5586 = vst.msk [vmem:[#allocation4 + $0x9] sm:$0xff] %vm383, %v5576
        %5587 = vst.msk [vmem:[#allocation4 + $0x11] sm:$0xff] %vm383, %v5578
        %5588 = vst.msk [vmem:[#allocation4 + $0x19] sm:$0xff] %vm383, %v5580
        %5593 = vrot.lane.b32.xlu0 %v5565, 1
        %v5594 = vpop.permute.xlu0 %5593
        %5595 = vrot.lane.b32.xlu0 %v5566, 1
        %v5596 = vpop.permute.xlu0 %5595
        %5597 = vrot.lane.b32.xlu0 %v5567, 1
        %v5598 = vpop.permute.xlu0 %5597
        %5599 = vrot.lane.b32.xlu0 %v5568, 1
        %v5600 = vpop.permute.xlu0 %5599
        %5605 = vst.msk [vmem:[%s3288 + $0x1] sm:$0xff] %vm383, %v5594
        %5606 = vst.msk [vmem:[%s3288 + $0x9] sm:$0xff] %vm383, %v5596
        %5607 = vst.msk [vmem:[%s3288 + $0x11] sm:$0xff] %vm383, %v5598
        %5608 = vst.msk [vmem:[%s3288 + $0x19] sm:$0xff] %vm383, %v5600
        %v5609 = vld [vmem:[#allocation4] sm:$0xff]
        %v5610 = vld [vmem:[#allocation4 + $0x8] sm:$0xff]
        %v5611 = vld [vmem:[#allocation4 + $0x10] sm:$0xff]
        %v5612 = vld [vmem:[#allocation4 + $0x18] sm:$0xff]
        %v5613 = vld [vmem:[#allocation4 + $0x20] sm:$0x3]
        %s5614 = sld [smem:[#allocation10 + $0xa2]]
        %v5615 = vstv %s5614
        %v5616 = vmul.f32 %v5615, %v5609
        %v5617 = vmul.f32 %v5615, %v5610
        %v5618 = vmul.f32 %v5615, %v5611
        %v5619 = vmul.f32 %v5615, %v5612
        %v5620 = vadd.f32 %v5616, 0.0
        %v5621 = vadd.f32 %v5617, 0.0
        %v5622 = vadd.f32 %v5618, 0.0
        %v5623 = vadd.f32 %v5619, 0.0
        %s5624 = sld [smem:[#allocation10 + $0xb4]]
        %v5625 = vstv %s5624
        %v5626 = vmul.f32 %v5625, %v5609
        %v5627 = vmul.f32 %v5625, %v5610
        %v5628 = vmul.f32 %v5625, %v5611
        %v5629 = vmul.f32 %v5625, %v5612
        %v5630 = vadd.f32 %v5626, 0.0
        %v5631 = vadd.f32 %v5627, 0.0
        %v5632 = vadd.f32 %v5628, 0.0
        %v5633 = vadd.f32 %v5629, 0.0
        %s5634 = sld [smem:[#allocation10 + $0xa3]]
        %v5635 = vstv %s5634
        %v5636 = vmul.f32 %v5635, %v5609
        %v5637 = vmul.f32 %v5635, %v5610
        %v5638 = vmul.f32 %v5635, %v5611
        %v5639 = vmul.f32 %v5635, %v5612
        %5644 = vrot.lane.b32.xlu0 %v5636, 127
        %v5645 = vpop.permute.xlu0 %5644
        %5646 = vrot.lane.b32.xlu0 %v5637, 127
        %v5647 = vpop.permute.xlu0 %5646
        %5648 = vrot.lane.b32.xlu0 %v5638, 127
        %v5649 = vpop.permute.xlu0 %5648
        %5650 = vrot.lane.b32.xlu0 %v5639, 127
        %v5651 = vpop.permute.xlu0 %5650
        %v5656 = vadd.f32 %v5620, %v5645
        %v5657 = vadd.f32 %v5621, %v5647
        %v5658 = vadd.f32 %v5622, %v5649
        %v5659 = vadd.f32 %v5623, %v5651
        %s5660 = sld [smem:[#allocation10 + $0xb5]]
        %v5661 = vstv %s5660
        %v5662 = vmul.f32 %v5661, %v5609
        %v5663 = vmul.f32 %v5661, %v5610
        %v5664 = vmul.f32 %v5661, %v5611
        %v5665 = vmul.f32 %v5661, %v5612
        %5670 = vrot.lane.b32.xlu0 %v5662, 127
        %v5671 = vpop.permute.xlu0 %5670
        %5672 = vrot.lane.b32.xlu0 %v5663, 127
        %v5673 = vpop.permute.xlu0 %5672
        %5674 = vrot.lane.b32.xlu0 %v5664, 127
        %v5675 = vpop.permute.xlu0 %5674
        %5676 = vrot.lane.b32.xlu0 %v5665, 127
        %v5677 = vpop.permute.xlu0 %5676
        %v5682 = vadd.f32 %v5630, %v5671
        %v5683 = vadd.f32 %v5631, %v5673
        %v5684 = vadd.f32 %v5632, %v5675
        %v5685 = vadd.f32 %v5633, %v5677
        %s5686 = sld [smem:[#allocation10 + $0xa4]]
        %v5687 = vstv %s5686
        %v5688 = vmul.f32 %v5687, %v5609
        %v5689 = vmul.f32 %v5687, %v5610
        %v5690 = vmul.f32 %v5687, %v5611
        %v5691 = vmul.f32 %v5687, %v5612
        %5696 = vrot.lane.b32.xlu0 %v5688, 126
        %v5697 = vpop.permute.xlu0 %5696
        %5698 = vrot.lane.b32.xlu0 %v5689, 126
        %v5699 = vpop.permute.xlu0 %5698
        %5700 = vrot.lane.b32.xlu0 %v5690, 126
        %v5701 = vpop.permute.xlu0 %5700
        %5702 = vrot.lane.b32.xlu0 %v5691, 126
        %v5703 = vpop.permute.xlu0 %5702
        %v5708 = vadd.f32 %v5656, %v5697
        %v5709 = vadd.f32 %v5657, %v5699
        %v5710 = vadd.f32 %v5658, %v5701
        %v5711 = vadd.f32 %v5659, %v5703
        %s5712 = sld [smem:[#allocation10 + $0xb6]]
        %v5713 = vstv %s5712
        %v5714 = vmul.f32 %v5713, %v5609
        %v5715 = vmul.f32 %v5713, %v5610
        %v5716 = vmul.f32 %v5713, %v5611
        %v5717 = vmul.f32 %v5713, %v5612
        %5722 = vrot.lane.b32.xlu0 %v5714, 126
        %v5723 = vpop.permute.xlu0 %5722
        %5724 = vrot.lane.b32.xlu0 %v5715, 126
        %v5725 = vpop.permute.xlu0 %5724
        %5726 = vrot.lane.b32.xlu0 %v5716, 126
        %v5727 = vpop.permute.xlu0 %5726
        %5728 = vrot.lane.b32.xlu0 %v5717, 126
        %v5729 = vpop.permute.xlu0 %5728
        %v5734 = vadd.f32 %v5682, %v5723
        %v5735 = vadd.f32 %v5683, %v5725
        %v5736 = vadd.f32 %v5684, %v5727
        %v5737 = vadd.f32 %v5685, %v5729
        %s5738 = sld [smem:[#allocation10 + $0xa5]]
        %v5739 = vstv %s5738
        %v5740 = vmul.f32 %v5739, %v5609
        %v5741 = vmul.f32 %v5739, %v5610
        %v5742 = vmul.f32 %v5739, %v5611
        %v5743 = vmul.f32 %v5739, %v5612
        %v5744 = vmul.f32 %v5739, %v5613
        %v5750 = vrot.slane %v5740, 1
        %v5751 = vrot.slane %v5741, 1
        %v5752 = vsel %vm581, %v5750, %v5751
        %v5753 = vrot.slane %v5742, 1
        %v5754 = vsel %vm581, %v5751, %v5753
        %v5755 = vrot.slane %v5743, 1
        %v5756 = vsel %vm581, %v5753, %v5755
        %v5757 = vrot.slane %v5744, 1
        %v5758 = vsel %vm581, %v5755, %v5757
        %v5763 = vadd.f32 %v5708, %v5752
        %v5764 = vadd.f32 %v5709, %v5754
        %v5765 = vadd.f32 %v5710, %v5756
        %v5766 = vadd.f32 %v5711, %v5758
        %s5767 = sld [smem:[#allocation10 + $0xb7]]
        %v5768 = vstv %s5767
        %v5769 = vmul.f32 %v5768, %v5609
        %v5770 = vmul.f32 %v5768, %v5610
        %v5771 = vmul.f32 %v5768, %v5611
        %v5772 = vmul.f32 %v5768, %v5612
        %v5773 = vmul.f32 %v5768, %v5613
        %v5779 = vrot.slane %v5769, 1
        %v5780 = vrot.slane %v5770, 1
        %v5781 = vsel %vm581, %v5779, %v5780
        %v5782 = vrot.slane %v5771, 1
        %v5783 = vsel %vm581, %v5780, %v5782
        %v5784 = vrot.slane %v5772, 1
        %v5785 = vsel %vm581, %v5782, %v5784
        %v5786 = vrot.slane %v5773, 1
        %v5787 = vsel %vm581, %v5784, %v5786
        %v5792 = vadd.f32 %v5734, %v5781
        %v5793 = vadd.f32 %v5735, %v5783
        %v5794 = vadd.f32 %v5736, %v5785
        %v5795 = vadd.f32 %v5737, %v5787
        %s5796 = sld [smem:[#allocation10 + $0xa6]]
        %v5797 = vstv %s5796
        %v5798 = vmul.f32 %v5797, %v5609
        %v5799 = vmul.f32 %v5797, %v5610
        %v5800 = vmul.f32 %v5797, %v5611
        %v5801 = vmul.f32 %v5797, %v5612
        %v5802 = vmul.f32 %v5797, %v5613
        %v5808 = vrot.slane %v5798, 1
        %v5809 = vrot.slane %v5799, 1
        %v5810 = vsel %vm581, %v5808, %v5809
        %v5811 = vrot.slane %v5800, 1
        %v5812 = vsel %vm581, %v5809, %v5811
        %v5813 = vrot.slane %v5801, 1
        %v5814 = vsel %vm581, %v5811, %v5813
        %v5815 = vrot.slane %v5802, 1
        %v5816 = vsel %vm581, %v5813, %v5815
        %5817 = vrot.lane.b32.xlu0 %v5810, 127
        %v5818 = vpop.permute.xlu0 %5817
        %5819 = vrot.lane.b32.xlu0 %v5812, 127
        %v5820 = vpop.permute.xlu0 %5819
        %5821 = vrot.lane.b32.xlu0 %v5814, 127
        %v5822 = vpop.permute.xlu0 %5821
        %5823 = vrot.lane.b32.xlu0 %v5816, 127
        %v5824 = vpop.permute.xlu0 %5823
        %v5829 = vadd.f32 %v5763, %v5818
        %v5830 = vadd.f32 %v5764, %v5820
        %v5831 = vadd.f32 %v5765, %v5822
        %v5832 = vadd.f32 %v5766, %v5824
        %s5833 = sld [smem:[#allocation10 + $0xb8]]
        %v5834 = vstv %s5833
        %v5835 = vmul.f32 %v5834, %v5609
        %v5836 = vmul.f32 %v5834, %v5610
        %v5837 = vmul.f32 %v5834, %v5611
        %v5838 = vmul.f32 %v5834, %v5612
        %v5839 = vmul.f32 %v5834, %v5613
        %v5845 = vrot.slane %v5835, 1
        %v5846 = vrot.slane %v5836, 1
        %v5847 = vsel %vm581, %v5845, %v5846
        %v5848 = vrot.slane %v5837, 1
        %v5849 = vsel %vm581, %v5846, %v5848
        %v5850 = vrot.slane %v5838, 1
        %v5851 = vsel %vm581, %v5848, %v5850
        %v5852 = vrot.slane %v5839, 1
        %v5853 = vsel %vm581, %v5850, %v5852
        %5854 = vrot.lane.b32.xlu0 %v5847, 127
        %v5855 = vpop.permute.xlu0 %5854
        %5856 = vrot.lane.b32.xlu0 %v5849, 127
        %v5857 = vpop.permute.xlu0 %5856
        %5858 = vrot.lane.b32.xlu0 %v5851, 127
        %v5859 = vpop.permute.xlu0 %5858
        %5860 = vrot.lane.b32.xlu0 %v5853, 127
        %v5861 = vpop.permute.xlu0 %5860
        %v5866 = vadd.f32 %v5792, %v5855
        %v5867 = vadd.f32 %v5793, %v5857
        %v5868 = vadd.f32 %v5794, %v5859
        %v5869 = vadd.f32 %v5795, %v5861
        %s5870 = sld [smem:[#allocation10 + $0xa7]]
        %v5871 = vstv %s5870
        %v5872 = vmul.f32 %v5871, %v5609
        %v5873 = vmul.f32 %v5871, %v5610
        %v5874 = vmul.f32 %v5871, %v5611
        %v5875 = vmul.f32 %v5871, %v5612
        %v5876 = vmul.f32 %v5871, %v5613
        %v5882 = vrot.slane %v5872, 1
        %v5883 = vrot.slane %v5873, 1
        %v5884 = vsel %vm581, %v5882, %v5883
        %v5885 = vrot.slane %v5874, 1
        %v5886 = vsel %vm581, %v5883, %v5885
        %v5887 = vrot.slane %v5875, 1
        %v5888 = vsel %vm581, %v5885, %v5887
        %v5889 = vrot.slane %v5876, 1
        %v5890 = vsel %vm581, %v5887, %v5889
        %5891 = vrot.lane.b32.xlu0 %v5884, 126
        %v5892 = vpop.permute.xlu0 %5891
        %5893 = vrot.lane.b32.xlu0 %v5886, 126
        %v5894 = vpop.permute.xlu0 %5893
        %5895 = vrot.lane.b32.xlu0 %v5888, 126
        %v5896 = vpop.permute.xlu0 %5895
        %5897 = vrot.lane.b32.xlu0 %v5890, 126
        %v5898 = vpop.permute.xlu0 %5897
        %v5903 = vadd.f32 %v5829, %v5892
        %v5904 = vadd.f32 %v5830, %v5894
        %v5905 = vadd.f32 %v5831, %v5896
        %v5906 = vadd.f32 %v5832, %v5898
        %s5907 = sld [smem:[#allocation10 + $0xb9]]
        %v5908 = vstv %s5907
        %v5909 = vmul.f32 %v5908, %v5609
        %v5910 = vmul.f32 %v5908, %v5610
        %v5911 = vmul.f32 %v5908, %v5611
        %v5912 = vmul.f32 %v5908, %v5612
        %v5913 = vmul.f32 %v5908, %v5613
        %v5919 = vrot.slane %v5909, 1
        %v5920 = vrot.slane %v5910, 1
        %v5921 = vsel %vm581, %v5919, %v5920
        %v5922 = vrot.slane %v5911, 1
        %v5923 = vsel %vm581, %v5920, %v5922
        %v5924 = vrot.slane %v5912, 1
        %v5925 = vsel %vm581, %v5922, %v5924
        %v5926 = vrot.slane %v5913, 1
        %v5927 = vsel %vm581, %v5924, %v5926
        %5928 = vrot.lane.b32.xlu0 %v5921, 126
        %v5929 = vpop.permute.xlu0 %5928
        %5930 = vrot.lane.b32.xlu0 %v5923, 126
        %v5931 = vpop.permute.xlu0 %5930
        %5932 = vrot.lane.b32.xlu0 %v5925, 126
        %v5933 = vpop.permute.xlu0 %5932
        %5934 = vrot.lane.b32.xlu0 %v5927, 126
        %v5935 = vpop.permute.xlu0 %5934
        %v5940 = vadd.f32 %v5866, %v5929
        %v5941 = vadd.f32 %v5867, %v5931
        %v5942 = vadd.f32 %v5868, %v5933
        %v5943 = vadd.f32 %v5869, %v5935
        %s5944 = sld [smem:[#allocation10 + $0xa8]]
        %v5945 = vstv %s5944
        %v5946 = vmul.f32 %v5945, %v5609
        %v5947 = vmul.f32 %v5945, %v5610
        %v5948 = vmul.f32 %v5945, %v5611
        %v5949 = vmul.f32 %v5945, %v5612
        %v5950 = vmul.f32 %v5945, %v5613
        %v5956 = vrot.slane %v5946, 2
        %v5957 = vrot.slane %v5947, 2
        %v5958 = vsel %vm788, %v5956, %v5957
        %v5959 = vrot.slane %v5948, 2
        %v5960 = vsel %vm788, %v5957, %v5959
        %v5961 = vrot.slane %v5949, 2
        %v5962 = vsel %vm788, %v5959, %v5961
        %v5963 = vrot.slane %v5950, 2
        %v5964 = vsel %vm788, %v5961, %v5963
        %v5969 = vadd.f32 %v5903, %v5958
        %v5970 = vadd.f32 %v5904, %v5960
        %v5971 = vadd.f32 %v5905, %v5962
        %v5972 = vadd.f32 %v5906, %v5964
        %s5973 = sld [smem:[#allocation10 + $0xba]]
        %v5974 = vstv %s5973
        %v5975 = vmul.f32 %v5974, %v5609
        %v5976 = vmul.f32 %v5974, %v5610
        %v5977 = vmul.f32 %v5974, %v5611
        %v5978 = vmul.f32 %v5974, %v5612
        %v5979 = vmul.f32 %v5974, %v5613
        %v5985 = vrot.slane %v5975, 2
        %v5986 = vrot.slane %v5976, 2
        %v5987 = vsel %vm788, %v5985, %v5986
        %v5988 = vrot.slane %v5977, 2
        %v5989 = vsel %vm788, %v5986, %v5988
        %v5990 = vrot.slane %v5978, 2
        %v5991 = vsel %vm788, %v5988, %v5990
        %v5992 = vrot.slane %v5979, 2
        %v5993 = vsel %vm788, %v5990, %v5992
        %v5998 = vadd.f32 %v5940, %v5987
        %v5999 = vadd.f32 %v5941, %v5989
        %v6000 = vadd.f32 %v5942, %v5991
        %v6001 = vadd.f32 %v5943, %v5993
        %s6002 = sld [smem:[#allocation10 + $0xa9]]
        %v6003 = vstv %s6002
        %v6004 = vmul.f32 %v6003, %v5609
        %v6005 = vmul.f32 %v6003, %v5610
        %v6006 = vmul.f32 %v6003, %v5611
        %v6007 = vmul.f32 %v6003, %v5612
        %v6008 = vmul.f32 %v6003, %v5613
        %v6014 = vrot.slane %v6004, 2
        %v6015 = vrot.slane %v6005, 2
        %v6016 = vsel %vm788, %v6014, %v6015
        %v6017 = vrot.slane %v6006, 2
        %v6018 = vsel %vm788, %v6015, %v6017
        %v6019 = vrot.slane %v6007, 2
        %v6020 = vsel %vm788, %v6017, %v6019
        %v6021 = vrot.slane %v6008, 2
        %v6022 = vsel %vm788, %v6019, %v6021
        %6023 = vrot.lane.b32.xlu0 %v6016, 127
        %v6024 = vpop.permute.xlu0 %6023
        %6025 = vrot.lane.b32.xlu0 %v6018, 127
        %v6026 = vpop.permute.xlu0 %6025
        %6027 = vrot.lane.b32.xlu0 %v6020, 127
        %v6028 = vpop.permute.xlu0 %6027
        %6029 = vrot.lane.b32.xlu0 %v6022, 127
        %v6030 = vpop.permute.xlu0 %6029
        %v6035 = vadd.f32 %v5969, %v6024
        %v6036 = vadd.f32 %v5970, %v6026
        %v6037 = vadd.f32 %v5971, %v6028
        %v6038 = vadd.f32 %v5972, %v6030
        %s6039 = sld [smem:[#allocation10 + $0xbb]]
        %v6040 = vstv %s6039
        %v6041 = vmul.f32 %v6040, %v5609
        %v6042 = vmul.f32 %v6040, %v5610
        %v6043 = vmul.f32 %v6040, %v5611
        %v6044 = vmul.f32 %v6040, %v5612
        %v6045 = vmul.f32 %v6040, %v5613
        %v6051 = vrot.slane %v6041, 2
        %v6052 = vrot.slane %v6042, 2
        %v6053 = vsel %vm788, %v6051, %v6052
        %v6054 = vrot.slane %v6043, 2
        %v6055 = vsel %vm788, %v6052, %v6054
        %v6056 = vrot.slane %v6044, 2
        %v6057 = vsel %vm788, %v6054, %v6056
        %v6058 = vrot.slane %v6045, 2
        %v6059 = vsel %vm788, %v6056, %v6058
        %6060 = vrot.lane.b32.xlu0 %v6053, 127
        %v6061 = vpop.permute.xlu0 %6060
        %6062 = vrot.lane.b32.xlu0 %v6055, 127
        %v6063 = vpop.permute.xlu0 %6062
        %6064 = vrot.lane.b32.xlu0 %v6057, 127
        %v6065 = vpop.permute.xlu0 %6064
        %6066 = vrot.lane.b32.xlu0 %v6059, 127
        %v6067 = vpop.permute.xlu0 %6066
        %v6072 = vadd.f32 %v5998, %v6061
        %v6073 = vadd.f32 %v5999, %v6063
        %v6074 = vadd.f32 %v6000, %v6065
        %v6075 = vadd.f32 %v6001, %v6067
        %s6076 = sld [smem:[#allocation10 + $0xaa]]
        %v6077 = vstv %s6076
        %v6078 = vmul.f32 %v6077, %v5609
        %v6079 = vmul.f32 %v6077, %v5610
        %v6080 = vmul.f32 %v6077, %v5611
        %v6081 = vmul.f32 %v6077, %v5612
        %v6082 = vmul.f32 %v6077, %v5613
        %v6088 = vrot.slane %v6078, 2
        %v6089 = vrot.slane %v6079, 2
        %v6090 = vsel %vm788, %v6088, %v6089
        %v6091 = vrot.slane %v6080, 2
        %v6092 = vsel %vm788, %v6089, %v6091
        %v6093 = vrot.slane %v6081, 2
        %v6094 = vsel %vm788, %v6091, %v6093
        %v6095 = vrot.slane %v6082, 2
        %v6096 = vsel %vm788, %v6093, %v6095
        %6097 = vrot.lane.b32.xlu0 %v6090, 126
        %v6098 = vpop.permute.xlu0 %6097
        %6099 = vrot.lane.b32.xlu0 %v6092, 126
        %v6100 = vpop.permute.xlu0 %6099
        %6101 = vrot.lane.b32.xlu0 %v6094, 126
        %v6102 = vpop.permute.xlu0 %6101
        %6103 = vrot.lane.b32.xlu0 %v6096, 126
        %v6104 = vpop.permute.xlu0 %6103
        %v6109 = vadd.f32 %v6035, %v6098
        %v6110 = vadd.f32 %v6036, %v6100
        %v6111 = vadd.f32 %v6037, %v6102
        %v6112 = vadd.f32 %v6038, %v6104
        %s6113 = sld [smem:[#allocation10 + $0xbc]]
        %v6114 = vstv %s6113
        %v6115 = vmul.f32 %v6114, %v5609
        %v6116 = vmul.f32 %v6114, %v5610
        %v6117 = vmul.f32 %v6114, %v5611
        %v6118 = vmul.f32 %v6114, %v5612
        %v6119 = vmul.f32 %v6114, %v5613
        %v6125 = vrot.slane %v6115, 2
        %v6126 = vrot.slane %v6116, 2
        %v6127 = vsel %vm788, %v6125, %v6126
        %v6128 = vrot.slane %v6117, 2
        %v6129 = vsel %vm788, %v6126, %v6128
        %v6130 = vrot.slane %v6118, 2
        %v6131 = vsel %vm788, %v6128, %v6130
        %v6132 = vrot.slane %v6119, 2
        %v6133 = vsel %vm788, %v6130, %v6132
        %6134 = vrot.lane.b32.xlu0 %v6127, 126
        %v6135 = vpop.permute.xlu0 %6134
        %6136 = vrot.lane.b32.xlu0 %v6129, 126
        %v6137 = vpop.permute.xlu0 %6136
        %6138 = vrot.lane.b32.xlu0 %v6131, 126
        %v6139 = vpop.permute.xlu0 %6138
        %6140 = vrot.lane.b32.xlu0 %v6133, 126
        %v6141 = vpop.permute.xlu0 %6140
        %v6146 = vadd.f32 %v6072, %v6135
        %v6147 = vadd.f32 %v6073, %v6137
        %v6148 = vadd.f32 %v6074, %v6139
        %v6149 = vadd.f32 %v6075, %v6141
        %v6150 = vld [vmem:[%s3288] sm:$0xff]
        %v6151 = vld [vmem:[%s3288 + $0x8] sm:$0xff]
        %v6152 = vld [vmem:[%s3288 + $0x10] sm:$0xff]
        %v6153 = vld [vmem:[%s3288 + $0x18] sm:$0xff]
        %v6154 = vld [vmem:[%s3288 + $0x20] sm:$0x3]
        %s6155 = sld [smem:[#allocation10 + $0xab]]
        %v6156 = vstv %s6155
        %v6157 = vmul.f32 %v6156, %v6150
        %v6158 = vmul.f32 %v6156, %v6151
        %v6159 = vmul.f32 %v6156, %v6152
        %v6160 = vmul.f32 %v6156, %v6153
        %v6161 = vadd.f32 %v6109, %v6157
        %v6162 = vadd.f32 %v6110, %v6158
        %v6163 = vadd.f32 %v6111, %v6159
        %v6164 = vadd.f32 %v6112, %v6160
        %s6165 = sld [smem:[#allocation10 + $0xbd]]
        %v6166 = vstv %s6165
        %v6167 = vmul.f32 %v6166, %v6150
        %v6168 = vmul.f32 %v6166, %v6151
        %v6169 = vmul.f32 %v6166, %v6152
        %v6170 = vmul.f32 %v6166, %v6153
        %v6171 = vadd.f32 %v6146, %v6167
        %v6172 = vadd.f32 %v6147, %v6168
        %v6173 = vadd.f32 %v6148, %v6169
        %v6174 = vadd.f32 %v6149, %v6170
        %s6175 = sld [smem:[#allocation10 + $0xac]]
        %v6176 = vstv %s6175
        %v6177 = vmul.f32 %v6176, %v6150
        %v6178 = vmul.f32 %v6176, %v6151
        %v6179 = vmul.f32 %v6176, %v6152
        %v6180 = vmul.f32 %v6176, %v6153
        %6185 = vrot.lane.b32.xlu0 %v6177, 127
        %v6186 = vpop.permute.xlu0 %6185
        %6187 = vrot.lane.b32.xlu0 %v6178, 127
        %v6188 = vpop.permute.xlu0 %6187
        %6189 = vrot.lane.b32.xlu0 %v6179, 127
        %v6190 = vpop.permute.xlu0 %6189
        %6191 = vrot.lane.b32.xlu0 %v6180, 127
        %v6192 = vpop.permute.xlu0 %6191
        %v6197 = vadd.f32 %v6161, %v6186
        %v6198 = vadd.f32 %v6162, %v6188
        %v6199 = vadd.f32 %v6163, %v6190
        %v6200 = vadd.f32 %v6164, %v6192
        %s6201 = sld [smem:[#allocation10 + $0xbe]]
        %v6202 = vstv %s6201
        %v6203 = vmul.f32 %v6202, %v6150
        %v6204 = vmul.f32 %v6202, %v6151
        %v6205 = vmul.f32 %v6202, %v6152
        %v6206 = vmul.f32 %v6202, %v6153
        %6211 = vrot.lane.b32.xlu0 %v6203, 127
        %v6212 = vpop.permute.xlu0 %6211
        %6213 = vrot.lane.b32.xlu0 %v6204, 127
        %v6214 = vpop.permute.xlu0 %6213
        %6215 = vrot.lane.b32.xlu0 %v6205, 127
        %v6216 = vpop.permute.xlu0 %6215
        %6217 = vrot.lane.b32.xlu0 %v6206, 127
        %v6218 = vpop.permute.xlu0 %6217
        %v6223 = vadd.f32 %v6171, %v6212
        %v6224 = vadd.f32 %v6172, %v6214
        %v6225 = vadd.f32 %v6173, %v6216
        %v6226 = vadd.f32 %v6174, %v6218
        %s6227 = sld [smem:[#allocation10 + $0xad]]
        %v6228 = vstv %s6227
        %v6229 = vmul.f32 %v6228, %v6150
        %v6230 = vmul.f32 %v6228, %v6151
        %v6231 = vmul.f32 %v6228, %v6152
        %v6232 = vmul.f32 %v6228, %v6153
        %6237 = vrot.lane.b32.xlu0 %v6229, 126
        %v6238 = vpop.permute.xlu0 %6237
        %6239 = vrot.lane.b32.xlu0 %v6230, 126
        %v6240 = vpop.permute.xlu0 %6239
        %6241 = vrot.lane.b32.xlu0 %v6231, 126
        %v6242 = vpop.permute.xlu0 %6241
        %6243 = vrot.lane.b32.xlu0 %v6232, 126
        %v6244 = vpop.permute.xlu0 %6243
        %v6249 = vadd.f32 %v6197, %v6238
        %v6250 = vadd.f32 %v6198, %v6240
        %v6251 = vadd.f32 %v6199, %v6242
        %v6252 = vadd.f32 %v6200, %v6244
        %s6253 = sld [smem:[#allocation10 + $0xbf]]
        %v6254 = vstv %s6253
        %v6255 = vmul.f32 %v6254, %v6150
        %v6256 = vmul.f32 %v6254, %v6151
        %v6257 = vmul.f32 %v6254, %v6152
        %v6258 = vmul.f32 %v6254, %v6153
        %6263 = vrot.lane.b32.xlu0 %v6255, 126
        %v6264 = vpop.permute.xlu0 %6263
        %6265 = vrot.lane.b32.xlu0 %v6256, 126
        %v6266 = vpop.permute.xlu0 %6265
        %6267 = vrot.lane.b32.xlu0 %v6257, 126
        %v6268 = vpop.permute.xlu0 %6267
        %6269 = vrot.lane.b32.xlu0 %v6258, 126
        %v6270 = vpop.permute.xlu0 %6269
        %v6275 = vadd.f32 %v6223, %v6264
        %v6276 = vadd.f32 %v6224, %v6266
        %v6277 = vadd.f32 %v6225, %v6268
        %v6278 = vadd.f32 %v6226, %v6270
        %s6279 = sld [smem:[#allocation10 + $0xae]]
        %v6280 = vstv %s6279
        %v6281 = vmul.f32 %v6280, %v6150
        %v6282 = vmul.f32 %v6280, %v6151
        %v6283 = vmul.f32 %v6280, %v6152
        %v6284 = vmul.f32 %v6280, %v6153
        %v6285 = vmul.f32 %v6280, %v6154
        %v6291 = vrot.slane %v6281, 1
        %v6292 = vrot.slane %v6282, 1
        %v6293 = vsel %vm581, %v6291, %v6292
        %v6294 = vrot.slane %v6283, 1
        %v6295 = vsel %vm581, %v6292, %v6294
        %v6296 = vrot.slane %v6284, 1
        %v6297 = vsel %vm581, %v6294, %v6296
        %v6298 = vrot.slane %v6285, 1
        %v6299 = vsel %vm581, %v6296, %v6298
        %v6304 = vadd.f32 %v6249, %v6293
        %v6305 = vadd.f32 %v6250, %v6295
        %v6306 = vadd.f32 %v6251, %v6297
        %v6307 = vadd.f32 %v6252, %v6299
        %s6308 = sld [smem:[#allocation10 + $0xc0]]
        %v6309 = vstv %s6308
        %v6310 = vmul.f32 %v6309, %v6150
        %v6311 = vmul.f32 %v6309, %v6151
        %v6312 = vmul.f32 %v6309, %v6152
        %v6313 = vmul.f32 %v6309, %v6153
        %v6314 = vmul.f32 %v6309, %v6154
        %v6320 = vrot.slane %v6310, 1
        %v6321 = vrot.slane %v6311, 1
        %v6322 = vsel %vm581, %v6320, %v6321
        %v6323 = vrot.slane %v6312, 1
        %v6324 = vsel %vm581, %v6321, %v6323
        %v6325 = vrot.slane %v6313, 1
        %v6326 = vsel %vm581, %v6323, %v6325
        %v6327 = vrot.slane %v6314, 1
        %v6328 = vsel %vm581, %v6325, %v6327
        %v6333 = vadd.f32 %v6275, %v6322
        %v6334 = vadd.f32 %v6276, %v6324
        %v6335 = vadd.f32 %v6277, %v6326
        %v6336 = vadd.f32 %v6278, %v6328
        %s6337 = sld [smem:[#allocation10 + $0xaf]]
        %v6338 = vstv %s6337
        %v6339 = vmul.f32 %v6338, %v6150
        %v6340 = vmul.f32 %v6338, %v6151
        %v6341 = vmul.f32 %v6338, %v6152
        %v6342 = vmul.f32 %v6338, %v6153
        %v6343 = vmul.f32 %v6338, %v6154
        %v6349 = vrot.slane %v6339, 1
        %v6350 = vrot.slane %v6340, 1
        %v6351 = vsel %vm581, %v6349, %v6350
        %v6352 = vrot.slane %v6341, 1
        %v6353 = vsel %vm581, %v6350, %v6352
        %v6354 = vrot.slane %v6342, 1
        %v6355 = vsel %vm581, %v6352, %v6354
        %v6356 = vrot.slane %v6343, 1
        %v6357 = vsel %vm581, %v6354, %v6356
        %6358 = vrot.lane.b32.xlu0 %v6351, 127
        %v6359 = vpop.permute.xlu0 %6358
        %6360 = vrot.lane.b32.xlu0 %v6353, 127
        %v6361 = vpop.permute.xlu0 %6360
        %6362 = vrot.lane.b32.xlu0 %v6355, 127
        %v6363 = vpop.permute.xlu0 %6362
        %6364 = vrot.lane.b32.xlu0 %v6357, 127
        %v6365 = vpop.permute.xlu0 %6364
        %v6370 = vadd.f32 %v6304, %v6359
        %v6371 = vadd.f32 %v6305, %v6361
        %v6372 = vadd.f32 %v6306, %v6363
        %v6373 = vadd.f32 %v6307, %v6365
        %s6374 = sld [smem:[#allocation10 + $0xc1]]
        %v6375 = vstv %s6374
        %v6376 = vmul.f32 %v6375, %v6150
        %v6377 = vmul.f32 %v6375, %v6151
        %v6378 = vmul.f32 %v6375, %v6152
        %v6379 = vmul.f32 %v6375, %v6153
        %v6380 = vmul.f32 %v6375, %v6154
        %v6386 = vrot.slane %v6376, 1
        %v6387 = vrot.slane %v6377, 1
        %v6388 = vsel %vm581, %v6386, %v6387
        %v6389 = vrot.slane %v6378, 1
        %v6390 = vsel %vm581, %v6387, %v6389
        %v6391 = vrot.slane %v6379, 1
        %v6392 = vsel %vm581, %v6389, %v6391
        %v6393 = vrot.slane %v6380, 1
        %v6394 = vsel %vm581, %v6391, %v6393
        %6395 = vrot.lane.b32.xlu0 %v6388, 127
        %v6396 = vpop.permute.xlu0 %6395
        %6397 = vrot.lane.b32.xlu0 %v6390, 127
        %v6398 = vpop.permute.xlu0 %6397
        %6399 = vrot.lane.b32.xlu0 %v6392, 127
        %v6400 = vpop.permute.xlu0 %6399
        %6401 = vrot.lane.b32.xlu0 %v6394, 127
        %v6402 = vpop.permute.xlu0 %6401
        %v6407 = vadd.f32 %v6333, %v6396
        %v6408 = vadd.f32 %v6334, %v6398
        %v6409 = vadd.f32 %v6335, %v6400
        %v6410 = vadd.f32 %v6336, %v6402
        %s6411 = sld [smem:[#allocation10 + $0xb0]]
        %v6412 = vstv %s6411
        %v6413 = vmul.f32 %v6412, %v6150
        %v6414 = vmul.f32 %v6412, %v6151
        %v6415 = vmul.f32 %v6412, %v6152
        %v6416 = vmul.f32 %v6412, %v6153
        %v6417 = vmul.f32 %v6412, %v6154
        %v6423 = vrot.slane %v6413, 1
        %v6424 = vrot.slane %v6414, 1
        %v6425 = vsel %vm581, %v6423, %v6424
        %v6426 = vrot.slane %v6415, 1
        %v6427 = vsel %vm581, %v6424, %v6426
        %v6428 = vrot.slane %v6416, 1
        %v6429 = vsel %vm581, %v6426, %v6428
        %v6430 = vrot.slane %v6417, 1
        %v6431 = vsel %vm581, %v6428, %v6430
        %6432 = vrot.lane.b32.xlu0 %v6425, 126
        %v6433 = vpop.permute.xlu0 %6432
        %6434 = vrot.lane.b32.xlu0 %v6427, 126
        %v6435 = vpop.permute.xlu0 %6434
        %6436 = vrot.lane.b32.xlu0 %v6429, 126
        %v6437 = vpop.permute.xlu0 %6436
        %6438 = vrot.lane.b32.xlu0 %v6431, 126
        %v6439 = vpop.permute.xlu0 %6438
        %v6444 = vadd.f32 %v6370, %v6433
        %v6445 = vadd.f32 %v6371, %v6435
        %v6446 = vadd.f32 %v6372, %v6437
        %v6447 = vadd.f32 %v6373, %v6439
        %s6448 = sld [smem:[#allocation10 + $0xc2]]
        %v6449 = vstv %s6448
        %v6450 = vmul.f32 %v6449, %v6150
        %v6451 = vmul.f32 %v6449, %v6151
        %v6452 = vmul.f32 %v6449, %v6152
        %v6453 = vmul.f32 %v6449, %v6153
        %v6454 = vmul.f32 %v6449, %v6154
        %v6460 = vrot.slane %v6450, 1
        %v6461 = vrot.slane %v6451, 1
        %v6462 = vsel %vm581, %v6460, %v6461
        %v6463 = vrot.slane %v6452, 1
        %v6464 = vsel %vm581, %v6461, %v6463
        %v6465 = vrot.slane %v6453, 1
        %v6466 = vsel %vm581, %v6463, %v6465
        %v6467 = vrot.slane %v6454, 1
        %v6468 = vsel %vm581, %v6465, %v6467
        %6469 = vrot.lane.b32.xlu0 %v6462, 126
        %v6470 = vpop.permute.xlu0 %6469
        %6471 = vrot.lane.b32.xlu0 %v6464, 126
        %v6472 = vpop.permute.xlu0 %6471
        %6473 = vrot.lane.b32.xlu0 %v6466, 126
        %v6474 = vpop.permute.xlu0 %6473
        %6475 = vrot.lane.b32.xlu0 %v6468, 126
        %v6476 = vpop.permute.xlu0 %6475
        %v6481 = vadd.f32 %v6407, %v6470
        %v6482 = vadd.f32 %v6408, %v6472
        %v6483 = vadd.f32 %v6409, %v6474
        %v6484 = vadd.f32 %v6410, %v6476
        %s6485 = sld [smem:[#allocation10 + $0xb1]]
        %v6486 = vstv %s6485
        %v6487 = vmul.f32 %v6486, %v6150
        %v6488 = vmul.f32 %v6486, %v6151
        %v6489 = vmul.f32 %v6486, %v6152
        %v6490 = vmul.f32 %v6486, %v6153
        %v6491 = vmul.f32 %v6486, %v6154
        %v6497 = vrot.slane %v6487, 2
        %v6498 = vrot.slane %v6488, 2
        %v6499 = vsel %vm788, %v6497, %v6498
        %v6500 = vrot.slane %v6489, 2
        %v6501 = vsel %vm788, %v6498, %v6500
        %v6502 = vrot.slane %v6490, 2
        %v6503 = vsel %vm788, %v6500, %v6502
        %v6504 = vrot.slane %v6491, 2
        %v6505 = vsel %vm788, %v6502, %v6504
        %v6510 = vadd.f32 %v6444, %v6499
        %v6511 = vadd.f32 %v6445, %v6501
        %v6512 = vadd.f32 %v6446, %v6503
        %v6513 = vadd.f32 %v6447, %v6505
        %s6514 = sld [smem:[#allocation10 + $0xc3]]
        %v6515 = vstv %s6514
        %v6516 = vmul.f32 %v6515, %v6150
        %v6517 = vmul.f32 %v6515, %v6151
        %v6518 = vmul.f32 %v6515, %v6152
        %v6519 = vmul.f32 %v6515, %v6153
        %v6520 = vmul.f32 %v6515, %v6154
        %v6526 = vrot.slane %v6516, 2
        %v6527 = vrot.slane %v6517, 2
        %v6528 = vsel %vm788, %v6526, %v6527
        %v6529 = vrot.slane %v6518, 2
        %v6530 = vsel %vm788, %v6527, %v6529
        %v6531 = vrot.slane %v6519, 2
        %v6532 = vsel %vm788, %v6529, %v6531
        %v6533 = vrot.slane %v6520, 2
        %v6534 = vsel %vm788, %v6531, %v6533
        %v6539 = vadd.f32 %v6481, %v6528
        %v6540 = vadd.f32 %v6482, %v6530
        %v6541 = vadd.f32 %v6483, %v6532
        %v6542 = vadd.f32 %v6484, %v6534
        %s6543 = sld [smem:[#allocation10 + $0xb2]]
        %v6544 = vstv %s6543
        %v6545 = vmul.f32 %v6544, %v6150
        %v6546 = vmul.f32 %v6544, %v6151
        %v6547 = vmul.f32 %v6544, %v6152
        %v6548 = vmul.f32 %v6544, %v6153
        %v6549 = vmul.f32 %v6544, %v6154
        %v6555 = vrot.slane %v6545, 2
        %v6556 = vrot.slane %v6546, 2
        %v6557 = vsel %vm788, %v6555, %v6556
        %v6558 = vrot.slane %v6547, 2
        %v6559 = vsel %vm788, %v6556, %v6558
        %v6560 = vrot.slane %v6548, 2
        %v6561 = vsel %vm788, %v6558, %v6560
        %v6562 = vrot.slane %v6549, 2
        %v6563 = vsel %vm788, %v6560, %v6562
        %6564 = vrot.lane.b32.xlu0 %v6557, 127
        %v6565 = vpop.permute.xlu0 %6564
        %6566 = vrot.lane.b32.xlu0 %v6559, 127
        %v6567 = vpop.permute.xlu0 %6566
        %6568 = vrot.lane.b32.xlu0 %v6561, 127
        %v6569 = vpop.permute.xlu0 %6568
        %6570 = vrot.lane.b32.xlu0 %v6563, 127
        %v6571 = vpop.permute.xlu0 %6570
        %v6576 = vadd.f32 %v6510, %v6565
        %v6577 = vadd.f32 %v6511, %v6567
        %v6578 = vadd.f32 %v6512, %v6569
        %v6579 = vadd.f32 %v6513, %v6571
        %s6580 = sld [smem:[#allocation10 + $0xc4]]
        %v6581 = vstv %s6580
        %v6582 = vmul.f32 %v6581, %v6150
        %v6583 = vmul.f32 %v6581, %v6151
        %v6584 = vmul.f32 %v6581, %v6152
        %v6585 = vmul.f32 %v6581, %v6153
        %v6586 = vmul.f32 %v6581, %v6154
        %v6592 = vrot.slane %v6582, 2
        %v6593 = vrot.slane %v6583, 2
        %v6594 = vsel %vm788, %v6592, %v6593
        %v6595 = vrot.slane %v6584, 2
        %v6596 = vsel %vm788, %v6593, %v6595
        %v6597 = vrot.slane %v6585, 2
        %v6598 = vsel %vm788, %v6595, %v6597
        %v6599 = vrot.slane %v6586, 2
        %v6600 = vsel %vm788, %v6597, %v6599
        %6601 = vrot.lane.b32.xlu0 %v6594, 127
        %v6602 = vpop.permute.xlu0 %6601
        %6603 = vrot.lane.b32.xlu0 %v6596, 127
        %v6604 = vpop.permute.xlu0 %6603
        %6605 = vrot.lane.b32.xlu0 %v6598, 127
        %v6606 = vpop.permute.xlu0 %6605
        %6607 = vrot.lane.b32.xlu0 %v6600, 127
        %v6608 = vpop.permute.xlu0 %6607
        %v6613 = vadd.f32 %v6539, %v6602
        %v6614 = vadd.f32 %v6540, %v6604
        %v6615 = vadd.f32 %v6541, %v6606
        %v6616 = vadd.f32 %v6542, %v6608
        %s6617 = sld [smem:[#allocation10 + $0xb3]]
        %v6618 = vstv %s6617
        %v6619 = vmul.f32 %v6618, %v6150
        %v6620 = vmul.f32 %v6618, %v6151
        %v6621 = vmul.f32 %v6618, %v6152
        %v6622 = vmul.f32 %v6618, %v6153
        %v6623 = vmul.f32 %v6618, %v6154
        %v6629 = vrot.slane %v6619, 2
        %v6630 = vrot.slane %v6620, 2
        %v6631 = vsel %vm788, %v6629, %v6630
        %v6632 = vrot.slane %v6621, 2
        %v6633 = vsel %vm788, %v6630, %v6632
        %v6634 = vrot.slane %v6622, 2
        %v6635 = vsel %vm788, %v6632, %v6634
        %v6636 = vrot.slane %v6623, 2
        %v6637 = vsel %vm788, %v6634, %v6636
        %6638 = vrot.lane.b32.xlu0 %v6631, 126
        %v6639 = vpop.permute.xlu0 %6638
        %6640 = vrot.lane.b32.xlu0 %v6633, 126
        %v6641 = vpop.permute.xlu0 %6640
        %6642 = vrot.lane.b32.xlu0 %v6635, 126
        %v6643 = vpop.permute.xlu0 %6642
        %6644 = vrot.lane.b32.xlu0 %v6637, 126
        %v6645 = vpop.permute.xlu0 %6644
        %v6650 = vadd.f32 %v6576, %v6639
        %v6651 = vadd.f32 %v6577, %v6641
        %v6652 = vadd.f32 %v6578, %v6643
        %v6653 = vadd.f32 %v6579, %v6645
        %s6654 = sld [smem:[#allocation10 + $0xc5]]
        %v6655 = vstv %s6654
        %v6656 = vmul.f32 %v6655, %v6150
        %v6657 = vmul.f32 %v6655, %v6151
        %v6658 = vmul.f32 %v6655, %v6152
        %v6659 = vmul.f32 %v6655, %v6153
        %v6660 = vmul.f32 %v6655, %v6154
        %v6666 = vrot.slane %v6656, 2
        %v6667 = vrot.slane %v6657, 2
        %v6668 = vsel %vm788, %v6666, %v6667
        %v6669 = vrot.slane %v6658, 2
        %v6670 = vsel %vm788, %v6667, %v6669
        %v6671 = vrot.slane %v6659, 2
        %v6672 = vsel %vm788, %v6669, %v6671
        %v6673 = vrot.slane %v6660, 2
        %v6674 = vsel %vm788, %v6671, %v6673
        %6675 = vrot.lane.b32.xlu0 %v6668, 126
        %v6676 = vpop.permute.xlu0 %6675
        %6677 = vrot.lane.b32.xlu0 %v6670, 126
        %v6678 = vpop.permute.xlu0 %6677
        %6679 = vrot.lane.b32.xlu0 %v6672, 126
        %v6680 = vpop.permute.xlu0 %6679
        %6681 = vrot.lane.b32.xlu0 %v6674, 126
        %v6682 = vpop.permute.xlu0 %6681
        %v6687 = vadd.f32 %v6613, %v6676
        %v6688 = vadd.f32 %v6614, %v6678
        %v6689 = vadd.f32 %v6615, %v6680
        %v6690 = vadd.f32 %v6616, %v6682
        %s6691 = sld [smem:[#allocation11 + $0x8]]
        %v6692 = vstv %s6691
        %v6693 = vmul.f32 %v6650, %v6692
        %v6694 = vmul.f32 %v6651, %v6692
        %v6695 = vmul.f32 %v6652, %v6692
        %v6696 = vmul.f32 %v6653, %v6692
        %s6697 = sld [smem:[#allocation12 + $0x8]]
        %v6698 = vstv %s6697
        %v6699 = vadd.f32 %v6693, %v6698
        %v6700 = vadd.f32 %v6694, %v6698
        %v6701 = vadd.f32 %v6695, %v6698
        %v6702 = vadd.f32 %v6696, %v6698
        %v6703 = vadd.f32 %v6699, %v4391
        %v6704 = vadd.f32 %v6700, %v4392
        %v6705 = vadd.f32 %v6701, %v4393
        %v6706 = vadd.f32 %v6702, %v4394
        %v6707 = vmax.f32 %v6703, 0.0
        %v6708 = vmax.f32 %v6704, 0.0
        %v6709 = vmax.f32 %v6705, 0.0
        %v6710 = vmax.f32 %v6706, 0.0
        %s6711 = sld [smem:[#allocation11 + $0x9]]
        %v6712 = vstv %s6711
        %v6713 = vmul.f32 %v6687, %v6712
        %v6714 = vmul.f32 %v6688, %v6712
        %v6715 = vmul.f32 %v6689, %v6712
        %v6716 = vmul.f32 %v6690, %v6712
        %s6717 = sld [smem:[#allocation12 + $0x9]]
        %v6718 = vstv %s6717
        %v6719 = vadd.f32 %v6713, %v6718
        %v6720 = vadd.f32 %v6714, %v6718
        %v6721 = vadd.f32 %v6715, %v6718
        %v6722 = vadd.f32 %v6716, %v6718
        %v6723 = vadd.f32 %v6719, %v4411
        %v6724 = vadd.f32 %v6720, %v4412
        %v6725 = vadd.f32 %v6721, %v4413
        %v6726 = vadd.f32 %v6722, %v4414
        %v6727 = vmax.f32 %v6723, 0.0
        %v6728 = vmax.f32 %v6724, 0.0
        %v6729 = vmax.f32 %v6725, 0.0
        %v6730 = vmax.f32 %v6726, 0.0
        %v6731 = vld [vmem:[#allocation14] sm:$0x1]
        %vm6732 = vcmask 261120
        %v6733 = vsel %vm6732, %v6707, 0.0
        %v6734 = vsel %vm6732, %v6708, 0.0
        %v6735 = vadd.f32 %v6733, %v6734
        %v6736 = vsel %vm6732, %v6709, 0.0
        %v6737 = vadd.f32 %v6735, %v6736
        %v6738 = vsel %vm6732, %v6710, 0.0
        %v6739 = vadd.f32 %v6737, %v6738
        %v6740 = vrot.slane %v6739, 4
        %v6741 = vadd.f32 %v6739, %v6740
        %v6742 = vrot.slane %v6741, 2
        %v6743 = vadd.f32 %v6741, %v6742
        %v6744 = vrot.slane %v6743, 1
        %v6745 = vadd.f32 %v6743, %v6744
        %v6746 = vsel %vm6732, %v6745, 0.0
        %6747 = vadd.xlane.f32.xlu0 %v6746
        %v6748 = vpop.xlane.xlu0 %6747
        %v6749 = vmul.f32 %v6748, 0.0009765625
        %v6750 = vld [vmem:[%s4] sm:$0x1]
        %v6751 = vmul.f32 %v6749, %v6750
        %v6752 = vadd.f32 %v6731, %v6751
        %v6753 = vsel %vm6732, %v6727, 0.0
        %v6754 = vsel %vm6732, %v6728, 0.0
        %v6755 = vadd.f32 %v6753, %v6754
        %v6756 = vsel %vm6732, %v6729, 0.0
        %v6757 = vadd.f32 %v6755, %v6756
        %v6758 = vsel %vm6732, %v6730, 0.0
        %v6759 = vadd.f32 %v6757, %v6758
        %v6760 = vrot.slane %v6759, 4
        %v6761 = vadd.f32 %v6759, %v6760
        %v6762 = vrot.slane %v6761, 2
        %v6763 = vadd.f32 %v6761, %v6762
        %v6764 = vrot.slane %v6763, 1
        %v6765 = vadd.f32 %v6763, %v6764
        %v6766 = vsel %vm6732, %v6765, 0.0
        %6767 = vadd.xlane.f32.xlu0 %v6766
        %v6768 = vpop.xlane.xlu0 %6767
        %v6769 = vmul.f32 %v6768, 0.0009765625
        %v6770 = vld [vmem:[%s4 + $0x1] sm:$0x1]
        %v6771 = vmul.f32 %v6769, %v6770
        %v6772 = vadd.f32 %v6752, %v6771
        %vm6773 = vcmask 73728
        %6774 = vst.msk [vmem:[%s325] sm:$0x1] %vm6773, %v6772
        %s6775 = sand.u32 %s166, 1
        %s6776 = scalar_lea.sflag [#allocation7], %s6775
        %s6777 = sand.u32 %s166, 1
        %s6778 = scalar_lea.vmem [#allocation16], %s6777
        // Predicated region
        $region65: #{resnet_forward.1} parent=43 // pred_check
          %p6779 = pneg %p176
        $region66: #{resnet_forward.1} parent=43 // pred_check_branch
          %6781 = sbr.rel (%p6779) target = $region68
        $region67: #{resnet_forward.1} parent=43 // pred_region
          %6783 = vsyncadd %s6776, 0
          %s6784 = scalar_lea.hbm %s6, %s27
          %s6786 = sshll.u32 %s6778, 4
          %s6787 = int_to_ptr.vmem [resolvable:$true] %s6786
          %s6788 = sshll.u32 %s6784, 4
          %s6789 = int_to_ptr.hbm [resolvable:$true] %s6788
          %6791 = dma.vmem_to_hbm [thread:$0]  %s6787, 16, %s6789, %s6776
        $region68: #{resnet_forward.1} parent=43 // pred_fallthru
          _
      $region44: #{resnet_forward.1} parent=5 // pred_fallthru
        _
      %p6792 = scmp.le.s32.totalorder 2, %s22
      // Predicated region
      $region69: #{resnet_forward.1} parent=5 // pred_check
        %p6793 = pneg %p6792
      $region70: #{resnet_forward.1} parent=5 // pred_check_branch
        %6795 = sbr.rel (%p6793) target = $region72
      $region71: #{resnet_forward.1} parent=5 // pred_region
        %s6796 = ssub.s32 %s22, 2
        // Predicated region
        $region73: #{resnet_forward.1} parent=71 // pred_check
          %p6797 = pneg %p182
        $region74: #{resnet_forward.1} parent=71 // pred_check_branch
          %6799 = sbr.rel (%p6797) target = $region76
        $region75: #{resnet_forward.1} parent=71 // pred_region
          %s6800 = sand.u32 %s167, 1
          %s6801 = scalar_lea.sflag [#allocation7], %s6800
          %s6802 = sand.u32 %s167, 1
          %s6803 = scalar_lea.vmem [#allocation16], %s6802
          %6805 = dma.done %s6801, 16
        $region76: #{resnet_forward.1} parent=71 // pred_fallthru
          _
      $region72: #{resnet_forward.1} parent=5 // pred_fallthru
        _
    $region6: #{resnet_forward.1} parent=1 // loop_footer
      %s26 = sadd.s32 1, %s22
    $region7: #{resnet_forward.1} parent=1 // loop_footer_branch
      %21 = sbr.rel target = $region3
    $region8: #{resnet_forward.1} parent=1 // loop_exit
      _
    %6806 = vsyncpa [#allocation6], 1
    %s6807 = scalar_lea.sflag [#allocation6], 1
    %6808 = vsyncpa %s6807, 1
    %6809 = vsyncpa [#allocation15], 1
    %6810 = vsyncpa [#allocation7], 1
    %s6811 = scalar_lea.sflag [#allocation7], 1
    %6812 = vsyncpa %s6811, 1
    %6813 = vsyncpa [#allocation8], 1
    %s6814 = scalar_lea.sflag [#allocation8], 1
    %6815 = vsyncpa %s6814, 1
    %6816 = vsyncpa [#allocation13], 1
    %6817 = vsyncpa [#allocation9], 1
    %s6818 = scalar_lea.sflag [#allocation9], 1
    %6819 = vsyncpa %s6818, 1

</llo_original>
